<compile_context>
chip_gen: v5e
topology: v5e:2x2
jax: 0.10.0
libtpu: 0.0.40
codegen_flags: <defaults>
</compile_context>

<pallas_src>
import functools

import jax
import jax.numpy as jnp
from jax.experimental import pallas as pl
from jax.experimental.pallas import tpu as pltpu

LN_EPS = 1e-5  # torch.nn.LayerNorm default
F32 = jnp.float32
BF16 = jnp.bfloat16


# ----------------------------- small helpers -----------------------------

def _default_vmem_limit():
    """Raise the scoped-VMEM ceiling above the 16/32 MiB defaults, with headroom."""
    try:
        cap = pltpu.get_tpu_info().vmem_capacity_bytes
        return int(min(cap * 3 // 4, 100 * 1024 * 1024))
    except Exception:
        return 56 * 1024 * 1024  # safe on every generation (v7x physical = 64 MiB)


_VMEM_LIMIT = _default_vmem_limit()


def _cparams(dimension_semantics):
    return pltpu.CompilerParams(dimension_semantics=dimension_semantics,
                                vmem_limit_bytes=_VMEM_LIMIT)


def _pick_row_tile(M):
    """Largest row tile (mult of 8, <=512) dividing M; prefer >=2 blocks (megacore)."""
    tm = M
    for t in (512, 256, 128, 64, 32, 16, 8):
        if M % t == 0:
            tm = t
            break
    if M // tm < 2 and tm % 16 == 0:
        tm //= 2
    return tm


def _pick_seq_tile(S):
    """Sq tile (mult of 8, <=256) dividing S, else the full S."""
    for t in (256, 128, 64, 32, 16, 8):
        if S % t == 0:
            return t
    return S


def _layernorm(z, g, b):
    mu = jnp.mean(z, axis=-1, keepdims=True)
    d = z - mu
    var = jnp.mean(d * d, axis=-1, keepdims=True)
    return d * jax.lax.rsqrt(var + LN_EPS) * g + b


# ----------------------------- in-kernel attention core -----------------------------

def _project_kv_to_scratch(xk_bf16, xv_bf16, wk_ref, wv_ref, bk_ref, bv_ref,
                           k_scr, v_scr, nhead):
    """Head-major K/V projections into (nhead, Sk, Dh) bf16 scratch (full K=D depth)."""
    for h in range(nhead):
        kh = jnp.dot(xk_bf16, wk_ref[h], preferred_element_type=F32) + bk_ref[h].astype(F32)
        vh = jnp.dot(xv_bf16, wv_ref[h], preferred_element_type=F32) + bv_ref[h].astype(F32)
        k_scr[h] = kh.astype(BF16)
        v_scr[h] = vh.astype(BF16)


def _mha_from_scratch(xq_f32, wq_ref, bq_ref, k_scr, v_scr, wo_ref, bo_ref,
                      nhead, scale):
    """Per-head SDPA against K/V scratch; returns (tq, D) f32 after output projection."""
    tq, D = xq_f32.shape
    Dh = D // nhead
    dense_out_proj = Dh >= 64            # single K=D output matmul when heads are wide
    xq = xq_f32.astype(BF16)

    heads = []
    acc = jnp.zeros((tq, D), F32)
    for h in range(nhead):
        qh = jnp.dot(xq, wq_ref[h], preferred_element_type=F32) + bq_ref[h].astype(F32)
        kh = k_scr[h]                                                    # (Sk, Dh) bf16
        s = jax.lax.dot_general(qh.astype(BF16), kh, (((1,), (1,)), ((), ())),
                                preferred_element_type=F32) * scale     # (tq, Sk)
        s = s - jnp.max(s, axis=-1, keepdims=True)
        p = jnp.exp(s)
        p = p / jnp.sum(p, axis=-1, keepdims=True)                      # exact softmax
        oh = jnp.dot(p.astype(BF16), v_scr[h], preferred_element_type=F32)  # (tq, Dh)
        if dense_out_proj:
            heads.append(oh)
        else:
            lo, hi = h * Dh, (h + 1) * Dh
            acc = acc + jnp.dot(oh.astype(BF16), wo_ref[lo:hi, :],
                                preferred_element_type=F32)
    if dense_out_proj:
        cat = jnp.concatenate(heads, axis=-1)                            # (tq, D)
        acc = jnp.dot(cat.astype(BF16), wo_ref[...], preferred_element_type=F32)
    return acc + bo_ref[...].astype(F32)


# ----------------------------- Pallas kernels -----------------------------

def _self_attn_res_ln_kernel(src_ref, wq_ref, wk_ref, wv_ref,
                             bq_ref, bk_ref, bv_ref,
                             wo_ref, bo_ref, g_ref, b_ref,
                             o_ref, k_scr, v_scr, *, nhead, scale, tq):
    """out[qtile] = LayerNorm(src + MHA(src, src, src)); src read once per batch elem."""
    qi = pl.program_id(1)

    @pl.when(qi == 0)
    def _():  # K/V projections once per batch element, reused across Sq tiles
        xk = src_ref[0].astype(BF16)                       # (S, D)
        _project_kv_to_scratch(xk, xk, wk_ref, wv_ref, bk_ref, bv_ref,
                               k_scr, v_scr, nhead)

    row0 = pl.multiple_of(qi * tq, 8)
    x_tile = src_ref[0, pl.ds(row0, tq), :].astype(F32)    # residual & Q rows (tq, D)
    attn = _mha_from_scratch(x_tile, wq_ref, bq_ref, k_scr, v_scr,
                             wo_ref, bo_ref, nhead, scale)
    z = x_tile + attn
    out = _layernorm(z, g_ref[...].astype(F32), b_ref[...].astype(F32))
    o_ref[0] = out.astype(o_ref.dtype)


def _cross_attn_res_ln_kernel(*refs, nhead, scale, has_qpos):
    """out[qtile] = LayerNorm(tgt + MHA(tgt(+qpos), k_mem, memory))."""
    if has_qpos:
        (tgt_ref, qpos_ref, kmem_ref, mem_ref,
         wq_ref, wk_ref, wv_ref, bq_ref, bk_ref, bv_ref,
         wo_ref, bo_ref, g_ref, b_ref, o_ref, k_scr, v_scr) = refs
    else:
        (tgt_ref, kmem_ref, mem_ref,
         wq_ref, wk_ref, wv_ref, bq_ref, bk_ref, bv_ref,
         wo_ref, bo_ref, g_ref, b_ref, o_ref, k_scr, v_scr) = refs
        qpos_ref = None

    qi = pl.program_id(1)

    @pl.when(qi == 0)
    def _():
        xk = kmem_ref[0].astype(BF16)                      # (Sk, D) = memory + pos
        xv = mem_ref[0].astype(BF16)                       # (Sk, D) = memory
        _project_kv_to_scratch(xk, xv, wk_ref, wv_ref, bk_ref, bv_ref,
                               k_scr, v_scr, nhead)

    resid = tgt_ref[0].astype(F32)                         # (tq, D)
    q_in = resid if qpos_ref is None else resid + qpos_ref[0].astype(F32)
    attn = _mha_from_scratch(q_in, wq_ref, bq_ref, k_scr, v_scr,
                             wo_ref, bo_ref, nhead, scale)
    z = resid + attn
    out = _layernorm(z, g_ref[...].astype(F32), b_ref[...].astype(F32))
    o_ref[0] = out.astype(o_ref.dtype)


def _ffn_res_ln_kernel(*refs, extra_ln):
    """out = [LN_final](LayerNorm(x + Linear2(ReLU(Linear1(x))))) on a (tm, D) tile."""
    if extra_ln:
        (x_ref, w1_ref, b1_ref, w2_ref, b2_ref,
         g_ref, b_ref, g2_ref, bb2_ref, o_ref) = refs
    else:
        (x_ref, w1_ref, b1_ref, w2_ref, b2_ref,
         g_ref, b_ref, o_ref) = refs
        g2_ref = bb2_ref = None
    x = x_ref[...].astype(F32)
    h = jnp.dot(x.astype(BF16), w1_ref[...], preferred_element_type=F32) \
        + b1_ref[...].astype(F32)
    h = jnp.maximum(h, 0.0)
    y = jnp.dot(h.astype(BF16), w2_ref[...], preferred_element_type=F32) \
        + b2_ref[...].astype(F32)
    z = x + y
    out = _layernorm(z, g_ref[...].astype(F32), b_ref[...].astype(F32))
    if extra_ln:  # fused final decoder norm
        out = _layernorm(out, g2_ref[...].astype(F32), bb2_ref[...].astype(F32))
    o_ref[...] = out.astype(o_ref.dtype)
    # TODO(synk): for very large dim_feedforward, add an inner "arbitrary" FF-tiling
    # grid axis with a (tm, D) accumulator so tm is not constrained by the (tm, FF)
    # intermediate (v7x VMEM).


def _ln_kernel(x_ref, g_ref, b_ref, o_ref):
    z = x_ref[...].astype(F32)
    o_ref[...] = _layernorm(z, g_ref[...].astype(F32),
                            b_ref[...].astype(F32)).astype(o_ref.dtype)


# ----------------------------- kernel wrappers -----------------------------

def self_attn_res_ln(src, a, g, b, nhead):
    """LayerNorm(src + MHA(q=src·Wq, k=src·Wk, v=src·Wv)) — src DMA'd once per batch."""
    B, S, D = src.shape
    assert D % nhead == 0
    Dh = D // nhead
    scale = 1.0 / float(Dh) ** 0.5
    tq = _pick_seq_tile(S)
    nq = S // tq

    const3 = lambda shape: pl.BlockSpec(shape, lambda b_, q_: (0, 0, 0))
    const2 = lambda shape: pl.BlockSpec(shape, lambda b_, q_: (0, 0))
    kernel = functools.partial(_self_attn_res_ln_kernel,
                               nhead=nhead, scale=scale, tq=tq)
    return pl.pallas_call(
        kernel,
        out_shape=jax.ShapeDtypeStruct((B, S, D), src.dtype),
        grid=(B, nq),
        in_specs=[
            pl.BlockSpec((1, S, D), lambda b_, q_: (b_, 0, 0)),   # src (once per b)
            const3((nhead, D, Dh)), const3((nhead, D, Dh)), const3((nhead, D, Dh)),
            const3((nhead, 1, Dh)), const3((nhead, 1, Dh)), const3((nhead, 1, Dh)),
            const2((D, D)), const2((1, D)),                       # wo, bo
            const2((1, D)), const2((1, D)),                       # ln gamma, beta
        ],
        out_specs=pl.BlockSpec((1, tq, D), lambda b_, q_: (b_, q_, 0)),
        scratch_shapes=[pltpu.VMEM((nhead, S, Dh), BF16),
                        pltpu.VMEM((nhead, S, Dh), BF16)],
        compiler_params=_cparams(("parallel", "arbitrary")),
    )(src, a["wq"], a["wk"], a["wv"], a["bq"], a["bk"], a["bv"],
      a["wo"], a["bo"], g, b)


def cross_attn_res_ln(tgt, qpos, kmem, mem, a, g, b, nhead):
    """LayerNorm(tgt + MHA(q=tgt+qpos, k=kmem, v=mem)); qpos add fused in-kernel."""
    B, Sq, D = tgt.shape
    Sk = kmem.shape[1]
    assert D % nhead == 0
    Dh = D // nhead
    scale = 1.0 / float(Dh) ** 0.5
    tq = _pick_seq_tile(Sq)
    nq = Sq // tq
    has_qpos = qpos is not None

    tile_spec = pl.BlockSpec((1, tq, D), lambda b_, q_: (b_, q_, 0))
    mem_spec = pl.BlockSpec((1, Sk, D), lambda b_, q_: (b_, 0, 0))
    const3 = lambda shape: pl.BlockSpec(shape, lambda b_, q_: (0, 0, 0))
    const2 = lambda shape: pl.BlockSpec(shape, lambda b_, q_: (0, 0))

    in_specs = [tile_spec]
    args = [tgt]
    if has_qpos:
        in_specs.append(tile_spec)
        args.append(qpos)
    in_specs += [
        mem_spec, mem_spec,
        const3((nhead, D, Dh)), const3((nhead, D, Dh)), const3((nhead, D, Dh)),
        const3((nhead, 1, Dh)), const3((nhead, 1, Dh)), const3((nhead, 1, Dh)),
        const2((D, D)), const2((1, D)), const2((1, D)), const2((1, D)),
    ]
    args += [kmem, mem, a["wq"], a["wk"], a["wv"], a["bq"], a["bk"], a["bv"],
             a["wo"], a["bo"], g, b]

    kernel = functools.partial(_cross_attn_res_ln_kernel,
                               nhead=nhead, scale=scale, has_qpos=has_qpos)
    return pl.pallas_call(
        kernel,
        out_shape=jax.ShapeDtypeStruct((B, Sq, D), tgt.dtype),
        grid=(B, nq),
        in_specs=in_specs,
        out_specs=pl.BlockSpec((1, tq, D), lambda b_, q_: (b_, q_, 0)),
        scratch_shapes=[pltpu.VMEM((nhead, Sk, Dh), BF16),
                        pltpu.VMEM((nhead, Sk, Dh), BF16)],
        compiler_params=_cparams(("parallel", "arbitrary")),
    )(*args)


def ffn_res_ln(x, w1, b1, w2, b2, g, b, final_g=None, final_b=None):
    B, S, D = x.shape
    M = B * S
    FF = w1.shape[1]
    tm = _pick_row_tile(M)
    extra_ln = final_g is not None

    const = lambda shape: pl.BlockSpec(shape, lambda i: (0, 0))
    in_specs = [pl.BlockSpec((tm, D), lambda i: (i, 0)),
                const((D, FF)), const((1, FF)), const((FF, D)), const((1, D)),
                const((1, D)), const((1, D))]
    args = [x.reshape(M, D), w1, b1, w2, b2, g, b]
    if extra_ln:
        in_specs += [const((1, D)), const((1, D))]
        args += [final_g, final_b]

    kernel = functools.partial(_ffn_res_ln_kernel, extra_ln=extra_ln)
    out = pl.pallas_call(
        kernel,
        out_shape=jax.ShapeDtypeStruct((M, D), x.dtype),
        grid=(M // tm,),
        in_specs=in_specs,
        out_specs=pl.BlockSpec((tm, D), lambda i: (i, 0)),
        compiler_params=_cparams(("parallel",)),
    )(*args)
    return out.reshape(B, S, D)


def layer_norm(x, g, b):
    """Standalone LN (only used if the decoder has zero layers)."""
    B, S, D = x.shape
    M = B * S
    tm = _pick_row_tile(M)
    out = pl.pallas_call(
        _ln_kernel,
        out_shape=jax.ShapeDtypeStruct((M, D), x.dtype),
        grid=(M // tm,),
        in_specs=[pl.BlockSpec((tm, D), lambda i: (i, 0)),
                  pl.BlockSpec((1, D), lambda i: (0, 0)),
                  pl.BlockSpec((1, D), lambda i: (0, 0))],
        out_specs=pl.BlockSpec((tm, D), lambda i: (i, 0)),
        compiler_params=_cparams(("parallel",)),
    )(x.reshape(M, D), g.reshape(1, -1), b.reshape(1, -1))
    return out.reshape(B, S, D)


# ----------------------------- model pieces -----------------------------

def encoder_layer(src, p, nhead):
    """TransformerEncoderLayer.forward_post with pos not None (qk-projection branch)."""
    src = self_attn_res_ln(src, p["attn"], p["ln1_g"], p["ln1_b"], nhead)
    src = ffn_res_ln(src, p["w1"], p["b1"], p["w2"], p["b2"], p["ln2_g"], p["ln2_b"])
    return src


def decoder_layer(tgt, query_pos, k_mem, memory, p, nhead, final_g=None, final_b=None):
    """TransformerDecoderLayer.forward_post (normalize_before=False).

    Both attention blocks attend to memory: q = tgt + query_pos (fused in-kernel),
    k = memory + pos (hoisted, loop-invariant), v = memory.  If final_g/b are given
    the trailing decoder LayerNorm is fused into the FFN kernel of this layer.
    """
    tgt = cross_attn_res_ln(tgt, query_pos, k_mem, memory,
                            p["self_attn"], p["ln1_g"], p["ln1_b"], nhead)
    tgt = cross_attn_res_ln(tgt, query_pos, k_mem, memory,
                            p["cross_attn"], p["ln2_g"], p["ln2_b"], nhead)
    tgt = ffn_res_ln(tgt, p["w1"], p["b1"], p["w2"], p["b2"],
                     p["ln3_g"], p["ln3_b"], final_g=final_g, final_b=final_b)
    return tgt


def transformer_forward(params, style, content, pos_embed_c, pos_embed_s, nhead):
    """Matches Transformer.forward with mask=None (inference)."""
    B, C, Hs, Ws = style.shape

    def to_seq(x):
        b_, c_, h_, w_ = x.shape
        return x.reshape(b_, c_, h_ * w_).transpose(0, 2, 1)      # (B, HW, C)

    s = to_seq(style)
    c = to_seq(content)
    ps = to_seq(pos_embed_s) if pos_embed_s is not None else None
    pc = to_seq(pos_embed_c) if pos_embed_c is not None else None
    # TODO(synk): src/memory key_padding_mask not implemented (reference passes mask=None).

    for lp in params["encoder_s"]:
        s = encoder_layer(s, lp, nhead)
    for lp in params["encoder_c"]:
        c = encoder_layer(c, lp, nhead)

    # loop-invariant decoder key input (memory + pos), hoisted out of the layer loop
    k_mem = s if ps is None else s + ps

    out = c
    n_dec = len(params["decoder"])
    for li, lp in enumerate(params["decoder"]):
        is_last = li == n_dec - 1
        out = decoder_layer(out, pc, k_mem, s, lp, nhead,
                            final_g=params["dec_norm_g"] if is_last else None,
                            final_b=params["dec_norm_b"] if is_last else None)
    if n_dec == 0:
        out = layer_norm(out, params["dec_norm_g"], params["dec_norm_b"])

    # (B, HW, C) -> (B, C, H_s, W_s)   (matches hs.permute(1,2,0).view(B,C,H_s,W_s))
    hs = out.transpose(0, 2, 1).reshape(B, C, Hs, Ws)
    return hs


# ----------------------------- parameter init & prep -----------------------------

def xavier(key, shape, dtype=jnp.float32):
    fan_in, fan_out = shape[0], shape[1]
    a = (6.0 / (fan_in + fan_out)) ** 0.5
    return jax.random.uniform(key, shape, dtype, -a, a)


def init_mha(key, D):
    ks = jax.random.split(key, 4)
    z = jnp.zeros((D,), jnp.float32)
    return dict(w_q=xavier(ks[0], (D, D)), b_q=z,
                w_k=xavier(ks[1], (D, D)), b_k=z,
                w_v=xavier(ks[2], (D, D)), b_v=z,
                w_o=xavier(ks[3], (D, D)), b_o=z)


def init_enc_layer(key, D, FF):
    ks = jax.random.split(key, 5)
    return dict(
        w_qk_q=xavier(ks[0], (D, D)), w_qk_k=xavier(ks[1], (D, D)),
        self_attn=init_mha(ks[2], D),
        w1=xavier(ks[3], (D, FF)), b1=jnp.zeros((FF,), jnp.float32),
        w2=xavier(ks[4], (FF, D)), b2=jnp.zeros((D,), jnp.float32),
        ln1_g=jnp.ones((D,), jnp.float32), ln1_b=jnp.zeros((D,), jnp.float32),
        ln2_g=jnp.ones((D,), jnp.float32), ln2_b=jnp.zeros((D,), jnp.float32),
    )


def init_dec_layer(key, D, FF):
    ks = jax.random.split(key, 4)
    return dict(
        self_attn=init_mha(ks[0], D),
        cross_attn=init_mha(ks[1], D),
        w1=xavier(ks[2], (D, FF)), b1=jnp.zeros((FF,), jnp.float32),
        w2=xavier(ks[3], (FF, D)), b2=jnp.zeros((D,), jnp.float32),
        ln1_g=jnp.ones((D,), jnp.float32), ln1_b=jnp.zeros((D,), jnp.float32),
        ln2_g=jnp.ones((D,), jnp.float32), ln2_b=jnp.zeros((D,), jnp.float32),
        ln3_g=jnp.ones((D,), jnp.float32), ln3_b=jnp.zeros((D,), jnp.float32),
    )


def init_params(key, D, FF, n_enc, n_dec):
    keys = jax.random.split(key, 2 * n_enc + n_dec)
    enc_s = [init_enc_layer(keys[i], D, FF) for i in range(n_enc)]
    enc_c = [init_enc_layer(keys[n_enc + i], D, FF) for i in range(n_enc)]
    dec = [init_dec_layer(keys[2 * n_enc + i], D, FF) for i in range(n_dec)]
    return dict(encoder_s=enc_s, encoder_c=enc_c, decoder=dec,
                dec_norm_g=jnp.ones((D,), jnp.float32),
                dec_norm_b=jnp.zeros((D,), jnp.float32))
    # NOTE: self.new_ps (1x1 Conv2d) and self.averagepooling are never used in
    # Transformer.forward, so they are intentionally omitted.


def _prep_mha(a, nhead, wq=None, wk=None):
    """Head-major bf16 weight layout for the attention kernels."""
    D = a["w_o"].shape[0]
    Dh = D // nhead

    def head_major(w):   # (D, D) -> (nhead, D, Dh), bf16
        return w.reshape(D, nhead, Dh).transpose(1, 0, 2).astype(BF16)

    def head_bias(v):    # (D,) -> (nhead, 1, Dh), f32
        return v.reshape(nhead, 1, Dh).astype(F32)

    return dict(
        wq=head_major(a["w_q"] if wq is None else wq),
        wk=head_major(a["w_k"] if wk is None else wk),
        wv=head_major(a["w_v"]),
        bq=head_bias(a["b_q"]), bk=head_bias(a["b_k"]), bv=head_bias(a["b_v"]),
        wo=a["w_o"].astype(BF16),
        bo=a["b_o"].reshape(1, D).astype(F32),
    )


def prepare_params(params, nhead):
    """One-time weight prep: compose encoder qk projections, bf16 matmul weights,
    head-major layouts, row-shaped biases / LN params."""
    row = lambda v: v.reshape(1, -1).astype(F32)

    def prep_enc(p):
        # bias-free qk projection composed into the MHA in-projection:
        # (x Wqk) Wq == x (Wqk Wq)
        wq_eff = jnp.dot(p["w_qk_q"], p["self_attn"]["w_q"])
        wk_eff = jnp.dot(p["w_qk_k"], p["self_attn"]["w_k"])
        return dict(
            attn=_prep_mha(p["self_attn"], nhead, wq=wq_eff, wk=wk_eff),
            w1=p["w1"].astype(BF16), b1=row(p["b1"]),
            w2=p["w2"].astype(BF16), b2=row(p["b2"]),
            ln1_g=row(p["ln1_g"]), ln1_b=row(p["ln1_b"]),
            ln2_g=row(p["ln2_g"]), ln2_b=row(p["ln2_b"]),
        )

    def prep_dec(p):
        return dict(
            self_attn=_prep_mha(p["self_attn"], nhead),
            cross_attn=_prep_mha(p["cross_attn"], nhead),
            w1=p["w1"].astype(BF16), b1=row(p["b1"]),
            w2=p["w2"].astype(BF16), b2=row(p["b2"]),
            ln1_g=row(p["ln1_g"]), ln1_b=row(p["ln1_b"]),
            ln2_g=row(p["ln2_g"]), ln2_b=row(p["ln2_b"]),
            ln3_g=row(p["ln3_g"]), ln3_b=row(p["ln3_b"]),
        )

    return dict(
        encoder_s=[prep_enc(p) for p in params["encoder_s"]],
        encoder_c=[prep_enc(p) for p in params["encoder_c"]],
        decoder=[prep_dec(p) for p in params["decoder"]],
        dec_norm_g=row(params["dec_norm_g"]),
        dec_norm_b=row(params["dec_norm_b"]),
    )


# ----------------------------- driver -----------------------------

if __name__ == "__main__":
    d_model, nhead, ff = 64, 4, 128
    n_enc, n_dec = 2, 2
    B, H, W = 2, 4, 4

    root = jax.random.PRNGKey(0)
    k_params, k_style, k_content, k_pc, k_ps = jax.random.split(root, 5)

    raw_params = init_params(k_params, d_model, ff, n_enc, n_dec)
    params = prepare_params(raw_params, nhead)   # one-time weight prep (outside jit)

    style = jax.random.normal(k_style, (B, d_model, H, W), jnp.float32)
    content = jax.random.normal(k_content, (B, d_model, H, W), jnp.float32)
    pos_embed_c = jax.random.normal(k_pc, (B, d_model, H, W), jnp.float32)
    pos_embed_s = jax.random.normal(k_ps, (B, d_model, H, W), jnp.float32)

    fwd = jax.jit(functools.partial(transformer_forward, nhead=nhead))
    hs = fwd(params, style, content, pos_embed_c, pos_embed_s)
    hs = jax.block_until_ready(hs)

    assert hs.shape == (B, d_model, H, W), hs.shape
    assert bool(jnp.all(jnp.isfinite(hs)))
    print("KERNEL_OK")
</pallas_src>

<mosaic_0001>
module attributes {stable_mosaic.version = 11 : i64} {
  func.func @_ffn_res_ln_kernel(%arg0: i32, %arg1: memref<16x64xf32, #tpu.memory_space<vmem>>, %arg2: memref<64x128xbf16, #tpu.memory_space<vmem>>, %arg3: memref<1x128xf32, #tpu.memory_space<vmem>>, %arg4: memref<128x64xbf16, #tpu.memory_space<vmem>>, %arg5: memref<1x64xf32, #tpu.memory_space<vmem>>, %arg6: memref<1x64xf32, #tpu.memory_space<vmem>>, %arg7: memref<1x64xf32, #tpu.memory_space<vmem>>, %arg8: memref<16x64xf32, #tpu.memory_space<vmem>>) attributes {dimension_semantics = [#tpu.dimension_semantics<parallel>], iteration_bounds = array<i64: 2>, scalar_prefetch = 0 : i64, scratch_operands = 0 : i64, tpu.core_type = #tpu.core_type<tc>, window_params = [{transform_indices = @transform_0, window_bounds = array<i64: 16, 64>}, {pipeline_mode = #tpu.pipeline_mode<synchronous>, transform_indices = @transform_1, window_bounds = array<i64: 64, 128>}, {pipeline_mode = #tpu.pipeline_mode<synchronous>, transform_indices = @transform_2, window_bounds = array<i64: 1, 128>}, {pipeline_mode = #tpu.pipeline_mode<synchronous>, transform_indices = @transform_3, window_bounds = array<i64: 128, 64>}, {pipeline_mode = #tpu.pipeline_mode<synchronous>, transform_indices = @transform_4, window_bounds = array<i64: 1, 64>}, {pipeline_mode = #tpu.pipeline_mode<synchronous>, transform_indices = @transform_5, window_bounds = array<i64: 1, 64>}, {pipeline_mode = #tpu.pipeline_mode<synchronous>, transform_indices = @transform_6, window_bounds = array<i64: 1, 64>}, {transform_indices = @transform_7, window_bounds = array<i64: 16, 64>}]} {
    %c0 = arith.constant 0 : index
    %c0_0 = arith.constant 0 : index
    %0 = vector.load %arg1[%c0, %c0_0] : memref<16x64xf32, #tpu.memory_space<vmem>>, vector<16x64xf32>
    %1 = arith.truncf %0 : vector<16x64xf32> to vector<16x64xbf16>
    %c0_1 = arith.constant 0 : index
    %c0_2 = arith.constant 0 : index
    %2 = vector.load %arg2[%c0_1, %c0_2] : memref<64x128xbf16, #tpu.memory_space<vmem>>, vector<64x128xbf16>
    %cst = arith.constant dense<0.000000e+00> : vector<16x128xf32>
    %3 = tpu.matmul %1, %2, %cst {dimension_numbers = #tpu.dot_dimension_numbers<[1], [0], [0], [1], [0, 0, 1, 1], [], []>} : vector<16x64xbf16>, vector<64x128xbf16>, vector<16x128xf32> -> vector<16x128xf32>
    %c0_3 = arith.constant 0 : index
    %c0_4 = arith.constant 0 : index
    %4 = vector.load %arg3[%c0_3, %c0_4] : memref<1x128xf32, #tpu.memory_space<vmem>>, vector<1x128xf32>
    %5 = vector.broadcast %4 : vector<1x128xf32> to vector<16x128xf32>
    %6 = arith.addf %3, %5 : vector<16x128xf32>
    %cst_5 = arith.constant 0.000000e+00 : f32
    %7 = vector.broadcast %cst_5 : f32 to vector<16x128xf32>
    %8 = arith.maximumf %6, %7 : vector<16x128xf32>
    %9 = arith.truncf %8 : vector<16x128xf32> to vector<16x128xbf16>
    %c0_6 = arith.constant 0 : index
    %c0_7 = arith.constant 0 : index
    %10 = vector.load %arg4[%c0_6, %c0_7] : memref<128x64xbf16, #tpu.memory_space<vmem>>, vector<128x64xbf16>
    %cst_8 = arith.constant dense<0.000000e+00> : vector<16x64xf32>
    %11 = tpu.matmul %9, %10, %cst_8 {dimension_numbers = #tpu.dot_dimension_numbers<[1], [0], [0], [1], [0, 0, 1, 1], [], []>} : vector<16x128xbf16>, vector<128x64xbf16>, vector<16x64xf32> -> vector<16x64xf32>
    %c0_9 = arith.constant 0 : index
    %c0_10 = arith.constant 0 : index
    %12 = vector.load %arg5[%c0_9, %c0_10] : memref<1x64xf32, #tpu.memory_space<vmem>>, vector<1x64xf32>
    %13 = vector.broadcast %12 : vector<1x64xf32> to vector<16x64xf32>
    %14 = arith.addf %11, %13 : vector<16x64xf32>
    %15 = arith.addf %0, %14 : vector<16x64xf32>
    %c0_11 = arith.constant 0 : index
    %c0_12 = arith.constant 0 : index
    %16 = vector.load %arg6[%c0_11, %c0_12] : memref<1x64xf32, #tpu.memory_space<vmem>>, vector<1x64xf32>
    %c0_13 = arith.constant 0 : index
    %c0_14 = arith.constant 0 : index
    %17 = vector.load %arg7[%c0_13, %c0_14] : memref<1x64xf32, #tpu.memory_space<vmem>>, vector<1x64xf32>
    %cst_15 = arith.constant dense<0.000000e+00> : vector<16xf32>
    %18 = vector.multi_reduction <add>, %15, %cst_15 [1] : vector<16x64xf32> to vector<16xf32>
    %19 = vector.shape_cast %18 : vector<16xf32> to vector<16x1xf32>
    %cst_16 = arith.constant 6.400000e+01 : f32
    %20 = vector.broadcast %cst_16 : f32 to vector<16x1xf32>
    %21 = arith.divf %19, %20 : vector<16x1xf32>
    %22 = vector.broadcast %21 : vector<16x1xf32> to vector<16x64xf32>
    %23 = arith.subf %15, %22 : vector<16x64xf32>
    %24 = arith.mulf %23, %23 : vector<16x64xf32>
    %cst_17 = arith.constant dense<0.000000e+00> : vector<16xf32>
    %25 = vector.multi_reduction <add>, %24, %cst_17 [1] : vector<16x64xf32> to vector<16xf32>
    %26 = vector.shape_cast %25 : vector<16xf32> to vector<16x1xf32>
    %cst_18 = arith.constant 6.400000e+01 : f32
    %27 = vector.broadcast %cst_18 : f32 to vector<16x1xf32>
    %28 = arith.divf %26, %27 : vector<16x1xf32>
    %cst_19 = arith.constant 9.99999974E-6 : f32
    %29 = vector.broadcast %cst_19 : f32 to vector<16x1xf32>
    %30 = arith.addf %28, %29 : vector<16x1xf32>
    %31 = math.rsqrt %30 : vector<16x1xf32>
    %32 = vector.broadcast %31 : vector<16x1xf32> to vector<16x64xf32>
    %33 = arith.mulf %23, %32 : vector<16x64xf32>
    %34 = vector.broadcast %16 : vector<1x64xf32> to vector<16x64xf32>
    %35 = arith.mulf %33, %34 : vector<16x64xf32>
    %36 = vector.broadcast %17 : vector<1x64xf32> to vector<16x64xf32>
    %37 = arith.addf %35, %36 : vector<16x64xf32>
    %c0_20 = arith.constant 0 : index
    %c0_21 = arith.constant 0 : index
    %38 = vector.load %arg8[%c0_20, %c0_21] : memref<16x64xf32, #tpu.memory_space<vmem>>, vector<16x64xf32>
    tpu.vector_store %arg8[%c0_20, %c0_21], %37 {strides = array<i32>} : memref<16x64xf32, #tpu.memory_space<vmem>>, vector<16x64xf32>,
    return
  }
  func.func @transform_0(%arg0: i32) -> (i32, i32) {
    %c0_i32 = arith.constant 0 : i32
    %c0_i32_0 = arith.constant 0 : i32
    return %arg0, %c0_i32 : i32, i32
  }
  func.func @transform_1(%arg0: i32) -> (i32, i32) {
    %c0_i32 = arith.constant 0 : i32
    %c0_i32_0 = arith.constant 0 : i32
    %c0_i32_1 = arith.constant 0 : i32
    return %c0_i32, %c0_i32_0 : i32, i32
  }
  func.func @transform_2(%arg0: i32) -> (i32, i32) {
    %c0_i32 = arith.constant 0 : i32
    %c0_i32_0 = arith.constant 0 : i32
    %c0_i32_1 = arith.constant 0 : i32
    return %c0_i32, %c0_i32_0 : i32, i32
  }
  func.func @transform_3(%arg0: i32) -> (i32, i32) {
    %c0_i32 = arith.constant 0 : i32
    %c0_i32_0 = arith.constant 0 : i32
    %c0_i32_1 = arith.constant 0 : i32
    return %c0_i32, %c0_i32_0 : i32, i32
  }
  func.func @transform_4(%arg0: i32) -> (i32, i32) {
    %c0_i32 = arith.constant 0 : i32
    %c0_i32_0 = arith.constant 0 : i32
    %c0_i32_1 = arith.constant 0 : i32
    return %c0_i32, %c0_i32_0 : i32, i32
  }
  func.func @transform_5(%arg0: i32) -> (i32, i32) {
    %c0_i32 = arith.constant 0 : i32
    %c0_i32_0 = arith.constant 0 : i32
    %c0_i32_1 = arith.constant 0 : i32
    return %c0_i32, %c0_i32_0 : i32, i32
  }
  func.func @transform_6(%arg0: i32) -> (i32, i32) {
    %c0_i32 = arith.constant 0 : i32
    %c0_i32_0 = arith.constant 0 : i32
    %c0_i32_1 = arith.constant 0 : i32
    return %c0_i32, %c0_i32_0 : i32, i32
  }
  func.func @transform_7(%arg0: i32) -> (i32, i32) {
    %c0_i32 = arith.constant 0 : i32
    %c0_i32_0 = arith.constant 0 : i32
    return %arg0, %c0_i32 : i32, i32
  }
}

module attributes {stable_mosaic.version = 11 : i64} {
  func.func @_self_attn_res_ln_kernel(%arg0: i32, %arg1: i32, %arg2: memref<1x16x64xf32, #tpu.memory_space<vmem>>, %arg3: memref<4x64x16xbf16, #tpu.memory_space<vmem>>, %arg4: memref<4x64x16xbf16, #tpu.memory_space<vmem>>, %arg5: memref<4x64x16xbf16, #tpu.memory_space<vmem>>, %arg6: memref<4x1x16xf32, #tpu.memory_space<vmem>>, %arg7: memref<4x1x16xf32, #tpu.memory_space<vmem>>, %arg8: memref<4x1x16xf32, #tpu.memory_space<vmem>>, %arg9: memref<64x64xbf16, #tpu.memory_space<vmem>>, %arg10: memref<1x64xf32, #tpu.memory_space<vmem>>, %arg11: memref<1x64xf32, #tpu.memory_space<vmem>>, %arg12: memref<1x64xf32, #tpu.memory_space<vmem>>, %arg13: memref<1x16x64xf32, #tpu.memory_space<vmem>>, %arg14: memref<4x16x16xbf16, #tpu.memory_space<vmem>>, %arg15: memref<4x16x16xbf16, #tpu.memory_space<vmem>>) attributes {dimension_semantics = [#tpu.dimension_semantics<parallel>, #tpu.dimension_semantics<arbitrary>], iteration_bounds = array<i64: 2, 1>, scalar_prefetch = 0 : i64, scratch_operands = 2 : i64, tpu.core_type = #tpu.core_type<tc>, window_params = [{transform_indices = @transform_0, window_bounds = array<i64: 1, 16, 64>}, {pipeline_mode = #tpu.pipeline_mode<synchronous>, transform_indices = @transform_1, window_bounds = array<i64: 4, 64, 16>}, {pipeline_mode = #tpu.pipeline_mode<synchronous>, transform_indices = @transform_2, window_bounds = array<i64: 4, 64, 16>}, {pipeline_mode = #tpu.pipeline_mode<synchronous>, transform_indices = @transform_3, window_bounds = array<i64: 4, 64, 16>}, {pipeline_mode = #tpu.pipeline_mode<synchronous>, transform_indices = @transform_4, window_bounds = array<i64: 4, 1, 16>}, {pipeline_mode = #tpu.pipeline_mode<synchronous>, transform_indices = @transform_5, window_bounds = array<i64: 4, 1, 16>}, {pipeline_mode = #tpu.pipeline_mode<synchronous>, transform_indices = @transform_6, window_bounds = array<i64: 4, 1, 16>}, {pipeline_mode = #tpu.pipeline_mode<synchronous>, transform_indices = @transform_7, window_bounds = array<i64: 64, 64>}, {pipeline_mode = #tpu.pipeline_mode<synchronous>, transform_indices = @transform_8, window_bounds = array<i64: 1, 64>}, {pipeline_mode = #tpu.pipeline_mode<synchronous>, transform_indices = @transform_9, window_bounds = array<i64: 1, 64>}, {pipeline_mode = #tpu.pipeline_mode<synchronous>, transform_indices = @transform_10, window_bounds = array<i64: 1, 64>}, {transform_indices = @transform_11, window_bounds = array<i64: 1, 16, 64>}]} {
    %c0_i32 = arith.constant 0 : i32
    %0 = arith.cmpi eq, %arg1, %c0_i32 : i32
    %1 = arith.extui %0 : i1 to i32
    %c0_i32_0 = arith.constant 0 : i32
    %2 = arith.cmpi ne, %1, %c0_i32_0 : i32
    scf.if %2 {
      %c0_94 = arith.constant 0 : index
      %c0_95 = arith.constant 0 : index
      %c0_96 = arith.constant 0 : index
      %159 = vector.load %arg2[%c0_94, %c0_95, %c0_96] : memref<1x16x64xf32, #tpu.memory_space<vmem>>, vector<1x16x64xf32>
      %160 = vector.shape_cast %159 : vector<1x16x64xf32> to vector<16x64xf32>
      %161 = arith.truncf %160 : vector<16x64xf32> to vector<16x64xbf16>
      %c0_97 = arith.constant 0 : index
      %c0_98 = arith.constant 0 : index
      %c0_99 = arith.constant 0 : index
      %162 = vector.load %arg4[%c0_97, %c0_98, %c0_99] : memref<4x64x16xbf16, #tpu.memory_space<vmem>>, vector<1x64x16xbf16>
      %163 = vector.shape_cast %162 : vector<1x64x16xbf16> to vector<64x16xbf16>
      %cst_100 = arith.constant dense<0.000000e+00> : vector<16x16xf32>
      %164 = tpu.matmul %161, %163, %cst_100 {dimension_numbers = #tpu.dot_dimension_numbers<[1], [0], [0], [1], [0, 0, 1, 1], [], []>} : vector<16x64xbf16>, vector<64x16xbf16>, vector<16x16xf32> -> vector<16x16xf32>
      %c0_101 = arith.constant 0 : index
      %c0_102 = arith.constant 0 : index
      %c0_103 = arith.constant 0 : index
      %165 = vector.load %arg7[%c0_101, %c0_102, %c0_103] : memref<4x1x16xf32, #tpu.memory_space<vmem>>, vector<1x1x16xf32>
      %166 = vector.shape_cast %165 : vector<1x1x16xf32> to vector<1x16xf32>
      %167 = vector.broadcast %166 : vector<1x16xf32> to vector<16x16xf32>
      %168 = arith.addf %164, %167 : vector<16x16xf32>
      %c0_104 = arith.constant 0 : index
      %c0_105 = arith.constant 0 : index
      %c0_106 = arith.constant 0 : index
      %169 = vector.load %arg5[%c0_104, %c0_105, %c0_106] : memref<4x64x16xbf16, #tpu.memory_space<vmem>>, vector<1x64x16xbf16>
      %170 = vector.shape_cast %169 : vector<1x64x16xbf16> to vector<64x16xbf16>
      %cst_107 = arith.constant dense<0.000000e+00> : vector<16x16xf32>
      %171 = tpu.matmul %161, %170, %cst_107 {dimension_numbers = #tpu.dot_dimension_numbers<[1], [0], [0], [1], [0, 0, 1, 1], [], []>} : vector<16x64xbf16>, vector<64x16xbf16>, vector<16x16xf32> -> vector<16x16xf32>
      %c0_108 = arith.constant 0 : index
      %c0_109 = arith.constant 0 : index
      %c0_110 = arith.constant 0 : index
      %172 = vector.load %arg8[%c0_108, %c0_109, %c0_110] : memref<4x1x16xf32, #tpu.memory_space<vmem>>, vector<1x1x16xf32>
      %173 = vector.shape_cast %172 : vector<1x1x16xf32> to vector<1x16xf32>
      %174 = vector.broadcast %173 : vector<1x16xf32> to vector<16x16xf32>
      %175 = arith.addf %171, %174 : vector<16x16xf32>
      %176 = arith.truncf %168 : vector<16x16xf32> to vector<16x16xbf16>
      %c0_111 = arith.constant 0 : index
      %c0_112 = arith.constant 0 : index
      %c0_113 = arith.constant 0 : index
      %177 = vector.load %arg14[%c0_111, %c0_112, %c0_113] : memref<4x16x16xbf16, #tpu.memory_space<vmem>>, vector<1x16x16xbf16>
      %178 = vector.shape_cast %177 : vector<1x16x16xbf16> to vector<16x16xbf16>
      %179 = vector.shape_cast %176 : vector<16x16xbf16> to vector<1x16x16xbf16>
      tpu.vector_store %arg14[%c0_111, %c0_112, %c0_113], %179 {strides = array<i32>} : memref<4x16x16xbf16, #tpu.memory_space<vmem>>, vector<1x16x16xbf16>,
      %180 = arith.truncf %175 : vector<16x16xf32> to vector<16x16xbf16>
      %c0_114 = arith.constant 0 : index
      %c0_115 = arith.constant 0 : index
      %c0_116 = arith.constant 0 : index
      %181 = vector.load %arg15[%c0_114, %c0_115, %c0_116] : memref<4x16x16xbf16, #tpu.memory_space<vmem>>, vector<1x16x16xbf16>
      %182 = vector.shape_cast %181 : vector<1x16x16xbf16> to vector<16x16xbf16>
      %183 = vector.shape_cast %180 : vector<16x16xbf16> to vector<1x16x16xbf16>
      tpu.vector_store %arg15[%c0_114, %c0_115, %c0_116], %183 {strides = array<i32>} : memref<4x16x16xbf16, #tpu.memory_space<vmem>>, vector<1x16x16xbf16>,
      %c1_117 = arith.constant 1 : index
      %c0_118 = arith.constant 0 : index
      %c0_119 = arith.constant 0 : index
      %184 = vector.load %arg4[%c1_117, %c0_118, %c0_119] : memref<4x64x16xbf16, #tpu.memory_space<vmem>>, vector<1x64x16xbf16>
      %185 = vector.shape_cast %184 : vector<1x64x16xbf16> to vector<64x16xbf16>
      %cst_120 = arith.constant dense<0.000000e+00> : vector<16x16xf32>
      %186 = tpu.matmul %161, %185, %cst_120 {dimension_numbers = #tpu.dot_dimension_numbers<[1], [0], [0], [1], [0, 0, 1, 1], [], []>} : vector<16x64xbf16>, vector<64x16xbf16>, vector<16x16xf32> -> vector<16x16xf32>
      %c1_121 = arith.constant 1 : index
      %c0_122 = arith.constant 0 : index
      %c0_123 = arith.constant 0 : index
      %187 = vector.load %arg7[%c1_121, %c0_122, %c0_123] : memref<4x1x16xf32, #tpu.memory_space<vmem>>, vector<1x1x16xf32>
      %188 = vector.shape_cast %187 : vector<1x1x16xf32> to vector<1x16xf32>
      %189 = vector.broadcast %188 : vector<1x16xf32> to vector<16x16xf32>
      %190 = arith.addf %186, %189 : vector<16x16xf32>
      %c1_124 = arith.constant 1 : index
      %c0_125 = arith.constant 0 : index
      %c0_126 = arith.constant 0 : index
      %191 = vector.load %arg5[%c1_124, %c0_125, %c0_126] : memref<4x64x16xbf16, #tpu.memory_space<vmem>>, vector<1x64x16xbf16>
      %192 = vector.shape_cast %191 : vector<1x64x16xbf16> to vector<64x16xbf16>
      %cst_127 = arith.constant dense<0.000000e+00> : vector<16x16xf32>
      %193 = tpu.matmul %161, %192, %cst_127 {dimension_numbers = #tpu.dot_dimension_numbers<[1], [0], [0], [1], [0, 0, 1, 1], [], []>} : vector<16x64xbf16>, vector<64x16xbf16>, vector<16x16xf32> -> vector<16x16xf32>
      %c1_128 = arith.constant 1 : index
      %c0_129 = arith.constant 0 : index
      %c0_130 = arith.constant 0 : index
      %194 = vector.load %arg8[%c1_128, %c0_129, %c0_130] : memref<4x1x16xf32, #tpu.memory_space<vmem>>, vector<1x1x16xf32>
      %195 = vector.shape_cast %194 : vector<1x1x16xf32> to vector<1x16xf32>
      %196 = vector.broadcast %195 : vector<1x16xf32> to vector<16x16xf32>
      %197 = arith.addf %193, %196 : vector<16x16xf32>
      %198 = arith.truncf %190 : vector<16x16xf32> to vector<16x16xbf16>
      %c1_131 = arith.constant 1 : index
      %c0_132 = arith.constant 0 : index
      %c0_133 = arith.constant 0 : index
      %199 = vector.load %arg14[%c1_131, %c0_132, %c0_133] : memref<4x16x16xbf16, #tpu.memory_space<vmem>>, vector<1x16x16xbf16>
      %200 = vector.shape_cast %199 : vector<1x16x16xbf16> to vector<16x16xbf16>
      %201 = vector.shape_cast %198 : vector<16x16xbf16> to vector<1x16x16xbf16>
      tpu.vector_store %arg14[%c1_131, %c0_132, %c0_133], %201 {strides = array<i32>} : memref<4x16x16xbf16, #tpu.memory_space<vmem>>, vector<1x16x16xbf16>,
      %202 = arith.truncf %197 : vector<16x16xf32> to vector<16x16xbf16>
      %c1_134 = arith.constant 1 : index
      %c0_135 = arith.constant 0 : index
      %c0_136 = arith.constant 0 : index
      %203 = vector.load %arg15[%c1_134, %c0_135, %c0_136] : memref<4x16x16xbf16, #tpu.memory_space<vmem>>, vector<1x16x16xbf16>
      %204 = vector.shape_cast %203 : vector<1x16x16xbf16> to vector<16x16xbf16>
      %205 = vector.shape_cast %202 : vector<16x16xbf16> to vector<1x16x16xbf16>
      tpu.vector_store %arg15[%c1_134, %c0_135, %c0_136], %205 {strides = array<i32>} : memref<4x16x16xbf16, #tpu.memory_space<vmem>>, vector<1x16x16xbf16>,
      %c2_137 = arith.constant 2 : index
      %c0_138 = arith.constant 0 : index
      %c0_139 = arith.constant 0 : index
      %206 = vector.load %arg4[%c2_137, %c0_138, %c0_139] : memref<4x64x16xbf16, #tpu.memory_space<vmem>>, vector<1x64x16xbf16>
      %207 = vector.shape_cast %206 : vector<1x64x16xbf16> to vector<64x16xbf16>
      %cst_140 = arith.constant dense<0.000000e+00> : vector<16x16xf32>
      %208 = tpu.matmul %161, %207, %cst_140 {dimension_numbers = #tpu.dot_dimension_numbers<[1], [0], [0], [1], [0, 0, 1, 1], [], []>} : vector<16x64xbf16>, vector<64x16xbf16>, vector<16x16xf32> -> vector<16x16xf32>
      %c2_141 = arith.constant 2 : index
      %c0_142 = arith.constant 0 : index
      %c0_143 = arith.constant 0 : index
      %209 = vector.load %arg7[%c2_141, %c0_142, %c0_143] : memref<4x1x16xf32, #tpu.memory_space<vmem>>, vector<1x1x16xf32>
      %210 = vector.shape_cast %209 : vector<1x1x16xf32> to vector<1x16xf32>
      %211 = vector.broadcast %210 : vector<1x16xf32> to vector<16x16xf32>
      %212 = arith.addf %208, %211 : vector<16x16xf32>
      %c2_144 = arith.constant 2 : index
      %c0_145 = arith.constant 0 : index
      %c0_146 = arith.constant 0 : index
      %213 = vector.load %arg5[%c2_144, %c0_145, %c0_146] : memref<4x64x16xbf16, #tpu.memory_space<vmem>>, vector<1x64x16xbf16>
      %214 = vector.shape_cast %213 : vector<1x64x16xbf16> to vector<64x16xbf16>
      %cst_147 = arith.constant dense<0.000000e+00> : vector<16x16xf32>
      %215 = tpu.matmul %161, %214, %cst_147 {dimension_numbers = #tpu.dot_dimension_numbers<[1], [0], [0], [1], [0, 0, 1, 1], [], []>} : vector<16x64xbf16>, vector<64x16xbf16>, vector<16x16xf32> -> vector<16x16xf32>
      %c2_148 = arith.constant 2 : index
      %c0_149 = arith.constant 0 : index
      %c0_150 = arith.constant 0 : index
      %216 = vector.load %arg8[%c2_148, %c0_149, %c0_150] : memref<4x1x16xf32, #tpu.memory_space<vmem>>, vector<1x1x16xf32>
      %217 = vector.shape_cast %216 : vector<1x1x16xf32> to vector<1x16xf32>
      %218 = vector.broadcast %217 : vector<1x16xf32> to vector<16x16xf32>
      %219 = arith.addf %215, %218 : vector<16x16xf32>
      %220 = arith.truncf %212 : vector<16x16xf32> to vector<16x16xbf16>
      %c2_151 = arith.constant 2 : index
      %c0_152 = arith.constant 0 : index
      %c0_153 = arith.constant 0 : index
      %221 = vector.load %arg14[%c2_151, %c0_152, %c0_153] : memref<4x16x16xbf16, #tpu.memory_space<vmem>>, vector<1x16x16xbf16>
      %222 = vector.shape_cast %221 : vector<1x16x16xbf16> to vector<16x16xbf16>
      %223 = vector.shape_cast %220 : vector<16x16xbf16> to vector<1x16x16xbf16>
      tpu.vector_store %arg14[%c2_151, %c0_152, %c0_153], %223 {strides = array<i32>} : memref<4x16x16xbf16, #tpu.memory_space<vmem>>, vector<1x16x16xbf16>,
      %224 = arith.truncf %219 : vector<16x16xf32> to vector<16x16xbf16>
      %c2_154 = arith.constant 2 : index
      %c0_155 = arith.constant 0 : index
      %c0_156 = arith.constant 0 : index
      %225 = vector.load %arg15[%c2_154, %c0_155, %c0_156] : memref<4x16x16xbf16, #tpu.memory_space<vmem>>, vector<1x16x16xbf16>
      %226 = vector.shape_cast %225 : vector<1x16x16xbf16> to vector<16x16xbf16>
      %227 = vector.shape_cast %224 : vector<16x16xbf16> to vector<1x16x16xbf16>
      tpu.vector_store %arg15[%c2_154, %c0_155, %c0_156], %227 {strides = array<i32>} : memref<4x16x16xbf16, #tpu.memory_space<vmem>>, vector<1x16x16xbf16>,
      %c3_157 = arith.constant 3 : index
      %c0_158 = arith.constant 0 : index
      %c0_159 = arith.constant 0 : index
      %228 = vector.load %arg4[%c3_157, %c0_158, %c0_159] : memref<4x64x16xbf16, #tpu.memory_space<vmem>>, vector<1x64x16xbf16>
      %229 = vector.shape_cast %228 : vector<1x64x16xbf16> to vector<64x16xbf16>
      %cst_160 = arith.constant dense<0.000000e+00> : vector<16x16xf32>
      %230 = tpu.matmul %161, %229, %cst_160 {dimension_numbers = #tpu.dot_dimension_numbers<[1], [0], [0], [1], [0, 0, 1, 1], [], []>} : vector<16x64xbf16>, vector<64x16xbf16>, vector<16x16xf32> -> vector<16x16xf32>
      %c3_161 = arith.constant 3 : index
      %c0_162 = arith.constant 0 : index
      %c0_163 = arith.constant 0 : index
      %231 = vector.load %arg7[%c3_161, %c0_162, %c0_163] : memref<4x1x16xf32, #tpu.memory_space<vmem>>, vector<1x1x16xf32>
      %232 = vector.shape_cast %231 : vector<1x1x16xf32> to vector<1x16xf32>
      %233 = vector.broadcast %232 : vector<1x16xf32> to vector<16x16xf32>
      %234 = arith.addf %230, %233 : vector<16x16xf32>
      %c3_164 = arith.constant 3 : index
      %c0_165 = arith.constant 0 : index
      %c0_166 = arith.constant 0 : index
      %235 = vector.load %arg5[%c3_164, %c0_165, %c0_166] : memref<4x64x16xbf16, #tpu.memory_space<vmem>>, vector<1x64x16xbf16>
      %236 = vector.shape_cast %235 : vector<1x64x16xbf16> to vector<64x16xbf16>
      %cst_167 = arith.constant dense<0.000000e+00> : vector<16x16xf32>
      %237 = tpu.matmul %161, %236, %cst_167 {dimension_numbers = #tpu.dot_dimension_numbers<[1], [0], [0], [1], [0, 0, 1, 1], [], []>} : vector<16x64xbf16>, vector<64x16xbf16>, vector<16x16xf32> -> vector<16x16xf32>
      %c3_168 = arith.constant 3 : index
      %c0_169 = arith.constant 0 : index
      %c0_170 = arith.constant 0 : index
      %238 = vector.load %arg8[%c3_168, %c0_169, %c0_170] : memref<4x1x16xf32, #tpu.memory_space<vmem>>, vector<1x1x16xf32>
      %239 = vector.shape_cast %238 : vector<1x1x16xf32> to vector<1x16xf32>
      %240 = vector.broadcast %239 : vector<1x16xf32> to vector<16x16xf32>
      %241 = arith.addf %237, %240 : vector<16x16xf32>
      %242 = arith.truncf %234 : vector<16x16xf32> to vector<16x16xbf16>
      %c3_171 = arith.constant 3 : index
      %c0_172 = arith.constant 0 : index
      %c0_173 = arith.constant 0 : index
      %243 = vector.load %arg14[%c3_171, %c0_172, %c0_173] : memref<4x16x16xbf16, #tpu.memory_space<vmem>>, vector<1x16x16xbf16>
      %244 = vector.shape_cast %243 : vector<1x16x16xbf16> to vector<16x16xbf16>
      %245 = vector.shape_cast %242 : vector<16x16xbf16> to vector<1x16x16xbf16>
      tpu.vector_store %arg14[%c3_171, %c0_172, %c0_173], %245 {strides = array<i32>} : memref<4x16x16xbf16, #tpu.memory_space<vmem>>, vector<1x16x16xbf16>,
      %246 = arith.truncf %241 : vector<16x16xf32> to vector<16x16xbf16>
      %c3_174 = arith.constant 3 : index
      %c0_175 = arith.constant 0 : index
      %c0_176 = arith.constant 0 : index
      %247 = vector.load %arg15[%c3_174, %c0_175, %c0_176] : memref<4x16x16xbf16, #tpu.memory_space<vmem>>, vector<1x16x16xbf16>
      %248 = vector.shape_cast %247 : vector<1x16x16xbf16> to vector<16x16xbf16>
      %249 = vector.shape_cast %246 : vector<16x16xbf16> to vector<1x16x16xbf16>
      tpu.vector_store %arg15[%c3_174, %c0_175, %c0_176], %249 {strides = array<i32>} : memref<4x16x16xbf16, #tpu.memory_space<vmem>>, vector<1x16x16xbf16>,
    } else {
    }
    %c16_i32 = arith.constant 16 : i32
    %3 = arith.muli %arg1, %c16_i32 : i32
    %4 = tpu.assume_multiple %3, 8 : i32
    %c0 = arith.constant 0 : index
    %5 = arith.index_cast %4 : i32 to index
    %c0_1 = arith.constant 0 : index
    %6 = vector.load %arg2[%c0, %5, %c0_1] : memref<1x16x64xf32, #tpu.memory_space<vmem>>, vector<1x16x64xf32>
    %7 = vector.shape_cast %6 : vector<1x16x64xf32> to vector<16x64xf32>
    %8 = arith.truncf %7 : vector<16x64xf32> to vector<16x64xbf16>
    %cst = arith.constant 0.000000e+00 : f32
    %9 = vector.broadcast %cst : f32 to vector<16x64xf32>
    %c0_2 = arith.constant 0 : index
    %c0_3 = arith.constant 0 : index
    %c0_4 = arith.constant 0 : index
    %10 = vector.load %arg3[%c0_2, %c0_3, %c0_4] : memref<4x64x16xbf16, #tpu.memory_space<vmem>>, vector<1x64x16xbf16>
    %11 = vector.shape_cast %10 : vector<1x64x16xbf16> to vector<64x16xbf16>
    %cst_5 = arith.constant dense<0.000000e+00> : vector<16x16xf32>
    %12 = tpu.matmul %8, %11, %cst_5 {dimension_numbers = #tpu.dot_dimension_numbers<[1], [0], [0], [1], [0, 0, 1, 1], [], []>} : vector<16x64xbf16>, vector<64x16xbf16>, vector<16x16xf32> -> vector<16x16xf32>
    %c0_6 = arith.constant 0 : index
    %c0_7 = arith.constant 0 : index
    %c0_8 = arith.constant 0 : index
    %13 = vector.load %arg6[%c0_6, %c0_7, %c0_8] : memref<4x1x16xf32, #tpu.memory_space<vmem>>, vector<1x1x16xf32>
    %14 = vector.shape_cast %13 : vector<1x1x16xf32> to vector<1x16xf32>
    %15 = vector.broadcast %14 : vector<1x16xf32> to vector<16x16xf32>
    %16 = arith.addf %12, %15 : vector<16x16xf32>
    %c0_9 = arith.constant 0 : index
    %c0_10 = arith.constant 0 : index
    %c0_11 = arith.constant 0 : index
    %17 = vector.load %arg14[%c0_9, %c0_10, %c0_11] : memref<4x16x16xbf16, #tpu.memory_space<vmem>>, vector<1x16x16xbf16>
    %18 = vector.shape_cast %17 : vector<1x16x16xbf16> to vector<16x16xbf16>
    %19 = arith.truncf %16 : vector<16x16xf32> to vector<16x16xbf16>
    %cst_12 = arith.constant dense<0.000000e+00> : vector<16x16xf32>
    %20 = tpu.matmul %19, %18, %cst_12 {dimension_numbers = #tpu.dot_dimension_numbers<[1], [1], [0], [0], [0, 0, 1, 0], [], []>} : vector<16x16xbf16>, vector<16x16xbf16>, vector<16x16xf32> -> vector<16x16xf32>
    %cst_13 = arith.constant 2.500000e-01 : f32
    %21 = vector.broadcast %cst_13 : f32 to vector<16x16xf32>
    %22 = arith.mulf %20, %21 : vector<16x16xf32>
    %cst_14 = arith.constant dense<0xFF800000> : vector<16xf32>
    %23 = vector.multi_reduction <maximumf>, %22, %cst_14 [1] : vector<16x16xf32> to vector<16xf32>
    %24 = vector.shape_cast %23 : vector<16xf32> to vector<16x1xf32>
    %25 = vector.broadcast %24 : vector<16x1xf32> to vector<16x16xf32>
    %26 = arith.subf %22, %25 : vector<16x16xf32>
    %27 = math.exp %26 : vector<16x16xf32>
    %cst_15 = arith.constant dense<0.000000e+00> : vector<16xf32>
    %28 = vector.multi_reduction <add>, %27, %cst_15 [1] : vector<16x16xf32> to vector<16xf32>
    %29 = vector.shape_cast %28 : vector<16xf32> to vector<16x1xf32>
    %30 = vector.broadcast %29 : vector<16x1xf32> to vector<16x16xf32>
    %31 = arith.divf %27, %30 : vector<16x16xf32>
    %32 = arith.truncf %31 : vector<16x16xf32> to vector<16x16xbf16>
    %c0_16 = arith.constant 0 : index
    %c0_17 = arith.constant 0 : index
    %c0_18 = arith.constant 0 : index
    %33 = vector.load %arg15[%c0_16, %c0_17, %c0_18] : memref<4x16x16xbf16, #tpu.memory_space<vmem>>, vector<1x16x16xbf16>
    %34 = vector.shape_cast %33 : vector<1x16x16xbf16> to vector<16x16xbf16>
    %cst_19 = arith.constant dense<0.000000e+00> : vector<16x16xf32>
    %35 = tpu.matmul %32, %34, %cst_19 {dimension_numbers = #tpu.dot_dimension_numbers<[1], [0], [0], [1], [0, 0, 1, 1], [], []>} : vector<16x16xbf16>, vector<16x16xbf16>, vector<16x16xf32> -> vector<16x16xf32>
    %36 = arith.truncf %35 : vector<16x16xf32> to vector<16x16xbf16>
    %c0_20 = arith.constant 0 : index
    %c0_21 = arith.constant 0 : index
    %37 = vector.load %arg9[%c0_20, %c0_21] : memref<64x64xbf16, #tpu.memory_space<vmem>>, vector<16x64xbf16>
    %cst_22 = arith.constant dense<0.000000e+00> : vector<16x64xf32>
    %38 = tpu.matmul %36, %37, %cst_22 {dimension_numbers = #tpu.dot_dimension_numbers<[1], [0], [0], [1], [0, 0, 1, 1], [], []>} : vector<16x16xbf16>, vector<16x64xbf16>, vector<16x64xf32> -> vector<16x64xf32>
    %39 = arith.addf %9, %38 : vector<16x64xf32>
    %c1 = arith.constant 1 : index
    %c0_23 = arith.constant 0 : index
    %c0_24 = arith.constant 0 : index
    %40 = vector.load %arg3[%c1, %c0_23, %c0_24] : memref<4x64x16xbf16, #tpu.memory_space<vmem>>, vector<1x64x16xbf16>
    %41 = vector.shape_cast %40 : vector<1x64x16xbf16> to vector<64x16xbf16>
    %cst_25 = arith.constant dense<0.000000e+00> : vector<16x16xf32>
    %42 = tpu.matmul %8, %41, %cst_25 {dimension_numbers = #tpu.dot_dimension_numbers<[1], [0], [0], [1], [0, 0, 1, 1], [], []>} : vector<16x64xbf16>, vector<64x16xbf16>, vector<16x16xf32> -> vector<16x16xf32>
    %c1_26 = arith.constant 1 : index
    %c0_27 = arith.constant 0 : index
    %c0_28 = arith.constant 0 : index
    %43 = vector.load %arg6[%c1_26, %c0_27, %c0_28] : memref<4x1x16xf32, #tpu.memory_space<vmem>>, vector<1x1x16xf32>
    %44 = vector.shape_cast %43 : vector<1x1x16xf32> to vector<1x16xf32>
    %45 = vector.broadcast %44 : vector<1x16xf32> to vector<16x16xf32>
    %46 = arith.addf %42, %45 : vector<16x16xf32>
    %c1_29 = arith.constant 1 : index
    %c0_30 = arith.constant 0 : index
    %c0_31 = arith.constant 0 : index
    %47 = vector.load %arg14[%c1_29, %c0_30, %c0_31] : memref<4x16x16xbf16, #tpu.memory_space<vmem>>, vector<1x16x16xbf16>
    %48 = vector.shape_cast %47 : vector<1x16x16xbf16> to vector<16x16xbf16>
    %49 = arith.truncf %46 : vector<16x16xf32> to vector<16x16xbf16>
    %cst_32 = arith.constant dense<0.000000e+00> : vector<16x16xf32>
    %50 = tpu.matmul %49, %48, %cst_32 {dimension_numbers = #tpu.dot_dimension_numbers<[1], [1], [0], [0], [0, 0, 1, 0], [], []>} : vector<16x16xbf16>, vector<16x16xbf16>, vector<16x16xf32> -> vector<16x16xf32>
    %cst_33 = arith.constant 2.500000e-01 : f32
    %51 = vector.broadcast %cst_33 : f32 to vector<16x16xf32>
    %52 = arith.mulf %50, %51 : vector<16x16xf32>
    %cst_34 = arith.constant dense<0xFF800000> : vector<16xf32>
    %53 = vector.multi_reduction <maximumf>, %52, %cst_34 [1] : vector<16x16xf32> to vector<16xf32>
    %54 = vector.shape_cast %53 : vector<16xf32> to vector<16x1xf32>
    %55 = vector.broadcast %54 : vector<16x1xf32> to vector<16x16xf32>
    %56 = arith.subf %52, %55 : vector<16x16xf32>
    %57 = math.exp %56 : vector<16x16xf32>
    %cst_35 = arith.constant dense<0.000000e+00> : vector<16xf32>
    %58 = vector.multi_reduction <add>, %57, %cst_35 [1] : vector<16x16xf32> to vector<16xf32>
    %59 = vector.shape_cast %58 : vector<16xf32> to vector<16x1xf32>
    %60 = vector.broadcast %59 : vector<16x1xf32> to vector<16x16xf32>
    %61 = arith.divf %57, %60 : vector<16x16xf32>
    %62 = arith.truncf %61 : vector<16x16xf32> to vector<16x16xbf16>
    %c1_36 = arith.constant 1 : index
    %c0_37 = arith.constant 0 : index
    %c0_38 = arith.constant 0 : index
    %63 = vector.load %arg15[%c1_36, %c0_37, %c0_38] : memref<4x16x16xbf16, #tpu.memory_space<vmem>>, vector<1x16x16xbf16>
    %64 = vector.shape_cast %63 : vector<1x16x16xbf16> to vector<16x16xbf16>
    %cst_39 = arith.constant dense<0.000000e+00> : vector<16x16xf32>
    %65 = tpu.matmul %62, %64, %cst_39 {dimension_numbers = #tpu.dot_dimension_numbers<[1], [0], [0], [1], [0, 0, 1, 1], [], []>} : vector<16x16xbf16>, vector<16x16xbf16>, vector<16x16xf32> -> vector<16x16xf32>
    %66 = arith.truncf %65 : vector<16x16xf32> to vector<16x16xbf16>
    %c16 = arith.constant 16 : index
    %c0_40 = arith.constant 0 : index
    %67 = vector.load %arg9[%c16, %c0_40] : memref<64x64xbf16, #tpu.memory_space<vmem>>, vector<16x64xbf16>
    %cst_41 = arith.constant dense<0.000000e+00> : vector<16x64xf32>
    %68 = tpu.matmul %66, %67, %cst_41 {dimension_numbers = #tpu.dot_dimension_numbers<[1], [0], [0], [1], [0, 0, 1, 1], [], []>} : vector<16x16xbf16>, vector<16x64xbf16>, vector<16x64xf32> -> vector<16x64xf32>
    %69 = arith.addf %39, %68 : vector<16x64xf32>
    %c2 = arith.constant 2 : index
    %c0_42 = arith.constant 0 : index
    %c0_43 = arith.constant 0 : index
    %70 = vector.load %arg3[%c2, %c0_42, %c0_43] : memref<4x64x16xbf16, #tpu.memory_space<vmem>>, vector<1x64x16xbf16>
    %71 = vector.shape_cast %70 : vector<1x64x16xbf16> to vector<64x16xbf16>
    %cst_44 = arith.constant dense<0.000000e+00> : vector<16x16xf32>
    %72 = tpu.matmul %8, %71, %cst_44 {dimension_numbers = #tpu.dot_dimension_numbers<[1], [0], [0], [1], [0, 0, 1, 1], [], []>} : vector<16x64xbf16>, vector<64x16xbf16>, vector<16x16xf32> -> vector<16x16xf32>
    %c2_45 = arith.constant 2 : index
    %c0_46 = arith.constant 0 : index
    %c0_47 = arith.constant 0 : index
    %73 = vector.load %arg6[%c2_45, %c0_46, %c0_47] : memref<4x1x16xf32, #tpu.memory_space<vmem>>, vector<1x1x16xf32>
    %74 = vector.shape_cast %73 : vector<1x1x16xf32> to vector<1x16xf32>
    %75 = vector.broadcast %74 : vector<1x16xf32> to vector<16x16xf32>
    %76 = arith.addf %72, %75 : vector<16x16xf32>
    %c2_48 = arith.constant 2 : index
    %c0_49 = arith.constant 0 : index
    %c0_50 = arith.constant 0 : index
    %77 = vector.load %arg14[%c2_48, %c0_49, %c0_50] : memref<4x16x16xbf16, #tpu.memory_space<vmem>>, vector<1x16x16xbf16>
    %78 = vector.shape_cast %77 : vector<1x16x16xbf16> to vector<16x16xbf16>
    %79 = arith.truncf %76 : vector<16x16xf32> to vector<16x16xbf16>
    %cst_51 = arith.constant dense<0.000000e+00> : vector<16x16xf32>
    %80 = tpu.matmul %79, %78, %cst_51 {dimension_numbers = #tpu.dot_dimension_numbers<[1], [1], [0], [0], [0, 0, 1, 0], [], []>} : vector<16x16xbf16>, vector<16x16xbf16>, vector<16x16xf32> -> vector<16x16xf32>
    %cst_52 = arith.constant 2.500000e-01 : f32
    %81 = vector.broadcast %cst_52 : f32 to vector<16x16xf32>
    %82 = arith.mulf %80, %81 : vector<16x16xf32>
    %cst_53 = arith.constant dense<0xFF800000> : vector<16xf32>
    %83 = vector.multi_reduction <maximumf>, %82, %cst_53 [1] : vector<16x16xf32> to vector<16xf32>
    %84 = vector.shape_cast %83 : vector<16xf32> to vector<16x1xf32>
    %85 = vector.broadcast %84 : vector<16x1xf32> to vector<16x16xf32>
    %86 = arith.subf %82, %85 : vector<16x16xf32>
    %87 = math.exp %86 : vector<16x16xf32>
    %cst_54 = arith.constant dense<0.000000e+00> : vector<16xf32>
    %88 = vector.multi_reduction <add>, %87, %cst_54 [1] : vector<16x16xf32> to vector<16xf32>
    %89 = vector.shape_cast %88 : vector<16xf32> to vector<16x1xf32>
    %90 = vector.broadcast %89 : vector<16x1xf32> to vector<16x16xf32>
    %91 = arith.divf %87, %90 : vector<16x16xf32>
    %92 = arith.truncf %91 : vector<16x16xf32> to vector<16x16xbf16>
    %c2_55 = arith.constant 2 : index
    %c0_56 = arith.constant 0 : index
    %c0_57 = arith.constant 0 : index
    %93 = vector.load %arg15[%c2_55, %c0_56, %c0_57] : memref<4x16x16xbf16, #tpu.memory_space<vmem>>, vector<1x16x16xbf16>
    %94 = vector.shape_cast %93 : vector<1x16x16xbf16> to vector<16x16xbf16>
    %cst_58 = arith.constant dense<0.000000e+00> : vector<16x16xf32>
    %95 = tpu.matmul %92, %94, %cst_58 {dimension_numbers = #tpu.dot_dimension_numbers<[1], [0], [0], [1], [0, 0, 1, 1], [], []>} : vector<16x16xbf16>, vector<16x16xbf16>, vector<16x16xf32> -> vector<16x16xf32>
    %96 = arith.truncf %95 : vector<16x16xf32> to vector<16x16xbf16>
    %c32 = arith.constant 32 : index
    %c0_59 = arith.constant 0 : index
    %97 = vector.load %arg9[%c32, %c0_59] : memref<64x64xbf16, #tpu.memory_space<vmem>>, vector<16x64xbf16>
    %cst_60 = arith.constant dense<0.000000e+00> : vector<16x64xf32>
    %98 = tpu.matmul %96, %97, %cst_60 {dimension_numbers = #tpu.dot_dimension_numbers<[1], [0], [0], [1], [0, 0, 1, 1], [], []>} : vector<16x16xbf16>, vector<16x64xbf16>, vector<16x64xf32> -> vector<16x64xf32>
    %99 = arith.addf %69, %98 : vector<16x64xf32>
    %c3 = arith.constant 3 : index
    %c0_61 = arith.constant 0 : index
    %c0_62 = arith.constant 0 : index
    %100 = vector.load %arg3[%c3, %c0_61, %c0_62] : memref<4x64x16xbf16, #tpu.memory_space<vmem>>, vector<1x64x16xbf16>
    %101 = vector.shape_cast %100 : vector<1x64x16xbf16> to vector<64x16xbf16>
    %cst_63 = arith.constant dense<0.000000e+00> : vector<16x16xf32>
    %102 = tpu.matmul %8, %101, %cst_63 {dimension_numbers = #tpu.dot_dimension_numbers<[1], [0], [0], [1], [0, 0, 1, 1], [], []>} : vector<16x64xbf16>, vector<64x16xbf16>, vector<16x16xf32> -> vector<16x16xf32>
    %c3_64 = arith.constant 3 : index
    %c0_65 = arith.constant 0 : index
    %c0_66 = arith.constant 0 : index
    %103 = vector.load %arg6[%c3_64, %c0_65, %c0_66] : memref<4x1x16xf32, #tpu.memory_space<vmem>>, vector<1x1x16xf32>
    %104 = vector.shape_cast %103 : vector<1x1x16xf32> to vector<1x16xf32>
    %105 = vector.broadcast %104 : vector<1x16xf32> to vector<16x16xf32>
    %106 = arith.addf %102, %105 : vector<16x16xf32>
    %c3_67 = arith.constant 3 : index
    %c0_68 = arith.constant 0 : index
    %c0_69 = arith.constant 0 : index
    %107 = vector.load %arg14[%c3_67, %c0_68, %c0_69] : memref<4x16x16xbf16, #tpu.memory_space<vmem>>, vector<1x16x16xbf16>
    %108 = vector.shape_cast %107 : vector<1x16x16xbf16> to vector<16x16xbf16>
    %109 = arith.truncf %106 : vector<16x16xf32> to vector<16x16xbf16>
    %cst_70 = arith.constant dense<0.000000e+00> : vector<16x16xf32>
    %110 = tpu.matmul %109, %108, %cst_70 {dimension_numbers = #tpu.dot_dimension_numbers<[1], [1], [0], [0], [0, 0, 1, 0], [], []>} : vector<16x16xbf16>, vector<16x16xbf16>, vector<16x16xf32> -> vector<16x16xf32>
    %cst_71 = arith.constant 2.500000e-01 : f32
    %111 = vector.broadcast %cst_71 : f32 to vector<16x16xf32>
    %112 = arith.mulf %110, %111 : vector<16x16xf32>
    %cst_72 = arith.constant dense<0xFF800000> : vector<16xf32>
    %113 = vector.multi_reduction <maximumf>, %112, %cst_72 [1] : vector<16x16xf32> to vector<16xf32>
    %114 = vector.shape_cast %113 : vector<16xf32> to vector<16x1xf32>
    %115 = vector.broadcast %114 : vector<16x1xf32> to vector<16x16xf32>
    %116 = arith.subf %112, %115 : vector<16x16xf32>
    %117 = math.exp %116 : vector<16x16xf32>
    %cst_73 = arith.constant dense<0.000000e+00> : vector<16xf32>
    %118 = vector.multi_reduction <add>, %117, %cst_73 [1] : vector<16x16xf32> to vector<16xf32>
    %119 = vector.shape_cast %118 : vector<16xf32> to vector<16x1xf32>
    %120 = vector.broadcast %119 : vector<16x1xf32> to vector<16x16xf32>
    %121 = arith.divf %117, %120 : vector<16x16xf32>
    %122 = arith.truncf %121 : vector<16x16xf32> to vector<16x16xbf16>
    %c3_74 = arith.constant 3 : index
    %c0_75 = arith.constant 0 : index
    %c0_76 = arith.constant 0 : index
    %123 = vector.load %arg15[%c3_74, %c0_75, %c0_76] : memref<4x16x16xbf16, #tpu.memory_space<vmem>>, vector<1x16x16xbf16>
    %124 = vector.shape_cast %123 : vector<1x16x16xbf16> to vector<16x16xbf16>
    %cst_77 = arith.constant dense<0.000000e+00> : vector<16x16xf32>
    %125 = tpu.matmul %122, %124, %cst_77 {dimension_numbers = #tpu.dot_dimension_numbers<[1], [0], [0], [1], [0, 0, 1, 1], [], []>} : vector<16x16xbf16>, vector<16x16xbf16>, vector<16x16xf32> -> vector<16x16xf32>
    %126 = arith.truncf %125 : vector<16x16xf32> to vector<16x16xbf16>
    %c48 = arith.constant 48 : index
    %c0_78 = arith.constant 0 : index
    %127 = vector.load %arg9[%c48, %c0_78] : memref<64x64xbf16, #tpu.memory_space<vmem>>, vector<16x64xbf16>
    %cst_79 = arith.constant dense<0.000000e+00> : vector<16x64xf32>
    %128 = tpu.matmul %126, %127, %cst_79 {dimension_numbers = #tpu.dot_dimension_numbers<[1], [0], [0], [1], [0, 0, 1, 1], [], []>} : vector<16x16xbf16>, vector<16x64xbf16>, vector<16x64xf32> -> vector<16x64xf32>
    %129 = arith.addf %99, %128 : vector<16x64xf32>
    %c0_80 = arith.constant 0 : index
    %c0_81 = arith.constant 0 : index
    %130 = vector.load %arg10[%c0_80, %c0_81] : memref<1x64xf32, #tpu.memory_space<vmem>>, vector<1x64xf32>
    %131 = vector.broadcast %130 : vector<1x64xf32> to vector<16x64xf32>
    %132 = arith.addf %129, %131 : vector<16x64xf32>
    %133 = arith.addf %7, %132 : vector<16x64xf32>
    %c0_82 = arith.constant 0 : index
    %c0_83 = arith.constant 0 : index
    %134 = vector.load %arg11[%c0_82, %c0_83] : memref<1x64xf32, #tpu.memory_space<vmem>>, vector<1x64xf32>
    %c0_84 = arith.constant 0 : index
    %c0_85 = arith.constant 0 : index
    %135 = vector.load %arg12[%c0_84, %c0_85] : memref<1x64xf32, #tpu.memory_space<vmem>>, vector<1x64xf32>
    %cst_86 = arith.constant dense<0.000000e+00> : vector<16xf32>
    %136 = vector.multi_reduction <add>, %133, %cst_86 [1] : vector<16x64xf32> to vector<16xf32>
    %137 = vector.shape_cast %136 : vector<16xf32> to vector<16x1xf32>
    %cst_87 = arith.constant 6.400000e+01 : f32
    %138 = vector.broadcast %cst_87 : f32 to vector<16x1xf32>
    %139 = arith.divf %137, %138 : vector<16x1xf32>
    %140 = vector.broadcast %139 : vector<16x1xf32> to vector<16x64xf32>
    %141 = arith.subf %133, %140 : vector<16x64xf32>
    %142 = arith.mulf %141, %141 : vector<16x64xf32>
    %cst_88 = arith.constant dense<0.000000e+00> : vector<16xf32>
    %143 = vector.multi_reduction <add>, %142, %cst_88 [1] : vector<16x64xf32> to vector<16xf32>
    %144 = vector.shape_cast %143 : vector<16xf32> to vector<16x1xf32>
    %cst_89 = arith.constant 6.400000e+01 : f32
    %145 = vector.broadcast %cst_89 : f32 to vector<16x1xf32>
    %146 = arith.divf %144, %145 : vector<16x1xf32>
    %cst_90 = arith.constant 9.99999974E-6 : f32
    %147 = vector.broadcast %cst_90 : f32 to vector<16x1xf32>
    %148 = arith.addf %146, %147 : vector<16x1xf32>
    %149 = math.rsqrt %148 : vector<16x1xf32>
    %150 = vector.broadcast %149 : vector<16x1xf32> to vector<16x64xf32>
    %151 = arith.mulf %141, %150 : vector<16x64xf32>
    %152 = vector.broadcast %134 : vector<1x64xf32> to vector<16x64xf32>
    %153 = arith.mulf %151, %152 : vector<16x64xf32>
    %154 = vector.broadcast %135 : vector<1x64xf32> to vector<16x64xf32>
    %155 = arith.addf %153, %154 : vector<16x64xf32>
    %c0_91 = arith.constant 0 : index
    %c0_92 = arith.constant 0 : index
    %c0_93 = arith.constant 0 : index
    %156 = vector.load %arg13[%c0_91, %c0_92, %c0_93] : memref<1x16x64xf32, #tpu.memory_space<vmem>>, vector<1x16x64xf32>
    %157 = vector.shape_cast %156 : vector<1x16x64xf32> to vector<16x64xf32>
    %158 = vector.shape_cast %155 : vector<16x64xf32> to vector<1x16x64xf32>
    tpu.vector_store %arg13[%c0_91, %c0_92, %c0_93], %158 {strides = array<i32>} : memref<1x16x64xf32, #tpu.memory_space<vmem>>, vector<1x16x64xf32>,
    return
  }
  func.func @transform_0(%arg0: i32, %arg1: i32) -> (i32, i32, i32) {
    %c0_i32 = arith.constant 0 : i32
    %c0_i32_0 = arith.constant 0 : i32
    %c0_i32_1 = arith.constant 0 : i32
    return %arg0, %c0_i32, %c0_i32_0 : i32, i32, i32
  }
  func.func @transform_1(%arg0: i32, %arg1: i32) -> (i32, i32, i32) {
    %c0_i32 = arith.constant 0 : i32
    %c0_i32_0 = arith.constant 0 : i32
    %c0_i32_1 = arith.constant 0 : i32
    %c0_i32_2 = arith.constant 0 : i32
    return %c0_i32, %c0_i32_0, %c0_i32_1 : i32, i32, i32
  }
  func.func @transform_2(%arg0: i32, %arg1: i32) -> (i32, i32, i32) {
    %c0_i32 = arith.constant 0 : i32
    %c0_i32_0 = arith.constant 0 : i32
    %c0_i32_1 = arith.constant 0 : i32
    %c0_i32_2 = arith.constant 0 : i32
    return %c0_i32, %c0_i32_0, %c0_i32_1 : i32, i32, i32
  }
  func.func @transform_3(%arg0: i32, %arg1: i32) -> (i32, i32, i32) {
    %c0_i32 = arith.constant 0 : i32
    %c0_i32_0 = arith.constant 0 : i32
    %c0_i32_1 = arith.constant 0 : i32
    %c0_i32_2 = arith.constant 0 : i32
    return %c0_i32, %c0_i32_0, %c0_i32_1 : i32, i32, i32
  }
  func.func @transform_4(%arg0: i32, %arg1: i32) -> (i32, i32, i32) {
    %c0_i32 = arith.constant 0 : i32
    %c0_i32_0 = arith.constant 0 : i32
    %c0_i32_1 = arith.constant 0 : i32
    %c0_i32_2 = arith.constant 0 : i32
    return %c0_i32, %c0_i32_0, %c0_i32_1 : i32, i32, i32
  }
  func.func @transform_5(%arg0: i32, %arg1: i32) -> (i32, i32, i32) {
    %c0_i32 = arith.constant 0 : i32
    %c0_i32_0 = arith.constant 0 : i32
    %c0_i32_1 = arith.constant 0 : i32
    %c0_i32_2 = arith.constant 0 : i32
    return %c0_i32, %c0_i32_0, %c0_i32_1 : i32, i32, i32
  }
  func.func @transform_6(%arg0: i32, %arg1: i32) -> (i32, i32, i32) {
    %c0_i32 = arith.constant 0 : i32
    %c0_i32_0 = arith.constant 0 : i32
    %c0_i32_1 = arith.constant 0 : i32
    %c0_i32_2 = arith.constant 0 : i32
    return %c0_i32, %c0_i32_0, %c0_i32_1 : i32, i32, i32
  }
  func.func @transform_7(%arg0: i32, %arg1: i32) -> (i32, i32) {
    %c0_i32 = arith.constant 0 : i32
    %c0_i32_0 = arith.constant 0 : i32
    %c0_i32_1 = arith.constant 0 : i32
    return %c0_i32, %c0_i32_0 : i32, i32
  }
  func.func @transform_8(%arg0: i32, %arg1: i32) -> (i32, i32) {
    %c0_i32 = arith.constant 0 : i32
    %c0_i32_0 = arith.constant 0 : i32
    %c0_i32_1 = arith.constant 0 : i32
    return %c0_i32, %c0_i32_0 : i32, i32
  }
  func.func @transform_9(%arg0: i32, %arg1: i32) -> (i32, i32) {
    %c0_i32 = arith.constant 0 : i32
    %c0_i32_0 = arith.constant 0 : i32
    %c0_i32_1 = arith.constant 0 : i32
    return %c0_i32, %c0_i32_0 : i32, i32
  }
  func.func @transform_10(%arg0: i32, %arg1: i32) -> (i32, i32) {
    %c0_i32 = arith.constant 0 : i32
    %c0_i32_0 = arith.constant 0 : i32
    %c0_i32_1 = arith.constant 0 : i32
    return %c0_i32, %c0_i32_0 : i32, i32
  }
  func.func @transform_11(%arg0: i32, %arg1: i32) -> (i32, i32, i32) {
    %c0_i32 = arith.constant 0 : i32
    %c0_i32_0 = arith.constant 0 : i32
    return %arg0, %arg1, %c0_i32 : i32, i32, i32
  }
}

module attributes {stable_mosaic.version = 11 : i64} {
  func.func @_cross_attn_res_ln_kernel(%arg0: i32, %arg1: i32, %arg2: memref<1x16x64xf32, #tpu.memory_space<vmem>>, %arg3: memref<1x16x64xf32, #tpu.memory_space<vmem>>, %arg4: memref<1x16x64xf32, #tpu.memory_space<vmem>>, %arg5: memref<1x16x64xf32, #tpu.memory_space<vmem>>, %arg6: memref<4x64x16xbf16, #tpu.memory_space<vmem>>, %arg7: memref<4x64x16xbf16, #tpu.memory_space<vmem>>, %arg8: memref<4x64x16xbf16, #tpu.memory_space<vmem>>, %arg9: memref<4x1x16xf32, #tpu.memory_space<vmem>>, %arg10: memref<4x1x16xf32, #tpu.memory_space<vmem>>, %arg11: memref<4x1x16xf32, #tpu.memory_space<vmem>>, %arg12: memref<64x64xbf16, #tpu.memory_space<vmem>>, %arg13: memref<1x64xf32, #tpu.memory_space<vmem>>, %arg14: memref<1x64xf32, #tpu.memory_space<vmem>>, %arg15: memref<1x64xf32, #tpu.memory_space<vmem>>, %arg16: memref<1x16x64xf32, #tpu.memory_space<vmem>>, %arg17: memref<4x16x16xbf16, #tpu.memory_space<vmem>>, %arg18: memref<4x16x16xbf16, #tpu.memory_space<vmem>>) attributes {dimension_semantics = [#tpu.dimension_semantics<parallel>, #tpu.dimension_semantics<arbitrary>], iteration_bounds = array<i64: 2, 1>, scalar_prefetch = 0 : i64, scratch_operands = 2 : i64, tpu.core_type = #tpu.core_type<tc>, window_params = [{transform_indices = @transform_0, window_bounds = array<i64: 1, 16, 64>}, {transform_indices = @transform_1, window_bounds = array<i64: 1, 16, 64>}, {transform_indices = @transform_2, window_bounds = array<i64: 1, 16, 64>}, {transform_indices = @transform_3, window_bounds = array<i64: 1, 16, 64>}, {pipeline_mode = #tpu.pipeline_mode<synchronous>, transform_indices = @transform_4, window_bounds = array<i64: 4, 64, 16>}, {pipeline_mode = #tpu.pipeline_mode<synchronous>, transform_indices = @transform_5, window_bounds = array<i64: 4, 64, 16>}, {pipeline_mode = #tpu.pipeline_mode<synchronous>, transform_indices = @transform_6, window_bounds = array<i64: 4, 64, 16>}, {pipeline_mode = #tpu.pipeline_mode<synchronous>, transform_indices = @transform_7, window_bounds = array<i64: 4, 1, 16>}, {pipeline_mode = #tpu.pipeline_mode<synchronous>, transform_indices = @transform_8, window_bounds = array<i64: 4, 1, 16>}, {pipeline_mode = #tpu.pipeline_mode<synchronous>, transform_indices = @transform_9, window_bounds = array<i64: 4, 1, 16>}, {pipeline_mode = #tpu.pipeline_mode<synchronous>, transform_indices = @transform_10, window_bounds = array<i64: 64, 64>}, {pipeline_mode = #tpu.pipeline_mode<synchronous>, transform_indices = @transform_11, window_bounds = array<i64: 1, 64>}, {pipeline_mode = #tpu.pipeline_mode<synchronous>, transform_indices = @transform_12, window_bounds = array<i64: 1, 64>}, {pipeline_mode = #tpu.pipeline_mode<synchronous>, transform_indices = @transform_13, window_bounds = array<i64: 1, 64>}, {transform_indices = @transform_14, window_bounds = array<i64: 1, 16, 64>}]} {
    %c0_i32 = arith.constant 0 : i32
    %0 = arith.cmpi eq, %arg1, %c0_i32 : i32
    %1 = arith.extui %0 : i1 to i32
    %c0_i32_0 = arith.constant 0 : i32
    %2 = arith.cmpi ne, %1, %c0_i32_0 : i32
    scf.if %2 {
      %c0_98 = arith.constant 0 : index
      %c0_99 = arith.constant 0 : index
      %c0_100 = arith.constant 0 : index
      %159 = vector.load %arg4[%c0_98, %c0_99, %c0_100] : memref<1x16x64xf32, #tpu.memory_space<vmem>>, vector<1x16x64xf32>
      %160 = vector.shape_cast %159 : vector<1x16x64xf32> to vector<16x64xf32>
      %161 = arith.truncf %160 : vector<16x64xf32> to vector<16x64xbf16>
      %c0_101 = arith.constant 0 : index
      %c0_102 = arith.constant 0 : index
      %c0_103 = arith.constant 0 : index
      %162 = vector.load %arg5[%c0_101, %c0_102, %c0_103] : memref<1x16x64xf32, #tpu.memory_space<vmem>>, vector<1x16x64xf32>
      %163 = vector.shape_cast %162 : vector<1x16x64xf32> to vector<16x64xf32>
      %164 = arith.truncf %163 : vector<16x64xf32> to vector<16x64xbf16>
      %c0_104 = arith.constant 0 : index
      %c0_105 = arith.constant 0 : index
      %c0_106 = arith.constant 0 : index
      %165 = vector.load %arg7[%c0_104, %c0_105, %c0_106] : memref<4x64x16xbf16, #tpu.memory_space<vmem>>, vector<1x64x16xbf16>
      %166 = vector.shape_cast %165 : vector<1x64x16xbf16> to vector<64x16xbf16>
      %cst_107 = arith.constant dense<0.000000e+00> : vector<16x16xf32>
      %167 = tpu.matmul %161, %166, %cst_107 {dimension_numbers = #tpu.dot_dimension_numbers<[1], [0], [0], [1], [0, 0, 1, 1], [], []>} : vector<16x64xbf16>, vector<64x16xbf16>, vector<16x16xf32> -> vector<16x16xf32>
      %c0_108 = arith.constant 0 : index
      %c0_109 = arith.constant 0 : index
      %c0_110 = arith.constant 0 : index
      %168 = vector.load %arg10[%c0_108, %c0_109, %c0_110] : memref<4x1x16xf32, #tpu.memory_space<vmem>>, vector<1x1x16xf32>
      %169 = vector.shape_cast %168 : vector<1x1x16xf32> to vector<1x16xf32>
      %170 = vector.broadcast %169 : vector<1x16xf32> to vector<16x16xf32>
      %171 = arith.addf %167, %170 : vector<16x16xf32>
      %c0_111 = arith.constant 0 : index
      %c0_112 = arith.constant 0 : index
      %c0_113 = arith.constant 0 : index
      %172 = vector.load %arg8[%c0_111, %c0_112, %c0_113] : memref<4x64x16xbf16, #tpu.memory_space<vmem>>, vector<1x64x16xbf16>
      %173 = vector.shape_cast %172 : vector<1x64x16xbf16> to vector<64x16xbf16>
      %cst_114 = arith.constant dense<0.000000e+00> : vector<16x16xf32>
      %174 = tpu.matmul %164, %173, %cst_114 {dimension_numbers = #tpu.dot_dimension_numbers<[1], [0], [0], [1], [0, 0, 1, 1], [], []>} : vector<16x64xbf16>, vector<64x16xbf16>, vector<16x16xf32> -> vector<16x16xf32>
      %c0_115 = arith.constant 0 : index
      %c0_116 = arith.constant 0 : index
      %c0_117 = arith.constant 0 : index
      %175 = vector.load %arg11[%c0_115, %c0_116, %c0_117] : memref<4x1x16xf32, #tpu.memory_space<vmem>>, vector<1x1x16xf32>
      %176 = vector.shape_cast %175 : vector<1x1x16xf32> to vector<1x16xf32>
      %177 = vector.broadcast %176 : vector<1x16xf32> to vector<16x16xf32>
      %178 = arith.addf %174, %177 : vector<16x16xf32>
      %179 = arith.truncf %171 : vector<16x16xf32> to vector<16x16xbf16>
      %c0_118 = arith.constant 0 : index
      %c0_119 = arith.constant 0 : index
      %c0_120 = arith.constant 0 : index
      %180 = vector.load %arg17[%c0_118, %c0_119, %c0_120] : memref<4x16x16xbf16, #tpu.memory_space<vmem>>, vector<1x16x16xbf16>
      %181 = vector.shape_cast %180 : vector<1x16x16xbf16> to vector<16x16xbf16>
      %182 = vector.shape_cast %179 : vector<16x16xbf16> to vector<1x16x16xbf16>
      tpu.vector_store %arg17[%c0_118, %c0_119, %c0_120], %182 {strides = array<i32>} : memref<4x16x16xbf16, #tpu.memory_space<vmem>>, vector<1x16x16xbf16>,
      %183 = arith.truncf %178 : vector<16x16xf32> to vector<16x16xbf16>
      %c0_121 = arith.constant 0 : index
      %c0_122 = arith.constant 0 : index
      %c0_123 = arith.constant 0 : index
      %184 = vector.load %arg18[%c0_121, %c0_122, %c0_123] : memref<4x16x16xbf16, #tpu.memory_space<vmem>>, vector<1x16x16xbf16>
      %185 = vector.shape_cast %184 : vector<1x16x16xbf16> to vector<16x16xbf16>
      %186 = vector.shape_cast %183 : vector<16x16xbf16> to vector<1x16x16xbf16>
      tpu.vector_store %arg18[%c0_121, %c0_122, %c0_123], %186 {strides = array<i32>} : memref<4x16x16xbf16, #tpu.memory_space<vmem>>, vector<1x16x16xbf16>,
      %c1_124 = arith.constant 1 : index
      %c0_125 = arith.constant 0 : index
      %c0_126 = arith.constant 0 : index
      %187 = vector.load %arg7[%c1_124, %c0_125, %c0_126] : memref<4x64x16xbf16, #tpu.memory_space<vmem>>, vector<1x64x16xbf16>
      %188 = vector.shape_cast %187 : vector<1x64x16xbf16> to vector<64x16xbf16>
      %cst_127 = arith.constant dense<0.000000e+00> : vector<16x16xf32>
      %189 = tpu.matmul %161, %188, %cst_127 {dimension_numbers = #tpu.dot_dimension_numbers<[1], [0], [0], [1], [0, 0, 1, 1], [], []>} : vector<16x64xbf16>, vector<64x16xbf16>, vector<16x16xf32> -> vector<16x16xf32>
      %c1_128 = arith.constant 1 : index
      %c0_129 = arith.constant 0 : index
      %c0_130 = arith.constant 0 : index
      %190 = vector.load %arg10[%c1_128, %c0_129, %c0_130] : memref<4x1x16xf32, #tpu.memory_space<vmem>>, vector<1x1x16xf32>
      %191 = vector.shape_cast %190 : vector<1x1x16xf32> to vector<1x16xf32>
      %192 = vector.broadcast %191 : vector<1x16xf32> to vector<16x16xf32>
      %193 = arith.addf %189, %192 : vector<16x16xf32>
      %c1_131 = arith.constant 1 : index
      %c0_132 = arith.constant 0 : index
      %c0_133 = arith.constant 0 : index
      %194 = vector.load %arg8[%c1_131, %c0_132, %c0_133] : memref<4x64x16xbf16, #tpu.memory_space<vmem>>, vector<1x64x16xbf16>
      %195 = vector.shape_cast %194 : vector<1x64x16xbf16> to vector<64x16xbf16>
      %cst_134 = arith.constant dense<0.000000e+00> : vector<16x16xf32>
      %196 = tpu.matmul %164, %195, %cst_134 {dimension_numbers = #tpu.dot_dimension_numbers<[1], [0], [0], [1], [0, 0, 1, 1], [], []>} : vector<16x64xbf16>, vector<64x16xbf16>, vector<16x16xf32> -> vector<16x16xf32>
      %c1_135 = arith.constant 1 : index
      %c0_136 = arith.constant 0 : index
      %c0_137 = arith.constant 0 : index
      %197 = vector.load %arg11[%c1_135, %c0_136, %c0_137] : memref<4x1x16xf32, #tpu.memory_space<vmem>>, vector<1x1x16xf32>
      %198 = vector.shape_cast %197 : vector<1x1x16xf32> to vector<1x16xf32>
      %199 = vector.broadcast %198 : vector<1x16xf32> to vector<16x16xf32>
      %200 = arith.addf %196, %199 : vector<16x16xf32>
      %201 = arith.truncf %193 : vector<16x16xf32> to vector<16x16xbf16>
      %c1_138 = arith.constant 1 : index
      %c0_139 = arith.constant 0 : index
      %c0_140 = arith.constant 0 : index
      %202 = vector.load %arg17[%c1_138, %c0_139, %c0_140] : memref<4x16x16xbf16, #tpu.memory_space<vmem>>, vector<1x16x16xbf16>
      %203 = vector.shape_cast %202 : vector<1x16x16xbf16> to vector<16x16xbf16>
      %204 = vector.shape_cast %201 : vector<16x16xbf16> to vector<1x16x16xbf16>
      tpu.vector_store %arg17[%c1_138, %c0_139, %c0_140], %204 {strides = array<i32>} : memref<4x16x16xbf16, #tpu.memory_space<vmem>>, vector<1x16x16xbf16>,
      %205 = arith.truncf %200 : vector<16x16xf32> to vector<16x16xbf16>
      %c1_141 = arith.constant 1 : index
      %c0_142 = arith.constant 0 : index
      %c0_143 = arith.constant 0 : index
      %206 = vector.load %arg18[%c1_141, %c0_142, %c0_143] : memref<4x16x16xbf16, #tpu.memory_space<vmem>>, vector<1x16x16xbf16>
      %207 = vector.shape_cast %206 : vector<1x16x16xbf16> to vector<16x16xbf16>
      %208 = vector.shape_cast %205 : vector<16x16xbf16> to vector<1x16x16xbf16>
      tpu.vector_store %arg18[%c1_141, %c0_142, %c0_143], %208 {strides = array<i32>} : memref<4x16x16xbf16, #tpu.memory_space<vmem>>, vector<1x16x16xbf16>,
      %c2_144 = arith.constant 2 : index
      %c0_145 = arith.constant 0 : index
      %c0_146 = arith.constant 0 : index
      %209 = vector.load %arg7[%c2_144, %c0_145, %c0_146] : memref<4x64x16xbf16, #tpu.memory_space<vmem>>, vector<1x64x16xbf16>
      %210 = vector.shape_cast %209 : vector<1x64x16xbf16> to vector<64x16xbf16>
      %cst_147 = arith.constant dense<0.000000e+00> : vector<16x16xf32>
      %211 = tpu.matmul %161, %210, %cst_147 {dimension_numbers = #tpu.dot_dimension_numbers<[1], [0], [0], [1], [0, 0, 1, 1], [], []>} : vector<16x64xbf16>, vector<64x16xbf16>, vector<16x16xf32> -> vector<16x16xf32>
      %c2_148 = arith.constant 2 : index
      %c0_149 = arith.constant 0 : index
      %c0_150 = arith.constant 0 : index
      %212 = vector.load %arg10[%c2_148, %c0_149, %c0_150] : memref<4x1x16xf32, #tpu.memory_space<vmem>>, vector<1x1x16xf32>
      %213 = vector.shape_cast %212 : vector<1x1x16xf32> to vector<1x16xf32>
      %214 = vector.broadcast %213 : vector<1x16xf32> to vector<16x16xf32>
      %215 = arith.addf %211, %214 : vector<16x16xf32>
      %c2_151 = arith.constant 2 : index
      %c0_152 = arith.constant 0 : index
      %c0_153 = arith.constant 0 : index
      %216 = vector.load %arg8[%c2_151, %c0_152, %c0_153] : memref<4x64x16xbf16, #tpu.memory_space<vmem>>, vector<1x64x16xbf16>
      %217 = vector.shape_cast %216 : vector<1x64x16xbf16> to vector<64x16xbf16>
      %cst_154 = arith.constant dense<0.000000e+00> : vector<16x16xf32>
      %218 = tpu.matmul %164, %217, %cst_154 {dimension_numbers = #tpu.dot_dimension_numbers<[1], [0], [0], [1], [0, 0, 1, 1], [], []>} : vector<16x64xbf16>, vector<64x16xbf16>, vector<16x16xf32> -> vector<16x16xf32>
      %c2_155 = arith.constant 2 : index
      %c0_156 = arith.constant 0 : index
      %c0_157 = arith.constant 0 : index
      %219 = vector.load %arg11[%c2_155, %c0_156, %c0_157] : memref<4x1x16xf32, #tpu.memory_space<vmem>>, vector<1x1x16xf32>
      %220 = vector.shape_cast %219 : vector<1x1x16xf32> to vector<1x16xf32>
      %221 = vector.broadcast %220 : vector<1x16xf32> to vector<16x16xf32>
      %222 = arith.addf %218, %221 : vector<16x16xf32>
      %223 = arith.truncf %215 : vector<16x16xf32> to vector<16x16xbf16>
      %c2_158 = arith.constant 2 : index
      %c0_159 = arith.constant 0 : index
      %c0_160 = arith.constant 0 : index
      %224 = vector.load %arg17[%c2_158, %c0_159, %c0_160] : memref<4x16x16xbf16, #tpu.memory_space<vmem>>, vector<1x16x16xbf16>
      %225 = vector.shape_cast %224 : vector<1x16x16xbf16> to vector<16x16xbf16>
      %226 = vector.shape_cast %223 : vector<16x16xbf16> to vector<1x16x16xbf16>
      tpu.vector_store %arg17[%c2_158, %c0_159, %c0_160], %226 {strides = array<i32>} : memref<4x16x16xbf16, #tpu.memory_space<vmem>>, vector<1x16x16xbf16>,
      %227 = arith.truncf %222 : vector<16x16xf32> to vector<16x16xbf16>
      %c2_161 = arith.constant 2 : index
      %c0_162 = arith.constant 0 : index
      %c0_163 = arith.constant 0 : index
      %228 = vector.load %arg18[%c2_161, %c0_162, %c0_163] : memref<4x16x16xbf16, #tpu.memory_space<vmem>>, vector<1x16x16xbf16>
      %229 = vector.shape_cast %228 : vector<1x16x16xbf16> to vector<16x16xbf16>
      %230 = vector.shape_cast %227 : vector<16x16xbf16> to vector<1x16x16xbf16>
      tpu.vector_store %arg18[%c2_161, %c0_162, %c0_163], %230 {strides = array<i32>} : memref<4x16x16xbf16, #tpu.memory_space<vmem>>, vector<1x16x16xbf16>,
      %c3_164 = arith.constant 3 : index
      %c0_165 = arith.constant 0 : index
      %c0_166 = arith.constant 0 : index
      %231 = vector.load %arg7[%c3_164, %c0_165, %c0_166] : memref<4x64x16xbf16, #tpu.memory_space<vmem>>, vector<1x64x16xbf16>
      %232 = vector.shape_cast %231 : vector<1x64x16xbf16> to vector<64x16xbf16>
      %cst_167 = arith.constant dense<0.000000e+00> : vector<16x16xf32>
      %233 = tpu.matmul %161, %232, %cst_167 {dimension_numbers = #tpu.dot_dimension_numbers<[1], [0], [0], [1], [0, 0, 1, 1], [], []>} : vector<16x64xbf16>, vector<64x16xbf16>, vector<16x16xf32> -> vector<16x16xf32>
      %c3_168 = arith.constant 3 : index
      %c0_169 = arith.constant 0 : index
      %c0_170 = arith.constant 0 : index
      %234 = vector.load %arg10[%c3_168, %c0_169, %c0_170] : memref<4x1x16xf32, #tpu.memory_space<vmem>>, vector<1x1x16xf32>
      %235 = vector.shape_cast %234 : vector<1x1x16xf32> to vector<1x16xf32>
      %236 = vector.broadcast %235 : vector<1x16xf32> to vector<16x16xf32>
      %237 = arith.addf %233, %236 : vector<16x16xf32>
      %c3_171 = arith.constant 3 : index
      %c0_172 = arith.constant 0 : index
      %c0_173 = arith.constant 0 : index
      %238 = vector.load %arg8[%c3_171, %c0_172, %c0_173] : memref<4x64x16xbf16, #tpu.memory_space<vmem>>, vector<1x64x16xbf16>
      %239 = vector.shape_cast %238 : vector<1x64x16xbf16> to vector<64x16xbf16>
      %cst_174 = arith.constant dense<0.000000e+00> : vector<16x16xf32>
      %240 = tpu.matmul %164, %239, %cst_174 {dimension_numbers = #tpu.dot_dimension_numbers<[1], [0], [0], [1], [0, 0, 1, 1], [], []>} : vector<16x64xbf16>, vector<64x16xbf16>, vector<16x16xf32> -> vector<16x16xf32>
      %c3_175 = arith.constant 3 : index
      %c0_176 = arith.constant 0 : index
      %c0_177 = arith.constant 0 : index
      %241 = vector.load %arg11[%c3_175, %c0_176, %c0_177] : memref<4x1x16xf32, #tpu.memory_space<vmem>>, vector<1x1x16xf32>
      %242 = vector.shape_cast %241 : vector<1x1x16xf32> to vector<1x16xf32>
      %243 = vector.broadcast %242 : vector<1x16xf32> to vector<16x16xf32>
      %244 = arith.addf %240, %243 : vector<16x16xf32>
      %245 = arith.truncf %237 : vector<16x16xf32> to vector<16x16xbf16>
      %c3_178 = arith.constant 3 : index
      %c0_179 = arith.constant 0 : index
      %c0_180 = arith.constant 0 : index
      %246 = vector.load %arg17[%c3_178, %c0_179, %c0_180] : memref<4x16x16xbf16, #tpu.memory_space<vmem>>, vector<1x16x16xbf16>
      %247 = vector.shape_cast %246 : vector<1x16x16xbf16> to vector<16x16xbf16>
      %248 = vector.shape_cast %245 : vector<16x16xbf16> to vector<1x16x16xbf16>
      tpu.vector_store %arg17[%c3_178, %c0_179, %c0_180], %248 {strides = array<i32>} : memref<4x16x16xbf16, #tpu.memory_space<vmem>>, vector<1x16x16xbf16>,
      %249 = arith.truncf %244 : vector<16x16xf32> to vector<16x16xbf16>
      %c3_181 = arith.constant 3 : index
      %c0_182 = arith.constant 0 : index
      %c0_183 = arith.constant 0 : index
      %250 = vector.load %arg18[%c3_181, %c0_182, %c0_183] : memref<4x16x16xbf16, #tpu.memory_space<vmem>>, vector<1x16x16xbf16>
      %251 = vector.shape_cast %250 : vector<1x16x16xbf16> to vector<16x16xbf16>
      %252 = vector.shape_cast %249 : vector<16x16xbf16> to vector<1x16x16xbf16>
      tpu.vector_store %arg18[%c3_181, %c0_182, %c0_183], %252 {strides = array<i32>} : memref<4x16x16xbf16, #tpu.memory_space<vmem>>, vector<1x16x16xbf16>,
    } else {
    }
    %c0 = arith.constant 0 : index
    %c0_1 = arith.constant 0 : index
    %c0_2 = arith.constant 0 : index
    %3 = vector.load %arg2[%c0, %c0_1, %c0_2] : memref<1x16x64xf32, #tpu.memory_space<vmem>>, vector<1x16x64xf32>
    %4 = vector.shape_cast %3 : vector<1x16x64xf32> to vector<16x64xf32>
    %c0_3 = arith.constant 0 : index
    %c0_4 = arith.constant 0 : index
    %c0_5 = arith.constant 0 : index
    %5 = vector.load %arg3[%c0_3, %c0_4, %c0_5] : memref<1x16x64xf32, #tpu.memory_space<vmem>>, vector<1x16x64xf32>
    %6 = vector.shape_cast %5 : vector<1x16x64xf32> to vector<16x64xf32>
    %7 = arith.addf %4, %6 : vector<16x64xf32>
    %8 = arith.truncf %7 : vector<16x64xf32> to vector<16x64xbf16>
    %cst = arith.constant 0.000000e+00 : f32
    %9 = vector.broadcast %cst : f32 to vector<16x64xf32>
    %c0_6 = arith.constant 0 : index
    %c0_7 = arith.constant 0 : index
    %c0_8 = arith.constant 0 : index
    %10 = vector.load %arg6[%c0_6, %c0_7, %c0_8] : memref<4x64x16xbf16, #tpu.memory_space<vmem>>, vector<1x64x16xbf16>
    %11 = vector.shape_cast %10 : vector<1x64x16xbf16> to vector<64x16xbf16>
    %cst_9 = arith.constant dense<0.000000e+00> : vector<16x16xf32>
    %12 = tpu.matmul %8, %11, %cst_9 {dimension_numbers = #tpu.dot_dimension_numbers<[1], [0], [0], [1], [0, 0, 1, 1], [], []>} : vector<16x64xbf16>, vector<64x16xbf16>, vector<16x16xf32> -> vector<16x16xf32>
    %c0_10 = arith.constant 0 : index
    %c0_11 = arith.constant 0 : index
    %c0_12 = arith.constant 0 : index
    %13 = vector.load %arg9[%c0_10, %c0_11, %c0_12] : memref<4x1x16xf32, #tpu.memory_space<vmem>>, vector<1x1x16xf32>
    %14 = vector.shape_cast %13 : vector<1x1x16xf32> to vector<1x16xf32>
    %15 = vector.broadcast %14 : vector<1x16xf32> to vector<16x16xf32>
    %16 = arith.addf %12, %15 : vector<16x16xf32>
    %c0_13 = arith.constant 0 : index
    %c0_14 = arith.constant 0 : index
    %c0_15 = arith.constant 0 : index
    %17 = vector.load %arg17[%c0_13, %c0_14, %c0_15] : memref<4x16x16xbf16, #tpu.memory_space<vmem>>, vector<1x16x16xbf16>
    %18 = vector.shape_cast %17 : vector<1x16x16xbf16> to vector<16x16xbf16>
    %19 = arith.truncf %16 : vector<16x16xf32> to vector<16x16xbf16>
    %cst_16 = arith.constant dense<0.000000e+00> : vector<16x16xf32>
    %20 = tpu.matmul %19, %18, %cst_16 {dimension_numbers = #tpu.dot_dimension_numbers<[1], [1], [0], [0], [0, 0, 1, 0], [], []>} : vector<16x16xbf16>, vector<16x16xbf16>, vector<16x16xf32> -> vector<16x16xf32>
    %cst_17 = arith.constant 2.500000e-01 : f32
    %21 = vector.broadcast %cst_17 : f32 to vector<16x16xf32>
    %22 = arith.mulf %20, %21 : vector<16x16xf32>
    %cst_18 = arith.constant dense<0xFF800000> : vector<16xf32>
    %23 = vector.multi_reduction <maximumf>, %22, %cst_18 [1] : vector<16x16xf32> to vector<16xf32>
    %24 = vector.shape_cast %23 : vector<16xf32> to vector<16x1xf32>
    %25 = vector.broadcast %24 : vector<16x1xf32> to vector<16x16xf32>
    %26 = arith.subf %22, %25 : vector<16x16xf32>
    %27 = math.exp %26 : vector<16x16xf32>
    %cst_19 = arith.constant dense<0.000000e+00> : vector<16xf32>
    %28 = vector.multi_reduction <add>, %27, %cst_19 [1] : vector<16x16xf32> to vector<16xf32>
    %29 = vector.shape_cast %28 : vector<16xf32> to vector<16x1xf32>
    %30 = vector.broadcast %29 : vector<16x1xf32> to vector<16x16xf32>
    %31 = arith.divf %27, %30 : vector<16x16xf32>
    %32 = arith.truncf %31 : vector<16x16xf32> to vector<16x16xbf16>
    %c0_20 = arith.constant 0 : index
    %c0_21 = arith.constant 0 : index
    %c0_22 = arith.constant 0 : index
    %33 = vector.load %arg18[%c0_20, %c0_21, %c0_22] : memref<4x16x16xbf16, #tpu.memory_space<vmem>>, vector<1x16x16xbf16>
    %34 = vector.shape_cast %33 : vector<1x16x16xbf16> to vector<16x16xbf16>
    %cst_23 = arith.constant dense<0.000000e+00> : vector<16x16xf32>
    %35 = tpu.matmul %32, %34, %cst_23 {dimension_numbers = #tpu.dot_dimension_numbers<[1], [0], [0], [1], [0, 0, 1, 1], [], []>} : vector<16x16xbf16>, vector<16x16xbf16>, vector<16x16xf32> -> vector<16x16xf32>
    %36 = arith.truncf %35 : vector<16x16xf32> to vector<16x16xbf16>
    %c0_24 = arith.constant 0 : index
    %c0_25 = arith.constant 0 : index
    %37 = vector.load %arg12[%c0_24, %c0_25] : memref<64x64xbf16, #tpu.memory_space<vmem>>, vector<16x64xbf16>
    %cst_26 = arith.constant dense<0.000000e+00> : vector<16x64xf32>
    %38 = tpu.matmul %36, %37, %cst_26 {dimension_numbers = #tpu.dot_dimension_numbers<[1], [0], [0], [1], [0, 0, 1, 1], [], []>} : vector<16x16xbf16>, vector<16x64xbf16>, vector<16x64xf32> -> vector<16x64xf32>
    %39 = arith.addf %9, %38 : vector<16x64xf32>
    %c1 = arith.constant 1 : index
    %c0_27 = arith.constant 0 : index
    %c0_28 = arith.constant 0 : index
    %40 = vector.load %arg6[%c1, %c0_27, %c0_28] : memref<4x64x16xbf16, #tpu.memory_space<vmem>>, vector<1x64x16xbf16>
    %41 = vector.shape_cast %40 : vector<1x64x16xbf16> to vector<64x16xbf16>
    %cst_29 = arith.constant dense<0.000000e+00> : vector<16x16xf32>
    %42 = tpu.matmul %8, %41, %cst_29 {dimension_numbers = #tpu.dot_dimension_numbers<[1], [0], [0], [1], [0, 0, 1, 1], [], []>} : vector<16x64xbf16>, vector<64x16xbf16>, vector<16x16xf32> -> vector<16x16xf32>
    %c1_30 = arith.constant 1 : index
    %c0_31 = arith.constant 0 : index
    %c0_32 = arith.constant 0 : index
    %43 = vector.load %arg9[%c1_30, %c0_31, %c0_32] : memref<4x1x16xf32, #tpu.memory_space<vmem>>, vector<1x1x16xf32>
    %44 = vector.shape_cast %43 : vector<1x1x16xf32> to vector<1x16xf32>
    %45 = vector.broadcast %44 : vector<1x16xf32> to vector<16x16xf32>
    %46 = arith.addf %42, %45 : vector<16x16xf32>
    %c1_33 = arith.constant 1 : index
    %c0_34 = arith.constant 0 : index
    %c0_35 = arith.constant 0 : index
    %47 = vector.load %arg17[%c1_33, %c0_34, %c0_35] : memref<4x16x16xbf16, #tpu.memory_space<vmem>>, vector<1x16x16xbf16>
    %48 = vector.shape_cast %47 : vector<1x16x16xbf16> to vector<16x16xbf16>
    %49 = arith.truncf %46 : vector<16x16xf32> to vector<16x16xbf16>
    %cst_36 = arith.constant dense<0.000000e+00> : vector<16x16xf32>
    %50 = tpu.matmul %49, %48, %cst_36 {dimension_numbers = #tpu.dot_dimension_numbers<[1], [1], [0], [0], [0, 0, 1, 0], [], []>} : vector<16x16xbf16>, vector<16x16xbf16>, vector<16x16xf32> -> vector<16x16xf32>
    %cst_37 = arith.constant 2.500000e-01 : f32
    %51 = vector.broadcast %cst_37 : f32 to vector<16x16xf32>
    %52 = arith.mulf %50, %51 : vector<16x16xf32>
    %cst_38 = arith.constant dense<0xFF800000> : vector<16xf32>
    %53 = vector.multi_reduction <maximumf>, %52, %cst_38 [1] : vector<16x16xf32> to vector<16xf32>
    %54 = vector.shape_cast %53 : vector<16xf32> to vector<16x1xf32>
    %55 = vector.broadcast %54 : vector<16x1xf32> to vector<16x16xf32>
    %56 = arith.subf %52, %55 : vector<16x16xf32>
    %57 = math.exp %56 : vector<16x16xf32>
    %cst_39 = arith.constant dense<0.000000e+00> : vector<16xf32>
    %58 = vector.multi_reduction <add>, %57, %cst_39 [1] : vector<16x16xf32> to vector<16xf32>
    %59 = vector.shape_cast %58 : vector<16xf32> to vector<16x1xf32>
    %60 = vector.broadcast %59 : vector<16x1xf32> to vector<16x16xf32>
    %61 = arith.divf %57, %60 : vector<16x16xf32>
    %62 = arith.truncf %61 : vector<16x16xf32> to vector<16x16xbf16>
    %c1_40 = arith.constant 1 : index
    %c0_41 = arith.constant 0 : index
    %c0_42 = arith.constant 0 : index
    %63 = vector.load %arg18[%c1_40, %c0_41, %c0_42] : memref<4x16x16xbf16, #tpu.memory_space<vmem>>, vector<1x16x16xbf16>
    %64 = vector.shape_cast %63 : vector<1x16x16xbf16> to vector<16x16xbf16>
    %cst_43 = arith.constant dense<0.000000e+00> : vector<16x16xf32>
    %65 = tpu.matmul %62, %64, %cst_43 {dimension_numbers = #tpu.dot_dimension_numbers<[1], [0], [0], [1], [0, 0, 1, 1], [], []>} : vector<16x16xbf16>, vector<16x16xbf16>, vector<16x16xf32> -> vector<16x16xf32>
    %66 = arith.truncf %65 : vector<16x16xf32> to vector<16x16xbf16>
    %c16 = arith.constant 16 : index
    %c0_44 = arith.constant 0 : index
    %67 = vector.load %arg12[%c16, %c0_44] : memref<64x64xbf16, #tpu.memory_space<vmem>>, vector<16x64xbf16>
    %cst_45 = arith.constant dense<0.000000e+00> : vector<16x64xf32>
    %68 = tpu.matmul %66, %67, %cst_45 {dimension_numbers = #tpu.dot_dimension_numbers<[1], [0], [0], [1], [0, 0, 1, 1], [], []>} : vector<16x16xbf16>, vector<16x64xbf16>, vector<16x64xf32> -> vector<16x64xf32>
    %69 = arith.addf %39, %68 : vector<16x64xf32>
    %c2 = arith.constant 2 : index
    %c0_46 = arith.constant 0 : index
    %c0_47 = arith.constant 0 : index
    %70 = vector.load %arg6[%c2, %c0_46, %c0_47] : memref<4x64x16xbf16, #tpu.memory_space<vmem>>, vector<1x64x16xbf16>
    %71 = vector.shape_cast %70 : vector<1x64x16xbf16> to vector<64x16xbf16>
    %cst_48 = arith.constant dense<0.000000e+00> : vector<16x16xf32>
    %72 = tpu.matmul %8, %71, %cst_48 {dimension_numbers = #tpu.dot_dimension_numbers<[1], [0], [0], [1], [0, 0, 1, 1], [], []>} : vector<16x64xbf16>, vector<64x16xbf16>, vector<16x16xf32> -> vector<16x16xf32>
    %c2_49 = arith.constant 2 : index
    %c0_50 = arith.constant 0 : index
    %c0_51 = arith.constant 0 : index
    %73 = vector.load %arg9[%c2_49, %c0_50, %c0_51] : memref<4x1x16xf32, #tpu.memory_space<vmem>>, vector<1x1x16xf32>
    %74 = vector.shape_cast %73 : vector<1x1x16xf32> to vector<1x16xf32>
    %75 = vector.broadcast %74 : vector<1x16xf32> to vector<16x16xf32>
    %76 = arith.addf %72, %75 : vector<16x16xf32>
    %c2_52 = arith.constant 2 : index
    %c0_53 = arith.constant 0 : index
    %c0_54 = arith.constant 0 : index
    %77 = vector.load %arg17[%c2_52, %c0_53, %c0_54] : memref<4x16x16xbf16, #tpu.memory_space<vmem>>, vector<1x16x16xbf16>
    %78 = vector.shape_cast %77 : vector<1x16x16xbf16> to vector<16x16xbf16>
    %79 = arith.truncf %76 : vector<16x16xf32> to vector<16x16xbf16>
    %cst_55 = arith.constant dense<0.000000e+00> : vector<16x16xf32>
    %80 = tpu.matmul %79, %78, %cst_55 {dimension_numbers = #tpu.dot_dimension_numbers<[1], [1], [0], [0], [0, 0, 1, 0], [], []>} : vector<16x16xbf16>, vector<16x16xbf16>, vector<16x16xf32> -> vector<16x16xf32>
    %cst_56 = arith.constant 2.500000e-01 : f32
    %81 = vector.broadcast %cst_56 : f32 to vector<16x16xf32>
    %82 = arith.mulf %80, %81 : vector<16x16xf32>
    %cst_57 = arith.constant dense<0xFF800000> : vector<16xf32>
    %83 = vector.multi_reduction <maximumf>, %82, %cst_57 [1] : vector<16x16xf32> to vector<16xf32>
    %84 = vector.shape_cast %83 : vector<16xf32> to vector<16x1xf32>
    %85 = vector.broadcast %84 : vector<16x1xf32> to vector<16x16xf32>
    %86 = arith.subf %82, %85 : vector<16x16xf32>
    %87 = math.exp %86 : vector<16x16xf32>
    %cst_58 = arith.constant dense<0.000000e+00> : vector<16xf32>
    %88 = vector.multi_reduction <add>, %87, %cst_58 [1] : vector<16x16xf32> to vector<16xf32>
    %89 = vector.shape_cast %88 : vector<16xf32> to vector<16x1xf32>
    %90 = vector.broadcast %89 : vector<16x1xf32> to vector<16x16xf32>
    %91 = arith.divf %87, %90 : vector<16x16xf32>
    %92 = arith.truncf %91 : vector<16x16xf32> to vector<16x16xbf16>
    %c2_59 = arith.constant 2 : index
    %c0_60 = arith.constant 0 : index
    %c0_61 = arith.constant 0 : index
    %93 = vector.load %arg18[%c2_59, %c0_60, %c0_61] : memref<4x16x16xbf16, #tpu.memory_space<vmem>>, vector<1x16x16xbf16>
    %94 = vector.shape_cast %93 : vector<1x16x16xbf16> to vector<16x16xbf16>
    %cst_62 = arith.constant dense<0.000000e+00> : vector<16x16xf32>
    %95 = tpu.matmul %92, %94, %cst_62 {dimension_numbers = #tpu.dot_dimension_numbers<[1], [0], [0], [1], [0, 0, 1, 1], [], []>} : vector<16x16xbf16>, vector<16x16xbf16>, vector<16x16xf32> -> vector<16x16xf32>
    %96 = arith.truncf %95 : vector<16x16xf32> to vector<16x16xbf16>
    %c32 = arith.constant 32 : index
    %c0_63 = arith.constant 0 : index
    %97 = vector.load %arg12[%c32, %c0_63] : memref<64x64xbf16, #tpu.memory_space<vmem>>, vector<16x64xbf16>
    %cst_64 = arith.constant dense<0.000000e+00> : vector<16x64xf32>
    %98 = tpu.matmul %96, %97, %cst_64 {dimension_numbers = #tpu.dot_dimension_numbers<[1], [0], [0], [1], [0, 0, 1, 1], [], []>} : vector<16x16xbf16>, vector<16x64xbf16>, vector<16x64xf32> -> vector<16x64xf32>
    %99 = arith.addf %69, %98 : vector<16x64xf32>
    %c3 = arith.constant 3 : index
    %c0_65 = arith.constant 0 : index
    %c0_66 = arith.constant 0 : index
    %100 = vector.load %arg6[%c3, %c0_65, %c0_66] : memref<4x64x16xbf16, #tpu.memory_space<vmem>>, vector<1x64x16xbf16>
    %101 = vector.shape_cast %100 : vector<1x64x16xbf16> to vector<64x16xbf16>
    %cst_67 = arith.constant dense<0.000000e+00> : vector<16x16xf32>
    %102 = tpu.matmul %8, %101, %cst_67 {dimension_numbers = #tpu.dot_dimension_numbers<[1], [0], [0], [1], [0, 0, 1, 1], [], []>} : vector<16x64xbf16>, vector<64x16xbf16>, vector<16x16xf32> -> vector<16x16xf32>
    %c3_68 = arith.constant 3 : index
    %c0_69 = arith.constant 0 : index
    %c0_70 = arith.constant 0 : index
    %103 = vector.load %arg9[%c3_68, %c0_69, %c0_70] : memref<4x1x16xf32, #tpu.memory_space<vmem>>, vector<1x1x16xf32>
    %104 = vector.shape_cast %103 : vector<1x1x16xf32> to vector<1x16xf32>
    %105 = vector.broadcast %104 : vector<1x16xf32> to vector<16x16xf32>
    %106 = arith.addf %102, %105 : vector<16x16xf32>
    %c3_71 = arith.constant 3 : index
    %c0_72 = arith.constant 0 : index
    %c0_73 = arith.constant 0 : index
    %107 = vector.load %arg17[%c3_71, %c0_72, %c0_73] : memref<4x16x16xbf16, #tpu.memory_space<vmem>>, vector<1x16x16xbf16>
    %108 = vector.shape_cast %107 : vector<1x16x16xbf16> to vector<16x16xbf16>
    %109 = arith.truncf %106 : vector<16x16xf32> to vector<16x16xbf16>
    %cst_74 = arith.constant dense<0.000000e+00> : vector<16x16xf32>
    %110 = tpu.matmul %109, %108, %cst_74 {dimension_numbers = #tpu.dot_dimension_numbers<[1], [1], [0], [0], [0, 0, 1, 0], [], []>} : vector<16x16xbf16>, vector<16x16xbf16>, vector<16x16xf32> -> vector<16x16xf32>
    %cst_75 = arith.constant 2.500000e-01 : f32
    %111 = vector.broadcast %cst_75 : f32 to vector<16x16xf32>
    %112 = arith.mulf %110, %111 : vector<16x16xf32>
    %cst_76 = arith.constant dense<0xFF800000> : vector<16xf32>
    %113 = vector.multi_reduction <maximumf>, %112, %cst_76 [1] : vector<16x16xf32> to vector<16xf32>
    %114 = vector.shape_cast %113 : vector<16xf32> to vector<16x1xf32>
    %115 = vector.broadcast %114 : vector<16x1xf32> to vector<16x16xf32>
    %116 = arith.subf %112, %115 : vector<16x16xf32>
    %117 = math.exp %116 : vector<16x16xf32>
    %cst_77 = arith.constant dense<0.000000e+00> : vector<16xf32>
    %118 = vector.multi_reduction <add>, %117, %cst_77 [1] : vector<16x16xf32> to vector<16xf32>
    %119 = vector.shape_cast %118 : vector<16xf32> to vector<16x1xf32>
    %120 = vector.broadcast %119 : vector<16x1xf32> to vector<16x16xf32>
    %121 = arith.divf %117, %120 : vector<16x16xf32>
    %122 = arith.truncf %121 : vector<16x16xf32> to vector<16x16xbf16>
    %c3_78 = arith.constant 3 : index
    %c0_79 = arith.constant 0 : index
    %c0_80 = arith.constant 0 : index
    %123 = vector.load %arg18[%c3_78, %c0_79, %c0_80] : memref<4x16x16xbf16, #tpu.memory_space<vmem>>, vector<1x16x16xbf16>
    %124 = vector.shape_cast %123 : vector<1x16x16xbf16> to vector<16x16xbf16>
    %cst_81 = arith.constant dense<0.000000e+00> : vector<16x16xf32>
    %125 = tpu.matmul %122, %124, %cst_81 {dimension_numbers = #tpu.dot_dimension_numbers<[1], [0], [0], [1], [0, 0, 1, 1], [], []>} : vector<16x16xbf16>, vector<16x16xbf16>, vector<16x16xf32> -> vector<16x16xf32>
    %126 = arith.truncf %125 : vector<16x16xf32> to vector<16x16xbf16>
    %c48 = arith.constant 48 : index
    %c0_82 = arith.constant 0 : index
    %127 = vector.load %arg12[%c48, %c0_82] : memref<64x64xbf16, #tpu.memory_space<vmem>>, vector<16x64xbf16>
    %cst_83 = arith.constant dense<0.000000e+00> : vector<16x64xf32>
    %128 = tpu.matmul %126, %127, %cst_83 {dimension_numbers = #tpu.dot_dimension_numbers<[1], [0], [0], [1], [0, 0, 1, 1], [], []>} : vector<16x16xbf16>, vector<16x64xbf16>, vector<16x64xf32> -> vector<16x64xf32>
    %129 = arith.addf %99, %128 : vector<16x64xf32>
    %c0_84 = arith.constant 0 : index
    %c0_85 = arith.constant 0 : index
    %130 = vector.load %arg13[%c0_84, %c0_85] : memref<1x64xf32, #tpu.memory_space<vmem>>, vector<1x64xf32>
    %131 = vector.broadcast %130 : vector<1x64xf32> to vector<16x64xf32>
    %132 = arith.addf %129, %131 : vector<16x64xf32>
    %133 = arith.addf %4, %132 : vector<16x64xf32>
    %c0_86 = arith.constant 0 : index
    %c0_87 = arith.constant 0 : index
    %134 = vector.load %arg14[%c0_86, %c0_87] : memref<1x64xf32, #tpu.memory_space<vmem>>, vector<1x64xf32>
    %c0_88 = arith.constant 0 : index
    %c0_89 = arith.constant 0 : index
    %135 = vector.load %arg15[%c0_88, %c0_89] : memref<1x64xf32, #tpu.memory_space<vmem>>, vector<1x64xf32>
    %cst_90 = arith.constant dense<0.000000e+00> : vector<16xf32>
    %136 = vector.multi_reduction <add>, %133, %cst_90 [1] : vector<16x64xf32> to vector<16xf32>
    %137 = vector.shape_cast %136 : vector<16xf32> to vector<16x1xf32>
    %cst_91 = arith.constant 6.400000e+01 : f32
    %138 = vector.broadcast %cst_91 : f32 to vector<16x1xf32>
    %139 = arith.divf %137, %138 : vector<16x1xf32>
    %140 = vector.broadcast %139 : vector<16x1xf32> to vector<16x64xf32>
    %141 = arith.subf %133, %140 : vector<16x64xf32>
    %142 = arith.mulf %141, %141 : vector<16x64xf32>
    %cst_92 = arith.constant dense<0.000000e+00> : vector<16xf32>
    %143 = vector.multi_reduction <add>, %142, %cst_92 [1] : vector<16x64xf32> to vector<16xf32>
    %144 = vector.shape_cast %143 : vector<16xf32> to vector<16x1xf32>
    %cst_93 = arith.constant 6.400000e+01 : f32
    %145 = vector.broadcast %cst_93 : f32 to vector<16x1xf32>
    %146 = arith.divf %144, %145 : vector<16x1xf32>
    %cst_94 = arith.constant 9.99999974E-6 : f32
    %147 = vector.broadcast %cst_94 : f32 to vector<16x1xf32>
    %148 = arith.addf %146, %147 : vector<16x1xf32>
    %149 = math.rsqrt %148 : vector<16x1xf32>
    %150 = vector.broadcast %149 : vector<16x1xf32> to vector<16x64xf32>
    %151 = arith.mulf %141, %150 : vector<16x64xf32>
    %152 = vector.broadcast %134 : vector<1x64xf32> to vector<16x64xf32>
    %153 = arith.mulf %151, %152 : vector<16x64xf32>
    %154 = vector.broadcast %135 : vector<1x64xf32> to vector<16x64xf32>
    %155 = arith.addf %153, %154 : vector<16x64xf32>
    %c0_95 = arith.constant 0 : index
    %c0_96 = arith.constant 0 : index
    %c0_97 = arith.constant 0 : index
    %156 = vector.load %arg16[%c0_95, %c0_96, %c0_97] : memref<1x16x64xf32, #tpu.memory_space<vmem>>, vector<1x16x64xf32>
    %157 = vector.shape_cast %156 : vector<1x16x64xf32> to vector<16x64xf32>
    %158 = vector.shape_cast %155 : vector<16x64xf32> to vector<1x16x64xf32>
    tpu.vector_store %arg16[%c0_95, %c0_96, %c0_97], %158 {strides = array<i32>} : memref<1x16x64xf32, #tpu.memory_space<vmem>>, vector<1x16x64xf32>,
    return
  }
  func.func @transform_0(%arg0: i32, %arg1: i32) -> (i32, i32, i32) {
    %c0_i32 = arith.constant 0 : i32
    %c0_i32_0 = arith.constant 0 : i32
    return %arg0, %arg1, %c0_i32 : i32, i32, i32
  }
  func.func @transform_1(%arg0: i32, %arg1: i32) -> (i32, i32, i32) {
    %c0_i32 = arith.constant 0 : i32
    %c0_i32_0 = arith.constant 0 : i32
    return %arg0, %arg1, %c0_i32 : i32, i32, i32
  }
  func.func @transform_2(%arg0: i32, %arg1: i32) -> (i32, i32, i32) {
    %c0_i32 = arith.constant 0 : i32
    %c0_i32_0 = arith.constant 0 : i32
    %c0_i32_1 = arith.constant 0 : i32
    return %arg0, %c0_i32, %c0_i32_0 : i32, i32, i32
  }
  func.func @transform_3(%arg0: i32, %arg1: i32) -> (i32, i32, i32) {
    %c0_i32 = arith.constant 0 : i32
    %c0_i32_0 = arith.constant 0 : i32
    %c0_i32_1 = arith.constant 0 : i32
    return %arg0, %c0_i32, %c0_i32_0 : i32, i32, i32
  }
  func.func @transform_4(%arg0: i32, %arg1: i32) -> (i32, i32, i32) {
    %c0_i32 = arith.constant 0 : i32
    %c0_i32_0 = arith.constant 0 : i32
    %c0_i32_1 = arith.constant 0 : i32
    %c0_i32_2 = arith.constant 0 : i32
    return %c0_i32, %c0_i32_0, %c0_i32_1 : i32, i32, i32
  }
  func.func @transform_5(%arg0: i32, %arg1: i32) -> (i32, i32, i32) {
    %c0_i32 = arith.constant 0 : i32
    %c0_i32_0 = arith.constant 0 : i32
    %c0_i32_1 = arith.constant 0 : i32
    %c0_i32_2 = arith.constant 0 : i32
    return %c0_i32, %c0_i32_0, %c0_i32_1 : i32, i32, i32
  }
  func.func @transform_6(%arg0: i32, %arg1: i32) -> (i32, i32, i32) {
    %c0_i32 = arith.constant 0 : i32
    %c0_i32_0 = arith.constant 0 : i32
    %c0_i32_1 = arith.constant 0 : i32
    %c0_i32_2 = arith.constant 0 : i32
    return %c0_i32, %c0_i32_0, %c0_i32_1 : i32, i32, i32
  }
  func.func @transform_7(%arg0: i32, %arg1: i32) -> (i32, i32, i32) {
    %c0_i32 = arith.constant 0 : i32
    %c0_i32_0 = arith.constant 0 : i32
    %c0_i32_1 = arith.constant 0 : i32
    %c0_i32_2 = arith.constant 0 : i32
    return %c0_i32, %c0_i32_0, %c0_i32_1 : i32, i32, i32
  }
  func.func @transform_8(%arg0: i32, %arg1: i32) -> (i32, i32, i32) {
    %c0_i32 = arith.constant 0 : i32
    %c0_i32_0 = arith.constant 0 : i32
    %c0_i32_1 = arith.constant 0 : i32
    %c0_i32_2 = arith.constant 0 : i32
    return %c0_i32, %c0_i32_0, %c0_i32_1 : i32, i32, i32
  }
  func.func @transform_9(%arg0: i32, %arg1: i32) -> (i32, i32, i32) {
    %c0_i32 = arith.constant 0 : i32
    %c0_i32_0 = arith.constant 0 : i32
    %c0_i32_1 = arith.constant 0 : i32
    %c0_i32_2 = arith.constant 0 : i32
    return %c0_i32, %c0_i32_0, %c0_i32_1 : i32, i32, i32
  }
  func.func @transform_10(%arg0: i32, %arg1: i32) -> (i32, i32) {
    %c0_i32 = arith.constant 0 : i32
    %c0_i32_0 = arith.constant 0 : i32
    %c0_i32_1 = arith.constant 0 : i32
    return %c0_i32, %c0_i32_0 : i32, i32
  }
  func.func @transform_11(%arg0: i32, %arg1: i32) -> (i32, i32) {
    %c0_i32 = arith.constant 0 : i32
    %c0_i32_0 = arith.constant 0 : i32
    %c0_i32_1 = arith.constant 0 : i32
    return %c0_i32, %c0_i32_0 : i32, i32
  }
  func.func @transform_12(%arg0: i32, %arg1: i32) -> (i32, i32) {
    %c0_i32 = arith.constant 0 : i32
    %c0_i32_0 = arith.constant 0 : i32
    %c0_i32_1 = arith.constant 0 : i32
    return %c0_i32, %c0_i32_0 : i32, i32
  }
  func.func @transform_13(%arg0: i32, %arg1: i32) -> (i32, i32) {
    %c0_i32 = arith.constant 0 : i32
    %c0_i32_0 = arith.constant 0 : i32
    %c0_i32_1 = arith.constant 0 : i32
    return %c0_i32, %c0_i32_0 : i32, i32
  }
  func.func @transform_14(%arg0: i32, %arg1: i32) -> (i32, i32, i32) {
    %c0_i32 = arith.constant 0 : i32
    %c0_i32_0 = arith.constant 0 : i32
    return %arg0, %arg1, %c0_i32 : i32, i32, i32
  }
}

module attributes {stable_mosaic.version = 11 : i64} {
  func.func @_ffn_res_ln_kernel(%arg0: i32, %arg1: memref<16x64xf32, #tpu.memory_space<vmem>>, %arg2: memref<64x128xbf16, #tpu.memory_space<vmem>>, %arg3: memref<1x128xf32, #tpu.memory_space<vmem>>, %arg4: memref<128x64xbf16, #tpu.memory_space<vmem>>, %arg5: memref<1x64xf32, #tpu.memory_space<vmem>>, %arg6: memref<1x64xf32, #tpu.memory_space<vmem>>, %arg7: memref<1x64xf32, #tpu.memory_space<vmem>>, %arg8: memref<1x64xf32, #tpu.memory_space<vmem>>, %arg9: memref<1x64xf32, #tpu.memory_space<vmem>>, %arg10: memref<16x64xf32, #tpu.memory_space<vmem>>) attributes {dimension_semantics = [#tpu.dimension_semantics<parallel>], iteration_bounds = array<i64: 2>, scalar_prefetch = 0 : i64, scratch_operands = 0 : i64, tpu.core_type = #tpu.core_type<tc>, window_params = [{transform_indices = @transform_0, window_bounds = array<i64: 16, 64>}, {pipeline_mode = #tpu.pipeline_mode<synchronous>, transform_indices = @transform_1, window_bounds = array<i64: 64, 128>}, {pipeline_mode = #tpu.pipeline_mode<synchronous>, transform_indices = @transform_2, window_bounds = array<i64: 1, 128>}, {pipeline_mode = #tpu.pipeline_mode<synchronous>, transform_indices = @transform_3, window_bounds = array<i64: 128, 64>}, {pipeline_mode = #tpu.pipeline_mode<synchronous>, transform_indices = @transform_4, window_bounds = array<i64: 1, 64>}, {pipeline_mode = #tpu.pipeline_mode<synchronous>, transform_indices = @transform_5, window_bounds = array<i64: 1, 64>}, {pipeline_mode = #tpu.pipeline_mode<synchronous>, transform_indices = @transform_6, window_bounds = array<i64: 1, 64>}, {pipeline_mode = #tpu.pipeline_mode<synchronous>, transform_indices = @transform_7, window_bounds = array<i64: 1, 64>}, {pipeline_mode = #tpu.pipeline_mode<synchronous>, transform_indices = @transform_8, window_bounds = array<i64: 1, 64>}, {transform_indices = @transform_9, window_bounds = array<i64: 16, 64>}]} {
    %c0 = arith.constant 0 : index
    %c0_0 = arith.constant 0 : index
    %0 = vector.load %arg1[%c0, %c0_0] : memref<16x64xf32, #tpu.memory_space<vmem>>, vector<16x64xf32>
    %1 = arith.truncf %0 : vector<16x64xf32> to vector<16x64xbf16>
    %c0_1 = arith.constant 0 : index
    %c0_2 = arith.constant 0 : index
    %2 = vector.load %arg2[%c0_1, %c0_2] : memref<64x128xbf16, #tpu.memory_space<vmem>>, vector<64x128xbf16>
    %cst = arith.constant dense<0.000000e+00> : vector<16x128xf32>
    %3 = tpu.matmul %1, %2, %cst {dimension_numbers = #tpu.dot_dimension_numbers<[1], [0], [0], [1], [0, 0, 1, 1], [], []>} : vector<16x64xbf16>, vector<64x128xbf16>, vector<16x128xf32> -> vector<16x128xf32>
    %c0_3 = arith.constant 0 : index
    %c0_4 = arith.constant 0 : index
    %4 = vector.load %arg3[%c0_3, %c0_4] : memref<1x128xf32, #tpu.memory_space<vmem>>, vector<1x128xf32>
    %5 = vector.broadcast %4 : vector<1x128xf32> to vector<16x128xf32>
    %6 = arith.addf %3, %5 : vector<16x128xf32>
    %cst_5 = arith.constant 0.000000e+00 : f32
    %7 = vector.broadcast %cst_5 : f32 to vector<16x128xf32>
    %8 = arith.maximumf %6, %7 : vector<16x128xf32>
    %9 = arith.truncf %8 : vector<16x128xf32> to vector<16x128xbf16>
    %c0_6 = arith.constant 0 : index
    %c0_7 = arith.constant 0 : index
    %10 = vector.load %arg4[%c0_6, %c0_7] : memref<128x64xbf16, #tpu.memory_space<vmem>>, vector<128x64xbf16>
    %cst_8 = arith.constant dense<0.000000e+00> : vector<16x64xf32>
    %11 = tpu.matmul %9, %10, %cst_8 {dimension_numbers = #tpu.dot_dimension_numbers<[1], [0], [0], [1], [0, 0, 1, 1], [], []>} : vector<16x128xbf16>, vector<128x64xbf16>, vector<16x64xf32> -> vector<16x64xf32>
    %c0_9 = arith.constant 0 : index
    %c0_10 = arith.constant 0 : index
    %12 = vector.load %arg5[%c0_9, %c0_10] : memref<1x64xf32, #tpu.memory_space<vmem>>, vector<1x64xf32>
    %13 = vector.broadcast %12 : vector<1x64xf32> to vector<16x64xf32>
    %14 = arith.addf %11, %13 : vector<16x64xf32>
    %15 = arith.addf %0, %14 : vector<16x64xf32>
    %c0_11 = arith.constant 0 : index
    %c0_12 = arith.constant 0 : index
    %16 = vector.load %arg6[%c0_11, %c0_12] : memref<1x64xf32, #tpu.memory_space<vmem>>, vector<1x64xf32>
    %c0_13 = arith.constant 0 : index
    %c0_14 = arith.constant 0 : index
    %17 = vector.load %arg7[%c0_13, %c0_14] : memref<1x64xf32, #tpu.memory_space<vmem>>, vector<1x64xf32>
    %cst_15 = arith.constant dense<0.000000e+00> : vector<16xf32>
    %18 = vector.multi_reduction <add>, %15, %cst_15 [1] : vector<16x64xf32> to vector<16xf32>
    %19 = vector.shape_cast %18 : vector<16xf32> to vector<16x1xf32>
    %cst_16 = arith.constant 6.400000e+01 : f32
    %20 = vector.broadcast %cst_16 : f32 to vector<16x1xf32>
    %21 = arith.divf %19, %20 : vector<16x1xf32>
    %22 = vector.broadcast %21 : vector<16x1xf32> to vector<16x64xf32>
    %23 = arith.subf %15, %22 : vector<16x64xf32>
    %24 = arith.mulf %23, %23 : vector<16x64xf32>
    %cst_17 = arith.constant dense<0.000000e+00> : vector<16xf32>
    %25 = vector.multi_reduction <add>, %24, %cst_17 [1] : vector<16x64xf32> to vector<16xf32>
    %26 = vector.shape_cast %25 : vector<16xf32> to vector<16x1xf32>
    %cst_18 = arith.constant 6.400000e+01 : f32
    %27 = vector.broadcast %cst_18 : f32 to vector<16x1xf32>
    %28 = arith.divf %26, %27 : vector<16x1xf32>
    %cst_19 = arith.constant 9.99999974E-6 : f32
    %29 = vector.broadcast %cst_19 : f32 to vector<16x1xf32>
    %30 = arith.addf %28, %29 : vector<16x1xf32>
    %31 = math.rsqrt %30 : vector<16x1xf32>
    %32 = vector.broadcast %31 : vector<16x1xf32> to vector<16x64xf32>
    %33 = arith.mulf %23, %32 : vector<16x64xf32>
    %34 = vector.broadcast %16 : vector<1x64xf32> to vector<16x64xf32>
    %35 = arith.mulf %33, %34 : vector<16x64xf32>
    %36 = vector.broadcast %17 : vector<1x64xf32> to vector<16x64xf32>
    %37 = arith.addf %35, %36 : vector<16x64xf32>
    %c0_20 = arith.constant 0 : index
    %c0_21 = arith.constant 0 : index
    %38 = vector.load %arg8[%c0_20, %c0_21] : memref<1x64xf32, #tpu.memory_space<vmem>>, vector<1x64xf32>
    %c0_22 = arith.constant 0 : index
    %c0_23 = arith.constant 0 : index
    %39 = vector.load %arg9[%c0_22, %c0_23] : memref<1x64xf32, #tpu.memory_space<vmem>>, vector<1x64xf32>
    %cst_24 = arith.constant dense<0.000000e+00> : vector<16xf32>
    %40 = vector.multi_reduction <add>, %37, %cst_24 [1] : vector<16x64xf32> to vector<16xf32>
    %41 = vector.shape_cast %40 : vector<16xf32> to vector<16x1xf32>
    %cst_25 = arith.constant 6.400000e+01 : f32
    %42 = vector.broadcast %cst_25 : f32 to vector<16x1xf32>
    %43 = arith.divf %41, %42 : vector<16x1xf32>
    %44 = vector.broadcast %43 : vector<16x1xf32> to vector<16x64xf32>
    %45 = arith.subf %37, %44 : vector<16x64xf32>
    %46 = arith.mulf %45, %45 : vector<16x64xf32>
    %cst_26 = arith.constant dense<0.000000e+00> : vector<16xf32>
    %47 = vector.multi_reduction <add>, %46, %cst_26 [1] : vector<16x64xf32> to vector<16xf32>
    %48 = vector.shape_cast %47 : vector<16xf32> to vector<16x1xf32>
    %cst_27 = arith.constant 6.400000e+01 : f32
    %49 = vector.broadcast %cst_27 : f32 to vector<16x1xf32>
    %50 = arith.divf %48, %49 : vector<16x1xf32>
    %cst_28 = arith.constant 9.99999974E-6 : f32
    %51 = vector.broadcast %cst_28 : f32 to vector<16x1xf32>
    %52 = arith.addf %50, %51 : vector<16x1xf32>
    %53 = math.rsqrt %52 : vector<16x1xf32>
    %54 = vector.broadcast %53 : vector<16x1xf32> to vector<16x64xf32>
    %55 = arith.mulf %45, %54 : vector<16x64xf32>
    %56 = vector.broadcast %38 : vector<1x64xf32> to vector<16x64xf32>
    %57 = arith.mulf %55, %56 : vector<16x64xf32>
    %58 = vector.broadcast %39 : vector<1x64xf32> to vector<16x64xf32>
    %59 = arith.addf %57, %58 : vector<16x64xf32>
    %c0_29 = arith.constant 0 : index
    %c0_30 = arith.constant 0 : index
    %60 = vector.load %arg10[%c0_29, %c0_30] : memref<16x64xf32, #tpu.memory_space<vmem>>, vector<16x64xf32>
    tpu.vector_store %arg10[%c0_29, %c0_30], %59 {strides = array<i32>} : memref<16x64xf32, #tpu.memory_space<vmem>>, vector<16x64xf32>,
    return
  }
  func.func @transform_0(%arg0: i32) -> (i32, i32) {
    %c0_i32 = arith.constant 0 : i32
    %c0_i32_0 = arith.constant 0 : i32
    return %arg0, %c0_i32 : i32, i32
  }
  func.func @transform_1(%arg0: i32) -> (i32, i32) {
    %c0_i32 = arith.constant 0 : i32
    %c0_i32_0 = arith.constant 0 : i32
    %c0_i32_1 = arith.constant 0 : i32
    return %c0_i32, %c0_i32_0 : i32, i32
  }
  func.func @transform_2(%arg0: i32) -> (i32, i32) {
    %c0_i32 = arith.constant 0 : i32
    %c0_i32_0 = arith.constant 0 : i32
    %c0_i32_1 = arith.constant 0 : i32
    return %c0_i32, %c0_i32_0 : i32, i32
  }
  func.func @transform_3(%arg0: i32) -> (i32, i32) {
    %c0_i32 = arith.constant 0 : i32
    %c0_i32_0 = arith.constant 0 : i32
    %c0_i32_1 = arith.constant 0 : i32
    return %c0_i32, %c0_i32_0 : i32, i32
  }
  func.func @transform_4(%arg0: i32) -> (i32, i32) {
    %c0_i32 = arith.constant 0 : i32
    %c0_i32_0 = arith.constant 0 : i32
    %c0_i32_1 = arith.constant 0 : i32
    return %c0_i32, %c0_i32_0 : i32, i32
  }
  func.func @transform_5(%arg0: i32) -> (i32, i32) {
    %c0_i32 = arith.constant 0 : i32
    %c0_i32_0 = arith.constant 0 : i32
    %c0_i32_1 = arith.constant 0 : i32
    return %c0_i32, %c0_i32_0 : i32, i32
  }
  func.func @transform_6(%arg0: i32) -> (i32, i32) {
    %c0_i32 = arith.constant 0 : i32
    %c0_i32_0 = arith.constant 0 : i32
    %c0_i32_1 = arith.constant 0 : i32
    return %c0_i32, %c0_i32_0 : i32, i32
  }
  func.func @transform_7(%arg0: i32) -> (i32, i32) {
    %c0_i32 = arith.constant 0 : i32
    %c0_i32_0 = arith.constant 0 : i32
    %c0_i32_1 = arith.constant 0 : i32
    return %c0_i32, %c0_i32_0 : i32, i32
  }
  func.func @transform_8(%arg0: i32) -> (i32, i32) {
    %c0_i32 = arith.constant 0 : i32
    %c0_i32_0 = arith.constant 0 : i32
    %c0_i32_1 = arith.constant 0 : i32
    return %c0_i32, %c0_i32_0 : i32, i32
  }
  func.func @transform_9(%arg0: i32) -> (i32, i32) {
    %c0_i32 = arith.constant 0 : i32
    %c0_i32_0 = arith.constant 0 : i32
    return %arg0, %c0_i32 : i32, i32
  }
}

</mosaic_0001>

<llo_original>
// kernel: transformer_forward.15
$region0: #{transformer_forward.15}
  #allocation0 [shape = 'u32[]', space=smem, size = 0x4, offset = 0x4, fixed_abs, tag = 'smem constant byte address 0x4 - core index']
  #allocation1 [shape = 'u32[72,128]{1,0:T(1,128)}', space=vmem, size = 0x9000, scoped, tag = 'internal scratch']
  %s0 = inlined_call_operand.vmem [shape: f32[32,64], index: 0, kind: input, shape index: {}]
  %s1 = inlined_call_operand.vmem [shape: bf16[64,128], index: 1, kind: input, shape index: {}]
  %s2 = inlined_call_operand.vmem [shape: f32[1,128], index: 2, kind: input, shape index: {}]
  %s3 = inlined_call_operand.vmem [shape: bf16[128,64], index: 3, kind: input, shape index: {}]
  %s4 = inlined_call_operand.vmem [shape: f32[1,64], index: 4, kind: input, shape index: {}]
  %s5 = inlined_call_operand.vmem [shape: f32[1,64], index: 5, kind: input, shape index: {}]
  %s6 = inlined_call_operand.vmem [shape: f32[1,64], index: 6, kind: input, shape index: {}]
  %s7 = inlined_call_operand.vmem [shape: f32[32,64], index: 7, kind: output, shape index: {}]
  %s8 = sld [smem:[#allocation0]]
  $region61: #{transformer_forward.15} parent=0
    _
  %s10 = ssub.s32 1, %s8
  %s11 = scalar_select 0, %s10, %s8
  loop: start=0, step=1, limit=4
  $region2: #{transformer_forward.15} parent=0 // loop_pre_header
    _
  $region3: #{transformer_forward.15} parent=0 // loop_header
    %s13 = sphi 0, %s17
    %p14 = scmp.ge.s32.totalorder %s13, 4
    %s23 = sphi 0, %s25
    %s26 = sphi 0, %s23
    %s27 = sphi 0, %s26
    %s43 = sphi 0, %s27
    %s47 = sphi 0, %s47
    %s49 = sphi 0, %s47
    %s50 = sphi 0, %s49
    %s64 = sphi 0, %s50
    %s68 = sphi 0, %s68
    %s70 = sphi 0, %s68
    %s71 = sphi 0, %s70
    %s85 = sphi 0, %s71
    %s89 = sphi 0, %s89
    %s91 = sphi 0, %s89
    %s92 = sphi 0, %s91
    %s106 = sphi 0, %s92
    %s110 = sphi 0, %s110
    %s112 = sphi 0, %s110
    %s113 = sphi 0, %s112
    %s127 = sphi 0, %s113
    %s131 = sphi 0, %s131
    %s133 = sphi 0, %s131
    %s134 = sphi 0, %s133
    %s148 = sphi 0, %s134
    %s152 = sphi 0, %s152
    %s154 = sphi 0, %s152
    %s155 = sphi 0, %s154
    %s169 = sphi 0, %s155
    %s175 = sphi 0, %s177
    %s178 = sphi 0, %s175
    %s179 = sphi 0, %s178
    %s195 = sphi 0, %s179
  $region4: #{transformer_forward.15} parent=0 // loop_header_branch
    %16 = sbr.rel (%p14) target = $region8
  $region5: #{transformer_forward.15} parent=0 // loop_body
    %s18 = ssub.s32 %s13, 1
    %s19 = ssub.s32 %s13, 2
    %s20 = sadd.s32 %s13, 1
    %s21 = ssub.s32 %s13, %s20
    %p22 = scmp.eq.s32.totalorder %s21, 0
    %s24 = sadd.s32 %s23, 1
    %s25 = scalar_select %p22, %s23, %s24
    %p28 = pneg %p22
    %p29 = scmp.eq.s32.totalorder %s13, 1
    %p30 = por %p28, %p29
    %p31 = scmp.ne.s32.totalorder %s23, %s26
    %p32 = scmp.eq.s32.totalorder %s13, 0
    %p33 = por %p31, %p32
    %p34 = scmp.ne.s32.totalorder %s23, %s26
    %p35 = scmp.eq.s32.totalorder %s18, 1
    %p36 = por %p34, %p35
    %p37 = scmp.ne.s32.totalorder %s26, %s27
    %p38 = scmp.eq.s32.totalorder %s18, 0
    %p39 = por %p37, %p38
    %p40 = scmp.ne.s32.totalorder %s26, %s27
    %p41 = scmp.eq.s32.totalorder %s19, 1
    %p42 = por %p40, %p41
    %p44 = scmp.ne.s32.totalorder %s27, %s43
    %p45 = scmp.eq.s32.totalorder %s19, 0
    %p46 = por %p44, %p45
    %s48 = sadd.s32 %s47, 1
    %p51 = scmp.eq.s32.totalorder %s13, 1
    %p52 = scmp.ne.s32.totalorder %s47, %s49
    %p53 = scmp.eq.s32.totalorder %s13, 0
    %p54 = por %p52, %p53
    %p55 = scmp.ne.s32.totalorder %s47, %s49
    %p56 = scmp.eq.s32.totalorder %s18, 1
    %p57 = por %p55, %p56
    %p58 = scmp.ne.s32.totalorder %s49, %s50
    %p59 = scmp.eq.s32.totalorder %s18, 0
    %p60 = por %p58, %p59
    %p61 = scmp.ne.s32.totalorder %s49, %s50
    %p62 = scmp.eq.s32.totalorder %s19, 1
    %p63 = por %p61, %p62
    %p65 = scmp.ne.s32.totalorder %s50, %s64
    %p66 = scmp.eq.s32.totalorder %s19, 0
    %p67 = por %p65, %p66
    %s69 = sadd.s32 %s68, 1
    %p72 = scmp.eq.s32.totalorder %s13, 1
    %p73 = scmp.ne.s32.totalorder %s68, %s70
    %p74 = scmp.eq.s32.totalorder %s13, 0
    %p75 = por %p73, %p74
    %p76 = scmp.ne.s32.totalorder %s68, %s70
    %p77 = scmp.eq.s32.totalorder %s18, 1
    %p78 = por %p76, %p77
    %p79 = scmp.ne.s32.totalorder %s70, %s71
    %p80 = scmp.eq.s32.totalorder %s18, 0
    %p81 = por %p79, %p80
    %p82 = scmp.ne.s32.totalorder %s70, %s71
    %p83 = scmp.eq.s32.totalorder %s19, 1
    %p84 = por %p82, %p83
    %p86 = scmp.ne.s32.totalorder %s71, %s85
    %p87 = scmp.eq.s32.totalorder %s19, 0
    %p88 = por %p86, %p87
    %s90 = sadd.s32 %s89, 1
    %p93 = scmp.eq.s32.totalorder %s13, 1
    %p94 = scmp.ne.s32.totalorder %s89, %s91
    %p95 = scmp.eq.s32.totalorder %s13, 0
    %p96 = por %p94, %p95
    %p97 = scmp.ne.s32.totalorder %s89, %s91
    %p98 = scmp.eq.s32.totalorder %s18, 1
    %p99 = por %p97, %p98
    %p100 = scmp.ne.s32.totalorder %s91, %s92
    %p101 = scmp.eq.s32.totalorder %s18, 0
    %p102 = por %p100, %p101
    %p103 = scmp.ne.s32.totalorder %s91, %s92
    %p104 = scmp.eq.s32.totalorder %s19, 1
    %p105 = por %p103, %p104
    %p107 = scmp.ne.s32.totalorder %s92, %s106
    %p108 = scmp.eq.s32.totalorder %s19, 0
    %p109 = por %p107, %p108
    %s111 = sadd.s32 %s110, 1
    %p114 = scmp.eq.s32.totalorder %s13, 1
    %p115 = scmp.ne.s32.totalorder %s110, %s112
    %p116 = scmp.eq.s32.totalorder %s13, 0
    %p117 = por %p115, %p116
    %p118 = scmp.ne.s32.totalorder %s110, %s112
    %p119 = scmp.eq.s32.totalorder %s18, 1
    %p120 = por %p118, %p119
    %p121 = scmp.ne.s32.totalorder %s112, %s113
    %p122 = scmp.eq.s32.totalorder %s18, 0
    %p123 = por %p121, %p122
    %p124 = scmp.ne.s32.totalorder %s112, %s113
    %p125 = scmp.eq.s32.totalorder %s19, 1
    %p126 = por %p124, %p125
    %p128 = scmp.ne.s32.totalorder %s113, %s127
    %p129 = scmp.eq.s32.totalorder %s19, 0
    %p130 = por %p128, %p129
    %s132 = sadd.s32 %s131, 1
    %p135 = scmp.eq.s32.totalorder %s13, 1
    %p136 = scmp.ne.s32.totalorder %s131, %s133
    %p137 = scmp.eq.s32.totalorder %s13, 0
    %p138 = por %p136, %p137
    %p139 = scmp.ne.s32.totalorder %s131, %s133
    %p140 = scmp.eq.s32.totalorder %s18, 1
    %p141 = por %p139, %p140
    %p142 = scmp.ne.s32.totalorder %s133, %s134
    %p143 = scmp.eq.s32.totalorder %s18, 0
    %p144 = por %p142, %p143
    %p145 = scmp.ne.s32.totalorder %s133, %s134
    %p146 = scmp.eq.s32.totalorder %s19, 1
    %p147 = por %p145, %p146
    %p149 = scmp.ne.s32.totalorder %s134, %s148
    %p150 = scmp.eq.s32.totalorder %s19, 0
    %p151 = por %p149, %p150
    %s153 = sadd.s32 %s152, 1
    %p156 = scmp.eq.s32.totalorder %s13, 1
    %p157 = scmp.ne.s32.totalorder %s152, %s154
    %p158 = scmp.eq.s32.totalorder %s13, 0
    %p159 = por %p157, %p158
    %p160 = scmp.ne.s32.totalorder %s152, %s154
    %p161 = scmp.eq.s32.totalorder %s18, 1
    %p162 = por %p160, %p161
    %p163 = scmp.ne.s32.totalorder %s154, %s155
    %p164 = scmp.eq.s32.totalorder %s18, 0
    %p165 = por %p163, %p164
    %p166 = scmp.ne.s32.totalorder %s154, %s155
    %p167 = scmp.eq.s32.totalorder %s19, 1
    %p168 = por %p166, %p167
    %p170 = scmp.ne.s32.totalorder %s155, %s169
    %p171 = scmp.eq.s32.totalorder %s19, 0
    %p172 = por %p170, %p171
    %s173 = ssub.s32 %s13, %s20
    %p174 = scmp.eq.s32.totalorder %s173, 0
    %s176 = sadd.s32 %s175, 1
    %s177 = scalar_select %p174, %s175, %s176
    %p180 = pneg %p174
    %p181 = scmp.eq.s32.totalorder %s13, 1
    %p182 = por %p180, %p181
    %p183 = scmp.ne.s32.totalorder %s175, %s178
    %p184 = scmp.eq.s32.totalorder %s13, 0
    %p185 = por %p183, %p184
    %p186 = scmp.ne.s32.totalorder %s175, %s178
    %p187 = scmp.eq.s32.totalorder %s18, 1
    %p188 = por %p186, %p187
    %p189 = scmp.ne.s32.totalorder %s178, %s179
    %p190 = scmp.eq.s32.totalorder %s18, 0
    %p191 = por %p189, %p190
    %p192 = scmp.ne.s32.totalorder %s178, %s179
    %p193 = scmp.eq.s32.totalorder %s19, 1
    %p194 = por %p192, %p193
    %p196 = scmp.ne.s32.totalorder %s179, %s195
    %p197 = scmp.eq.s32.totalorder %s19, 0
    %p198 = por %p196, %p197
    %p199 = scmp.le.s32.totalorder 1, %s13
    %p200 = scmp.lt.s32.totalorder %s13, 3
    %p201 = pnand %p199, %p200
    %p202 = pneg %p201
    // Predicated region
    $region9: #{transformer_forward.15} parent=5 // pred_check
      _
    $region10: #{transformer_forward.15} parent=5 // pred_check_branch
      %204 = sbr.rel (%p201) target = $region12
    $region11: #{transformer_forward.15} parent=5 // pred_region
      %s205 = ssub.s32 %s13, 1
      // Predicated region
      $region13: #{transformer_forward.15} parent=11 // pred_check
        %p206 = pneg %p60
      $region14: #{transformer_forward.15} parent=11 // pred_check_branch
        %208 = sbr.rel (%p206) target = $region16
      $region15: #{transformer_forward.15} parent=11 // pred_region
        _
      $region16: #{transformer_forward.15} parent=11 // pred_fallthru
        _
      // Predicated region
      $region17: #{transformer_forward.15} parent=11 // pred_check
        %p209 = pneg %p81
      $region18: #{transformer_forward.15} parent=11 // pred_check_branch
        %211 = sbr.rel (%p209) target = $region20
      $region19: #{transformer_forward.15} parent=11 // pred_region
        _
      $region20: #{transformer_forward.15} parent=11 // pred_fallthru
        _
      // Predicated region
      $region21: #{transformer_forward.15} parent=11 // pred_check
        %p212 = pneg %p102
      $region22: #{transformer_forward.15} parent=11 // pred_check_branch
        %214 = sbr.rel (%p212) target = $region24
      $region23: #{transformer_forward.15} parent=11 // pred_region
        _
      $region24: #{transformer_forward.15} parent=11 // pred_fallthru
        _
      // Predicated region
      $region25: #{transformer_forward.15} parent=11 // pred_check
        %p215 = pneg %p123
      $region26: #{transformer_forward.15} parent=11 // pred_check_branch
        %217 = sbr.rel (%p215) target = $region28
      $region27: #{transformer_forward.15} parent=11 // pred_region
        _
      $region28: #{transformer_forward.15} parent=11 // pred_fallthru
        _
      // Predicated region
      $region29: #{transformer_forward.15} parent=11 // pred_check
        %p218 = pneg %p144
      $region30: #{transformer_forward.15} parent=11 // pred_check_branch
        %220 = sbr.rel (%p218) target = $region32
      $region31: #{transformer_forward.15} parent=11 // pred_region
        _
      $region32: #{transformer_forward.15} parent=11 // pred_fallthru
        _
      // Predicated region
      $region33: #{transformer_forward.15} parent=11 // pred_check
        %p221 = pneg %p165
      $region34: #{transformer_forward.15} parent=11 // pred_check_branch
        %223 = sbr.rel (%p221) target = $region36
      $region35: #{transformer_forward.15} parent=11 // pred_region
        _
      $region36: #{transformer_forward.15} parent=11 // pred_fallthru
        _
    $region12: #{transformer_forward.15} parent=5 // pred_fallthru
      _
    %p224 = scmp.lt.s32.totalorder %s13, 2
    // Predicated region
    $region37: #{transformer_forward.15} parent=5 // pred_check
      %p225 = pneg %p224
    $region38: #{transformer_forward.15} parent=5 // pred_check_branch
      %227 = sbr.rel (%p225) target = $region40
    $region39: #{transformer_forward.15} parent=5 // pred_region
      // Predicated region
      $region41: #{transformer_forward.15} parent=39 // pred_check
        %p228 = pneg %p33
      $region42: #{transformer_forward.15} parent=39 // pred_check_branch
        %230 = sbr.rel (%p228) target = $region44
      $region43: #{transformer_forward.15} parent=39 // pred_region
        %s231 = smul.u32 2, %s13
        %p232 = scmp.lt.s32.totalorder %s231, 3
        %s233 = scalar_select %p232, %s231, 3
        %s234 = smul.addr %s233, 8
        %s235 = scalar_lea.vmem %s0, %s234
        %s236 = smul.u32 2, %s13
      $region44: #{transformer_forward.15} parent=39 // pred_fallthru
        _
    $region40: #{transformer_forward.15} parent=5 // pred_fallthru
      _
    %p237 = scmp.le.s32.totalorder 1, %s13
    %p238 = scmp.lt.s32.totalorder %s13, 3
    %p239 = pnand %p237, %p238
    %p240 = pneg %p239
    // Predicated region
    $region45: #{transformer_forward.15} parent=5 // pred_check
      _
    $region46: #{transformer_forward.15} parent=5 // pred_check_branch
      %242 = sbr.rel (%p239) target = $region48
    $region47: #{transformer_forward.15} parent=5 // pred_region
      %s243 = ssub.s32 %s13, 1
      %s244 = smul.u32 2, %s18
      %p245 = scmp.lt.s32.totalorder %s244, 3
      %s246 = scalar_select %p245, %s244, 3
      %s247 = smul.addr %s246, 8
      %s248 = scalar_lea.vmem %s0, %s247
      %p249 = pneg %p39
      %p250 = pneg %p36
      %p251 = pneg %p60
      %p252 = pneg %p57
      %p253 = pneg %p81
      %p254 = pneg %p78
      %p255 = pneg %p102
      %p256 = pneg %p99
      %p257 = pneg %p123
      %p258 = pneg %p120
      %p259 = pneg %p144
      %p260 = pneg %p141
      %p261 = pneg %p165
      %p262 = pneg %p162
      %p263 = pneg %p191
      %p264 = pneg %p188
      %s265 = smul.u32 2, %s18
      %p266 = scmp.lt.s32.totalorder %s265, 3
      %s267 = scalar_select %p266, %s265, 3
      %s268 = smul.addr %s267, 8
      %s269 = scalar_lea.vmem %s7, %s268
      %s270 = smul.u32 2, %s18
      %p271 = scmp.lt.s32.totalorder %s270, 3
      %s272 = scalar_select %p271, %s270, 3
      %s273 = smul.addr %s272, 8
      %s274 = scalar_lea.vmem %s0, %s273
      %s275 = smul.u32 2, %s18
      %s276 = smul.u32 2, %s18
      %p277 = scmp.lt.s32.totalorder %s276, 3
      %s278 = scalar_select %p277, %s276, 3
      %s279 = smul.addr %s278, 8
      %s280 = scalar_lea.vmem %s7, %s279
      %s281 = smul.u32 2, %s18
      %v283 = vld [vmem:[%s274] sm:$0xff]
      %v284 = vld [vmem:[%s274 + $0x8] sm:$0xff]
      %v285 = vpack.c.bf16 %v284, %v283
      %v286 = vld [vmem:[%s1] sm:$0xf]
      %v287 = vld [vmem:[%s1 + $0x4] sm:$0xf]
      %v288 = vld [vmem:[%s1 + $0x8] sm:$0xf]
      %v289 = vld [vmem:[%s1 + $0xc] sm:$0xf]
      %v290 = vld [vmem:[%s1 + $0x10] sm:$0xf]
      %v291 = vld [vmem:[%s1 + $0x14] sm:$0xf]
      %v292 = vld [vmem:[%s1 + $0x18] sm:$0xf]
      %v293 = vld [vmem:[%s1 + $0x1c] sm:$0xf]
      %v294 = vld [vmem:[%s2] sm:$0x1]
      %v296 = vperm.slane %v294, 0
      %v306 = vunpack.c.l.b16 %v286
      %v307 = vunpack.c.l.b16 %v287
      %v308 = vunpack.c.l.b16 %v288
      %v309 = vunpack.c.l.b16 %v289
      %v310 = vunpack.c.l.b16 %v290
      %v311 = vunpack.c.l.b16 %v291
      %v312 = vunpack.c.l.b16 %v292
      %v313 = vunpack.c.l.b16 %v293
      %v314 = vpack.c.b16 %v307, %v306
      %v315 = vpack.c.b16 %v309, %v308
      %v316 = vpack.c.b16 %v311, %v310
      %v317 = vpack.c.b16 %v313, %v312
      %vm322 = vcmask 523264
      %v324 = vsel %vm322, %v285, 0
      %326 = vmatpush.bf16.msra.mxu0 0
      %327 = vmatpush.bf16.msra.mxu0 0
      %328 = vmatpush.bf16.msra.mxu0 0
      %329 = vmatpush.bf16.msra.mxu0 0
      %330 = vmatpush.bf16.msra.mxu0 %v317
      %331 = vmatpush.bf16.msra.mxu0 %v316
      %332 = vmatpush.bf16.msra.mxu0 %v315
      %333 = vmatpush.bf16.msra.mxu0 %v314
      %334 = vmatmul.bf16.gmra.mxu0 %v324
      %v335 = vpop.f32.mrf.mxu0
      %v336 = vadd.f32 %v296, %v335
      %v337 = vpop.f32.mrf.mxu0
      %v338 = vadd.f32 %v296, %v337
      %339 = vdwg.mxu0
      %v340 = vmax.f32 %v336, 0.0
      %v341 = vmax.f32 %v338, 0.0
      %v342 = vpack.c.bf16 %v341, %v340
      %v343 = vld [vmem:[%s3] sm:$0xf]
      %v344 = vld [vmem:[%s3 + $0x4] sm:$0xf]
      %v345 = vld [vmem:[%s3 + $0x8] sm:$0xf]
      %v346 = vld [vmem:[%s3 + $0xc] sm:$0xf]
      %v347 = vld [vmem:[%s3 + $0x10] sm:$0xf]
      %v348 = vld [vmem:[%s3 + $0x14] sm:$0xf]
      %v349 = vld [vmem:[%s3 + $0x18] sm:$0xf]
      %v350 = vld [vmem:[%s3 + $0x1c] sm:$0xf]
      %v351 = vld [vmem:[%s3 + $0x20] sm:$0xf]
      %v352 = vld [vmem:[%s3 + $0x24] sm:$0xf]
      %v353 = vld [vmem:[%s3 + $0x28] sm:$0xf]
      %v354 = vld [vmem:[%s3 + $0x2c] sm:$0xf]
      %v355 = vld [vmem:[%s3 + $0x30] sm:$0xf]
      %v356 = vld [vmem:[%s3 + $0x34] sm:$0xf]
      %v357 = vld [vmem:[%s3 + $0x38] sm:$0xf]
      %v358 = vld [vmem:[%s3 + $0x3c] sm:$0xf]
      %v359 = vld [vmem:[%s4] sm:$0x1]
      %v361 = vperm.slane %v359, 0
      %v379 = vunpack.c.l.b16 %v343
      %v380 = vunpack.c.l.b16 %v344
      %v381 = vunpack.c.l.b16 %v345
      %v382 = vunpack.c.l.b16 %v346
      %v383 = vunpack.c.l.b16 %v347
      %v384 = vunpack.c.l.b16 %v348
      %v385 = vunpack.c.l.b16 %v349
      %v386 = vunpack.c.l.b16 %v350
      %v387 = vunpack.c.l.b16 %v351
      %v388 = vunpack.c.l.b16 %v352
      %v389 = vunpack.c.l.b16 %v353
      %v390 = vunpack.c.l.b16 %v354
      %v391 = vunpack.c.l.b16 %v355
      %v392 = vunpack.c.l.b16 %v356
      %v393 = vunpack.c.l.b16 %v357
      %v394 = vunpack.c.l.b16 %v358
      %v395 = vpack.c.b16 %v380, %v379
      %v396 = vpack.c.b16 %v382, %v381
      %v397 = vpack.c.b16 %v384, %v383
      %v398 = vpack.c.b16 %v386, %v385
      %v399 = vpack.c.b16 %v388, %v387
      %v400 = vpack.c.b16 %v390, %v389
      %v401 = vpack.c.b16 %v392, %v391
      %v402 = vpack.c.b16 %v394, %v393
      %411 = vmatpush.bf16.msra.mxu0 %v402
      %412 = vmatpush.bf16.msra.mxu0 %v401
      %413 = vmatpush.bf16.msra.mxu0 %v400
      %414 = vmatpush.bf16.msra.mxu0 %v399
      %415 = vmatpush.bf16.msra.mxu0 %v398
      %416 = vmatpush.bf16.msra.mxu0 %v397
      %417 = vmatpush.bf16.msra.mxu0 %v396
      %418 = vmatpush.bf16.msra.mxu0 %v395
      %419 = vmatmul.bf16.gmra.mxu0 %v342
      %v420 = vpop.f32.mrf.mxu0
      %v421 = vadd.f32 %v361, %v420
      %v422 = vpop.f32.mrf.mxu0
      %v423 = vadd.f32 %v361, %v422
      %424 = vdwg.mxu0
      %v425 = vadd.f32 %v283, %v421
      %v426 = vadd.f32 %v284, %v423
      %v427 = vld [vmem:[%s5] sm:$0x1]
      %v428 = vld [vmem:[%s6] sm:$0x1]
      %v429 = vsel %vm322, %v425, 0.0
      %430 = vadd.xlane.f32.xlu0 %v429
      %v431 = vpop.xlane.xlu0 %430
      %v432 = vsel %vm322, %v426, 0.0
      %433 = vadd.xlane.f32.xlu0 %v432
      %v434 = vpop.xlane.xlu0 %433
      %v435 = vrcp.pop 64.0
      %v436 = vmul.f32 64.0, %v435
      %v437 = vsub.f32 1.0, %v436
      %v438 = vmul.f32 %v435, %v437
      %v439 = vadd.f32 %v435, %v438
      %vm440 = vweird.f32 %v435
      %v441 = vsel %vm440, %v435, %v439
      %v442 = vmul.f32 %v431, %v441
      %v443 = vmul.f32 %v434, %v441
      %v444 = vsub.f32 %v425, %v442
      %v445 = vsub.f32 %v426, %v443
      %v446 = vmul.f32 %v444, %v444
      %v447 = vmul.f32 %v445, %v445
      %v448 = vsel %vm322, %v446, 0.0
      %449 = vadd.xlane.f32.xlu0 %v448
      %v450 = vpop.xlane.xlu0 %449
      %v451 = vsel %vm322, %v447, 0.0
      %452 = vadd.xlane.f32.xlu0 %v451
      %v453 = vpop.xlane.xlu0 %452
      %v454 = vmul.f32 %v450, %v441
      %v455 = vmul.f32 %v453, %v441
      %v456 = vadd.f32 %v454, 1e-05
      %v457 = vadd.f32 %v455, 1e-05
      %v458 = vrsqrt.pop %v456
      %v459 = vmul.f32 %v458, %v456
      %v460 = vmul.f32 %v459, %v458
      %v461 = vmul.f32 0.5, %v460
      %v462 = vsub.f32 1.5, %v461
      %v463 = vmul.f32 %v458, %v462
      %vm464 = vweird.f32 %v456
      %vm465 = vweird.f32 %v458
      %vm466 = vmor %vm464, %vm465
      %v467 = vsel %vm466, %v458, %v463
      %v468 = vrsqrt.pop %v457
      %v469 = vmul.f32 %v468, %v457
      %v470 = vmul.f32 %v469, %v468
      %v471 = vmul.f32 0.5, %v470
      %v472 = vsub.f32 1.5, %v471
      %v473 = vmul.f32 %v468, %v472
      %vm474 = vweird.f32 %v457
      %vm475 = vweird.f32 %v468
      %vm476 = vmor %vm474, %vm475
      %v477 = vsel %vm476, %v468, %v473
      %v478 = vmul.f32 %v444, %v467
      %v479 = vmul.f32 %v445, %v477
      %v481 = vperm.slane %v427, 0
      %v483 = vmul.f32 %v478, %v481
      %v484 = vmul.f32 %v479, %v481
      %v486 = vperm.slane %v428, 0
      %v488 = vadd.f32 %v483, %v486
      %v489 = vadd.f32 %v484, %v486
      %490 = vst.msk [vmem:[%s280] sm:$0xff] %vm322, %v488
      %491 = vst.msk [vmem:[%s280 + $0x8] sm:$0xff] %vm322, %v489
      %s492 = smul.u32 2, %s18
      %p493 = scmp.lt.s32.totalorder %s492, 3
      %s494 = scalar_select %p493, %s492, 3
      %s495 = smul.addr %s494, 8
      %s496 = scalar_lea.vmem %s7, %s495
      // Predicated region
      $region49: #{transformer_forward.15} parent=47 // pred_check
        %p497 = pneg %p188
      $region50: #{transformer_forward.15} parent=47 // pred_check_branch
        %499 = sbr.rel (%p497) target = $region52
      $region51: #{transformer_forward.15} parent=47 // pred_region
        %s500 = smul.u32 2, %s18
      $region52: #{transformer_forward.15} parent=47 // pred_fallthru
        _
    $region48: #{transformer_forward.15} parent=5 // pred_fallthru
      _
    %p501 = scmp.le.s32.totalorder 2, %s13
    // Predicated region
    $region53: #{transformer_forward.15} parent=5 // pred_check
      %p502 = pneg %p501
    $region54: #{transformer_forward.15} parent=5 // pred_check_branch
      %504 = sbr.rel (%p502) target = $region56
    $region55: #{transformer_forward.15} parent=5 // pred_region
      %s505 = ssub.s32 %s13, 2
      // Predicated region
      $region57: #{transformer_forward.15} parent=55 // pred_check
        %p506 = pneg %p194
      $region58: #{transformer_forward.15} parent=55 // pred_check_branch
        %508 = sbr.rel (%p506) target = $region60
      $region59: #{transformer_forward.15} parent=55 // pred_region
        %s509 = smul.u32 2, %s19
        %p510 = scmp.lt.s32.totalorder %s509, 3
        %s511 = scalar_select %p510, %s509, 3
        %s512 = smul.addr %s511, 8
        %s513 = scalar_lea.vmem %s7, %s512
      $region60: #{transformer_forward.15} parent=55 // pred_fallthru
        _
    $region56: #{transformer_forward.15} parent=5 // pred_fallthru
      _
  $region6: #{transformer_forward.15} parent=0 // loop_footer
    %s17 = sadd.s32 1, %s13
  $region7: #{transformer_forward.15} parent=0 // loop_footer_branch
    %12 = sbr.rel target = $region3
  $region8: #{transformer_forward.15} parent=0 // loop_exit
    _

// kernel: transformer_forward.27
$region0: #{transformer_forward.27}
  #allocation0 [shape = 'u32[]', space=smem, size = 0x4, offset = 0x4, fixed_abs, tag = 'smem constant byte address 0x4 - core index']
  #allocation1 [shape = 'u32[72,128]{1,0:T(1,128)}', space=vmem, size = 0x9000, scoped, tag = 'internal scratch']
  %s0 = inlined_call_operand.vmem [shape: f32[32,64], index: 0, kind: input, shape index: {}]
  %s1 = inlined_call_operand.vmem [shape: bf16[64,128], index: 1, kind: input, shape index: {}]
  %s2 = inlined_call_operand.vmem [shape: f32[1,128], index: 2, kind: input, shape index: {}]
  %s3 = inlined_call_operand.vmem [shape: bf16[128,64], index: 3, kind: input, shape index: {}]
  %s4 = inlined_call_operand.vmem [shape: f32[1,64], index: 4, kind: input, shape index: {}]
  %s5 = inlined_call_operand.vmem [shape: f32[1,64], index: 5, kind: input, shape index: {}]
  %s6 = inlined_call_operand.vmem [shape: f32[1,64], index: 6, kind: input, shape index: {}]
  %s7 = inlined_call_operand.vmem [shape: f32[1,64], index: 7, kind: input, shape index: {}]
  %s8 = inlined_call_operand.vmem [shape: f32[1,64], index: 8, kind: input, shape index: {}]
  %s9 = inlined_call_operand.hbm [shape: f32[32,64], index: 9, kind: output, shape index: {}]
  %s10 = sld [smem:[#allocation0]]
  $region69: #{transformer_forward.27} parent=0
    _
  %s12 = ssub.s32 1, %s10
  %s13 = scalar_select 0, %s12, %s10
  $region1: #{transformer_forward.27} parent=0
    #allocation2 [shape = 'u8[16384]{0}', space=vmem, size = 0x4000, scoped, tag = 'output window, operand 0']
    #allocation3 [shape = 's32[2]{0}', space=sflag, size = 0x8, scoped, tag = 'scoped memory for transformer_forward.27']
    %14 = vsyncpa [#allocation3], 0
    %s15 = scalar_lea.sflag [#allocation3], 1
    %16 = vsyncpa %s15, 0
    loop: start=0, step=1, limit=4
    $region2: #{transformer_forward.27} parent=1 // loop_pre_header
      _
    $region3: #{transformer_forward.27} parent=1 // loop_header
      %s18 = sphi 0, %s22
      %p19 = scmp.ge.s32.totalorder %s18, 4
      %s28 = sphi 0, %s30
      %s31 = sphi 0, %s28
      %s32 = sphi 0, %s31
      %s48 = sphi 0, %s32
      %s52 = sphi 0, %s52
      %s54 = sphi 0, %s52
      %s55 = sphi 0, %s54
      %s69 = sphi 0, %s55
      %s73 = sphi 0, %s73
      %s75 = sphi 0, %s73
      %s76 = sphi 0, %s75
      %s90 = sphi 0, %s76
      %s94 = sphi 0, %s94
      %s96 = sphi 0, %s94
      %s97 = sphi 0, %s96
      %s111 = sphi 0, %s97
      %s115 = sphi 0, %s115
      %s117 = sphi 0, %s115
      %s118 = sphi 0, %s117
      %s132 = sphi 0, %s118
      %s136 = sphi 0, %s136
      %s138 = sphi 0, %s136
      %s139 = sphi 0, %s138
      %s153 = sphi 0, %s139
      %s157 = sphi 0, %s157
      %s159 = sphi 0, %s157
      %s160 = sphi 0, %s159
      %s174 = sphi 0, %s160
      %s178 = sphi 0, %s178
      %s180 = sphi 0, %s178
      %s181 = sphi 0, %s180
      %s195 = sphi 0, %s181
      %s199 = sphi 0, %s199
      %s201 = sphi 0, %s199
      %s202 = sphi 0, %s201
      %s216 = sphi 0, %s202
      %s222 = sphi 0, %s224
      %s225 = sphi 0, %s222
      %s226 = sphi 0, %s225
      %s242 = sphi 0, %s226
    $region4: #{transformer_forward.27} parent=1 // loop_header_branch
      %21 = sbr.rel (%p19) target = $region8
    $region5: #{transformer_forward.27} parent=1 // loop_body
      %s23 = ssub.s32 %s18, 1
      %s24 = ssub.s32 %s18, 2
      %s25 = sadd.s32 %s18, 1
      %s26 = ssub.s32 %s18, %s25
      %p27 = scmp.eq.s32.totalorder %s26, 0
      %s29 = sadd.s32 %s28, 1
      %s30 = scalar_select %p27, %s28, %s29
      %p33 = pneg %p27
      %p34 = scmp.eq.s32.totalorder %s18, 1
      %p35 = por %p33, %p34
      %p36 = scmp.ne.s32.totalorder %s28, %s31
      %p37 = scmp.eq.s32.totalorder %s18, 0
      %p38 = por %p36, %p37
      %p39 = scmp.ne.s32.totalorder %s28, %s31
      %p40 = scmp.eq.s32.totalorder %s23, 1
      %p41 = por %p39, %p40
      %p42 = scmp.ne.s32.totalorder %s31, %s32
      %p43 = scmp.eq.s32.totalorder %s23, 0
      %p44 = por %p42, %p43
      %p45 = scmp.ne.s32.totalorder %s31, %s32
      %p46 = scmp.eq.s32.totalorder %s24, 1
      %p47 = por %p45, %p46
      %p49 = scmp.ne.s32.totalorder %s32, %s48
      %p50 = scmp.eq.s32.totalorder %s24, 0
      %p51 = por %p49, %p50
      %s53 = sadd.s32 %s52, 1
      %p56 = scmp.eq.s32.totalorder %s18, 1
      %p57 = scmp.ne.s32.totalorder %s52, %s54
      %p58 = scmp.eq.s32.totalorder %s18, 0
      %p59 = por %p57, %p58
      %p60 = scmp.ne.s32.totalorder %s52, %s54
      %p61 = scmp.eq.s32.totalorder %s23, 1
      %p62 = por %p60, %p61
      %p63 = scmp.ne.s32.totalorder %s54, %s55
      %p64 = scmp.eq.s32.totalorder %s23, 0
      %p65 = por %p63, %p64
      %p66 = scmp.ne.s32.totalorder %s54, %s55
      %p67 = scmp.eq.s32.totalorder %s24, 1
      %p68 = por %p66, %p67
      %p70 = scmp.ne.s32.totalorder %s55, %s69
      %p71 = scmp.eq.s32.totalorder %s24, 0
      %p72 = por %p70, %p71
      %s74 = sadd.s32 %s73, 1
      %p77 = scmp.eq.s32.totalorder %s18, 1
      %p78 = scmp.ne.s32.totalorder %s73, %s75
      %p79 = scmp.eq.s32.totalorder %s18, 0
      %p80 = por %p78, %p79
      %p81 = scmp.ne.s32.totalorder %s73, %s75
      %p82 = scmp.eq.s32.totalorder %s23, 1
      %p83 = por %p81, %p82
      %p84 = scmp.ne.s32.totalorder %s75, %s76
      %p85 = scmp.eq.s32.totalorder %s23, 0
      %p86 = por %p84, %p85
      %p87 = scmp.ne.s32.totalorder %s75, %s76
      %p88 = scmp.eq.s32.totalorder %s24, 1
      %p89 = por %p87, %p88
      %p91 = scmp.ne.s32.totalorder %s76, %s90
      %p92 = scmp.eq.s32.totalorder %s24, 0
      %p93 = por %p91, %p92
      %s95 = sadd.s32 %s94, 1
      %p98 = scmp.eq.s32.totalorder %s18, 1
      %p99 = scmp.ne.s32.totalorder %s94, %s96
      %p100 = scmp.eq.s32.totalorder %s18, 0
      %p101 = por %p99, %p100
      %p102 = scmp.ne.s32.totalorder %s94, %s96
      %p103 = scmp.eq.s32.totalorder %s23, 1
      %p104 = por %p102, %p103
      %p105 = scmp.ne.s32.totalorder %s96, %s97
      %p106 = scmp.eq.s32.totalorder %s23, 0
      %p107 = por %p105, %p106
      %p108 = scmp.ne.s32.totalorder %s96, %s97
      %p109 = scmp.eq.s32.totalorder %s24, 1
      %p110 = por %p108, %p109
      %p112 = scmp.ne.s32.totalorder %s97, %s111
      %p113 = scmp.eq.s32.totalorder %s24, 0
      %p114 = por %p112, %p113
      %s116 = sadd.s32 %s115, 1
      %p119 = scmp.eq.s32.totalorder %s18, 1
      %p120 = scmp.ne.s32.totalorder %s115, %s117
      %p121 = scmp.eq.s32.totalorder %s18, 0
      %p122 = por %p120, %p121
      %p123 = scmp.ne.s32.totalorder %s115, %s117
      %p124 = scmp.eq.s32.totalorder %s23, 1
      %p125 = por %p123, %p124
      %p126 = scmp.ne.s32.totalorder %s117, %s118
      %p127 = scmp.eq.s32.totalorder %s23, 0
      %p128 = por %p126, %p127
      %p129 = scmp.ne.s32.totalorder %s117, %s118
      %p130 = scmp.eq.s32.totalorder %s24, 1
      %p131 = por %p129, %p130
      %p133 = scmp.ne.s32.totalorder %s118, %s132
      %p134 = scmp.eq.s32.totalorder %s24, 0
      %p135 = por %p133, %p134
      %s137 = sadd.s32 %s136, 1
      %p140 = scmp.eq.s32.totalorder %s18, 1
      %p141 = scmp.ne.s32.totalorder %s136, %s138
      %p142 = scmp.eq.s32.totalorder %s18, 0
      %p143 = por %p141, %p142
      %p144 = scmp.ne.s32.totalorder %s136, %s138
      %p145 = scmp.eq.s32.totalorder %s23, 1
      %p146 = por %p144, %p145
      %p147 = scmp.ne.s32.totalorder %s138, %s139
      %p148 = scmp.eq.s32.totalorder %s23, 0
      %p149 = por %p147, %p148
      %p150 = scmp.ne.s32.totalorder %s138, %s139
      %p151 = scmp.eq.s32.totalorder %s24, 1
      %p152 = por %p150, %p151
      %p154 = scmp.ne.s32.totalorder %s139, %s153
      %p155 = scmp.eq.s32.totalorder %s24, 0
      %p156 = por %p154, %p155
      %s158 = sadd.s32 %s157, 1
      %p161 = scmp.eq.s32.totalorder %s18, 1
      %p162 = scmp.ne.s32.totalorder %s157, %s159
      %p163 = scmp.eq.s32.totalorder %s18, 0
      %p164 = por %p162, %p163
      %p165 = scmp.ne.s32.totalorder %s157, %s159
      %p166 = scmp.eq.s32.totalorder %s23, 1
      %p167 = por %p165, %p166
      %p168 = scmp.ne.s32.totalorder %s159, %s160
      %p169 = scmp.eq.s32.totalorder %s23, 0
      %p170 = por %p168, %p169
      %p171 = scmp.ne.s32.totalorder %s159, %s160
      %p172 = scmp.eq.s32.totalorder %s24, 1
      %p173 = por %p171, %p172
      %p175 = scmp.ne.s32.totalorder %s160, %s174
      %p176 = scmp.eq.s32.totalorder %s24, 0
      %p177 = por %p175, %p176
      %s179 = sadd.s32 %s178, 1
      %p182 = scmp.eq.s32.totalorder %s18, 1
      %p183 = scmp.ne.s32.totalorder %s178, %s180
      %p184 = scmp.eq.s32.totalorder %s18, 0
      %p185 = por %p183, %p184
      %p186 = scmp.ne.s32.totalorder %s178, %s180
      %p187 = scmp.eq.s32.totalorder %s23, 1
      %p188 = por %p186, %p187
      %p189 = scmp.ne.s32.totalorder %s180, %s181
      %p190 = scmp.eq.s32.totalorder %s23, 0
      %p191 = por %p189, %p190
      %p192 = scmp.ne.s32.totalorder %s180, %s181
      %p193 = scmp.eq.s32.totalorder %s24, 1
      %p194 = por %p192, %p193
      %p196 = scmp.ne.s32.totalorder %s181, %s195
      %p197 = scmp.eq.s32.totalorder %s24, 0
      %p198 = por %p196, %p197
      %s200 = sadd.s32 %s199, 1
      %p203 = scmp.eq.s32.totalorder %s18, 1
      %p204 = scmp.ne.s32.totalorder %s199, %s201
      %p205 = scmp.eq.s32.totalorder %s18, 0
      %p206 = por %p204, %p205
      %p207 = scmp.ne.s32.totalorder %s199, %s201
      %p208 = scmp.eq.s32.totalorder %s23, 1
      %p209 = por %p207, %p208
      %p210 = scmp.ne.s32.totalorder %s201, %s202
      %p211 = scmp.eq.s32.totalorder %s23, 0
      %p212 = por %p210, %p211
      %p213 = scmp.ne.s32.totalorder %s201, %s202
      %p214 = scmp.eq.s32.totalorder %s24, 1
      %p215 = por %p213, %p214
      %p217 = scmp.ne.s32.totalorder %s202, %s216
      %p218 = scmp.eq.s32.totalorder %s24, 0
      %p219 = por %p217, %p218
      %s220 = ssub.s32 %s18, %s25
      %p221 = scmp.eq.s32.totalorder %s220, 0
      %s223 = sadd.s32 %s222, 1
      %s224 = scalar_select %p221, %s222, %s223
      %p227 = pneg %p221
      %p228 = scmp.eq.s32.totalorder %s18, 1
      %p229 = por %p227, %p228
      %p230 = scmp.ne.s32.totalorder %s222, %s225
      %p231 = scmp.eq.s32.totalorder %s18, 0
      %p232 = por %p230, %p231
      %p233 = scmp.ne.s32.totalorder %s222, %s225
      %p234 = scmp.eq.s32.totalorder %s23, 1
      %p235 = por %p233, %p234
      %p236 = scmp.ne.s32.totalorder %s225, %s226
      %p237 = scmp.eq.s32.totalorder %s23, 0
      %p238 = por %p236, %p237
      %p239 = scmp.ne.s32.totalorder %s225, %s226
      %p240 = scmp.eq.s32.totalorder %s24, 1
      %p241 = por %p239, %p240
      %p243 = scmp.ne.s32.totalorder %s226, %s242
      %p244 = scmp.eq.s32.totalorder %s24, 0
      %p245 = por %p243, %p244
      %p246 = scmp.le.s32.totalorder 1, %s18
      %p247 = scmp.lt.s32.totalorder %s18, 3
      %p248 = pnand %p246, %p247
      %p249 = pneg %p248
      // Predicated region
      $region9: #{transformer_forward.27} parent=5 // pred_check
        _
      $region10: #{transformer_forward.27} parent=5 // pred_check_branch
        %251 = sbr.rel (%p248) target = $region12
      $region11: #{transformer_forward.27} parent=5 // pred_region
        %s252 = ssub.s32 %s18, 1
        // Predicated region
        $region13: #{transformer_forward.27} parent=11 // pred_check
          %p253 = pneg %p65
        $region14: #{transformer_forward.27} parent=11 // pred_check_branch
          %255 = sbr.rel (%p253) target = $region16
        $region15: #{transformer_forward.27} parent=11 // pred_region
          _
        $region16: #{transformer_forward.27} parent=11 // pred_fallthru
          _
        // Predicated region
        $region17: #{transformer_forward.27} parent=11 // pred_check
          %p256 = pneg %p86
        $region18: #{transformer_forward.27} parent=11 // pred_check_branch
          %258 = sbr.rel (%p256) target = $region20
        $region19: #{transformer_forward.27} parent=11 // pred_region
          _
        $region20: #{transformer_forward.27} parent=11 // pred_fallthru
          _
        // Predicated region
        $region21: #{transformer_forward.27} parent=11 // pred_check
          %p259 = pneg %p107
        $region22: #{transformer_forward.27} parent=11 // pred_check_branch
          %261 = sbr.rel (%p259) target = $region24
        $region23: #{transformer_forward.27} parent=11 // pred_region
          _
        $region24: #{transformer_forward.27} parent=11 // pred_fallthru
          _
        // Predicated region
        $region25: #{transformer_forward.27} parent=11 // pred_check
          %p262 = pneg %p128
        $region26: #{transformer_forward.27} parent=11 // pred_check_branch
          %264 = sbr.rel (%p262) target = $region28
        $region27: #{transformer_forward.27} parent=11 // pred_region
          _
        $region28: #{transformer_forward.27} parent=11 // pred_fallthru
          _
        // Predicated region
        $region29: #{transformer_forward.27} parent=11 // pred_check
          %p265 = pneg %p149
        $region30: #{transformer_forward.27} parent=11 // pred_check_branch
          %267 = sbr.rel (%p265) target = $region32
        $region31: #{transformer_forward.27} parent=11 // pred_region
          _
        $region32: #{transformer_forward.27} parent=11 // pred_fallthru
          _
        // Predicated region
        $region33: #{transformer_forward.27} parent=11 // pred_check
          %p268 = pneg %p170
        $region34: #{transformer_forward.27} parent=11 // pred_check_branch
          %270 = sbr.rel (%p268) target = $region36
        $region35: #{transformer_forward.27} parent=11 // pred_region
          _
        $region36: #{transformer_forward.27} parent=11 // pred_fallthru
          _
        // Predicated region
        $region37: #{transformer_forward.27} parent=11 // pred_check
          %p271 = pneg %p191
        $region38: #{transformer_forward.27} parent=11 // pred_check_branch
          %273 = sbr.rel (%p271) target = $region40
        $region39: #{transformer_forward.27} parent=11 // pred_region
          _
        $region40: #{transformer_forward.27} parent=11 // pred_fallthru
          _
        // Predicated region
        $region41: #{transformer_forward.27} parent=11 // pred_check
          %p274 = pneg %p212
        $region42: #{transformer_forward.27} parent=11 // pred_check_branch
          %276 = sbr.rel (%p274) target = $region44
        $region43: #{transformer_forward.27} parent=11 // pred_region
          _
        $region44: #{transformer_forward.27} parent=11 // pred_fallthru
          _
      $region12: #{transformer_forward.27} parent=5 // pred_fallthru
        _
      %p277 = scmp.lt.s32.totalorder %s18, 2
      // Predicated region
      $region45: #{transformer_forward.27} parent=5 // pred_check
        %p278 = pneg %p277
      $region46: #{transformer_forward.27} parent=5 // pred_check_branch
        %280 = sbr.rel (%p278) target = $region48
      $region47: #{transformer_forward.27} parent=5 // pred_region
        // Predicated region
        $region49: #{transformer_forward.27} parent=47 // pred_check
          %p281 = pneg %p38
        $region50: #{transformer_forward.27} parent=47 // pred_check_branch
          %283 = sbr.rel (%p281) target = $region52
        $region51: #{transformer_forward.27} parent=47 // pred_region
          %s284 = smul.u32 2, %s18
          %p285 = scmp.lt.s32.totalorder %s284, 3
          %s286 = scalar_select %p285, %s284, 3
          %s287 = smul.addr %s286, 8
          %s288 = scalar_lea.vmem %s0, %s287
          %s289 = smul.u32 2, %s18
        $region52: #{transformer_forward.27} parent=47 // pred_fallthru
          _
      $region48: #{transformer_forward.27} parent=5 // pred_fallthru
        _
      %p290 = scmp.le.s32.totalorder 1, %s18
      %p291 = scmp.lt.s32.totalorder %s18, 3
      %p292 = pnand %p290, %p291
      %p293 = pneg %p292
      // Predicated region
      $region53: #{transformer_forward.27} parent=5 // pred_check
        _
      $region54: #{transformer_forward.27} parent=5 // pred_check_branch
        %295 = sbr.rel (%p292) target = $region56
      $region55: #{transformer_forward.27} parent=5 // pred_region
        %s296 = ssub.s32 %s18, 1
        %s297 = smul.u32 2, %s23
        %p298 = scmp.lt.s32.totalorder %s297, 3
        %s299 = scalar_select %p298, %s297, 3
        %s300 = smul.addr %s299, 8
        %s301 = scalar_lea.vmem %s0, %s300
        %p302 = pneg %p44
        %p303 = pneg %p41
        %p304 = pneg %p65
        %p305 = pneg %p62
        %p306 = pneg %p86
        %p307 = pneg %p83
        %p308 = pneg %p107
        %p309 = pneg %p104
        %p310 = pneg %p128
        %p311 = pneg %p125
        %p312 = pneg %p149
        %p313 = pneg %p146
        %p314 = pneg %p170
        %p315 = pneg %p167
        %p316 = pneg %p191
        %p317 = pneg %p188
        %p318 = pneg %p212
        %p319 = pneg %p209
        %p320 = pneg %p238
        %p321 = pneg %p235
        %s322 = sand.u32 %s225, 1
        %s323 = scalar_lea.sflag [#allocation3], %s322
        %s324 = sand.u32 %s225, 1
        %s325 = smul.addr %s324, 16
        %s326 = scalar_lea.vmem [#allocation2], %s325
        %s327 = smul.u32 2, %s23
        %p328 = scmp.lt.s32.totalorder %s327, 3
        %s329 = scalar_select %p328, %s327, 3
        %s330 = smul.addr %s329, 8
        %s331 = scalar_lea.vmem %s0, %s330
        %s332 = smul.u32 2, %s23
        %s333 = smul.u32 2, %s23
        %v335 = vld [vmem:[%s331] sm:$0xff]
        %v336 = vld [vmem:[%s331 + $0x8] sm:$0xff]
        %v337 = vpack.c.bf16 %v336, %v335
        %v338 = vld [vmem:[%s1] sm:$0xf]
        %v339 = vld [vmem:[%s1 + $0x4] sm:$0xf]
        %v340 = vld [vmem:[%s1 + $0x8] sm:$0xf]
        %v341 = vld [vmem:[%s1 + $0xc] sm:$0xf]
        %v342 = vld [vmem:[%s1 + $0x10] sm:$0xf]
        %v343 = vld [vmem:[%s1 + $0x14] sm:$0xf]
        %v344 = vld [vmem:[%s1 + $0x18] sm:$0xf]
        %v345 = vld [vmem:[%s1 + $0x1c] sm:$0xf]
        %v346 = vld [vmem:[%s2] sm:$0x1]
        %v348 = vperm.slane %v346, 0
        %v358 = vunpack.c.l.b16 %v338
        %v359 = vunpack.c.l.b16 %v339
        %v360 = vunpack.c.l.b16 %v340
        %v361 = vunpack.c.l.b16 %v341
        %v362 = vunpack.c.l.b16 %v342
        %v363 = vunpack.c.l.b16 %v343
        %v364 = vunpack.c.l.b16 %v344
        %v365 = vunpack.c.l.b16 %v345
        %v366 = vpack.c.b16 %v359, %v358
        %v367 = vpack.c.b16 %v361, %v360
        %v368 = vpack.c.b16 %v363, %v362
        %v369 = vpack.c.b16 %v365, %v364
        %vm374 = vcmask 523264
        %v376 = vsel %vm374, %v337, 0
        %378 = vmatpush.bf16.msra.mxu0 0
        %379 = vmatpush.bf16.msra.mxu0 0
        %380 = vmatpush.bf16.msra.mxu0 0
        %381 = vmatpush.bf16.msra.mxu0 0
        %382 = vmatpush.bf16.msra.mxu0 %v369
        %383 = vmatpush.bf16.msra.mxu0 %v368
        %384 = vmatpush.bf16.msra.mxu0 %v367
        %385 = vmatpush.bf16.msra.mxu0 %v366
        %386 = vmatmul.bf16.gmra.mxu0 %v376
        %v387 = vpop.f32.mrf.mxu0
        %v388 = vadd.f32 %v348, %v387
        %v389 = vpop.f32.mrf.mxu0
        %v390 = vadd.f32 %v348, %v389
        %391 = vdwg.mxu0
        %v392 = vmax.f32 %v388, 0.0
        %v393 = vmax.f32 %v390, 0.0
        %v394 = vpack.c.bf16 %v393, %v392
        %v395 = vld [vmem:[%s3] sm:$0xf]
        %v396 = vld [vmem:[%s3 + $0x4] sm:$0xf]
        %v397 = vld [vmem:[%s3 + $0x8] sm:$0xf]
        %v398 = vld [vmem:[%s3 + $0xc] sm:$0xf]
        %v399 = vld [vmem:[%s3 + $0x10] sm:$0xf]
        %v400 = vld [vmem:[%s3 + $0x14] sm:$0xf]
        %v401 = vld [vmem:[%s3 + $0x18] sm:$0xf]
        %v402 = vld [vmem:[%s3 + $0x1c] sm:$0xf]
        %v403 = vld [vmem:[%s3 + $0x20] sm:$0xf]
        %v404 = vld [vmem:[%s3 + $0x24] sm:$0xf]
        %v405 = vld [vmem:[%s3 + $0x28] sm:$0xf]
        %v406 = vld [vmem:[%s3 + $0x2c] sm:$0xf]
        %v407 = vld [vmem:[%s3 + $0x30] sm:$0xf]
        %v408 = vld [vmem:[%s3 + $0x34] sm:$0xf]
        %v409 = vld [vmem:[%s3 + $0x38] sm:$0xf]
        %v410 = vld [vmem:[%s3 + $0x3c] sm:$0xf]
        %v411 = vld [vmem:[%s4] sm:$0x1]
        %v413 = vperm.slane %v411, 0
        %v431 = vunpack.c.l.b16 %v395
        %v432 = vunpack.c.l.b16 %v396
        %v433 = vunpack.c.l.b16 %v397
        %v434 = vunpack.c.l.b16 %v398
        %v435 = vunpack.c.l.b16 %v399
        %v436 = vunpack.c.l.b16 %v400
        %v437 = vunpack.c.l.b16 %v401
        %v438 = vunpack.c.l.b16 %v402
        %v439 = vunpack.c.l.b16 %v403
        %v440 = vunpack.c.l.b16 %v404
        %v441 = vunpack.c.l.b16 %v405
        %v442 = vunpack.c.l.b16 %v406
        %v443 = vunpack.c.l.b16 %v407
        %v444 = vunpack.c.l.b16 %v408
        %v445 = vunpack.c.l.b16 %v409
        %v446 = vunpack.c.l.b16 %v410
        %v447 = vpack.c.b16 %v432, %v431
        %v448 = vpack.c.b16 %v434, %v433
        %v449 = vpack.c.b16 %v436, %v435
        %v450 = vpack.c.b16 %v438, %v437
        %v451 = vpack.c.b16 %v440, %v439
        %v452 = vpack.c.b16 %v442, %v441
        %v453 = vpack.c.b16 %v444, %v443
        %v454 = vpack.c.b16 %v446, %v445
        %463 = vmatpush.bf16.msra.mxu0 %v454
        %464 = vmatpush.bf16.msra.mxu0 %v453
        %465 = vmatpush.bf16.msra.mxu0 %v452
        %466 = vmatpush.bf16.msra.mxu0 %v451
        %467 = vmatpush.bf16.msra.mxu0 %v450
        %468 = vmatpush.bf16.msra.mxu0 %v449
        %469 = vmatpush.bf16.msra.mxu0 %v448
        %470 = vmatpush.bf16.msra.mxu0 %v447
        %471 = vmatmul.bf16.gmra.mxu0 %v394
        %v472 = vpop.f32.mrf.mxu0
        %v473 = vadd.f32 %v413, %v472
        %v474 = vpop.f32.mrf.mxu0
        %v475 = vadd.f32 %v413, %v474
        %476 = vdwg.mxu0
        %v477 = vadd.f32 %v335, %v473
        %v478 = vadd.f32 %v336, %v475
        %v479 = vld [vmem:[%s5] sm:$0x1]
        %v480 = vld [vmem:[%s6] sm:$0x1]
        %v481 = vsel %vm374, %v477, 0.0
        %482 = vadd.xlane.f32.xlu0 %v481
        %v483 = vpop.xlane.xlu0 %482
        %v484 = vsel %vm374, %v478, 0.0
        %485 = vadd.xlane.f32.xlu0 %v484
        %v486 = vpop.xlane.xlu0 %485
        %v487 = vrcp.pop 64.0
        %v488 = vmul.f32 64.0, %v487
        %v489 = vsub.f32 1.0, %v488
        %v490 = vmul.f32 %v487, %v489
        %v491 = vadd.f32 %v487, %v490
        %vm492 = vweird.f32 %v487
        %v493 = vsel %vm492, %v487, %v491
        %v494 = vmul.f32 %v483, %v493
        %v495 = vmul.f32 %v486, %v493
        %v496 = vsub.f32 %v477, %v494
        %v497 = vsub.f32 %v478, %v495
        %v498 = vmul.f32 %v496, %v496
        %v499 = vmul.f32 %v497, %v497
        %v500 = vsel %vm374, %v498, 0.0
        %501 = vadd.xlane.f32.xlu0 %v500
        %v502 = vpop.xlane.xlu0 %501
        %v503 = vsel %vm374, %v499, 0.0
        %504 = vadd.xlane.f32.xlu0 %v503
        %v505 = vpop.xlane.xlu0 %504
        %v506 = vmul.f32 %v502, %v493
        %v507 = vmul.f32 %v505, %v493
        %v508 = vadd.f32 %v506, 1e-05
        %v509 = vadd.f32 %v507, 1e-05
        %v510 = vrsqrt.pop %v508
        %v511 = vmul.f32 %v510, %v508
        %v512 = vmul.f32 %v511, %v510
        %v513 = vmul.f32 0.5, %v512
        %v514 = vsub.f32 1.5, %v513
        %v515 = vmul.f32 %v510, %v514
        %vm516 = vweird.f32 %v508
        %vm517 = vweird.f32 %v510
        %vm518 = vmor %vm516, %vm517
        %v519 = vsel %vm518, %v510, %v515
        %v520 = vrsqrt.pop %v509
        %v521 = vmul.f32 %v520, %v509
        %v522 = vmul.f32 %v521, %v520
        %v523 = vmul.f32 0.5, %v522
        %v524 = vsub.f32 1.5, %v523
        %v525 = vmul.f32 %v520, %v524
        %vm526 = vweird.f32 %v509
        %vm527 = vweird.f32 %v520
        %vm528 = vmor %vm526, %vm527
        %v529 = vsel %vm528, %v520, %v525
        %v530 = vmul.f32 %v496, %v519
        %v531 = vmul.f32 %v497, %v529
        %v533 = vperm.slane %v479, 0
        %v535 = vmul.f32 %v530, %v533
        %v536 = vmul.f32 %v531, %v533
        %v538 = vperm.slane %v480, 0
        %v540 = vadd.f32 %v535, %v538
        %v541 = vadd.f32 %v536, %v538
        %v542 = vld [vmem:[%s7] sm:$0x1]
        %v543 = vld [vmem:[%s8] sm:$0x1]
        %v544 = vsel %vm374, %v540, 0.0
        %545 = vadd.xlane.f32.xlu0 %v544
        %v546 = vpop.xlane.xlu0 %545
        %v547 = vsel %vm374, %v541, 0.0
        %548 = vadd.xlane.f32.xlu0 %v547
        %v549 = vpop.xlane.xlu0 %548
        %v550 = vmul.f32 %v546, %v493
        %v551 = vmul.f32 %v549, %v493
        %v552 = vsub.f32 %v540, %v550
        %v553 = vsub.f32 %v541, %v551
        %v554 = vmul.f32 %v552, %v552
        %v555 = vmul.f32 %v553, %v553
        %v556 = vsel %vm374, %v554, 0.0
        %557 = vadd.xlane.f32.xlu0 %v556
        %v558 = vpop.xlane.xlu0 %557
        %v559 = vsel %vm374, %v555, 0.0
        %560 = vadd.xlane.f32.xlu0 %v559
        %v561 = vpop.xlane.xlu0 %560
        %v562 = vmul.f32 %v558, %v493
        %v563 = vmul.f32 %v561, %v493
        %v564 = vadd.f32 %v562, 1e-05
        %v565 = vadd.f32 %v563, 1e-05
        %v566 = vrsqrt.pop %v564
        %v567 = vmul.f32 %v566, %v564
        %v568 = vmul.f32 %v567, %v566
        %v569 = vmul.f32 0.5, %v568
        %v570 = vsub.f32 1.5, %v569
        %v571 = vmul.f32 %v566, %v570
        %vm572 = vweird.f32 %v564
        %vm573 = vweird.f32 %v566
        %vm574 = vmor %vm572, %vm573
        %v575 = vsel %vm574, %v566, %v571
        %v576 = vrsqrt.pop %v565
        %v577 = vmul.f32 %v576, %v565
        %v578 = vmul.f32 %v577, %v576
        %v579 = vmul.f32 0.5, %v578
        %v580 = vsub.f32 1.5, %v579
        %v581 = vmul.f32 %v576, %v580
        %vm582 = vweird.f32 %v565
        %vm583 = vweird.f32 %v576
        %vm584 = vmor %vm582, %vm583
        %v585 = vsel %vm584, %v576, %v581
        %v586 = vmul.f32 %v552, %v575
        %v587 = vmul.f32 %v553, %v585
        %v589 = vperm.slane %v542, 0
        %v591 = vmul.f32 %v586, %v589
        %v592 = vmul.f32 %v587, %v589
        %v594 = vperm.slane %v543, 0
        %v596 = vadd.f32 %v591, %v594
        %v597 = vadd.f32 %v592, %v594
        %598 = vst.msk [vmem:[%s326] sm:$0xff] %vm374, %v596
        %599 = vst.msk [vmem:[%s326 + $0x8] sm:$0xff] %vm374, %v597
        %s600 = sand.u32 %s225, 1
        %s601 = scalar_lea.sflag [#allocation3], %s600
        %s602 = sand.u32 %s225, 1
        %s603 = smul.addr %s602, 16
        %s604 = scalar_lea.vmem [#allocation2], %s603
        // Predicated region
        $region57: #{transformer_forward.27} parent=55 // pred_check
          %p605 = pneg %p235
        $region58: #{transformer_forward.27} parent=55 // pred_check_branch
          %607 = sbr.rel (%p605) target = $region60
        $region59: #{transformer_forward.27} parent=55 // pred_region
          %s608 = smul.u32 2, %s23
          %610 = vsyncadd %s601, 0
          %s611 = smul.addr %s608, 8
          %s612 = scalar_lea.hbm %s9, %s611
          %s613 = sshll.u32 %s604, 4
          %s614 = int_to_ptr.vmem [resolvable:$true] %s613
          %s615 = sshll.u32 %s612, 4
          %s616 = int_to_ptr.hbm [resolvable:$true] %s615
          %621 = dma.vmem_to_hbm [thread:$0]  %s614, 256, %s616, %s601, 128, 128, 8
        $region60: #{transformer_forward.27} parent=55 // pred_fallthru
          _
      $region56: #{transformer_forward.27} parent=5 // pred_fallthru
        _
      %p622 = scmp.le.s32.totalorder 2, %s18
      // Predicated region
      $region61: #{transformer_forward.27} parent=5 // pred_check
        %p623 = pneg %p622
      $region62: #{transformer_forward.27} parent=5 // pred_check_branch
        %625 = sbr.rel (%p623) target = $region64
      $region63: #{transformer_forward.27} parent=5 // pred_region
        %s626 = ssub.s32 %s18, 2
        // Predicated region
        $region65: #{transformer_forward.27} parent=63 // pred_check
          %p627 = pneg %p241
        $region66: #{transformer_forward.27} parent=63 // pred_check_branch
          %629 = sbr.rel (%p627) target = $region68
        $region67: #{transformer_forward.27} parent=63 // pred_region
          %s630 = sand.u32 %s226, 1
          %s631 = scalar_lea.sflag [#allocation3], %s630
          %s632 = sand.u32 %s226, 1
          %s633 = smul.addr %s632, 16
          %s634 = scalar_lea.vmem [#allocation2], %s633
          %636 = dma.done %s631, 256
        $region68: #{transformer_forward.27} parent=63 // pred_fallthru
          _
      $region64: #{transformer_forward.27} parent=5 // pred_fallthru
        _
    $region6: #{transformer_forward.27} parent=1 // loop_footer
      %s22 = sadd.s32 1, %s18
    $region7: #{transformer_forward.27} parent=1 // loop_footer_branch
      %17 = sbr.rel target = $region3
    $region8: #{transformer_forward.27} parent=1 // loop_exit
      _
    %637 = vsyncpa [#allocation3], 1
    %s638 = scalar_lea.sflag [#allocation3], 1
    %639 = vsyncpa %s638, 1

// kernel: transformer_forward.14
$region0: #{transformer_forward.14}
  #allocation0 [shape = 'u32[]', space=smem, size = 0x4, offset = 0x4, fixed_abs, tag = 'smem constant byte address 0x4 - core index']
  #allocation1 [shape = 'u32[72,128]{1,0:T(1,128)}', space=vmem, size = 0x9000, scoped, tag = 'internal scratch']
  #allocation2 [shape = 'bf16[4,16,16]{2,1,0:T(8,128)(2,1)}', space=vmem, size = 0x4000, scoped, tag = 'scratch operand']
  #allocation3 [shape = 'bf16[4,16,16]{2,1,0:T(8,128)(2,1)}', space=vmem, size = 0x4000, scoped, tag = 'scratch operand']
  %s0 = inlined_call_operand.vmem [shape: f32[2,16,64], index: 0, kind: input, shape index: {}]
  %s1 = inlined_call_operand.vmem [shape: bf16[4,64,16], index: 1, kind: input, shape index: {}]
  %s2 = inlined_call_operand.vmem [shape: bf16[4,64,16], index: 2, kind: input, shape index: {}]
  %s3 = inlined_call_operand.vmem [shape: bf16[4,64,16], index: 3, kind: input, shape index: {}]
  %s4 = inlined_call_operand.vmem [shape: f32[4,1,16], index: 4, kind: input, shape index: {}]
  %s5 = inlined_call_operand.vmem [shape: f32[4,1,16], index: 5, kind: input, shape index: {}]
  %s6 = inlined_call_operand.vmem [shape: f32[4,1,16], index: 6, kind: input, shape index: {}]
  %s7 = inlined_call_operand.vmem [shape: bf16[64,64], index: 7, kind: input, shape index: {}]
  %s8 = inlined_call_operand.vmem [shape: f32[1,64], index: 8, kind: input, shape index: {}]
  %s9 = inlined_call_operand.vmem [shape: f32[1,64], index: 9, kind: input, shape index: {}]
  %s10 = inlined_call_operand.vmem [shape: f32[1,64], index: 10, kind: input, shape index: {}]
  %s11 = inlined_call_operand.vmem [shape: f32[2,16,64], index: 11, kind: output, shape index: {}]
  %s12 = sld [smem:[#allocation0]]
  $region81: #{transformer_forward.14} parent=0
    _
  %s14 = ssub.s32 1, %s12
  %s15 = scalar_select 0, %s14, %s12
  loop: start=0, step=1, limit=4
  $region2: #{transformer_forward.14} parent=0 // loop_pre_header
    _
  $region3: #{transformer_forward.14} parent=0 // loop_header
    %s17 = sphi 0, %s21
    %p18 = scmp.ge.s32.totalorder %s17, 4
    %s24 = sphi 0, %s36
    %s25 = sphi 0, %s32
    %s26 = sphi 0, %s24
    %s27 = sphi 0, %s25
    %s28 = sphi 0, %s26
    %s29 = sphi 0, %s27
    %s39 = sphi 0, %s41
    %s42 = sphi 0, %s39
    %s43 = sphi 0, %s42
    %s59 = sphi 0, %s43
    %s63 = sphi 0, %s63
    %s65 = sphi 0, %s63
    %s66 = sphi 0, %s65
    %s80 = sphi 0, %s66
    %s84 = sphi 0, %s84
    %s86 = sphi 0, %s84
    %s87 = sphi 0, %s86
    %s101 = sphi 0, %s87
    %s105 = sphi 0, %s105
    %s107 = sphi 0, %s105
    %s108 = sphi 0, %s107
    %s122 = sphi 0, %s108
    %s126 = sphi 0, %s126
    %s128 = sphi 0, %s126
    %s129 = sphi 0, %s128
    %s143 = sphi 0, %s129
    %s147 = sphi 0, %s147
    %s149 = sphi 0, %s147
    %s150 = sphi 0, %s149
    %s164 = sphi 0, %s150
    %s168 = sphi 0, %s168
    %s170 = sphi 0, %s168
    %s171 = sphi 0, %s170
    %s185 = sphi 0, %s171
    %s189 = sphi 0, %s189
    %s191 = sphi 0, %s189
    %s192 = sphi 0, %s191
    %s206 = sphi 0, %s192
    %s210 = sphi 0, %s210
    %s212 = sphi 0, %s210
    %s213 = sphi 0, %s212
    %s227 = sphi 0, %s213
    %s231 = sphi 0, %s231
    %s233 = sphi 0, %s231
    %s234 = sphi 0, %s233
    %s248 = sphi 0, %s234
    %s252 = sphi 0, %s252
    %s254 = sphi 0, %s252
    %s255 = sphi 0, %s254
    %s269 = sphi 0, %s255
    %s277 = sphi 0, %s279
    %s280 = sphi 0, %s277
    %s281 = sphi 0, %s280
    %s297 = sphi 0, %s281
  $region4: #{transformer_forward.14} parent=0 // loop_header_branch
    %20 = sbr.rel (%p18) target = $region8
  $region5: #{transformer_forward.14} parent=0 // loop_body
    %s22 = ssub.s32 %s17, 1
    %s23 = ssub.s32 %s17, 2
    %s30 = sadd.s32 1, %s25
    %p31 = scmp.ge.s32.totalorder %s30, 1
    %s32 = scalar_select %p31, 0, %s30
    %s33 = sadd.s32 1, %s24
    %s34 = scalar_select %p31, %s33, %s24
    %p35 = scmp.ge.s32.totalorder %s34, 2
    %s36 = scalar_select %p35, 0, %s34
    %s37 = ssub.s32 %s24, %s36
    %p38 = scmp.eq.s32.totalorder %s37, 0
    %s40 = sadd.s32 %s39, 1
    %s41 = scalar_select %p38, %s39, %s40
    %p44 = pneg %p38
    %p45 = scmp.eq.s32.totalorder %s17, 1
    %p46 = por %p44, %p45
    %p47 = scmp.ne.s32.totalorder %s39, %s42
    %p48 = scmp.eq.s32.totalorder %s17, 0
    %p49 = por %p47, %p48
    %p50 = scmp.ne.s32.totalorder %s39, %s42
    %p51 = scmp.eq.s32.totalorder %s22, 1
    %p52 = por %p50, %p51
    %p53 = scmp.ne.s32.totalorder %s42, %s43
    %p54 = scmp.eq.s32.totalorder %s22, 0
    %p55 = por %p53, %p54
    %p56 = scmp.ne.s32.totalorder %s42, %s43
    %p57 = scmp.eq.s32.totalorder %s23, 1
    %p58 = por %p56, %p57
    %p60 = scmp.ne.s32.totalorder %s43, %s59
    %p61 = scmp.eq.s32.totalorder %s23, 0
    %p62 = por %p60, %p61
    %s64 = sadd.s32 %s63, 1
    %p67 = scmp.eq.s32.totalorder %s17, 1
    %p68 = scmp.ne.s32.totalorder %s63, %s65
    %p69 = scmp.eq.s32.totalorder %s17, 0
    %p70 = por %p68, %p69
    %p71 = scmp.ne.s32.totalorder %s63, %s65
    %p72 = scmp.eq.s32.totalorder %s22, 1
    %p73 = por %p71, %p72
    %p74 = scmp.ne.s32.totalorder %s65, %s66
    %p75 = scmp.eq.s32.totalorder %s22, 0
    %p76 = por %p74, %p75
    %p77 = scmp.ne.s32.totalorder %s65, %s66
    %p78 = scmp.eq.s32.totalorder %s23, 1
    %p79 = por %p77, %p78
    %p81 = scmp.ne.s32.totalorder %s66, %s80
    %p82 = scmp.eq.s32.totalorder %s23, 0
    %p83 = por %p81, %p82
    %s85 = sadd.s32 %s84, 1
    %p88 = scmp.eq.s32.totalorder %s17, 1
    %p89 = scmp.ne.s32.totalorder %s84, %s86
    %p90 = scmp.eq.s32.totalorder %s17, 0
    %p91 = por %p89, %p90
    %p92 = scmp.ne.s32.totalorder %s84, %s86
    %p93 = scmp.eq.s32.totalorder %s22, 1
    %p94 = por %p92, %p93
    %p95 = scmp.ne.s32.totalorder %s86, %s87
    %p96 = scmp.eq.s32.totalorder %s22, 0
    %p97 = por %p95, %p96
    %p98 = scmp.ne.s32.totalorder %s86, %s87
    %p99 = scmp.eq.s32.totalorder %s23, 1
    %p100 = por %p98, %p99
    %p102 = scmp.ne.s32.totalorder %s87, %s101
    %p103 = scmp.eq.s32.totalorder %s23, 0
    %p104 = por %p102, %p103
    %s106 = sadd.s32 %s105, 1
    %p109 = scmp.eq.s32.totalorder %s17, 1
    %p110 = scmp.ne.s32.totalorder %s105, %s107
    %p111 = scmp.eq.s32.totalorder %s17, 0
    %p112 = por %p110, %p111
    %p113 = scmp.ne.s32.totalorder %s105, %s107
    %p114 = scmp.eq.s32.totalorder %s22, 1
    %p115 = por %p113, %p114
    %p116 = scmp.ne.s32.totalorder %s107, %s108
    %p117 = scmp.eq.s32.totalorder %s22, 0
    %p118 = por %p116, %p117
    %p119 = scmp.ne.s32.totalorder %s107, %s108
    %p120 = scmp.eq.s32.totalorder %s23, 1
    %p121 = por %p119, %p120
    %p123 = scmp.ne.s32.totalorder %s108, %s122
    %p124 = scmp.eq.s32.totalorder %s23, 0
    %p125 = por %p123, %p124
    %s127 = sadd.s32 %s126, 1
    %p130 = scmp.eq.s32.totalorder %s17, 1
    %p131 = scmp.ne.s32.totalorder %s126, %s128
    %p132 = scmp.eq.s32.totalorder %s17, 0
    %p133 = por %p131, %p132
    %p134 = scmp.ne.s32.totalorder %s126, %s128
    %p135 = scmp.eq.s32.totalorder %s22, 1
    %p136 = por %p134, %p135
    %p137 = scmp.ne.s32.totalorder %s128, %s129
    %p138 = scmp.eq.s32.totalorder %s22, 0
    %p139 = por %p137, %p138
    %p140 = scmp.ne.s32.totalorder %s128, %s129
    %p141 = scmp.eq.s32.totalorder %s23, 1
    %p142 = por %p140, %p141
    %p144 = scmp.ne.s32.totalorder %s129, %s143
    %p145 = scmp.eq.s32.totalorder %s23, 0
    %p146 = por %p144, %p145
    %s148 = sadd.s32 %s147, 1
    %p151 = scmp.eq.s32.totalorder %s17, 1
    %p152 = scmp.ne.s32.totalorder %s147, %s149
    %p153 = scmp.eq.s32.totalorder %s17, 0
    %p154 = por %p152, %p153
    %p155 = scmp.ne.s32.totalorder %s147, %s149
    %p156 = scmp.eq.s32.totalorder %s22, 1
    %p157 = por %p155, %p156
    %p158 = scmp.ne.s32.totalorder %s149, %s150
    %p159 = scmp.eq.s32.totalorder %s22, 0
    %p160 = por %p158, %p159
    %p161 = scmp.ne.s32.totalorder %s149, %s150
    %p162 = scmp.eq.s32.totalorder %s23, 1
    %p163 = por %p161, %p162
    %p165 = scmp.ne.s32.totalorder %s150, %s164
    %p166 = scmp.eq.s32.totalorder %s23, 0
    %p167 = por %p165, %p166
    %s169 = sadd.s32 %s168, 1
    %p172 = scmp.eq.s32.totalorder %s17, 1
    %p173 = scmp.ne.s32.totalorder %s168, %s170
    %p174 = scmp.eq.s32.totalorder %s17, 0
    %p175 = por %p173, %p174
    %p176 = scmp.ne.s32.totalorder %s168, %s170
    %p177 = scmp.eq.s32.totalorder %s22, 1
    %p178 = por %p176, %p177
    %p179 = scmp.ne.s32.totalorder %s170, %s171
    %p180 = scmp.eq.s32.totalorder %s22, 0
    %p181 = por %p179, %p180
    %p182 = scmp.ne.s32.totalorder %s170, %s171
    %p183 = scmp.eq.s32.totalorder %s23, 1
    %p184 = por %p182, %p183
    %p186 = scmp.ne.s32.totalorder %s171, %s185
    %p187 = scmp.eq.s32.totalorder %s23, 0
    %p188 = por %p186, %p187
    %s190 = sadd.s32 %s189, 1
    %p193 = scmp.eq.s32.totalorder %s17, 1
    %p194 = scmp.ne.s32.totalorder %s189, %s191
    %p195 = scmp.eq.s32.totalorder %s17, 0
    %p196 = por %p194, %p195
    %p197 = scmp.ne.s32.totalorder %s189, %s191
    %p198 = scmp.eq.s32.totalorder %s22, 1
    %p199 = por %p197, %p198
    %p200 = scmp.ne.s32.totalorder %s191, %s192
    %p201 = scmp.eq.s32.totalorder %s22, 0
    %p202 = por %p200, %p201
    %p203 = scmp.ne.s32.totalorder %s191, %s192
    %p204 = scmp.eq.s32.totalorder %s23, 1
    %p205 = por %p203, %p204
    %p207 = scmp.ne.s32.totalorder %s192, %s206
    %p208 = scmp.eq.s32.totalorder %s23, 0
    %p209 = por %p207, %p208
    %s211 = sadd.s32 %s210, 1
    %p214 = scmp.eq.s32.totalorder %s17, 1
    %p215 = scmp.ne.s32.totalorder %s210, %s212
    %p216 = scmp.eq.s32.totalorder %s17, 0
    %p217 = por %p215, %p216
    %p218 = scmp.ne.s32.totalorder %s210, %s212
    %p219 = scmp.eq.s32.totalorder %s22, 1
    %p220 = por %p218, %p219
    %p221 = scmp.ne.s32.totalorder %s212, %s213
    %p222 = scmp.eq.s32.totalorder %s22, 0
    %p223 = por %p221, %p222
    %p224 = scmp.ne.s32.totalorder %s212, %s213
    %p225 = scmp.eq.s32.totalorder %s23, 1
    %p226 = por %p224, %p225
    %p228 = scmp.ne.s32.totalorder %s213, %s227
    %p229 = scmp.eq.s32.totalorder %s23, 0
    %p230 = por %p228, %p229
    %s232 = sadd.s32 %s231, 1
    %p235 = scmp.eq.s32.totalorder %s17, 1
    %p236 = scmp.ne.s32.totalorder %s231, %s233
    %p237 = scmp.eq.s32.totalorder %s17, 0
    %p238 = por %p236, %p237
    %p239 = scmp.ne.s32.totalorder %s231, %s233
    %p240 = scmp.eq.s32.totalorder %s22, 1
    %p241 = por %p239, %p240
    %p242 = scmp.ne.s32.totalorder %s233, %s234
    %p243 = scmp.eq.s32.totalorder %s22, 0
    %p244 = por %p242, %p243
    %p245 = scmp.ne.s32.totalorder %s233, %s234
    %p246 = scmp.eq.s32.totalorder %s23, 1
    %p247 = por %p245, %p246
    %p249 = scmp.ne.s32.totalorder %s234, %s248
    %p250 = scmp.eq.s32.totalorder %s23, 0
    %p251 = por %p249, %p250
    %s253 = sadd.s32 %s252, 1
    %p256 = scmp.eq.s32.totalorder %s17, 1
    %p257 = scmp.ne.s32.totalorder %s252, %s254
    %p258 = scmp.eq.s32.totalorder %s17, 0
    %p259 = por %p257, %p258
    %p260 = scmp.ne.s32.totalorder %s252, %s254
    %p261 = scmp.eq.s32.totalorder %s22, 1
    %p262 = por %p260, %p261
    %p263 = scmp.ne.s32.totalorder %s254, %s255
    %p264 = scmp.eq.s32.totalorder %s22, 0
    %p265 = por %p263, %p264
    %p266 = scmp.ne.s32.totalorder %s254, %s255
    %p267 = scmp.eq.s32.totalorder %s23, 1
    %p268 = por %p266, %p267
    %p270 = scmp.ne.s32.totalorder %s255, %s269
    %p271 = scmp.eq.s32.totalorder %s23, 0
    %p272 = por %p270, %p271
    %s273 = ssub.s32 %s24, %s36
    %s274 = ssub.s32 %s25, %s32
    %s275 = sor.u32 %s273, %s274
    %p276 = scmp.eq.s32.totalorder %s275, 0
    %s278 = sadd.s32 %s277, 1
    %s279 = scalar_select %p276, %s277, %s278
    %p282 = pneg %p276
    %p283 = scmp.eq.s32.totalorder %s17, 1
    %p284 = por %p282, %p283
    %p285 = scmp.ne.s32.totalorder %s277, %s280
    %p286 = scmp.eq.s32.totalorder %s17, 0
    %p287 = por %p285, %p286
    %p288 = scmp.ne.s32.totalorder %s277, %s280
    %p289 = scmp.eq.s32.totalorder %s22, 1
    %p290 = por %p288, %p289
    %p291 = scmp.ne.s32.totalorder %s280, %s281
    %p292 = scmp.eq.s32.totalorder %s22, 0
    %p293 = por %p291, %p292
    %p294 = scmp.ne.s32.totalorder %s280, %s281
    %p295 = scmp.eq.s32.totalorder %s23, 1
    %p296 = por %p294, %p295
    %p298 = scmp.ne.s32.totalorder %s281, %s297
    %p299 = scmp.eq.s32.totalorder %s23, 0
    %p300 = por %p298, %p299
    %p301 = scmp.le.s32.totalorder 1, %s17
    %p302 = scmp.lt.s32.totalorder %s17, 3
    %p303 = pnand %p301, %p302
    %p304 = pneg %p303
    // Predicated region
    $region9: #{transformer_forward.14} parent=5 // pred_check
      _
    $region10: #{transformer_forward.14} parent=5 // pred_check_branch
      %306 = sbr.rel (%p303) target = $region12
    $region11: #{transformer_forward.14} parent=5 // pred_region
      %s307 = ssub.s32 %s17, 1
      // Predicated region
      $region13: #{transformer_forward.14} parent=11 // pred_check
        %p308 = pneg %p76
      $region14: #{transformer_forward.14} parent=11 // pred_check_branch
        %310 = sbr.rel (%p308) target = $region16
      $region15: #{transformer_forward.14} parent=11 // pred_region
        _
      $region16: #{transformer_forward.14} parent=11 // pred_fallthru
        _
      // Predicated region
      $region17: #{transformer_forward.14} parent=11 // pred_check
        %p311 = pneg %p97
      $region18: #{transformer_forward.14} parent=11 // pred_check_branch
        %313 = sbr.rel (%p311) target = $region20
      $region19: #{transformer_forward.14} parent=11 // pred_region
        _
      $region20: #{transformer_forward.14} parent=11 // pred_fallthru
        _
      // Predicated region
      $region21: #{transformer_forward.14} parent=11 // pred_check
        %p314 = pneg %p118
      $region22: #{transformer_forward.14} parent=11 // pred_check_branch
        %316 = sbr.rel (%p314) target = $region24
      $region23: #{transformer_forward.14} parent=11 // pred_region
        _
      $region24: #{transformer_forward.14} parent=11 // pred_fallthru
        _
      // Predicated region
      $region25: #{transformer_forward.14} parent=11 // pred_check
        %p317 = pneg %p139
      $region26: #{transformer_forward.14} parent=11 // pred_check_branch
        %319 = sbr.rel (%p317) target = $region28
      $region27: #{transformer_forward.14} parent=11 // pred_region
        _
      $region28: #{transformer_forward.14} parent=11 // pred_fallthru
        _
      // Predicated region
      $region29: #{transformer_forward.14} parent=11 // pred_check
        %p320 = pneg %p160
      $region30: #{transformer_forward.14} parent=11 // pred_check_branch
        %322 = sbr.rel (%p320) target = $region32
      $region31: #{transformer_forward.14} parent=11 // pred_region
        _
      $region32: #{transformer_forward.14} parent=11 // pred_fallthru
        _
      // Predicated region
      $region33: #{transformer_forward.14} parent=11 // pred_check
        %p323 = pneg %p181
      $region34: #{transformer_forward.14} parent=11 // pred_check_branch
        %325 = sbr.rel (%p323) target = $region36
      $region35: #{transformer_forward.14} parent=11 // pred_region
        _
      $region36: #{transformer_forward.14} parent=11 // pred_fallthru
        _
      // Predicated region
      $region37: #{transformer_forward.14} parent=11 // pred_check
        %p326 = pneg %p202
      $region38: #{transformer_forward.14} parent=11 // pred_check_branch
        %328 = sbr.rel (%p326) target = $region40
      $region39: #{transformer_forward.14} parent=11 // pred_region
        _
      $region40: #{transformer_forward.14} parent=11 // pred_fallthru
        _
      // Predicated region
      $region41: #{transformer_forward.14} parent=11 // pred_check
        %p329 = pneg %p223
      $region42: #{transformer_forward.14} parent=11 // pred_check_branch
        %331 = sbr.rel (%p329) target = $region44
      $region43: #{transformer_forward.14} parent=11 // pred_region
        _
      $region44: #{transformer_forward.14} parent=11 // pred_fallthru
        _
      // Predicated region
      $region45: #{transformer_forward.14} parent=11 // pred_check
        %p332 = pneg %p244
      $region46: #{transformer_forward.14} parent=11 // pred_check_branch
        %334 = sbr.rel (%p332) target = $region48
      $region47: #{transformer_forward.14} parent=11 // pred_region
        _
      $region48: #{transformer_forward.14} parent=11 // pred_fallthru
        _
      // Predicated region
      $region49: #{transformer_forward.14} parent=11 // pred_check
        %p335 = pneg %p265
      $region50: #{transformer_forward.14} parent=11 // pred_check_branch
        %337 = sbr.rel (%p335) target = $region52
      $region51: #{transformer_forward.14} parent=11 // pred_region
        _
      $region52: #{transformer_forward.14} parent=11 // pred_fallthru
        _
    $region12: #{transformer_forward.14} parent=5 // pred_fallthru
      _
    %p338 = scmp.lt.s32.totalorder %s17, 2
    // Predicated region
    $region53: #{transformer_forward.14} parent=5 // pred_check
      %p339 = pneg %p338
    $region54: #{transformer_forward.14} parent=5 // pred_check_branch
      %341 = sbr.rel (%p339) target = $region56
    $region55: #{transformer_forward.14} parent=5 // pred_region
      // Predicated region
      $region57: #{transformer_forward.14} parent=55 // pred_check
        %p342 = pneg %p49
      $region58: #{transformer_forward.14} parent=55 // pred_check_branch
        %344 = sbr.rel (%p342) target = $region60
      $region59: #{transformer_forward.14} parent=55 // pred_region
        %p345 = scmp.lt.s32.totalorder %s24, 1
        %s346 = scalar_select %p345, %s24, 1
        %s347 = smul.addr %s346, 2
        %s348 = smul.addr %s347, 8
        %s349 = scalar_lea.vmem %s0, %s348
      $region60: #{transformer_forward.14} parent=55 // pred_fallthru
        _
    $region56: #{transformer_forward.14} parent=5 // pred_fallthru
      _
    %p350 = scmp.le.s32.totalorder 1, %s17
    %p351 = scmp.lt.s32.totalorder %s17, 3
    %p352 = pnand %p350, %p351
    %p353 = pneg %p352
    // Predicated region
    $region61: #{transformer_forward.14} parent=5 // pred_check
      _
    $region62: #{transformer_forward.14} parent=5 // pred_check_branch
      %355 = sbr.rel (%p352) target = $region64
    $region63: #{transformer_forward.14} parent=5 // pred_region
      %s356 = ssub.s32 %s17, 1
      %p357 = scmp.lt.s32.totalorder %s26, 1
      %s358 = scalar_select %p357, %s26, 1
      %s359 = smul.addr %s358, 2
      %s360 = smul.addr %s359, 8
      %s361 = scalar_lea.vmem %s0, %s360
      %p362 = pneg %p55
      %p363 = pneg %p52
      %p364 = pneg %p76
      %p365 = pneg %p73
      %p366 = pneg %p97
      %p367 = pneg %p94
      %p368 = pneg %p118
      %p369 = pneg %p115
      %p370 = pneg %p139
      %p371 = pneg %p136
      %p372 = pneg %p160
      %p373 = pneg %p157
      %p374 = pneg %p181
      %p375 = pneg %p178
      %p376 = pneg %p202
      %p377 = pneg %p199
      %p378 = pneg %p223
      %p379 = pneg %p220
      %p380 = pneg %p244
      %p381 = pneg %p241
      %p382 = pneg %p265
      %p383 = pneg %p262
      %p384 = pneg %p293
      %p385 = pneg %p290
      %s386 = smul.u32 2, %s27
      %p387 = scmp.lt.s32.totalorder %s26, 1
      %s388 = scalar_select %p387, %s26, 1
      %p389 = scmp.lt.s32.totalorder %s386, 1
      %s390 = scalar_select %p389, %s386, 1
      %s391 = smul.addr %s388, 2
      %s392 = sadd.s32 %s390, %s391
      %s393 = smul.addr %s392, 8
      %s394 = scalar_lea.vmem %s11, %s393
      %p395 = scmp.lt.s32.totalorder %s26, 1
      %s396 = scalar_select %p395, %s26, 1
      %s397 = smul.addr %s396, 2
      %s398 = smul.addr %s397, 8
      %s399 = scalar_lea.vmem %s0, %s398
      %s400 = smul.u32 2, %s27
      %p401 = scmp.lt.s32.totalorder %s26, 1
      %s402 = scalar_select %p401, %s26, 1
      %p403 = scmp.lt.s32.totalorder %s400, 1
      %s404 = scalar_select %p403, %s400, 1
      %s405 = smul.addr %s402, 2
      %s406 = sadd.s32 %s404, %s405
      %s407 = smul.addr %s406, 8
      %s408 = scalar_lea.vmem %s11, %s407
      %s409 = smul.u32 2, %s27
      %p411 = scmp.eq.s32.totalorder %s27, 0
      // Predicated region
      $region65: #{transformer_forward.14} parent=63 // pred_check
        %p412 = pneg %p411
      $region66: #{transformer_forward.14} parent=63 // pred_check_branch
        %414 = sbr.rel (%p412) target = $region68
      $region67: #{transformer_forward.14} parent=63 // pred_region
        %v415 = vld [vmem:[%s399] sm:$0xff]
        %v416 = vld [vmem:[%s399 + $0x8] sm:$0xff]
        %v417 = vpack.c.bf16 %v416, %v415
        %v418 = vld [vmem:[%s2] sm:$0xf]
        %v419 = vld [vmem:[%s2 + $0x4] sm:$0xf]
        %v420 = vld [vmem:[%s2 + $0x8] sm:$0xf]
        %v421 = vld [vmem:[%s2 + $0xc] sm:$0xf]
        %v422 = vld [vmem:[%s2 + $0x10] sm:$0xf]
        %v423 = vld [vmem:[%s2 + $0x14] sm:$0xf]
        %v424 = vld [vmem:[%s2 + $0x18] sm:$0xf]
        %v425 = vld [vmem:[%s2 + $0x1c] sm:$0xf]
        %v426 = vld [vmem:[%s5] sm:$0x1]
        %v428 = vperm.slane %v426, 0
        %v438 = vunpack.c.l.b16 %v418
        %v439 = vunpack.c.l.b16 %v419
        %v440 = vunpack.c.l.b16 %v420
        %v441 = vunpack.c.l.b16 %v421
        %v442 = vunpack.c.l.b16 %v422
        %v443 = vunpack.c.l.b16 %v423
        %v444 = vunpack.c.l.b16 %v424
        %v445 = vunpack.c.l.b16 %v425
        %v446 = vpack.c.b16 %v439, %v438
        %v447 = vpack.c.b16 %v441, %v440
        %v448 = vpack.c.b16 %v443, %v442
        %v449 = vpack.c.b16 %v445, %v444
        %vm454 = vcmask 523264
        %v456 = vsel %vm454, %v417, 0
        %458 = vmatpush.bf16.msra.mxu0 0
        %459 = vmatpush.bf16.msra.mxu0 0
        %460 = vmatpush.bf16.msra.mxu0 0
        %461 = vmatpush.bf16.msra.mxu0 0
        %462 = vmatpush.bf16.msra.mxu0 %v449
        %463 = vmatpush.bf16.msra.mxu0 %v448
        %464 = vmatpush.bf16.msra.mxu0 %v447
        %465 = vmatpush.bf16.msra.mxu0 %v446
        %466 = vmatmul.bf16.gmra.mxu0 %v456
        %v467 = vpop.f32.mrf.mxu0
        %v468 = vadd.f32 %v428, %v467
        %v469 = vpop.f32.mrf.mxu0
        %v470 = vadd.f32 %v428, %v469
        %471 = vdwg.mxu0
        %v472 = vld [vmem:[%s3] sm:$0xf]
        %v473 = vld [vmem:[%s3 + $0x4] sm:$0xf]
        %v474 = vld [vmem:[%s3 + $0x8] sm:$0xf]
        %v475 = vld [vmem:[%s3 + $0xc] sm:$0xf]
        %v476 = vld [vmem:[%s3 + $0x10] sm:$0xf]
        %v477 = vld [vmem:[%s3 + $0x14] sm:$0xf]
        %v478 = vld [vmem:[%s3 + $0x18] sm:$0xf]
        %v479 = vld [vmem:[%s3 + $0x1c] sm:$0xf]
        %v480 = vld [vmem:[%s6] sm:$0x1]
        %v482 = vperm.slane %v480, 0
        %v492 = vunpack.c.l.b16 %v472
        %v493 = vunpack.c.l.b16 %v473
        %v494 = vunpack.c.l.b16 %v474
        %v495 = vunpack.c.l.b16 %v475
        %v496 = vunpack.c.l.b16 %v476
        %v497 = vunpack.c.l.b16 %v477
        %v498 = vunpack.c.l.b16 %v478
        %v499 = vunpack.c.l.b16 %v479
        %v500 = vpack.c.b16 %v493, %v492
        %v501 = vpack.c.b16 %v495, %v494
        %v502 = vpack.c.b16 %v497, %v496
        %v503 = vpack.c.b16 %v499, %v498
        %508 = vmatpush.bf16.msra.mxu0 0
        %509 = vmatpush.bf16.msra.mxu0 0
        %510 = vmatpush.bf16.msra.mxu0 0
        %511 = vmatpush.bf16.msra.mxu0 0
        %512 = vmatpush.bf16.msra.mxu0 %v503
        %513 = vmatpush.bf16.msra.mxu0 %v502
        %514 = vmatpush.bf16.msra.mxu0 %v501
        %515 = vmatpush.bf16.msra.mxu0 %v500
        %516 = vmatmul.bf16.gmra.mxu0 %v456
        %v517 = vpop.f32.mrf.mxu0
        %v518 = vadd.f32 %v482, %v517
        %v519 = vpop.f32.mrf.mxu0
        %v520 = vadd.f32 %v482, %v519
        %521 = vdwg.mxu0
        %v522 = vpack.c.bf16 %v468, %v468
        %v523 = vpack.c.bf16 %v470, %v470
        %vm524 = vcmask 125952
        %525 = vst.msk [vmem:[#allocation2] sm:$0xf] %vm524, %v522
        %526 = vst.msk [vmem:[#allocation2 + $0x4] sm:$0xf] %vm524, %v523
        %v527 = vpack.c.bf16 %v518, %v518
        %v528 = vpack.c.bf16 %v520, %v520
        %529 = vst.msk [vmem:[#allocation3] sm:$0xf] %vm524, %v527
        %530 = vst.msk [vmem:[#allocation3 + $0x4] sm:$0xf] %vm524, %v528
        %s531 = scalar_lea.vmem %s2, 32
        %v532 = vld [vmem:[%s531] sm:$0xf]
        %v533 = vld [vmem:[%s531 + $0x4] sm:$0xf]
        %v534 = vld [vmem:[%s531 + $0x8] sm:$0xf]
        %v535 = vld [vmem:[%s531 + $0xc] sm:$0xf]
        %v536 = vld [vmem:[%s531 + $0x10] sm:$0xf]
        %v537 = vld [vmem:[%s531 + $0x14] sm:$0xf]
        %v538 = vld [vmem:[%s531 + $0x18] sm:$0xf]
        %v539 = vld [vmem:[%s531 + $0x1c] sm:$0xf]
        %s540 = scalar_lea.vmem %s5, 1
        %v541 = vld [vmem:[%s540] sm:$0x1]
        %v543 = vperm.slane %v541, 0
        %v553 = vunpack.c.l.b16 %v532
        %v554 = vunpack.c.l.b16 %v533
        %v555 = vunpack.c.l.b16 %v534
        %v556 = vunpack.c.l.b16 %v535
        %v557 = vunpack.c.l.b16 %v536
        %v558 = vunpack.c.l.b16 %v537
        %v559 = vunpack.c.l.b16 %v538
        %v560 = vunpack.c.l.b16 %v539
        %v561 = vpack.c.b16 %v554, %v553
        %v562 = vpack.c.b16 %v556, %v555
        %v563 = vpack.c.b16 %v558, %v557
        %v564 = vpack.c.b16 %v560, %v559
        %569 = vmatpush.bf16.msra.mxu0 0
        %570 = vmatpush.bf16.msra.mxu0 0
        %571 = vmatpush.bf16.msra.mxu0 0
        %572 = vmatpush.bf16.msra.mxu0 0
        %573 = vmatpush.bf16.msra.mxu0 %v564
        %574 = vmatpush.bf16.msra.mxu0 %v563
        %575 = vmatpush.bf16.msra.mxu0 %v562
        %576 = vmatpush.bf16.msra.mxu0 %v561
        %577 = vmatmul.bf16.gmra.mxu0 %v456
        %v578 = vpop.f32.mrf.mxu0
        %v579 = vadd.f32 %v543, %v578
        %v580 = vpop.f32.mrf.mxu0
        %v581 = vadd.f32 %v543, %v580
        %582 = vdwg.mxu0
        %s583 = scalar_lea.vmem %s3, 32
        %v584 = vld [vmem:[%s583] sm:$0xf]
        %v585 = vld [vmem:[%s583 + $0x4] sm:$0xf]
        %v586 = vld [vmem:[%s583 + $0x8] sm:$0xf]
        %v587 = vld [vmem:[%s583 + $0xc] sm:$0xf]
        %v588 = vld [vmem:[%s583 + $0x10] sm:$0xf]
        %v589 = vld [vmem:[%s583 + $0x14] sm:$0xf]
        %v590 = vld [vmem:[%s583 + $0x18] sm:$0xf]
        %v591 = vld [vmem:[%s583 + $0x1c] sm:$0xf]
        %s592 = scalar_lea.vmem %s6, 1
        %v593 = vld [vmem:[%s592] sm:$0x1]
        %v595 = vperm.slane %v593, 0
        %v605 = vunpack.c.l.b16 %v584
        %v606 = vunpack.c.l.b16 %v585
        %v607 = vunpack.c.l.b16 %v586
        %v608 = vunpack.c.l.b16 %v587
        %v609 = vunpack.c.l.b16 %v588
        %v610 = vunpack.c.l.b16 %v589
        %v611 = vunpack.c.l.b16 %v590
        %v612 = vunpack.c.l.b16 %v591
        %v613 = vpack.c.b16 %v606, %v605
        %v614 = vpack.c.b16 %v608, %v607
        %v615 = vpack.c.b16 %v610, %v609
        %v616 = vpack.c.b16 %v612, %v611
        %621 = vmatpush.bf16.msra.mxu0 0
        %622 = vmatpush.bf16.msra.mxu0 0
        %623 = vmatpush.bf16.msra.mxu0 0
        %624 = vmatpush.bf16.msra.mxu0 0
        %625 = vmatpush.bf16.msra.mxu0 %v616
        %626 = vmatpush.bf16.msra.mxu0 %v615
        %627 = vmatpush.bf16.msra.mxu0 %v614
        %628 = vmatpush.bf16.msra.mxu0 %v613
        %629 = vmatmul.bf16.gmra.mxu0 %v456
        %v630 = vpop.f32.mrf.mxu0
        %v631 = vadd.f32 %v595, %v630
        %v632 = vpop.f32.mrf.mxu0
        %v633 = vadd.f32 %v595, %v632
        %634 = vdwg.mxu0
        %v635 = vpack.c.bf16 %v579, %v579
        %v636 = vpack.c.bf16 %v581, %v581
        %s637 = scalar_lea.vmem [#allocation2], 8
        %638 = vst.msk [vmem:[%s637] sm:$0xf] %vm524, %v635
        %639 = vst.msk [vmem:[%s637 + $0x4] sm:$0xf] %vm524, %v636
        %v640 = vpack.c.bf16 %v631, %v631
        %v641 = vpack.c.bf16 %v633, %v633
        %s642 = scalar_lea.vmem [#allocation3], 8
        %643 = vst.msk [vmem:[%s642] sm:$0xf] %vm524, %v640
        %644 = vst.msk [vmem:[%s642 + $0x4] sm:$0xf] %vm524, %v641
        %s645 = scalar_lea.vmem %s2, 64
        %v646 = vld [vmem:[%s645] sm:$0xf]
        %v647 = vld [vmem:[%s645 + $0x4] sm:$0xf]
        %v648 = vld [vmem:[%s645 + $0x8] sm:$0xf]
        %v649 = vld [vmem:[%s645 + $0xc] sm:$0xf]
        %v650 = vld [vmem:[%s645 + $0x10] sm:$0xf]
        %v651 = vld [vmem:[%s645 + $0x14] sm:$0xf]
        %v652 = vld [vmem:[%s645 + $0x18] sm:$0xf]
        %v653 = vld [vmem:[%s645 + $0x1c] sm:$0xf]
        %s654 = scalar_lea.vmem %s5, 2
        %v655 = vld [vmem:[%s654] sm:$0x1]
        %v657 = vperm.slane %v655, 0
        %v667 = vunpack.c.l.b16 %v646
        %v668 = vunpack.c.l.b16 %v647
        %v669 = vunpack.c.l.b16 %v648
        %v670 = vunpack.c.l.b16 %v649
        %v671 = vunpack.c.l.b16 %v650
        %v672 = vunpack.c.l.b16 %v651
        %v673 = vunpack.c.l.b16 %v652
        %v674 = vunpack.c.l.b16 %v653
        %v675 = vpack.c.b16 %v668, %v667
        %v676 = vpack.c.b16 %v670, %v669
        %v677 = vpack.c.b16 %v672, %v671
        %v678 = vpack.c.b16 %v674, %v673
        %683 = vmatpush.bf16.msra.mxu0 0
        %684 = vmatpush.bf16.msra.mxu0 0
        %685 = vmatpush.bf16.msra.mxu0 0
        %686 = vmatpush.bf16.msra.mxu0 0
        %687 = vmatpush.bf16.msra.mxu0 %v678
        %688 = vmatpush.bf16.msra.mxu0 %v677
        %689 = vmatpush.bf16.msra.mxu0 %v676
        %690 = vmatpush.bf16.msra.mxu0 %v675
        %691 = vmatmul.bf16.gmra.mxu0 %v456
        %v692 = vpop.f32.mrf.mxu0
        %v693 = vadd.f32 %v657, %v692
        %v694 = vpop.f32.mrf.mxu0
        %v695 = vadd.f32 %v657, %v694
        %696 = vdwg.mxu0
        %s697 = scalar_lea.vmem %s3, 64
        %v698 = vld [vmem:[%s697] sm:$0xf]
        %v699 = vld [vmem:[%s697 + $0x4] sm:$0xf]
        %v700 = vld [vmem:[%s697 + $0x8] sm:$0xf]
        %v701 = vld [vmem:[%s697 + $0xc] sm:$0xf]
        %v702 = vld [vmem:[%s697 + $0x10] sm:$0xf]
        %v703 = vld [vmem:[%s697 + $0x14] sm:$0xf]
        %v704 = vld [vmem:[%s697 + $0x18] sm:$0xf]
        %v705 = vld [vmem:[%s697 + $0x1c] sm:$0xf]
        %s706 = scalar_lea.vmem %s6, 2
        %v707 = vld [vmem:[%s706] sm:$0x1]
        %v709 = vperm.slane %v707, 0
        %v719 = vunpack.c.l.b16 %v698
        %v720 = vunpack.c.l.b16 %v699
        %v721 = vunpack.c.l.b16 %v700
        %v722 = vunpack.c.l.b16 %v701
        %v723 = vunpack.c.l.b16 %v702
        %v724 = vunpack.c.l.b16 %v703
        %v725 = vunpack.c.l.b16 %v704
        %v726 = vunpack.c.l.b16 %v705
        %v727 = vpack.c.b16 %v720, %v719
        %v728 = vpack.c.b16 %v722, %v721
        %v729 = vpack.c.b16 %v724, %v723
        %v730 = vpack.c.b16 %v726, %v725
        %735 = vmatpush.bf16.msra.mxu0 0
        %736 = vmatpush.bf16.msra.mxu0 0
        %737 = vmatpush.bf16.msra.mxu0 0
        %738 = vmatpush.bf16.msra.mxu0 0
        %739 = vmatpush.bf16.msra.mxu0 %v730
        %740 = vmatpush.bf16.msra.mxu0 %v729
        %741 = vmatpush.bf16.msra.mxu0 %v728
        %742 = vmatpush.bf16.msra.mxu0 %v727
        %743 = vmatmul.bf16.gmra.mxu0 %v456
        %v744 = vpop.f32.mrf.mxu0
        %v745 = vadd.f32 %v709, %v744
        %v746 = vpop.f32.mrf.mxu0
        %v747 = vadd.f32 %v709, %v746
        %748 = vdwg.mxu0
        %v749 = vpack.c.bf16 %v693, %v693
        %v750 = vpack.c.bf16 %v695, %v695
        %s751 = scalar_lea.vmem [#allocation2], 16
        %752 = vst.msk [vmem:[%s751] sm:$0xf] %vm524, %v749
        %753 = vst.msk [vmem:[%s751 + $0x4] sm:$0xf] %vm524, %v750
        %v754 = vpack.c.bf16 %v745, %v745
        %v755 = vpack.c.bf16 %v747, %v747
        %s756 = scalar_lea.vmem [#allocation3], 16
        %757 = vst.msk [vmem:[%s756] sm:$0xf] %vm524, %v754
        %758 = vst.msk [vmem:[%s756 + $0x4] sm:$0xf] %vm524, %v755
        %s759 = scalar_lea.vmem %s2, 96
        %v760 = vld [vmem:[%s759] sm:$0xf]
        %v761 = vld [vmem:[%s759 + $0x4] sm:$0xf]
        %v762 = vld [vmem:[%s759 + $0x8] sm:$0xf]
        %v763 = vld [vmem:[%s759 + $0xc] sm:$0xf]
        %v764 = vld [vmem:[%s759 + $0x10] sm:$0xf]
        %v765 = vld [vmem:[%s759 + $0x14] sm:$0xf]
        %v766 = vld [vmem:[%s759 + $0x18] sm:$0xf]
        %v767 = vld [vmem:[%s759 + $0x1c] sm:$0xf]
        %s768 = scalar_lea.vmem %s5, 3
        %v769 = vld [vmem:[%s768] sm:$0x1]
        %v771 = vperm.slane %v769, 0
        %v781 = vunpack.c.l.b16 %v760
        %v782 = vunpack.c.l.b16 %v761
        %v783 = vunpack.c.l.b16 %v762
        %v784 = vunpack.c.l.b16 %v763
        %v785 = vunpack.c.l.b16 %v764
        %v786 = vunpack.c.l.b16 %v765
        %v787 = vunpack.c.l.b16 %v766
        %v788 = vunpack.c.l.b16 %v767
        %v789 = vpack.c.b16 %v782, %v781
        %v790 = vpack.c.b16 %v784, %v783
        %v791 = vpack.c.b16 %v786, %v785
        %v792 = vpack.c.b16 %v788, %v787
        %797 = vmatpush.bf16.msra.mxu0 0
        %798 = vmatpush.bf16.msra.mxu0 0
        %799 = vmatpush.bf16.msra.mxu0 0
        %800 = vmatpush.bf16.msra.mxu0 0
        %801 = vmatpush.bf16.msra.mxu0 %v792
        %802 = vmatpush.bf16.msra.mxu0 %v791
        %803 = vmatpush.bf16.msra.mxu0 %v790
        %804 = vmatpush.bf16.msra.mxu0 %v789
        %805 = vmatmul.bf16.gmra.mxu0 %v456
        %v806 = vpop.f32.mrf.mxu0
        %v807 = vadd.f32 %v771, %v806
        %v808 = vpop.f32.mrf.mxu0
        %v809 = vadd.f32 %v771, %v808
        %810 = vdwg.mxu0
        %s811 = scalar_lea.vmem %s3, 96
        %v812 = vld [vmem:[%s811] sm:$0xf]
        %v813 = vld [vmem:[%s811 + $0x4] sm:$0xf]
        %v814 = vld [vmem:[%s811 + $0x8] sm:$0xf]
        %v815 = vld [vmem:[%s811 + $0xc] sm:$0xf]
        %v816 = vld [vmem:[%s811 + $0x10] sm:$0xf]
        %v817 = vld [vmem:[%s811 + $0x14] sm:$0xf]
        %v818 = vld [vmem:[%s811 + $0x18] sm:$0xf]
        %v819 = vld [vmem:[%s811 + $0x1c] sm:$0xf]
        %s820 = scalar_lea.vmem %s6, 3
        %v821 = vld [vmem:[%s820] sm:$0x1]
        %v823 = vperm.slane %v821, 0
        %v833 = vunpack.c.l.b16 %v812
        %v834 = vunpack.c.l.b16 %v813
        %v835 = vunpack.c.l.b16 %v814
        %v836 = vunpack.c.l.b16 %v815
        %v837 = vunpack.c.l.b16 %v816
        %v838 = vunpack.c.l.b16 %v817
        %v839 = vunpack.c.l.b16 %v818
        %v840 = vunpack.c.l.b16 %v819
        %v841 = vpack.c.b16 %v834, %v833
        %v842 = vpack.c.b16 %v836, %v835
        %v843 = vpack.c.b16 %v838, %v837
        %v844 = vpack.c.b16 %v840, %v839
        %849 = vmatpush.bf16.msra.mxu0 0
        %850 = vmatpush.bf16.msra.mxu0 0
        %851 = vmatpush.bf16.msra.mxu0 0
        %852 = vmatpush.bf16.msra.mxu0 0
        %853 = vmatpush.bf16.msra.mxu0 %v844
        %854 = vmatpush.bf16.msra.mxu0 %v843
        %855 = vmatpush.bf16.msra.mxu0 %v842
        %856 = vmatpush.bf16.msra.mxu0 %v841
        %857 = vmatmul.bf16.gmra.mxu0 %v456
        %v858 = vpop.f32.mrf.mxu0
        %v859 = vadd.f32 %v823, %v858
        %v860 = vpop.f32.mrf.mxu0
        %v861 = vadd.f32 %v823, %v860
        %862 = vdwg.mxu0
        %v863 = vpack.c.bf16 %v807, %v807
        %v864 = vpack.c.bf16 %v809, %v809
        %s865 = scalar_lea.vmem [#allocation2], 24
        %866 = vst.msk [vmem:[%s865] sm:$0xf] %vm524, %v863
        %867 = vst.msk [vmem:[%s865 + $0x4] sm:$0xf] %vm524, %v864
        %v868 = vpack.c.bf16 %v859, %v859
        %v869 = vpack.c.bf16 %v861, %v861
        %s870 = scalar_lea.vmem [#allocation3], 24
        %871 = vst.msk [vmem:[%s870] sm:$0xf] %vm524, %v868
        %872 = vst.msk [vmem:[%s870 + $0x4] sm:$0xf] %vm524, %v869
      $region68: #{transformer_forward.14} parent=63 // pred_fallthru
        _
      %s873 = smul.u32 %s27, 16
      %s874 = scalar_lea.vmem %s399, %s873
      %v875 = vld [vmem:[%s874] sm:$0xff]
      %v876 = vld [vmem:[%s874 + $0x8] sm:$0xff]
      %v877 = vpack.c.bf16 %v876, %v875
      %v878 = vld [vmem:[%s1] sm:$0xf]
      %v879 = vld [vmem:[%s1 + $0x4] sm:$0xf]
      %v880 = vld [vmem:[%s1 + $0x8] sm:$0xf]
      %v881 = vld [vmem:[%s1 + $0xc] sm:$0xf]
      %v882 = vld [vmem:[%s1 + $0x10] sm:$0xf]
      %v883 = vld [vmem:[%s1 + $0x14] sm:$0xf]
      %v884 = vld [vmem:[%s1 + $0x18] sm:$0xf]
      %v885 = vld [vmem:[%s1 + $0x1c] sm:$0xf]
      %v886 = vld [vmem:[%s4] sm:$0x1]
      %v888 = vperm.slane %v886, 0
      %v898 = vunpack.c.l.b16 %v878
      %v899 = vunpack.c.l.b16 %v879
      %v900 = vunpack.c.l.b16 %v880
      %v901 = vunpack.c.l.b16 %v881
      %v902 = vunpack.c.l.b16 %v882
      %v903 = vunpack.c.l.b16 %v883
      %v904 = vunpack.c.l.b16 %v884
      %v905 = vunpack.c.l.b16 %v885
      %v906 = vpack.c.b16 %v899, %v898
      %v907 = vpack.c.b16 %v901, %v900
      %v908 = vpack.c.b16 %v903, %v902
      %v909 = vpack.c.b16 %v905, %v904
      %vm914 = vcmask 523264
      %v916 = vsel %vm914, %v877, 0
      %918 = vmatpush.bf16.msra.mxu0 0
      %919 = vmatpush.bf16.msra.mxu0 0
      %920 = vmatpush.bf16.msra.mxu0 0
      %921 = vmatpush.bf16.msra.mxu0 0
      %922 = vmatpush.bf16.msra.mxu0 %v909
      %923 = vmatpush.bf16.msra.mxu0 %v908
      %924 = vmatpush.bf16.msra.mxu0 %v907
      %925 = vmatpush.bf16.msra.mxu0 %v906
      %926 = vmatmul.bf16.gmra.mxu0 %v916
      %v927 = vpop.f32.mrf.mxu0
      %v928 = vadd.f32 %v888, %v927
      %v929 = vpop.f32.mrf.mxu0
      %v930 = vadd.f32 %v888, %v929
      %931 = vdwg.mxu0
      %v932 = vld [vmem:[#allocation2] sm:$0xf]
      %v933 = vld [vmem:[#allocation2 + $0x4] sm:$0xf]
      %v934 = vpack.c.bf16 %v930, %v928
      %v937 = vunpack.c.l.b16 %v932
      %v938 = vunpack.c.l.b16 %v933
      %v939 = vpack.c.b16 %v938, %v937
      %vm940 = vcmask 130048
      %v942 = vsel %vm940, %v934, 0
      %v945 = vsel %vm940, %v939, 0
      %947 = vmatpush.bf16.xpose.msra.mxu0 0
      %948 = vmatpush.bf16.xpose.msra.mxu0 0
      %949 = vmatpush.bf16.xpose.msra.mxu0 0
      %950 = vmatpush.bf16.xpose.msra.mxu0 0
      %951 = vmatpush.bf16.xpose.msra.mxu0 0
      %952 = vmatpush.bf16.xpose.msra.mxu0 0
      %953 = vmatpush.bf16.xpose.msra.mxu0 0
      %954 = vmatpush.bf16.xpose.msra.mxu0 %v945
      %955 = vmatmul.bf16.gmra.mxu0 %v942
      %v956 = vpop.f32.mrf.mxu0
      %v957 = vadd.f32 0.0, %v956
      %v958 = vpop.f32.mrf.mxu0
      %v959 = vadd.f32 0.0, %v958
      %960 = vdwg.mxu0
      %v961 = vmul.f32 %v957, 0.25
      %v962 = vmul.f32 %v959, 0.25
      %v963 = vsel %vm940, %v961, -inf
      %964 = vmax.xlane.f32.xlu0 %v963
      %v965 = vpop.xlane.xlu0 %964
      %v966 = vsel %vm940, %v962, -inf
      %967 = vmax.xlane.f32.xlu0 %v966
      %v968 = vpop.xlane.xlu0 %967
      %v969 = vsub.f32 %v961, %v965
      %v970 = vsub.f32 %v962, %v968
      %v971 = vmul.f32 %v969, 1.442695
      %v972 = vpow.pop %v971
      %v973 = vmul.f32 %v970, 1.442695
      %v974 = vpow.pop %v973
      %v975 = vsel %vm940, %v972, 0.0
      %976 = vadd.xlane.f32.xlu0 %v975
      %v977 = vpop.xlane.xlu0 %976
      %v978 = vsel %vm940, %v974, 0.0
      %979 = vadd.xlane.f32.xlu0 %v978
      %v980 = vpop.xlane.xlu0 %979
      %v981 = vrcp.pop %v977
      %v982 = vmul.f32 %v977, %v981
      %v983 = vsub.f32 1.0, %v982
      %v984 = vmul.f32 %v981, %v983
      %v985 = vadd.f32 %v981, %v984
      %vm986 = vweird.f32 %v977
      %vm987 = vweird.f32 %v981
      %vm988 = vmor %vm986, %vm987
      %v989 = vsel %vm988, %v981, %v985
      %v990 = vand.u32 2147483647, %v977
      %vm991 = vcmp.eq.f32.partialorder %v990, 8.507059e+37
      %v992 = vand.u32 %v977, 2147483648
      %v993 = vor.u32 1.1754944e-38, %v992
      %v994 = vsel %vm991, %v993, %v989
      %v995 = vmul.f32 %v972, %v994
      %v996 = vrcp.pop %v980
      %v997 = vmul.f32 %v980, %v996
      %v998 = vsub.f32 1.0, %v997
      %v999 = vmul.f32 %v996, %v998
      %v1000 = vadd.f32 %v996, %v999
      %vm1001 = vweird.f32 %v980
      %vm1002 = vweird.f32 %v996
      %vm1003 = vmor %vm1001, %vm1002
      %v1004 = vsel %vm1003, %v996, %v1000
      %v1005 = vand.u32 2147483647, %v980
      %vm1006 = vcmp.eq.f32.partialorder %v1005, 8.507059e+37
      %v1007 = vand.u32 %v980, 2147483648
      %v1008 = vor.u32 1.1754944e-38, %v1007
      %v1009 = vsel %vm1006, %v1008, %v1004
      %v1010 = vmul.f32 %v974, %v1009
      %v1011 = vpack.c.bf16 %v1010, %v995
      %v1012 = vld [vmem:[#allocation3] sm:$0xf]
      %v1013 = vld [vmem:[#allocation3 + $0x4] sm:$0xf]
      %v1016 = vunpack.c.l.b16 %v1012
      %v1017 = vunpack.c.l.b16 %v1013
      %v1018 = vpack.c.b16 %v1017, %v1016
      %v1021 = vsel %vm940, %v1011, 0
      %1023 = vmatpush.bf16.msra.mxu0 0
      %1024 = vmatpush.bf16.msra.mxu0 0
      %1025 = vmatpush.bf16.msra.mxu0 0
      %1026 = vmatpush.bf16.msra.mxu0 0
      %1027 = vmatpush.bf16.msra.mxu0 0
      %1028 = vmatpush.bf16.msra.mxu0 0
      %1029 = vmatpush.bf16.msra.mxu0 0
      %1030 = vmatpush.bf16.msra.mxu0 %v1018
      %1031 = vmatmul.bf16.gmra.mxu0 %v1021
      %v1032 = vpop.f32.mrf.mxu0
      %v1033 = vadd.f32 0.0, %v1032
      %v1034 = vpop.f32.mrf.mxu0
      %v1035 = vadd.f32 0.0, %v1034
      %1036 = vdwg.mxu0
      %v1037 = vpack.c.bf16 %v1035, %v1033
      %v1038 = vld [vmem:[%s7] sm:$0xf]
      %v1039 = vld [vmem:[%s7 + $0x4] sm:$0xf]
      %s1040 = scalar_lea.vmem %s1, 32
      %v1041 = vld [vmem:[%s1040] sm:$0xf]
      %v1042 = vld [vmem:[%s1040 + $0x4] sm:$0xf]
      %v1043 = vld [vmem:[%s1040 + $0x8] sm:$0xf]
      %v1044 = vld [vmem:[%s1040 + $0xc] sm:$0xf]
      %v1045 = vld [vmem:[%s1040 + $0x10] sm:$0xf]
      %v1046 = vld [vmem:[%s1040 + $0x14] sm:$0xf]
      %v1047 = vld [vmem:[%s1040 + $0x18] sm:$0xf]
      %v1048 = vld [vmem:[%s1040 + $0x1c] sm:$0xf]
      %s1049 = scalar_lea.vmem %s4, 1
      %v1050 = vld [vmem:[%s1049] sm:$0x1]
      %v1052 = vperm.slane %v1050, 0
      %v1062 = vunpack.c.l.b16 %v1041
      %v1063 = vunpack.c.l.b16 %v1042
      %v1064 = vunpack.c.l.b16 %v1043
      %v1065 = vunpack.c.l.b16 %v1044
      %v1066 = vunpack.c.l.b16 %v1045
      %v1067 = vunpack.c.l.b16 %v1046
      %v1068 = vunpack.c.l.b16 %v1047
      %v1069 = vunpack.c.l.b16 %v1048
      %v1070 = vpack.c.b16 %v1063, %v1062
      %v1071 = vpack.c.b16 %v1065, %v1064
      %v1072 = vpack.c.b16 %v1067, %v1066
      %v1073 = vpack.c.b16 %v1069, %v1068
      %1078 = vmatpush.bf16.msra.mxu0 0
      %1079 = vmatpush.bf16.msra.mxu0 0
      %1080 = vmatpush.bf16.msra.mxu0 0
      %1081 = vmatpush.bf16.msra.mxu0 0
      %1082 = vmatpush.bf16.msra.mxu0 %v1073
      %1083 = vmatpush.bf16.msra.mxu0 %v1072
      %1084 = vmatpush.bf16.msra.mxu0 %v1071
      %1085 = vmatpush.bf16.msra.mxu0 %v1070
      %1086 = vmatmul.bf16.gmra.mxu0 %v916
      %v1087 = vpop.f32.mrf.mxu0
      %v1088 = vadd.f32 %v1052, %v1087
      %v1089 = vpop.f32.mrf.mxu0
      %v1090 = vadd.f32 %v1052, %v1089
      %1091 = vdwg.mxu0
      %s1092 = scalar_lea.vmem [#allocation2], 8
      %v1093 = vld [vmem:[%s1092] sm:$0xf]
      %v1094 = vld [vmem:[%s1092 + $0x4] sm:$0xf]
      %v1095 = vpack.c.bf16 %v1090, %v1088
      %v1098 = vunpack.c.l.b16 %v1093
      %v1099 = vunpack.c.l.b16 %v1094
      %v1100 = vpack.c.b16 %v1099, %v1098
      %v1102 = vsel %vm940, %v1095, 0
      %v1105 = vsel %vm940, %v1100, 0
      %1107 = vmatpush.bf16.xpose.msra.mxu0 0
      %1108 = vmatpush.bf16.xpose.msra.mxu0 0
      %1109 = vmatpush.bf16.xpose.msra.mxu0 0
      %1110 = vmatpush.bf16.xpose.msra.mxu0 0
      %1111 = vmatpush.bf16.xpose.msra.mxu0 0
      %1112 = vmatpush.bf16.xpose.msra.mxu0 0
      %1113 = vmatpush.bf16.xpose.msra.mxu0 0
      %1114 = vmatpush.bf16.xpose.msra.mxu0 %v1105
      %1115 = vmatmul.bf16.gmra.mxu0 %v1102
      %v1116 = vpop.f32.mrf.mxu0
      %v1117 = vadd.f32 0.0, %v1116
      %v1118 = vpop.f32.mrf.mxu0
      %v1119 = vadd.f32 0.0, %v1118
      %1120 = vdwg.mxu0
      %v1121 = vmul.f32 %v1117, 0.25
      %v1122 = vmul.f32 %v1119, 0.25
      %v1123 = vsel %vm940, %v1121, -inf
      %1124 = vmax.xlane.f32.xlu0 %v1123
      %v1125 = vpop.xlane.xlu0 %1124
      %v1126 = vsel %vm940, %v1122, -inf
      %1127 = vmax.xlane.f32.xlu0 %v1126
      %v1128 = vpop.xlane.xlu0 %1127
      %v1129 = vsub.f32 %v1121, %v1125
      %v1130 = vsub.f32 %v1122, %v1128
      %v1131 = vmul.f32 %v1129, 1.442695
      %v1132 = vpow.pop %v1131
      %v1133 = vmul.f32 %v1130, 1.442695
      %v1134 = vpow.pop %v1133
      %v1135 = vsel %vm940, %v1132, 0.0
      %1136 = vadd.xlane.f32.xlu0 %v1135
      %v1137 = vpop.xlane.xlu0 %1136
      %v1138 = vsel %vm940, %v1134, 0.0
      %1139 = vadd.xlane.f32.xlu0 %v1138
      %v1140 = vpop.xlane.xlu0 %1139
      %v1141 = vrcp.pop %v1137
      %v1142 = vmul.f32 %v1137, %v1141
      %v1143 = vsub.f32 1.0, %v1142
      %v1144 = vmul.f32 %v1141, %v1143
      %v1145 = vadd.f32 %v1141, %v1144
      %vm1146 = vweird.f32 %v1137
      %vm1147 = vweird.f32 %v1141
      %vm1148 = vmor %vm1146, %vm1147
      %v1149 = vsel %vm1148, %v1141, %v1145
      %v1150 = vand.u32 2147483647, %v1137
      %vm1151 = vcmp.eq.f32.partialorder %v1150, 8.507059e+37
      %v1152 = vand.u32 %v1137, 2147483648
      %v1153 = vor.u32 1.1754944e-38, %v1152
      %v1154 = vsel %vm1151, %v1153, %v1149
      %v1155 = vmul.f32 %v1132, %v1154
      %v1156 = vrcp.pop %v1140
      %v1157 = vmul.f32 %v1140, %v1156
      %v1158 = vsub.f32 1.0, %v1157
      %v1159 = vmul.f32 %v1156, %v1158
      %v1160 = vadd.f32 %v1156, %v1159
      %vm1161 = vweird.f32 %v1140
      %vm1162 = vweird.f32 %v1156
      %vm1163 = vmor %vm1161, %vm1162
      %v1164 = vsel %vm1163, %v1156, %v1160
      %v1165 = vand.u32 2147483647, %v1140
      %vm1166 = vcmp.eq.f32.partialorder %v1165, 8.507059e+37
      %v1167 = vand.u32 %v1140, 2147483648
      %v1168 = vor.u32 1.1754944e-38, %v1167
      %v1169 = vsel %vm1166, %v1168, %v1164
      %v1170 = vmul.f32 %v1134, %v1169
      %v1171 = vpack.c.bf16 %v1170, %v1155
      %s1172 = scalar_lea.vmem [#allocation3], 8
      %v1173 = vld [vmem:[%s1172] sm:$0xf]
      %v1174 = vld [vmem:[%s1172 + $0x4] sm:$0xf]
      %v1177 = vunpack.c.l.b16 %v1173
      %v1178 = vunpack.c.l.b16 %v1174
      %v1179 = vpack.c.b16 %v1178, %v1177
      %v1182 = vsel %vm940, %v1171, 0
      %1184 = vmatpush.bf16.msra.mxu0 0
      %1185 = vmatpush.bf16.msra.mxu0 0
      %1186 = vmatpush.bf16.msra.mxu0 0
      %1187 = vmatpush.bf16.msra.mxu0 0
      %1188 = vmatpush.bf16.msra.mxu0 0
      %1189 = vmatpush.bf16.msra.mxu0 0
      %1190 = vmatpush.bf16.msra.mxu0 0
      %1191 = vmatpush.bf16.msra.mxu0 %v1179
      %1192 = vmatmul.bf16.gmra.mxu0 %v1182
      %v1193 = vpop.f32.mrf.mxu0
      %v1194 = vadd.f32 0.0, %v1193
      %v1195 = vpop.f32.mrf.mxu0
      %v1196 = vadd.f32 0.0, %v1195
      %1197 = vdwg.mxu0
      %v1198 = vpack.c.bf16 %v1196, %v1194
      %v1199 = vld [vmem:[%s7 + $0x8] sm:$0xf]
      %v1200 = vld [vmem:[%s7 + $0xc] sm:$0xf]
      %v1203 = vunpack.c.l.b16 %v1199
      %v1204 = vunpack.c.l.b16 %v1200
      %v1205 = vpack.c.b16 %v1204, %v1203
      %v1208 = vsel %vm940, %v1198, 0
      %1210 = vmatpush.bf16.msra.mxu0 0
      %1211 = vmatpush.bf16.msra.mxu0 0
      %1212 = vmatpush.bf16.msra.mxu0 0
      %1213 = vmatpush.bf16.msra.mxu0 0
      %1214 = vmatpush.bf16.msra.mxu0 0
      %1215 = vmatpush.bf16.msra.mxu0 0
      %1216 = vmatpush.bf16.msra.mxu0 0
      %1217 = vmatpush.bf16.msra.mxu0 %v1205
      %1218 = vmatmul.bf16.gmra.mxu0 %v1208
      %v1219 = vpop.f32.mrf.mxu0
      %v1220 = vadd.f32 0.0, %v1219
      %v1221 = vpop.f32.mrf.mxu0
      %v1222 = vadd.f32 0.0, %v1221
      %1223 = vdwg.mxu0
      %v1226 = vunpack.c.l.b16 %v1038
      %v1227 = vunpack.c.l.b16 %v1039
      %v1228 = vpack.c.b16 %v1227, %v1226
      %v1231 = vsel %vm940, %v1037, 0
      %1233 = vmatpush.bf16.msra.mxu0 0
      %1234 = vmatpush.bf16.msra.mxu0 0
      %1235 = vmatpush.bf16.msra.mxu0 0
      %1236 = vmatpush.bf16.msra.mxu0 0
      %1237 = vmatpush.bf16.msra.mxu0 0
      %1238 = vmatpush.bf16.msra.mxu0 0
      %1239 = vmatpush.bf16.msra.mxu0 0
      %1240 = vmatpush.bf16.msra.mxu0 %v1228
      %1241 = vmatmul.bf16.gmra.mxu0 %v1231
      %v1242 = vpop.f32.mrf.mxu0
      %v1243 = vadd.f32 %v1220, %v1242
      %v1244 = vpop.f32.mrf.mxu0
      %v1245 = vadd.f32 %v1222, %v1244
      %1246 = vdwg.mxu0
      %s1247 = scalar_lea.vmem %s1, 64
      %v1248 = vld [vmem:[%s1247] sm:$0xf]
      %v1249 = vld [vmem:[%s1247 + $0x4] sm:$0xf]
      %v1250 = vld [vmem:[%s1247 + $0x8] sm:$0xf]
      %v1251 = vld [vmem:[%s1247 + $0xc] sm:$0xf]
      %v1252 = vld [vmem:[%s1247 + $0x10] sm:$0xf]
      %v1253 = vld [vmem:[%s1247 + $0x14] sm:$0xf]
      %v1254 = vld [vmem:[%s1247 + $0x18] sm:$0xf]
      %v1255 = vld [vmem:[%s1247 + $0x1c] sm:$0xf]
      %s1256 = scalar_lea.vmem %s4, 2
      %v1257 = vld [vmem:[%s1256] sm:$0x1]
      %v1259 = vperm.slane %v1257, 0
      %v1269 = vunpack.c.l.b16 %v1248
      %v1270 = vunpack.c.l.b16 %v1249
      %v1271 = vunpack.c.l.b16 %v1250
      %v1272 = vunpack.c.l.b16 %v1251
      %v1273 = vunpack.c.l.b16 %v1252
      %v1274 = vunpack.c.l.b16 %v1253
      %v1275 = vunpack.c.l.b16 %v1254
      %v1276 = vunpack.c.l.b16 %v1255
      %v1277 = vpack.c.b16 %v1270, %v1269
      %v1278 = vpack.c.b16 %v1272, %v1271
      %v1279 = vpack.c.b16 %v1274, %v1273
      %v1280 = vpack.c.b16 %v1276, %v1275
      %1285 = vmatpush.bf16.msra.mxu0 0
      %1286 = vmatpush.bf16.msra.mxu0 0
      %1287 = vmatpush.bf16.msra.mxu0 0
      %1288 = vmatpush.bf16.msra.mxu0 0
      %1289 = vmatpush.bf16.msra.mxu0 %v1280
      %1290 = vmatpush.bf16.msra.mxu0 %v1279
      %1291 = vmatpush.bf16.msra.mxu0 %v1278
      %1292 = vmatpush.bf16.msra.mxu0 %v1277
      %1293 = vmatmul.bf16.gmra.mxu0 %v916
      %v1294 = vpop.f32.mrf.mxu0
      %v1295 = vadd.f32 %v1259, %v1294
      %v1296 = vpop.f32.mrf.mxu0
      %v1297 = vadd.f32 %v1259, %v1296
      %1298 = vdwg.mxu0
      %s1299 = scalar_lea.vmem [#allocation2], 16
      %v1300 = vld [vmem:[%s1299] sm:$0xf]
      %v1301 = vld [vmem:[%s1299 + $0x4] sm:$0xf]
      %v1302 = vpack.c.bf16 %v1297, %v1295
      %v1305 = vunpack.c.l.b16 %v1300
      %v1306 = vunpack.c.l.b16 %v1301
      %v1307 = vpack.c.b16 %v1306, %v1305
      %v1309 = vsel %vm940, %v1302, 0
      %v1312 = vsel %vm940, %v1307, 0
      %1314 = vmatpush.bf16.xpose.msra.mxu0 0
      %1315 = vmatpush.bf16.xpose.msra.mxu0 0
      %1316 = vmatpush.bf16.xpose.msra.mxu0 0
      %1317 = vmatpush.bf16.xpose.msra.mxu0 0
      %1318 = vmatpush.bf16.xpose.msra.mxu0 0
      %1319 = vmatpush.bf16.xpose.msra.mxu0 0
      %1320 = vmatpush.bf16.xpose.msra.mxu0 0
      %1321 = vmatpush.bf16.xpose.msra.mxu0 %v1312
      %1322 = vmatmul.bf16.gmra.mxu0 %v1309
      %v1323 = vpop.f32.mrf.mxu0
      %v1324 = vadd.f32 0.0, %v1323
      %v1325 = vpop.f32.mrf.mxu0
      %v1326 = vadd.f32 0.0, %v1325
      %1327 = vdwg.mxu0
      %v1328 = vmul.f32 %v1324, 0.25
      %v1329 = vmul.f32 %v1326, 0.25
      %v1330 = vsel %vm940, %v1328, -inf
      %1331 = vmax.xlane.f32.xlu0 %v1330
      %v1332 = vpop.xlane.xlu0 %1331
      %v1333 = vsel %vm940, %v1329, -inf
      %1334 = vmax.xlane.f32.xlu0 %v1333
      %v1335 = vpop.xlane.xlu0 %1334
      %v1336 = vsub.f32 %v1328, %v1332
      %v1337 = vsub.f32 %v1329, %v1335
      %v1338 = vmul.f32 %v1336, 1.442695
      %v1339 = vpow.pop %v1338
      %v1340 = vmul.f32 %v1337, 1.442695
      %v1341 = vpow.pop %v1340
      %v1342 = vsel %vm940, %v1339, 0.0
      %1343 = vadd.xlane.f32.xlu0 %v1342
      %v1344 = vpop.xlane.xlu0 %1343
      %v1345 = vsel %vm940, %v1341, 0.0
      %1346 = vadd.xlane.f32.xlu0 %v1345
      %v1347 = vpop.xlane.xlu0 %1346
      %v1348 = vrcp.pop %v1344
      %v1349 = vmul.f32 %v1344, %v1348
      %v1350 = vsub.f32 1.0, %v1349
      %v1351 = vmul.f32 %v1348, %v1350
      %v1352 = vadd.f32 %v1348, %v1351
      %vm1353 = vweird.f32 %v1344
      %vm1354 = vweird.f32 %v1348
      %vm1355 = vmor %vm1353, %vm1354
      %v1356 = vsel %vm1355, %v1348, %v1352
      %v1357 = vand.u32 2147483647, %v1344
      %vm1358 = vcmp.eq.f32.partialorder %v1357, 8.507059e+37
      %v1359 = vand.u32 %v1344, 2147483648
      %v1360 = vor.u32 1.1754944e-38, %v1359
      %v1361 = vsel %vm1358, %v1360, %v1356
      %v1362 = vmul.f32 %v1339, %v1361
      %v1363 = vrcp.pop %v1347
      %v1364 = vmul.f32 %v1347, %v1363
      %v1365 = vsub.f32 1.0, %v1364
      %v1366 = vmul.f32 %v1363, %v1365
      %v1367 = vadd.f32 %v1363, %v1366
      %vm1368 = vweird.f32 %v1347
      %vm1369 = vweird.f32 %v1363
      %vm1370 = vmor %vm1368, %vm1369
      %v1371 = vsel %vm1370, %v1363, %v1367
      %v1372 = vand.u32 2147483647, %v1347
      %vm1373 = vcmp.eq.f32.partialorder %v1372, 8.507059e+37
      %v1374 = vand.u32 %v1347, 2147483648
      %v1375 = vor.u32 1.1754944e-38, %v1374
      %v1376 = vsel %vm1373, %v1375, %v1371
      %v1377 = vmul.f32 %v1341, %v1376
      %v1378 = vpack.c.bf16 %v1377, %v1362
      %s1379 = scalar_lea.vmem [#allocation3], 16
      %v1380 = vld [vmem:[%s1379] sm:$0xf]
      %v1381 = vld [vmem:[%s1379 + $0x4] sm:$0xf]
      %v1384 = vunpack.c.l.b16 %v1380
      %v1385 = vunpack.c.l.b16 %v1381
      %v1386 = vpack.c.b16 %v1385, %v1384
      %v1389 = vsel %vm940, %v1378, 0
      %1391 = vmatpush.bf16.msra.mxu0 0
      %1392 = vmatpush.bf16.msra.mxu0 0
      %1393 = vmatpush.bf16.msra.mxu0 0
      %1394 = vmatpush.bf16.msra.mxu0 0
      %1395 = vmatpush.bf16.msra.mxu0 0
      %1396 = vmatpush.bf16.msra.mxu0 0
      %1397 = vmatpush.bf16.msra.mxu0 0
      %1398 = vmatpush.bf16.msra.mxu0 %v1386
      %1399 = vmatmul.bf16.gmra.mxu0 %v1389
      %v1400 = vpop.f32.mrf.mxu0
      %v1401 = vadd.f32 0.0, %v1400
      %v1402 = vpop.f32.mrf.mxu0
      %v1403 = vadd.f32 0.0, %v1402
      %1404 = vdwg.mxu0
      %v1405 = vpack.c.bf16 %v1403, %v1401
      %v1406 = vld [vmem:[%s7 + $0x10] sm:$0xf]
      %v1407 = vld [vmem:[%s7 + $0x14] sm:$0xf]
      %v1410 = vunpack.c.l.b16 %v1406
      %v1411 = vunpack.c.l.b16 %v1407
      %v1412 = vpack.c.b16 %v1411, %v1410
      %v1415 = vsel %vm940, %v1405, 0
      %1417 = vmatpush.bf16.msra.mxu0 0
      %1418 = vmatpush.bf16.msra.mxu0 0
      %1419 = vmatpush.bf16.msra.mxu0 0
      %1420 = vmatpush.bf16.msra.mxu0 0
      %1421 = vmatpush.bf16.msra.mxu0 0
      %1422 = vmatpush.bf16.msra.mxu0 0
      %1423 = vmatpush.bf16.msra.mxu0 0
      %1424 = vmatpush.bf16.msra.mxu0 %v1412
      %1425 = vmatmul.bf16.gmra.mxu0 %v1415
      %v1426 = vpop.f32.mrf.mxu0
      %v1427 = vadd.f32 0.0, %v1426
      %v1428 = vpop.f32.mrf.mxu0
      %v1429 = vadd.f32 0.0, %v1428
      %1430 = vdwg.mxu0
      %v1431 = vadd.f32 %v1243, %v1427
      %v1432 = vadd.f32 %v1245, %v1429
      %s1433 = scalar_lea.vmem %s1, 96
      %v1434 = vld [vmem:[%s1433] sm:$0xf]
      %v1435 = vld [vmem:[%s1433 + $0x4] sm:$0xf]
      %v1436 = vld [vmem:[%s1433 + $0x8] sm:$0xf]
      %v1437 = vld [vmem:[%s1433 + $0xc] sm:$0xf]
      %v1438 = vld [vmem:[%s1433 + $0x10] sm:$0xf]
      %v1439 = vld [vmem:[%s1433 + $0x14] sm:$0xf]
      %v1440 = vld [vmem:[%s1433 + $0x18] sm:$0xf]
      %v1441 = vld [vmem:[%s1433 + $0x1c] sm:$0xf]
      %s1442 = scalar_lea.vmem %s4, 3
      %v1443 = vld [vmem:[%s1442] sm:$0x1]
      %v1445 = vperm.slane %v1443, 0
      %v1455 = vunpack.c.l.b16 %v1434
      %v1456 = vunpack.c.l.b16 %v1435
      %v1457 = vunpack.c.l.b16 %v1436
      %v1458 = vunpack.c.l.b16 %v1437
      %v1459 = vunpack.c.l.b16 %v1438
      %v1460 = vunpack.c.l.b16 %v1439
      %v1461 = vunpack.c.l.b16 %v1440
      %v1462 = vunpack.c.l.b16 %v1441
      %v1463 = vpack.c.b16 %v1456, %v1455
      %v1464 = vpack.c.b16 %v1458, %v1457
      %v1465 = vpack.c.b16 %v1460, %v1459
      %v1466 = vpack.c.b16 %v1462, %v1461
      %1471 = vmatpush.bf16.msra.mxu0 0
      %1472 = vmatpush.bf16.msra.mxu0 0
      %1473 = vmatpush.bf16.msra.mxu0 0
      %1474 = vmatpush.bf16.msra.mxu0 0
      %1475 = vmatpush.bf16.msra.mxu0 %v1466
      %1476 = vmatpush.bf16.msra.mxu0 %v1465
      %1477 = vmatpush.bf16.msra.mxu0 %v1464
      %1478 = vmatpush.bf16.msra.mxu0 %v1463
      %1479 = vmatmul.bf16.gmra.mxu0 %v916
      %v1480 = vpop.f32.mrf.mxu0
      %v1481 = vadd.f32 %v1445, %v1480
      %v1482 = vpop.f32.mrf.mxu0
      %v1483 = vadd.f32 %v1445, %v1482
      %1484 = vdwg.mxu0
      %s1485 = scalar_lea.vmem [#allocation2], 24
      %v1486 = vld [vmem:[%s1485] sm:$0xf]
      %v1487 = vld [vmem:[%s1485 + $0x4] sm:$0xf]
      %v1488 = vpack.c.bf16 %v1483, %v1481
      %v1491 = vunpack.c.l.b16 %v1486
      %v1492 = vunpack.c.l.b16 %v1487
      %v1493 = vpack.c.b16 %v1492, %v1491
      %v1495 = vsel %vm940, %v1488, 0
      %v1498 = vsel %vm940, %v1493, 0
      %1500 = vmatpush.bf16.xpose.msra.mxu0 0
      %1501 = vmatpush.bf16.xpose.msra.mxu0 0
      %1502 = vmatpush.bf16.xpose.msra.mxu0 0
      %1503 = vmatpush.bf16.xpose.msra.mxu0 0
      %1504 = vmatpush.bf16.xpose.msra.mxu0 0
      %1505 = vmatpush.bf16.xpose.msra.mxu0 0
      %1506 = vmatpush.bf16.xpose.msra.mxu0 0
      %1507 = vmatpush.bf16.xpose.msra.mxu0 %v1498
      %1508 = vmatmul.bf16.gmra.mxu0 %v1495
      %v1509 = vpop.f32.mrf.mxu0
      %v1510 = vadd.f32 0.0, %v1509
      %v1511 = vpop.f32.mrf.mxu0
      %v1512 = vadd.f32 0.0, %v1511
      %1513 = vdwg.mxu0
      %v1514 = vmul.f32 %v1510, 0.25
      %v1515 = vmul.f32 %v1512, 0.25
      %v1516 = vsel %vm940, %v1514, -inf
      %1517 = vmax.xlane.f32.xlu0 %v1516
      %v1518 = vpop.xlane.xlu0 %1517
      %v1519 = vsel %vm940, %v1515, -inf
      %1520 = vmax.xlane.f32.xlu0 %v1519
      %v1521 = vpop.xlane.xlu0 %1520
      %v1522 = vsub.f32 %v1514, %v1518
      %v1523 = vsub.f32 %v1515, %v1521
      %v1524 = vmul.f32 %v1522, 1.442695
      %v1525 = vpow.pop %v1524
      %v1526 = vmul.f32 %v1523, 1.442695
      %v1527 = vpow.pop %v1526
      %v1528 = vsel %vm940, %v1525, 0.0
      %1529 = vadd.xlane.f32.xlu0 %v1528
      %v1530 = vpop.xlane.xlu0 %1529
      %v1531 = vsel %vm940, %v1527, 0.0
      %1532 = vadd.xlane.f32.xlu0 %v1531
      %v1533 = vpop.xlane.xlu0 %1532
      %v1534 = vrcp.pop %v1530
      %v1535 = vmul.f32 %v1530, %v1534
      %v1536 = vsub.f32 1.0, %v1535
      %v1537 = vmul.f32 %v1534, %v1536
      %v1538 = vadd.f32 %v1534, %v1537
      %vm1539 = vweird.f32 %v1530
      %vm1540 = vweird.f32 %v1534
      %vm1541 = vmor %vm1539, %vm1540
      %v1542 = vsel %vm1541, %v1534, %v1538
      %v1543 = vand.u32 2147483647, %v1530
      %vm1544 = vcmp.eq.f32.partialorder %v1543, 8.507059e+37
      %v1545 = vand.u32 %v1530, 2147483648
      %v1546 = vor.u32 1.1754944e-38, %v1545
      %v1547 = vsel %vm1544, %v1546, %v1542
      %v1548 = vmul.f32 %v1525, %v1547
      %v1549 = vrcp.pop %v1533
      %v1550 = vmul.f32 %v1533, %v1549
      %v1551 = vsub.f32 1.0, %v1550
      %v1552 = vmul.f32 %v1549, %v1551
      %v1553 = vadd.f32 %v1549, %v1552
      %vm1554 = vweird.f32 %v1533
      %vm1555 = vweird.f32 %v1549
      %vm1556 = vmor %vm1554, %vm1555
      %v1557 = vsel %vm1556, %v1549, %v1553
      %v1558 = vand.u32 2147483647, %v1533
      %vm1559 = vcmp.eq.f32.partialorder %v1558, 8.507059e+37
      %v1560 = vand.u32 %v1533, 2147483648
      %v1561 = vor.u32 1.1754944e-38, %v1560
      %v1562 = vsel %vm1559, %v1561, %v1557
      %v1563 = vmul.f32 %v1527, %v1562
      %v1564 = vpack.c.bf16 %v1563, %v1548
      %s1565 = scalar_lea.vmem [#allocation3], 24
      %v1566 = vld [vmem:[%s1565] sm:$0xf]
      %v1567 = vld [vmem:[%s1565 + $0x4] sm:$0xf]
      %v1570 = vunpack.c.l.b16 %v1566
      %v1571 = vunpack.c.l.b16 %v1567
      %v1572 = vpack.c.b16 %v1571, %v1570
      %v1575 = vsel %vm940, %v1564, 0
      %1577 = vmatpush.bf16.msra.mxu0 0
      %1578 = vmatpush.bf16.msra.mxu0 0
      %1579 = vmatpush.bf16.msra.mxu0 0
      %1580 = vmatpush.bf16.msra.mxu0 0
      %1581 = vmatpush.bf16.msra.mxu0 0
      %1582 = vmatpush.bf16.msra.mxu0 0
      %1583 = vmatpush.bf16.msra.mxu0 0
      %1584 = vmatpush.bf16.msra.mxu0 %v1572
      %1585 = vmatmul.bf16.gmra.mxu0 %v1575
      %v1586 = vpop.f32.mrf.mxu0
      %v1587 = vadd.f32 0.0, %v1586
      %v1588 = vpop.f32.mrf.mxu0
      %v1589 = vadd.f32 0.0, %v1588
      %1590 = vdwg.mxu0
      %v1591 = vpack.c.bf16 %v1589, %v1587
      %v1592 = vld [vmem:[%s7 + $0x18] sm:$0xf]
      %v1593 = vld [vmem:[%s7 + $0x1c] sm:$0xf]
      %v1596 = vunpack.c.l.b16 %v1592
      %v1597 = vunpack.c.l.b16 %v1593
      %v1598 = vpack.c.b16 %v1597, %v1596
      %v1601 = vsel %vm940, %v1591, 0
      %1603 = vmatpush.bf16.msra.mxu0 0
      %1604 = vmatpush.bf16.msra.mxu0 0
      %1605 = vmatpush.bf16.msra.mxu0 0
      %1606 = vmatpush.bf16.msra.mxu0 0
      %1607 = vmatpush.bf16.msra.mxu0 0
      %1608 = vmatpush.bf16.msra.mxu0 0
      %1609 = vmatpush.bf16.msra.mxu0 0
      %1610 = vmatpush.bf16.msra.mxu0 %v1598
      %1611 = vmatmul.bf16.gmra.mxu0 %v1601
      %v1612 = vpop.f32.mrf.mxu0
      %v1613 = vadd.f32 0.0, %v1612
      %v1614 = vpop.f32.mrf.mxu0
      %v1615 = vadd.f32 0.0, %v1614
      %1616 = vdwg.mxu0
      %v1617 = vadd.f32 %v1431, %v1613
      %v1618 = vadd.f32 %v1432, %v1615
      %v1619 = vld [vmem:[%s8] sm:$0x1]
      %v1621 = vperm.slane %v1619, 0
      %v1623 = vadd.f32 %v1617, %v1621
      %v1624 = vadd.f32 %v1618, %v1621
      %v1625 = vadd.f32 %v875, %v1623
      %v1626 = vadd.f32 %v876, %v1624
      %v1627 = vld [vmem:[%s9] sm:$0x1]
      %v1628 = vld [vmem:[%s10] sm:$0x1]
      %v1629 = vsel %vm914, %v1625, 0.0
      %1630 = vadd.xlane.f32.xlu0 %v1629
      %v1631 = vpop.xlane.xlu0 %1630
      %v1632 = vsel %vm914, %v1626, 0.0
      %1633 = vadd.xlane.f32.xlu0 %v1632
      %v1634 = vpop.xlane.xlu0 %1633
      %v1635 = vrcp.pop 64.0
      %v1636 = vmul.f32 64.0, %v1635
      %v1637 = vsub.f32 1.0, %v1636
      %v1638 = vmul.f32 %v1635, %v1637
      %v1639 = vadd.f32 %v1635, %v1638
      %vm1640 = vweird.f32 %v1635
      %v1641 = vsel %vm1640, %v1635, %v1639
      %v1642 = vmul.f32 %v1631, %v1641
      %v1643 = vmul.f32 %v1634, %v1641
      %v1644 = vsub.f32 %v1625, %v1642
      %v1645 = vsub.f32 %v1626, %v1643
      %v1646 = vmul.f32 %v1644, %v1644
      %v1647 = vmul.f32 %v1645, %v1645
      %v1648 = vsel %vm914, %v1646, 0.0
      %1649 = vadd.xlane.f32.xlu0 %v1648
      %v1650 = vpop.xlane.xlu0 %1649
      %v1651 = vsel %vm914, %v1647, 0.0
      %1652 = vadd.xlane.f32.xlu0 %v1651
      %v1653 = vpop.xlane.xlu0 %1652
      %v1654 = vmul.f32 %v1650, %v1641
      %v1655 = vmul.f32 %v1653, %v1641
      %v1656 = vadd.f32 %v1654, 1e-05
      %v1657 = vadd.f32 %v1655, 1e-05
      %v1658 = vrsqrt.pop %v1656
      %v1659 = vmul.f32 %v1658, %v1656
      %v1660 = vmul.f32 %v1659, %v1658
      %v1661 = vmul.f32 0.5, %v1660
      %v1662 = vsub.f32 1.5, %v1661
      %v1663 = vmul.f32 %v1658, %v1662
      %vm1664 = vweird.f32 %v1656
      %vm1665 = vweird.f32 %v1658
      %vm1666 = vmor %vm1664, %vm1665
      %v1667 = vsel %vm1666, %v1658, %v1663
      %v1668 = vrsqrt.pop %v1657
      %v1669 = vmul.f32 %v1668, %v1657
      %v1670 = vmul.f32 %v1669, %v1668
      %v1671 = vmul.f32 0.5, %v1670
      %v1672 = vsub.f32 1.5, %v1671
      %v1673 = vmul.f32 %v1668, %v1672
      %vm1674 = vweird.f32 %v1657
      %vm1675 = vweird.f32 %v1668
      %vm1676 = vmor %vm1674, %vm1675
      %v1677 = vsel %vm1676, %v1668, %v1673
      %v1678 = vmul.f32 %v1644, %v1667
      %v1679 = vmul.f32 %v1645, %v1677
      %v1681 = vperm.slane %v1627, 0
      %v1683 = vmul.f32 %v1678, %v1681
      %v1684 = vmul.f32 %v1679, %v1681
      %v1686 = vperm.slane %v1628, 0
      %v1688 = vadd.f32 %v1683, %v1686
      %v1689 = vadd.f32 %v1684, %v1686
      %1690 = vst.msk [vmem:[%s408] sm:$0xff] %vm914, %v1688
      %1691 = vst.msk [vmem:[%s408 + $0x8] sm:$0xff] %vm914, %v1689
      %s1692 = smul.u32 2, %s27
      %p1693 = scmp.lt.s32.totalorder %s26, 1
      %s1694 = scalar_select %p1693, %s26, 1
      %p1695 = scmp.lt.s32.totalorder %s1692, 1
      %s1696 = scalar_select %p1695, %s1692, 1
      %s1697 = smul.addr %s1694, 2
      %s1698 = sadd.s32 %s1696, %s1697
      %s1699 = smul.addr %s1698, 8
      %s1700 = scalar_lea.vmem %s11, %s1699
      // Predicated region
      $region69: #{transformer_forward.14} parent=63 // pred_check
        %p1701 = pneg %p290
      $region70: #{transformer_forward.14} parent=63 // pred_check_branch
        %1703 = sbr.rel (%p1701) target = $region72
      $region71: #{transformer_forward.14} parent=63 // pred_region
        %s1704 = smul.u32 2, %s27
      $region72: #{transformer_forward.14} parent=63 // pred_fallthru
        _
    $region64: #{transformer_forward.14} parent=5 // pred_fallthru
      _
    %p1705 = scmp.le.s32.totalorder 2, %s17
    // Predicated region
    $region73: #{transformer_forward.14} parent=5 // pred_check
      %p1706 = pneg %p1705
    $region74: #{transformer_forward.14} parent=5 // pred_check_branch
      %1708 = sbr.rel (%p1706) target = $region76
    $region75: #{transformer_forward.14} parent=5 // pred_region
      %s1709 = ssub.s32 %s17, 2
      // Predicated region
      $region77: #{transformer_forward.14} parent=75 // pred_check
        %p1710 = pneg %p296
      $region78: #{transformer_forward.14} parent=75 // pred_check_branch
        %1712 = sbr.rel (%p1710) target = $region80
      $region79: #{transformer_forward.14} parent=75 // pred_region
        %s1713 = smul.u32 2, %s29
        %p1714 = scmp.lt.s32.totalorder %s28, 1
        %s1715 = scalar_select %p1714, %s28, 1
        %p1716 = scmp.lt.s32.totalorder %s1713, 1
        %s1717 = scalar_select %p1716, %s1713, 1
        %s1718 = smul.addr %s1715, 2
        %s1719 = sadd.s32 %s1717, %s1718
        %s1720 = smul.addr %s1719, 8
        %s1721 = scalar_lea.vmem %s11, %s1720
      $region80: #{transformer_forward.14} parent=75 // pred_fallthru
        _
    $region76: #{transformer_forward.14} parent=5 // pred_fallthru
      _
  $region6: #{transformer_forward.14} parent=0 // loop_footer
    %s21 = sadd.s32 1, %s17
  $region7: #{transformer_forward.14} parent=0 // loop_footer_branch
    %16 = sbr.rel target = $region3
  $region8: #{transformer_forward.14} parent=0 // loop_exit
    _

// kernel: transformer_forward.22
$region0: #{transformer_forward.22}
  #allocation0 [shape = 'u32[]', space=smem, size = 0x4, offset = 0x4, fixed_abs, tag = 'smem constant byte address 0x4 - core index']
  #allocation1 [shape = 'u32[72,128]{1,0:T(1,128)}', space=vmem, size = 0x9000, scoped, tag = 'internal scratch']
  #allocation2 [shape = 'bf16[4,16,16]{2,1,0:T(8,128)(2,1)}', space=vmem, size = 0x4000, scoped, tag = 'scratch operand']
  #allocation3 [shape = 'bf16[4,16,16]{2,1,0:T(8,128)(2,1)}', space=vmem, size = 0x4000, scoped, tag = 'scratch operand']
  %s0 = inlined_call_operand.vmem [shape: f32[2,16,64], index: 0, kind: input, shape index: {}]
  %s1 = inlined_call_operand.vmem [shape: f32[2,16,64], index: 1, kind: input, shape index: {}]
  %s2 = inlined_call_operand.vmem [shape: f32[2,16,64], index: 2, kind: input, shape index: {}]
  %s3 = inlined_call_operand.vmem [shape: f32[2,16,64], index: 3, kind: input, shape index: {}]
  %s4 = inlined_call_operand.vmem [shape: bf16[4,64,16], index: 4, kind: input, shape index: {}]
  %s5 = inlined_call_operand.vmem [shape: bf16[4,64,16], index: 5, kind: input, shape index: {}]
  %s6 = inlined_call_operand.vmem [shape: bf16[4,64,16], index: 6, kind: input, shape index: {}]
  %s7 = inlined_call_operand.vmem [shape: f32[4,1,16], index: 7, kind: input, shape index: {}]
  %s8 = inlined_call_operand.vmem [shape: f32[4,1,16], index: 8, kind: input, shape index: {}]
  %s9 = inlined_call_operand.vmem [shape: f32[4,1,16], index: 9, kind: input, shape index: {}]
  %s10 = inlined_call_operand.vmem [shape: bf16[64,64], index: 10, kind: input, shape index: {}]
  %s11 = inlined_call_operand.vmem [shape: f32[1,64], index: 11, kind: input, shape index: {}]
  %s12 = inlined_call_operand.vmem [shape: f32[1,64], index: 12, kind: input, shape index: {}]
  %s13 = inlined_call_operand.vmem [shape: f32[1,64], index: 13, kind: input, shape index: {}]
  %s14 = inlined_call_operand.vmem [shape: f32[2,16,64], index: 14, kind: output, shape index: {}]
  %s15 = sld [smem:[#allocation0]]
  $region93: #{transformer_forward.22} parent=0
    _
  %s17 = ssub.s32 1, %s15
  %s18 = scalar_select 0, %s17, %s15
  loop: start=0, step=1, limit=4
  $region2: #{transformer_forward.22} parent=0 // loop_pre_header
    _
  $region3: #{transformer_forward.22} parent=0 // loop_header
    %s20 = sphi 0, %s24
    %p21 = scmp.ge.s32.totalorder %s20, 4
    %s27 = sphi 0, %s39
    %s28 = sphi 0, %s35
    %s29 = sphi 0, %s27
    %s30 = sphi 0, %s28
    %s31 = sphi 0, %s29
    %s32 = sphi 0, %s30
    %s44 = sphi 0, %s46
    %s47 = sphi 0, %s44
    %s48 = sphi 0, %s47
    %s64 = sphi 0, %s48
    %s72 = sphi 0, %s74
    %s75 = sphi 0, %s72
    %s76 = sphi 0, %s75
    %s92 = sphi 0, %s76
    %s98 = sphi 0, %s100
    %s101 = sphi 0, %s98
    %s102 = sphi 0, %s101
    %s118 = sphi 0, %s102
    %s124 = sphi 0, %s126
    %s127 = sphi 0, %s124
    %s128 = sphi 0, %s127
    %s144 = sphi 0, %s128
    %s148 = sphi 0, %s148
    %s150 = sphi 0, %s148
    %s151 = sphi 0, %s150
    %s165 = sphi 0, %s151
    %s169 = sphi 0, %s169
    %s171 = sphi 0, %s169
    %s172 = sphi 0, %s171
    %s186 = sphi 0, %s172
    %s190 = sphi 0, %s190
    %s192 = sphi 0, %s190
    %s193 = sphi 0, %s192
    %s207 = sphi 0, %s193
    %s211 = sphi 0, %s211
    %s213 = sphi 0, %s211
    %s214 = sphi 0, %s213
    %s228 = sphi 0, %s214
    %s232 = sphi 0, %s232
    %s234 = sphi 0, %s232
    %s235 = sphi 0, %s234
    %s249 = sphi 0, %s235
    %s253 = sphi 0, %s253
    %s255 = sphi 0, %s253
    %s256 = sphi 0, %s255
    %s270 = sphi 0, %s256
    %s274 = sphi 0, %s274
    %s276 = sphi 0, %s274
    %s277 = sphi 0, %s276
    %s291 = sphi 0, %s277
    %s295 = sphi 0, %s295
    %s297 = sphi 0, %s295
    %s298 = sphi 0, %s297
    %s312 = sphi 0, %s298
    %s316 = sphi 0, %s316
    %s318 = sphi 0, %s316
    %s319 = sphi 0, %s318
    %s333 = sphi 0, %s319
    %s337 = sphi 0, %s337
    %s339 = sphi 0, %s337
    %s340 = sphi 0, %s339
    %s354 = sphi 0, %s340
    %s362 = sphi 0, %s364
    %s365 = sphi 0, %s362
    %s366 = sphi 0, %s365
    %s382 = sphi 0, %s366
  $region4: #{transformer_forward.22} parent=0 // loop_header_branch
    %23 = sbr.rel (%p21) target = $region8
  $region5: #{transformer_forward.22} parent=0 // loop_body
    %s25 = ssub.s32 %s20, 1
    %s26 = ssub.s32 %s20, 2
    %s33 = sadd.s32 1, %s28
    %p34 = scmp.ge.s32.totalorder %s33, 1
    %s35 = scalar_select %p34, 0, %s33
    %s36 = sadd.s32 1, %s27
    %s37 = scalar_select %p34, %s36, %s27
    %p38 = scmp.ge.s32.totalorder %s37, 2
    %s39 = scalar_select %p38, 0, %s37
    %s40 = ssub.s32 %s27, %s39
    %s41 = ssub.s32 %s28, %s35
    %s42 = sor.u32 %s40, %s41
    %p43 = scmp.eq.s32.totalorder %s42, 0
    %s45 = sadd.s32 %s44, 1
    %s46 = scalar_select %p43, %s44, %s45
    %p49 = pneg %p43
    %p50 = scmp.eq.s32.totalorder %s20, 1
    %p51 = por %p49, %p50
    %p52 = scmp.ne.s32.totalorder %s44, %s47
    %p53 = scmp.eq.s32.totalorder %s20, 0
    %p54 = por %p52, %p53
    %p55 = scmp.ne.s32.totalorder %s44, %s47
    %p56 = scmp.eq.s32.totalorder %s25, 1
    %p57 = por %p55, %p56
    %p58 = scmp.ne.s32.totalorder %s47, %s48
    %p59 = scmp.eq.s32.totalorder %s25, 0
    %p60 = por %p58, %p59
    %p61 = scmp.ne.s32.totalorder %s47, %s48
    %p62 = scmp.eq.s32.totalorder %s26, 1
    %p63 = por %p61, %p62
    %p65 = scmp.ne.s32.totalorder %s48, %s64
    %p66 = scmp.eq.s32.totalorder %s26, 0
    %p67 = por %p65, %p66
    %s68 = ssub.s32 %s27, %s39
    %s69 = ssub.s32 %s28, %s35
    %s70 = sor.u32 %s68, %s69
    %p71 = scmp.eq.s32.totalorder %s70, 0
    %s73 = sadd.s32 %s72, 1
    %s74 = scalar_select %p71, %s72, %s73
    %p77 = pneg %p71
    %p78 = scmp.eq.s32.totalorder %s20, 1
    %p79 = por %p77, %p78
    %p80 = scmp.ne.s32.totalorder %s72, %s75
    %p81 = scmp.eq.s32.totalorder %s20, 0
    %p82 = por %p80, %p81
    %p83 = scmp.ne.s32.totalorder %s72, %s75
    %p84 = scmp.eq.s32.totalorder %s25, 1
    %p85 = por %p83, %p84
    %p86 = scmp.ne.s32.totalorder %s75, %s76
    %p87 = scmp.eq.s32.totalorder %s25, 0
    %p88 = por %p86, %p87
    %p89 = scmp.ne.s32.totalorder %s75, %s76
    %p90 = scmp.eq.s32.totalorder %s26, 1
    %p91 = por %p89, %p90
    %p93 = scmp.ne.s32.totalorder %s76, %s92
    %p94 = scmp.eq.s32.totalorder %s26, 0
    %p95 = por %p93, %p94
    %s96 = ssub.s32 %s27, %s39
    %p97 = scmp.eq.s32.totalorder %s96, 0
    %s99 = sadd.s32 %s98, 1
    %s100 = scalar_select %p97, %s98, %s99
    %p103 = pneg %p97
    %p104 = scmp.eq.s32.totalorder %s20, 1
    %p105 = por %p103, %p104
    %p106 = scmp.ne.s32.totalorder %s98, %s101
    %p107 = scmp.eq.s32.totalorder %s20, 0
    %p108 = por %p106, %p107
    %p109 = scmp.ne.s32.totalorder %s98, %s101
    %p110 = scmp.eq.s32.totalorder %s25, 1
    %p111 = por %p109, %p110
    %p112 = scmp.ne.s32.totalorder %s101, %s102
    %p113 = scmp.eq.s32.totalorder %s25, 0
    %p114 = por %p112, %p113
    %p115 = scmp.ne.s32.totalorder %s101, %s102
    %p116 = scmp.eq.s32.totalorder %s26, 1
    %p117 = por %p115, %p116
    %p119 = scmp.ne.s32.totalorder %s102, %s118
    %p120 = scmp.eq.s32.totalorder %s26, 0
    %p121 = por %p119, %p120
    %s122 = ssub.s32 %s27, %s39
    %p123 = scmp.eq.s32.totalorder %s122, 0
    %s125 = sadd.s32 %s124, 1
    %s126 = scalar_select %p123, %s124, %s125
    %p129 = pneg %p123
    %p130 = scmp.eq.s32.totalorder %s20, 1
    %p131 = por %p129, %p130
    %p132 = scmp.ne.s32.totalorder %s124, %s127
    %p133 = scmp.eq.s32.totalorder %s20, 0
    %p134 = por %p132, %p133
    %p135 = scmp.ne.s32.totalorder %s124, %s127
    %p136 = scmp.eq.s32.totalorder %s25, 1
    %p137 = por %p135, %p136
    %p138 = scmp.ne.s32.totalorder %s127, %s128
    %p139 = scmp.eq.s32.totalorder %s25, 0
    %p140 = por %p138, %p139
    %p141 = scmp.ne.s32.totalorder %s127, %s128
    %p142 = scmp.eq.s32.totalorder %s26, 1
    %p143 = por %p141, %p142
    %p145 = scmp.ne.s32.totalorder %s128, %s144
    %p146 = scmp.eq.s32.totalorder %s26, 0
    %p147 = por %p145, %p146
    %s149 = sadd.s32 %s148, 1
    %p152 = scmp.eq.s32.totalorder %s20, 1
    %p153 = scmp.ne.s32.totalorder %s148, %s150
    %p154 = scmp.eq.s32.totalorder %s20, 0
    %p155 = por %p153, %p154
    %p156 = scmp.ne.s32.totalorder %s148, %s150
    %p157 = scmp.eq.s32.totalorder %s25, 1
    %p158 = por %p156, %p157
    %p159 = scmp.ne.s32.totalorder %s150, %s151
    %p160 = scmp.eq.s32.totalorder %s25, 0
    %p161 = por %p159, %p160
    %p162 = scmp.ne.s32.totalorder %s150, %s151
    %p163 = scmp.eq.s32.totalorder %s26, 1
    %p164 = por %p162, %p163
    %p166 = scmp.ne.s32.totalorder %s151, %s165
    %p167 = scmp.eq.s32.totalorder %s26, 0
    %p168 = por %p166, %p167
    %s170 = sadd.s32 %s169, 1
    %p173 = scmp.eq.s32.totalorder %s20, 1
    %p174 = scmp.ne.s32.totalorder %s169, %s171
    %p175 = scmp.eq.s32.totalorder %s20, 0
    %p176 = por %p174, %p175
    %p177 = scmp.ne.s32.totalorder %s169, %s171
    %p178 = scmp.eq.s32.totalorder %s25, 1
    %p179 = por %p177, %p178
    %p180 = scmp.ne.s32.totalorder %s171, %s172
    %p181 = scmp.eq.s32.totalorder %s25, 0
    %p182 = por %p180, %p181
    %p183 = scmp.ne.s32.totalorder %s171, %s172
    %p184 = scmp.eq.s32.totalorder %s26, 1
    %p185 = por %p183, %p184
    %p187 = scmp.ne.s32.totalorder %s172, %s186
    %p188 = scmp.eq.s32.totalorder %s26, 0
    %p189 = por %p187, %p188
    %s191 = sadd.s32 %s190, 1
    %p194 = scmp.eq.s32.totalorder %s20, 1
    %p195 = scmp.ne.s32.totalorder %s190, %s192
    %p196 = scmp.eq.s32.totalorder %s20, 0
    %p197 = por %p195, %p196
    %p198 = scmp.ne.s32.totalorder %s190, %s192
    %p199 = scmp.eq.s32.totalorder %s25, 1
    %p200 = por %p198, %p199
    %p201 = scmp.ne.s32.totalorder %s192, %s193
    %p202 = scmp.eq.s32.totalorder %s25, 0
    %p203 = por %p201, %p202
    %p204 = scmp.ne.s32.totalorder %s192, %s193
    %p205 = scmp.eq.s32.totalorder %s26, 1
    %p206 = por %p204, %p205
    %p208 = scmp.ne.s32.totalorder %s193, %s207
    %p209 = scmp.eq.s32.totalorder %s26, 0
    %p210 = por %p208, %p209
    %s212 = sadd.s32 %s211, 1
    %p215 = scmp.eq.s32.totalorder %s20, 1
    %p216 = scmp.ne.s32.totalorder %s211, %s213
    %p217 = scmp.eq.s32.totalorder %s20, 0
    %p218 = por %p216, %p217
    %p219 = scmp.ne.s32.totalorder %s211, %s213
    %p220 = scmp.eq.s32.totalorder %s25, 1
    %p221 = por %p219, %p220
    %p222 = scmp.ne.s32.totalorder %s213, %s214
    %p223 = scmp.eq.s32.totalorder %s25, 0
    %p224 = por %p222, %p223
    %p225 = scmp.ne.s32.totalorder %s213, %s214
    %p226 = scmp.eq.s32.totalorder %s26, 1
    %p227 = por %p225, %p226
    %p229 = scmp.ne.s32.totalorder %s214, %s228
    %p230 = scmp.eq.s32.totalorder %s26, 0
    %p231 = por %p229, %p230
    %s233 = sadd.s32 %s232, 1
    %p236 = scmp.eq.s32.totalorder %s20, 1
    %p237 = scmp.ne.s32.totalorder %s232, %s234
    %p238 = scmp.eq.s32.totalorder %s20, 0
    %p239 = por %p237, %p238
    %p240 = scmp.ne.s32.totalorder %s232, %s234
    %p241 = scmp.eq.s32.totalorder %s25, 1
    %p242 = por %p240, %p241
    %p243 = scmp.ne.s32.totalorder %s234, %s235
    %p244 = scmp.eq.s32.totalorder %s25, 0
    %p245 = por %p243, %p244
    %p246 = scmp.ne.s32.totalorder %s234, %s235
    %p247 = scmp.eq.s32.totalorder %s26, 1
    %p248 = por %p246, %p247
    %p250 = scmp.ne.s32.totalorder %s235, %s249
    %p251 = scmp.eq.s32.totalorder %s26, 0
    %p252 = por %p250, %p251
    %s254 = sadd.s32 %s253, 1
    %p257 = scmp.eq.s32.totalorder %s20, 1
    %p258 = scmp.ne.s32.totalorder %s253, %s255
    %p259 = scmp.eq.s32.totalorder %s20, 0
    %p260 = por %p258, %p259
    %p261 = scmp.ne.s32.totalorder %s253, %s255
    %p262 = scmp.eq.s32.totalorder %s25, 1
    %p263 = por %p261, %p262
    %p264 = scmp.ne.s32.totalorder %s255, %s256
    %p265 = scmp.eq.s32.totalorder %s25, 0
    %p266 = por %p264, %p265
    %p267 = scmp.ne.s32.totalorder %s255, %s256
    %p268 = scmp.eq.s32.totalorder %s26, 1
    %p269 = por %p267, %p268
    %p271 = scmp.ne.s32.totalorder %s256, %s270
    %p272 = scmp.eq.s32.totalorder %s26, 0
    %p273 = por %p271, %p272
    %s275 = sadd.s32 %s274, 1
    %p278 = scmp.eq.s32.totalorder %s20, 1
    %p279 = scmp.ne.s32.totalorder %s274, %s276
    %p280 = scmp.eq.s32.totalorder %s20, 0
    %p281 = por %p279, %p280
    %p282 = scmp.ne.s32.totalorder %s274, %s276
    %p283 = scmp.eq.s32.totalorder %s25, 1
    %p284 = por %p282, %p283
    %p285 = scmp.ne.s32.totalorder %s276, %s277
    %p286 = scmp.eq.s32.totalorder %s25, 0
    %p287 = por %p285, %p286
    %p288 = scmp.ne.s32.totalorder %s276, %s277
    %p289 = scmp.eq.s32.totalorder %s26, 1
    %p290 = por %p288, %p289
    %p292 = scmp.ne.s32.totalorder %s277, %s291
    %p293 = scmp.eq.s32.totalorder %s26, 0
    %p294 = por %p292, %p293
    %s296 = sadd.s32 %s295, 1
    %p299 = scmp.eq.s32.totalorder %s20, 1
    %p300 = scmp.ne.s32.totalorder %s295, %s297
    %p301 = scmp.eq.s32.totalorder %s20, 0
    %p302 = por %p300, %p301
    %p303 = scmp.ne.s32.totalorder %s295, %s297
    %p304 = scmp.eq.s32.totalorder %s25, 1
    %p305 = por %p303, %p304
    %p306 = scmp.ne.s32.totalorder %s297, %s298
    %p307 = scmp.eq.s32.totalorder %s25, 0
    %p308 = por %p306, %p307
    %p309 = scmp.ne.s32.totalorder %s297, %s298
    %p310 = scmp.eq.s32.totalorder %s26, 1
    %p311 = por %p309, %p310
    %p313 = scmp.ne.s32.totalorder %s298, %s312
    %p314 = scmp.eq.s32.totalorder %s26, 0
    %p315 = por %p313, %p314
    %s317 = sadd.s32 %s316, 1
    %p320 = scmp.eq.s32.totalorder %s20, 1
    %p321 = scmp.ne.s32.totalorder %s316, %s318
    %p322 = scmp.eq.s32.totalorder %s20, 0
    %p323 = por %p321, %p322
    %p324 = scmp.ne.s32.totalorder %s316, %s318
    %p325 = scmp.eq.s32.totalorder %s25, 1
    %p326 = por %p324, %p325
    %p327 = scmp.ne.s32.totalorder %s318, %s319
    %p328 = scmp.eq.s32.totalorder %s25, 0
    %p329 = por %p327, %p328
    %p330 = scmp.ne.s32.totalorder %s318, %s319
    %p331 = scmp.eq.s32.totalorder %s26, 1
    %p332 = por %p330, %p331
    %p334 = scmp.ne.s32.totalorder %s319, %s333
    %p335 = scmp.eq.s32.totalorder %s26, 0
    %p336 = por %p334, %p335
    %s338 = sadd.s32 %s337, 1
    %p341 = scmp.eq.s32.totalorder %s20, 1
    %p342 = scmp.ne.s32.totalorder %s337, %s339
    %p343 = scmp.eq.s32.totalorder %s20, 0
    %p344 = por %p342, %p343
    %p345 = scmp.ne.s32.totalorder %s337, %s339
    %p346 = scmp.eq.s32.totalorder %s25, 1
    %p347 = por %p345, %p346
    %p348 = scmp.ne.s32.totalorder %s339, %s340
    %p349 = scmp.eq.s32.totalorder %s25, 0
    %p350 = por %p348, %p349
    %p351 = scmp.ne.s32.totalorder %s339, %s340
    %p352 = scmp.eq.s32.totalorder %s26, 1
    %p353 = por %p351, %p352
    %p355 = scmp.ne.s32.totalorder %s340, %s354
    %p356 = scmp.eq.s32.totalorder %s26, 0
    %p357 = por %p355, %p356
    %s358 = ssub.s32 %s27, %s39
    %s359 = ssub.s32 %s28, %s35
    %s360 = sor.u32 %s358, %s359
    %p361 = scmp.eq.s32.totalorder %s360, 0
    %s363 = sadd.s32 %s362, 1
    %s364 = scalar_select %p361, %s362, %s363
    %p367 = pneg %p361
    %p368 = scmp.eq.s32.totalorder %s20, 1
    %p369 = por %p367, %p368
    %p370 = scmp.ne.s32.totalorder %s362, %s365
    %p371 = scmp.eq.s32.totalorder %s20, 0
    %p372 = por %p370, %p371
    %p373 = scmp.ne.s32.totalorder %s362, %s365
    %p374 = scmp.eq.s32.totalorder %s25, 1
    %p375 = por %p373, %p374
    %p376 = scmp.ne.s32.totalorder %s365, %s366
    %p377 = scmp.eq.s32.totalorder %s25, 0
    %p378 = por %p376, %p377
    %p379 = scmp.ne.s32.totalorder %s365, %s366
    %p380 = scmp.eq.s32.totalorder %s26, 1
    %p381 = por %p379, %p380
    %p383 = scmp.ne.s32.totalorder %s366, %s382
    %p384 = scmp.eq.s32.totalorder %s26, 0
    %p385 = por %p383, %p384
    %p386 = scmp.le.s32.totalorder 1, %s20
    %p387 = scmp.lt.s32.totalorder %s20, 3
    %p388 = pnand %p386, %p387
    %p389 = pneg %p388
    // Predicated region
    $region9: #{transformer_forward.22} parent=5 // pred_check
      _
    $region10: #{transformer_forward.22} parent=5 // pred_check_branch
      %391 = sbr.rel (%p388) target = $region12
    $region11: #{transformer_forward.22} parent=5 // pred_region
      %s392 = ssub.s32 %s20, 1
      // Predicated region
      $region13: #{transformer_forward.22} parent=11 // pred_check
        %p393 = pneg %p161
      $region14: #{transformer_forward.22} parent=11 // pred_check_branch
        %395 = sbr.rel (%p393) target = $region16
      $region15: #{transformer_forward.22} parent=11 // pred_region
        _
      $region16: #{transformer_forward.22} parent=11 // pred_fallthru
        _
      // Predicated region
      $region17: #{transformer_forward.22} parent=11 // pred_check
        %p396 = pneg %p182
      $region18: #{transformer_forward.22} parent=11 // pred_check_branch
        %398 = sbr.rel (%p396) target = $region20
      $region19: #{transformer_forward.22} parent=11 // pred_region
        _
      $region20: #{transformer_forward.22} parent=11 // pred_fallthru
        _
      // Predicated region
      $region21: #{transformer_forward.22} parent=11 // pred_check
        %p399 = pneg %p203
      $region22: #{transformer_forward.22} parent=11 // pred_check_branch
        %401 = sbr.rel (%p399) target = $region24
      $region23: #{transformer_forward.22} parent=11 // pred_region
        _
      $region24: #{transformer_forward.22} parent=11 // pred_fallthru
        _
      // Predicated region
      $region25: #{transformer_forward.22} parent=11 // pred_check
        %p402 = pneg %p224
      $region26: #{transformer_forward.22} parent=11 // pred_check_branch
        %404 = sbr.rel (%p402) target = $region28
      $region27: #{transformer_forward.22} parent=11 // pred_region
        _
      $region28: #{transformer_forward.22} parent=11 // pred_fallthru
        _
      // Predicated region
      $region29: #{transformer_forward.22} parent=11 // pred_check
        %p405 = pneg %p245
      $region30: #{transformer_forward.22} parent=11 // pred_check_branch
        %407 = sbr.rel (%p405) target = $region32
      $region31: #{transformer_forward.22} parent=11 // pred_region
        _
      $region32: #{transformer_forward.22} parent=11 // pred_fallthru
        _
      // Predicated region
      $region33: #{transformer_forward.22} parent=11 // pred_check
        %p408 = pneg %p266
      $region34: #{transformer_forward.22} parent=11 // pred_check_branch
        %410 = sbr.rel (%p408) target = $region36
      $region35: #{transformer_forward.22} parent=11 // pred_region
        _
      $region36: #{transformer_forward.22} parent=11 // pred_fallthru
        _
      // Predicated region
      $region37: #{transformer_forward.22} parent=11 // pred_check
        %p411 = pneg %p287
      $region38: #{transformer_forward.22} parent=11 // pred_check_branch
        %413 = sbr.rel (%p411) target = $region40
      $region39: #{transformer_forward.22} parent=11 // pred_region
        _
      $region40: #{transformer_forward.22} parent=11 // pred_fallthru
        _
      // Predicated region
      $region41: #{transformer_forward.22} parent=11 // pred_check
        %p414 = pneg %p308
      $region42: #{transformer_forward.22} parent=11 // pred_check_branch
        %416 = sbr.rel (%p414) target = $region44
      $region43: #{transformer_forward.22} parent=11 // pred_region
        _
      $region44: #{transformer_forward.22} parent=11 // pred_fallthru
        _
      // Predicated region
      $region45: #{transformer_forward.22} parent=11 // pred_check
        %p417 = pneg %p329
      $region46: #{transformer_forward.22} parent=11 // pred_check_branch
        %419 = sbr.rel (%p417) target = $region48
      $region47: #{transformer_forward.22} parent=11 // pred_region
        _
      $region48: #{transformer_forward.22} parent=11 // pred_fallthru
        _
      // Predicated region
      $region49: #{transformer_forward.22} parent=11 // pred_check
        %p420 = pneg %p350
      $region50: #{transformer_forward.22} parent=11 // pred_check_branch
        %422 = sbr.rel (%p420) target = $region52
      $region51: #{transformer_forward.22} parent=11 // pred_region
        _
      $region52: #{transformer_forward.22} parent=11 // pred_fallthru
        _
    $region12: #{transformer_forward.22} parent=5 // pred_fallthru
      _
    %p423 = scmp.lt.s32.totalorder %s20, 2
    // Predicated region
    $region53: #{transformer_forward.22} parent=5 // pred_check
      %p424 = pneg %p423
    $region54: #{transformer_forward.22} parent=5 // pred_check_branch
      %426 = sbr.rel (%p424) target = $region56
    $region55: #{transformer_forward.22} parent=5 // pred_region
      // Predicated region
      $region57: #{transformer_forward.22} parent=55 // pred_check
        %p427 = pneg %p54
      $region58: #{transformer_forward.22} parent=55 // pred_check_branch
        %429 = sbr.rel (%p427) target = $region60
      $region59: #{transformer_forward.22} parent=55 // pred_region
        %s430 = smul.u32 2, %s28
        %p431 = scmp.lt.s32.totalorder %s27, 1
        %s432 = scalar_select %p431, %s27, 1
        %p433 = scmp.lt.s32.totalorder %s430, 1
        %s434 = scalar_select %p433, %s430, 1
        %s435 = smul.addr %s432, 2
        %s436 = sadd.s32 %s434, %s435
        %s437 = smul.addr %s436, 8
        %s438 = scalar_lea.vmem %s0, %s437
        %s439 = smul.u32 2, %s28
      $region60: #{transformer_forward.22} parent=55 // pred_fallthru
        _
      // Predicated region
      $region61: #{transformer_forward.22} parent=55 // pred_check
        %p440 = pneg %p82
      $region62: #{transformer_forward.22} parent=55 // pred_check_branch
        %442 = sbr.rel (%p440) target = $region64
      $region63: #{transformer_forward.22} parent=55 // pred_region
        %s443 = smul.u32 2, %s28
        %p444 = scmp.lt.s32.totalorder %s27, 1
        %s445 = scalar_select %p444, %s27, 1
        %p446 = scmp.lt.s32.totalorder %s443, 1
        %s447 = scalar_select %p446, %s443, 1
        %s448 = smul.addr %s445, 2
        %s449 = sadd.s32 %s447, %s448
        %s450 = smul.addr %s449, 8
        %s451 = scalar_lea.vmem %s1, %s450
        %s452 = smul.u32 2, %s28
      $region64: #{transformer_forward.22} parent=55 // pred_fallthru
        _
      // Predicated region
      $region65: #{transformer_forward.22} parent=55 // pred_check
        %p453 = pneg %p108
      $region66: #{transformer_forward.22} parent=55 // pred_check_branch
        %455 = sbr.rel (%p453) target = $region68
      $region67: #{transformer_forward.22} parent=55 // pred_region
        %p456 = scmp.lt.s32.totalorder %s27, 1
        %s457 = scalar_select %p456, %s27, 1
        %s458 = smul.addr %s457, 2
        %s459 = smul.addr %s458, 8
        %s460 = scalar_lea.vmem %s2, %s459
      $region68: #{transformer_forward.22} parent=55 // pred_fallthru
        _
      // Predicated region
      $region69: #{transformer_forward.22} parent=55 // pred_check
        %p461 = pneg %p134
      $region70: #{transformer_forward.22} parent=55 // pred_check_branch
        %463 = sbr.rel (%p461) target = $region72
      $region71: #{transformer_forward.22} parent=55 // pred_region
        %p464 = scmp.lt.s32.totalorder %s27, 1
        %s465 = scalar_select %p464, %s27, 1
        %s466 = smul.addr %s465, 2
        %s467 = smul.addr %s466, 8
        %s468 = scalar_lea.vmem %s3, %s467
      $region72: #{transformer_forward.22} parent=55 // pred_fallthru
        _
    $region56: #{transformer_forward.22} parent=5 // pred_fallthru
      _
    %p469 = scmp.le.s32.totalorder 1, %s20
    %p470 = scmp.lt.s32.totalorder %s20, 3
    %p471 = pnand %p469, %p470
    %p472 = pneg %p471
    // Predicated region
    $region73: #{transformer_forward.22} parent=5 // pred_check
      _
    $region74: #{transformer_forward.22} parent=5 // pred_check_branch
      %474 = sbr.rel (%p471) target = $region76
    $region75: #{transformer_forward.22} parent=5 // pred_region
      %s475 = ssub.s32 %s20, 1
      %s476 = smul.u32 2, %s30
      %p477 = scmp.lt.s32.totalorder %s29, 1
      %s478 = scalar_select %p477, %s29, 1
      %p479 = scmp.lt.s32.totalorder %s476, 1
      %s480 = scalar_select %p479, %s476, 1
      %s481 = smul.addr %s478, 2
      %s482 = sadd.s32 %s480, %s481
      %s483 = smul.addr %s482, 8
      %s484 = scalar_lea.vmem %s0, %s483
      %p485 = pneg %p60
      %p486 = pneg %p57
      %s487 = smul.u32 2, %s30
      %p488 = scmp.lt.s32.totalorder %s29, 1
      %s489 = scalar_select %p488, %s29, 1
      %p490 = scmp.lt.s32.totalorder %s487, 1
      %s491 = scalar_select %p490, %s487, 1
      %s492 = smul.addr %s489, 2
      %s493 = sadd.s32 %s491, %s492
      %s494 = smul.addr %s493, 8
      %s495 = scalar_lea.vmem %s1, %s494
      %p496 = pneg %p88
      %p497 = pneg %p85
      %p498 = scmp.lt.s32.totalorder %s29, 1
      %s499 = scalar_select %p498, %s29, 1
      %s500 = smul.addr %s499, 2
      %s501 = smul.addr %s500, 8
      %s502 = scalar_lea.vmem %s2, %s501
      %p503 = pneg %p114
      %p504 = pneg %p111
      %p505 = scmp.lt.s32.totalorder %s29, 1
      %s506 = scalar_select %p505, %s29, 1
      %s507 = smul.addr %s506, 2
      %s508 = smul.addr %s507, 8
      %s509 = scalar_lea.vmem %s3, %s508
      %p510 = pneg %p140
      %p511 = pneg %p137
      %p512 = pneg %p161
      %p513 = pneg %p158
      %p514 = pneg %p182
      %p515 = pneg %p179
      %p516 = pneg %p203
      %p517 = pneg %p200
      %p518 = pneg %p224
      %p519 = pneg %p221
      %p520 = pneg %p245
      %p521 = pneg %p242
      %p522 = pneg %p266
      %p523 = pneg %p263
      %p524 = pneg %p287
      %p525 = pneg %p284
      %p526 = pneg %p308
      %p527 = pneg %p305
      %p528 = pneg %p329
      %p529 = pneg %p326
      %p530 = pneg %p350
      %p531 = pneg %p347
      %p532 = pneg %p378
      %p533 = pneg %p375
      %s534 = smul.u32 2, %s30
      %p535 = scmp.lt.s32.totalorder %s29, 1
      %s536 = scalar_select %p535, %s29, 1
      %p537 = scmp.lt.s32.totalorder %s534, 1
      %s538 = scalar_select %p537, %s534, 1
      %s539 = smul.addr %s536, 2
      %s540 = sadd.s32 %s538, %s539
      %s541 = smul.addr %s540, 8
      %s542 = scalar_lea.vmem %s14, %s541
      %s543 = smul.u32 2, %s30
      %p544 = scmp.lt.s32.totalorder %s29, 1
      %s545 = scalar_select %p544, %s29, 1
      %p546 = scmp.lt.s32.totalorder %s543, 1
      %s547 = scalar_select %p546, %s543, 1
      %s548 = smul.addr %s545, 2
      %s549 = sadd.s32 %s547, %s548
      %s550 = smul.addr %s549, 8
      %s551 = scalar_lea.vmem %s0, %s550
      %s552 = smul.u32 2, %s30
      %s553 = smul.u32 2, %s30
      %p554 = scmp.lt.s32.totalorder %s29, 1
      %s555 = scalar_select %p554, %s29, 1
      %p556 = scmp.lt.s32.totalorder %s553, 1
      %s557 = scalar_select %p556, %s553, 1
      %s558 = smul.addr %s555, 2
      %s559 = sadd.s32 %s557, %s558
      %s560 = smul.addr %s559, 8
      %s561 = scalar_lea.vmem %s1, %s560
      %s562 = smul.u32 2, %s30
      %p563 = scmp.lt.s32.totalorder %s29, 1
      %s564 = scalar_select %p563, %s29, 1
      %s565 = smul.addr %s564, 2
      %s566 = smul.addr %s565, 8
      %s567 = scalar_lea.vmem %s2, %s566
      %p568 = scmp.lt.s32.totalorder %s29, 1
      %s569 = scalar_select %p568, %s29, 1
      %s570 = smul.addr %s569, 2
      %s571 = smul.addr %s570, 8
      %s572 = scalar_lea.vmem %s3, %s571
      %s573 = smul.u32 2, %s30
      %p574 = scmp.lt.s32.totalorder %s29, 1
      %s575 = scalar_select %p574, %s29, 1
      %p576 = scmp.lt.s32.totalorder %s573, 1
      %s577 = scalar_select %p576, %s573, 1
      %s578 = smul.addr %s575, 2
      %s579 = sadd.s32 %s577, %s578
      %s580 = smul.addr %s579, 8
      %s581 = scalar_lea.vmem %s14, %s580
      %s582 = smul.u32 2, %s30
      %p584 = scmp.eq.s32.totalorder %s30, 0
      // Predicated region
      $region77: #{transformer_forward.22} parent=75 // pred_check
        %p585 = pneg %p584
      $region78: #{transformer_forward.22} parent=75 // pred_check_branch
        %587 = sbr.rel (%p585) target = $region80
      $region79: #{transformer_forward.22} parent=75 // pred_region
        %v588 = vld [vmem:[%s567] sm:$0xff]
        %v589 = vld [vmem:[%s567 + $0x8] sm:$0xff]
        %v590 = vpack.c.bf16 %v589, %v588
        %v591 = vld [vmem:[%s572] sm:$0xff]
        %v592 = vld [vmem:[%s572 + $0x8] sm:$0xff]
        %v593 = vpack.c.bf16 %v592, %v591
        %v594 = vld [vmem:[%s5] sm:$0xf]
        %v595 = vld [vmem:[%s5 + $0x4] sm:$0xf]
        %v596 = vld [vmem:[%s5 + $0x8] sm:$0xf]
        %v597 = vld [vmem:[%s5 + $0xc] sm:$0xf]
        %v598 = vld [vmem:[%s5 + $0x10] sm:$0xf]
        %v599 = vld [vmem:[%s5 + $0x14] sm:$0xf]
        %v600 = vld [vmem:[%s5 + $0x18] sm:$0xf]
        %v601 = vld [vmem:[%s5 + $0x1c] sm:$0xf]
        %v602 = vld [vmem:[%s8] sm:$0x1]
        %v604 = vperm.slane %v602, 0
        %v614 = vunpack.c.l.b16 %v594
        %v615 = vunpack.c.l.b16 %v595
        %v616 = vunpack.c.l.b16 %v596
        %v617 = vunpack.c.l.b16 %v597
        %v618 = vunpack.c.l.b16 %v598
        %v619 = vunpack.c.l.b16 %v599
        %v620 = vunpack.c.l.b16 %v600
        %v621 = vunpack.c.l.b16 %v601
        %v622 = vpack.c.b16 %v615, %v614
        %v623 = vpack.c.b16 %v617, %v616
        %v624 = vpack.c.b16 %v619, %v618
        %v625 = vpack.c.b16 %v621, %v620
        %vm630 = vcmask 523264
        %v632 = vsel %vm630, %v590, 0
        %634 = vmatpush.bf16.msra.mxu0 0
        %635 = vmatpush.bf16.msra.mxu0 0
        %636 = vmatpush.bf16.msra.mxu0 0
        %637 = vmatpush.bf16.msra.mxu0 0
        %638 = vmatpush.bf16.msra.mxu0 %v625
        %639 = vmatpush.bf16.msra.mxu0 %v624
        %640 = vmatpush.bf16.msra.mxu0 %v623
        %641 = vmatpush.bf16.msra.mxu0 %v622
        %642 = vmatmul.bf16.gmra.mxu0 %v632
        %v643 = vpop.f32.mrf.mxu0
        %v644 = vadd.f32 %v604, %v643
        %v645 = vpop.f32.mrf.mxu0
        %v646 = vadd.f32 %v604, %v645
        %647 = vdwg.mxu0
        %v648 = vld [vmem:[%s6] sm:$0xf]
        %v649 = vld [vmem:[%s6 + $0x4] sm:$0xf]
        %v650 = vld [vmem:[%s6 + $0x8] sm:$0xf]
        %v651 = vld [vmem:[%s6 + $0xc] sm:$0xf]
        %v652 = vld [vmem:[%s6 + $0x10] sm:$0xf]
        %v653 = vld [vmem:[%s6 + $0x14] sm:$0xf]
        %v654 = vld [vmem:[%s6 + $0x18] sm:$0xf]
        %v655 = vld [vmem:[%s6 + $0x1c] sm:$0xf]
        %v656 = vld [vmem:[%s9] sm:$0x1]
        %v658 = vperm.slane %v656, 0
        %v668 = vunpack.c.l.b16 %v648
        %v669 = vunpack.c.l.b16 %v649
        %v670 = vunpack.c.l.b16 %v650
        %v671 = vunpack.c.l.b16 %v651
        %v672 = vunpack.c.l.b16 %v652
        %v673 = vunpack.c.l.b16 %v653
        %v674 = vunpack.c.l.b16 %v654
        %v675 = vunpack.c.l.b16 %v655
        %v676 = vpack.c.b16 %v669, %v668
        %v677 = vpack.c.b16 %v671, %v670
        %v678 = vpack.c.b16 %v673, %v672
        %v679 = vpack.c.b16 %v675, %v674
        %v685 = vsel %vm630, %v593, 0
        %687 = vmatpush.bf16.msra.mxu0 0
        %688 = vmatpush.bf16.msra.mxu0 0
        %689 = vmatpush.bf16.msra.mxu0 0
        %690 = vmatpush.bf16.msra.mxu0 0
        %691 = vmatpush.bf16.msra.mxu0 %v679
        %692 = vmatpush.bf16.msra.mxu0 %v678
        %693 = vmatpush.bf16.msra.mxu0 %v677
        %694 = vmatpush.bf16.msra.mxu0 %v676
        %695 = vmatmul.bf16.gmra.mxu0 %v685
        %v696 = vpop.f32.mrf.mxu0
        %v697 = vadd.f32 %v658, %v696
        %v698 = vpop.f32.mrf.mxu0
        %v699 = vadd.f32 %v658, %v698
        %700 = vdwg.mxu0
        %v701 = vpack.c.bf16 %v644, %v644
        %v702 = vpack.c.bf16 %v646, %v646
        %vm703 = vcmask 125952
        %704 = vst.msk [vmem:[#allocation2] sm:$0xf] %vm703, %v701
        %705 = vst.msk [vmem:[#allocation2 + $0x4] sm:$0xf] %vm703, %v702
        %v706 = vpack.c.bf16 %v697, %v697
        %v707 = vpack.c.bf16 %v699, %v699
        %708 = vst.msk [vmem:[#allocation3] sm:$0xf] %vm703, %v706
        %709 = vst.msk [vmem:[#allocation3 + $0x4] sm:$0xf] %vm703, %v707
        %s710 = scalar_lea.vmem %s5, 32
        %v711 = vld [vmem:[%s710] sm:$0xf]
        %v712 = vld [vmem:[%s710 + $0x4] sm:$0xf]
        %v713 = vld [vmem:[%s710 + $0x8] sm:$0xf]
        %v714 = vld [vmem:[%s710 + $0xc] sm:$0xf]
        %v715 = vld [vmem:[%s710 + $0x10] sm:$0xf]
        %v716 = vld [vmem:[%s710 + $0x14] sm:$0xf]
        %v717 = vld [vmem:[%s710 + $0x18] sm:$0xf]
        %v718 = vld [vmem:[%s710 + $0x1c] sm:$0xf]
        %s719 = scalar_lea.vmem %s8, 1
        %v720 = vld [vmem:[%s719] sm:$0x1]
        %v722 = vperm.slane %v720, 0
        %v732 = vunpack.c.l.b16 %v711
        %v733 = vunpack.c.l.b16 %v712
        %v734 = vunpack.c.l.b16 %v713
        %v735 = vunpack.c.l.b16 %v714
        %v736 = vunpack.c.l.b16 %v715
        %v737 = vunpack.c.l.b16 %v716
        %v738 = vunpack.c.l.b16 %v717
        %v739 = vunpack.c.l.b16 %v718
        %v740 = vpack.c.b16 %v733, %v732
        %v741 = vpack.c.b16 %v735, %v734
        %v742 = vpack.c.b16 %v737, %v736
        %v743 = vpack.c.b16 %v739, %v738
        %748 = vmatpush.bf16.msra.mxu0 0
        %749 = vmatpush.bf16.msra.mxu0 0
        %750 = vmatpush.bf16.msra.mxu0 0
        %751 = vmatpush.bf16.msra.mxu0 0
        %752 = vmatpush.bf16.msra.mxu0 %v743
        %753 = vmatpush.bf16.msra.mxu0 %v742
        %754 = vmatpush.bf16.msra.mxu0 %v741
        %755 = vmatpush.bf16.msra.mxu0 %v740
        %756 = vmatmul.bf16.gmra.mxu0 %v632
        %v757 = vpop.f32.mrf.mxu0
        %v758 = vadd.f32 %v722, %v757
        %v759 = vpop.f32.mrf.mxu0
        %v760 = vadd.f32 %v722, %v759
        %761 = vdwg.mxu0
        %s762 = scalar_lea.vmem %s6, 32
        %v763 = vld [vmem:[%s762] sm:$0xf]
        %v764 = vld [vmem:[%s762 + $0x4] sm:$0xf]
        %v765 = vld [vmem:[%s762 + $0x8] sm:$0xf]
        %v766 = vld [vmem:[%s762 + $0xc] sm:$0xf]
        %v767 = vld [vmem:[%s762 + $0x10] sm:$0xf]
        %v768 = vld [vmem:[%s762 + $0x14] sm:$0xf]
        %v769 = vld [vmem:[%s762 + $0x18] sm:$0xf]
        %v770 = vld [vmem:[%s762 + $0x1c] sm:$0xf]
        %s771 = scalar_lea.vmem %s9, 1
        %v772 = vld [vmem:[%s771] sm:$0x1]
        %v774 = vperm.slane %v772, 0
        %v784 = vunpack.c.l.b16 %v763
        %v785 = vunpack.c.l.b16 %v764
        %v786 = vunpack.c.l.b16 %v765
        %v787 = vunpack.c.l.b16 %v766
        %v788 = vunpack.c.l.b16 %v767
        %v789 = vunpack.c.l.b16 %v768
        %v790 = vunpack.c.l.b16 %v769
        %v791 = vunpack.c.l.b16 %v770
        %v792 = vpack.c.b16 %v785, %v784
        %v793 = vpack.c.b16 %v787, %v786
        %v794 = vpack.c.b16 %v789, %v788
        %v795 = vpack.c.b16 %v791, %v790
        %800 = vmatpush.bf16.msra.mxu0 0
        %801 = vmatpush.bf16.msra.mxu0 0
        %802 = vmatpush.bf16.msra.mxu0 0
        %803 = vmatpush.bf16.msra.mxu0 0
        %804 = vmatpush.bf16.msra.mxu0 %v795
        %805 = vmatpush.bf16.msra.mxu0 %v794
        %806 = vmatpush.bf16.msra.mxu0 %v793
        %807 = vmatpush.bf16.msra.mxu0 %v792
        %808 = vmatmul.bf16.gmra.mxu0 %v685
        %v809 = vpop.f32.mrf.mxu0
        %v810 = vadd.f32 %v774, %v809
        %v811 = vpop.f32.mrf.mxu0
        %v812 = vadd.f32 %v774, %v811
        %813 = vdwg.mxu0
        %v814 = vpack.c.bf16 %v758, %v758
        %v815 = vpack.c.bf16 %v760, %v760
        %s816 = scalar_lea.vmem [#allocation2], 8
        %817 = vst.msk [vmem:[%s816] sm:$0xf] %vm703, %v814
        %818 = vst.msk [vmem:[%s816 + $0x4] sm:$0xf] %vm703, %v815
        %v819 = vpack.c.bf16 %v810, %v810
        %v820 = vpack.c.bf16 %v812, %v812
        %s821 = scalar_lea.vmem [#allocation3], 8
        %822 = vst.msk [vmem:[%s821] sm:$0xf] %vm703, %v819
        %823 = vst.msk [vmem:[%s821 + $0x4] sm:$0xf] %vm703, %v820
        %s824 = scalar_lea.vmem %s5, 64
        %v825 = vld [vmem:[%s824] sm:$0xf]
        %v826 = vld [vmem:[%s824 + $0x4] sm:$0xf]
        %v827 = vld [vmem:[%s824 + $0x8] sm:$0xf]
        %v828 = vld [vmem:[%s824 + $0xc] sm:$0xf]
        %v829 = vld [vmem:[%s824 + $0x10] sm:$0xf]
        %v830 = vld [vmem:[%s824 + $0x14] sm:$0xf]
        %v831 = vld [vmem:[%s824 + $0x18] sm:$0xf]
        %v832 = vld [vmem:[%s824 + $0x1c] sm:$0xf]
        %s833 = scalar_lea.vmem %s8, 2
        %v834 = vld [vmem:[%s833] sm:$0x1]
        %v836 = vperm.slane %v834, 0
        %v846 = vunpack.c.l.b16 %v825
        %v847 = vunpack.c.l.b16 %v826
        %v848 = vunpack.c.l.b16 %v827
        %v849 = vunpack.c.l.b16 %v828
        %v850 = vunpack.c.l.b16 %v829
        %v851 = vunpack.c.l.b16 %v830
        %v852 = vunpack.c.l.b16 %v831
        %v853 = vunpack.c.l.b16 %v832
        %v854 = vpack.c.b16 %v847, %v846
        %v855 = vpack.c.b16 %v849, %v848
        %v856 = vpack.c.b16 %v851, %v850
        %v857 = vpack.c.b16 %v853, %v852
        %862 = vmatpush.bf16.msra.mxu0 0
        %863 = vmatpush.bf16.msra.mxu0 0
        %864 = vmatpush.bf16.msra.mxu0 0
        %865 = vmatpush.bf16.msra.mxu0 0
        %866 = vmatpush.bf16.msra.mxu0 %v857
        %867 = vmatpush.bf16.msra.mxu0 %v856
        %868 = vmatpush.bf16.msra.mxu0 %v855
        %869 = vmatpush.bf16.msra.mxu0 %v854
        %870 = vmatmul.bf16.gmra.mxu0 %v632
        %v871 = vpop.f32.mrf.mxu0
        %v872 = vadd.f32 %v836, %v871
        %v873 = vpop.f32.mrf.mxu0
        %v874 = vadd.f32 %v836, %v873
        %875 = vdwg.mxu0
        %s876 = scalar_lea.vmem %s6, 64
        %v877 = vld [vmem:[%s876] sm:$0xf]
        %v878 = vld [vmem:[%s876 + $0x4] sm:$0xf]
        %v879 = vld [vmem:[%s876 + $0x8] sm:$0xf]
        %v880 = vld [vmem:[%s876 + $0xc] sm:$0xf]
        %v881 = vld [vmem:[%s876 + $0x10] sm:$0xf]
        %v882 = vld [vmem:[%s876 + $0x14] sm:$0xf]
        %v883 = vld [vmem:[%s876 + $0x18] sm:$0xf]
        %v884 = vld [vmem:[%s876 + $0x1c] sm:$0xf]
        %s885 = scalar_lea.vmem %s9, 2
        %v886 = vld [vmem:[%s885] sm:$0x1]
        %v888 = vperm.slane %v886, 0
        %v898 = vunpack.c.l.b16 %v877
        %v899 = vunpack.c.l.b16 %v878
        %v900 = vunpack.c.l.b16 %v879
        %v901 = vunpack.c.l.b16 %v880
        %v902 = vunpack.c.l.b16 %v881
        %v903 = vunpack.c.l.b16 %v882
        %v904 = vunpack.c.l.b16 %v883
        %v905 = vunpack.c.l.b16 %v884
        %v906 = vpack.c.b16 %v899, %v898
        %v907 = vpack.c.b16 %v901, %v900
        %v908 = vpack.c.b16 %v903, %v902
        %v909 = vpack.c.b16 %v905, %v904
        %914 = vmatpush.bf16.msra.mxu0 0
        %915 = vmatpush.bf16.msra.mxu0 0
        %916 = vmatpush.bf16.msra.mxu0 0
        %917 = vmatpush.bf16.msra.mxu0 0
        %918 = vmatpush.bf16.msra.mxu0 %v909
        %919 = vmatpush.bf16.msra.mxu0 %v908
        %920 = vmatpush.bf16.msra.mxu0 %v907
        %921 = vmatpush.bf16.msra.mxu0 %v906
        %922 = vmatmul.bf16.gmra.mxu0 %v685
        %v923 = vpop.f32.mrf.mxu0
        %v924 = vadd.f32 %v888, %v923
        %v925 = vpop.f32.mrf.mxu0
        %v926 = vadd.f32 %v888, %v925
        %927 = vdwg.mxu0
        %v928 = vpack.c.bf16 %v872, %v872
        %v929 = vpack.c.bf16 %v874, %v874
        %s930 = scalar_lea.vmem [#allocation2], 16
        %931 = vst.msk [vmem:[%s930] sm:$0xf] %vm703, %v928
        %932 = vst.msk [vmem:[%s930 + $0x4] sm:$0xf] %vm703, %v929
        %v933 = vpack.c.bf16 %v924, %v924
        %v934 = vpack.c.bf16 %v926, %v926
        %s935 = scalar_lea.vmem [#allocation3], 16
        %936 = vst.msk [vmem:[%s935] sm:$0xf] %vm703, %v933
        %937 = vst.msk [vmem:[%s935 + $0x4] sm:$0xf] %vm703, %v934
        %s938 = scalar_lea.vmem %s5, 96
        %v939 = vld [vmem:[%s938] sm:$0xf]
        %v940 = vld [vmem:[%s938 + $0x4] sm:$0xf]
        %v941 = vld [vmem:[%s938 + $0x8] sm:$0xf]
        %v942 = vld [vmem:[%s938 + $0xc] sm:$0xf]
        %v943 = vld [vmem:[%s938 + $0x10] sm:$0xf]
        %v944 = vld [vmem:[%s938 + $0x14] sm:$0xf]
        %v945 = vld [vmem:[%s938 + $0x18] sm:$0xf]
        %v946 = vld [vmem:[%s938 + $0x1c] sm:$0xf]
        %s947 = scalar_lea.vmem %s8, 3
        %v948 = vld [vmem:[%s947] sm:$0x1]
        %v950 = vperm.slane %v948, 0
        %v960 = vunpack.c.l.b16 %v939
        %v961 = vunpack.c.l.b16 %v940
        %v962 = vunpack.c.l.b16 %v941
        %v963 = vunpack.c.l.b16 %v942
        %v964 = vunpack.c.l.b16 %v943
        %v965 = vunpack.c.l.b16 %v944
        %v966 = vunpack.c.l.b16 %v945
        %v967 = vunpack.c.l.b16 %v946
        %v968 = vpack.c.b16 %v961, %v960
        %v969 = vpack.c.b16 %v963, %v962
        %v970 = vpack.c.b16 %v965, %v964
        %v971 = vpack.c.b16 %v967, %v966
        %976 = vmatpush.bf16.msra.mxu0 0
        %977 = vmatpush.bf16.msra.mxu0 0
        %978 = vmatpush.bf16.msra.mxu0 0
        %979 = vmatpush.bf16.msra.mxu0 0
        %980 = vmatpush.bf16.msra.mxu0 %v971
        %981 = vmatpush.bf16.msra.mxu0 %v970
        %982 = vmatpush.bf16.msra.mxu0 %v969
        %983 = vmatpush.bf16.msra.mxu0 %v968
        %984 = vmatmul.bf16.gmra.mxu0 %v632
        %v985 = vpop.f32.mrf.mxu0
        %v986 = vadd.f32 %v950, %v985
        %v987 = vpop.f32.mrf.mxu0
        %v988 = vadd.f32 %v950, %v987
        %989 = vdwg.mxu0
        %s990 = scalar_lea.vmem %s6, 96
        %v991 = vld [vmem:[%s990] sm:$0xf]
        %v992 = vld [vmem:[%s990 + $0x4] sm:$0xf]
        %v993 = vld [vmem:[%s990 + $0x8] sm:$0xf]
        %v994 = vld [vmem:[%s990 + $0xc] sm:$0xf]
        %v995 = vld [vmem:[%s990 + $0x10] sm:$0xf]
        %v996 = vld [vmem:[%s990 + $0x14] sm:$0xf]
        %v997 = vld [vmem:[%s990 + $0x18] sm:$0xf]
        %v998 = vld [vmem:[%s990 + $0x1c] sm:$0xf]
        %s999 = scalar_lea.vmem %s9, 3
        %v1000 = vld [vmem:[%s999] sm:$0x1]
        %v1002 = vperm.slane %v1000, 0
        %v1012 = vunpack.c.l.b16 %v991
        %v1013 = vunpack.c.l.b16 %v992
        %v1014 = vunpack.c.l.b16 %v993
        %v1015 = vunpack.c.l.b16 %v994
        %v1016 = vunpack.c.l.b16 %v995
        %v1017 = vunpack.c.l.b16 %v996
        %v1018 = vunpack.c.l.b16 %v997
        %v1019 = vunpack.c.l.b16 %v998
        %v1020 = vpack.c.b16 %v1013, %v1012
        %v1021 = vpack.c.b16 %v1015, %v1014
        %v1022 = vpack.c.b16 %v1017, %v1016
        %v1023 = vpack.c.b16 %v1019, %v1018
        %1028 = vmatpush.bf16.msra.mxu0 0
        %1029 = vmatpush.bf16.msra.mxu0 0
        %1030 = vmatpush.bf16.msra.mxu0 0
        %1031 = vmatpush.bf16.msra.mxu0 0
        %1032 = vmatpush.bf16.msra.mxu0 %v1023
        %1033 = vmatpush.bf16.msra.mxu0 %v1022
        %1034 = vmatpush.bf16.msra.mxu0 %v1021
        %1035 = vmatpush.bf16.msra.mxu0 %v1020
        %1036 = vmatmul.bf16.gmra.mxu0 %v685
        %v1037 = vpop.f32.mrf.mxu0
        %v1038 = vadd.f32 %v1002, %v1037
        %v1039 = vpop.f32.mrf.mxu0
        %v1040 = vadd.f32 %v1002, %v1039
        %1041 = vdwg.mxu0
        %v1042 = vpack.c.bf16 %v986, %v986
        %v1043 = vpack.c.bf16 %v988, %v988
        %s1044 = scalar_lea.vmem [#allocation2], 24
        %1045 = vst.msk [vmem:[%s1044] sm:$0xf] %vm703, %v1042
        %1046 = vst.msk [vmem:[%s1044 + $0x4] sm:$0xf] %vm703, %v1043
        %v1047 = vpack.c.bf16 %v1038, %v1038
        %v1048 = vpack.c.bf16 %v1040, %v1040
        %s1049 = scalar_lea.vmem [#allocation3], 24
        %1050 = vst.msk [vmem:[%s1049] sm:$0xf] %vm703, %v1047
        %1051 = vst.msk [vmem:[%s1049 + $0x4] sm:$0xf] %vm703, %v1048
      $region80: #{transformer_forward.22} parent=75 // pred_fallthru
        _
      %v1052 = vld [vmem:[%s551] sm:$0xff]
      %v1053 = vld [vmem:[%s551 + $0x8] sm:$0xff]
      %v1054 = vld [vmem:[%s561] sm:$0xff]
      %v1055 = vld [vmem:[%s561 + $0x8] sm:$0xff]
      %v1056 = vadd.f32 %v1052, %v1054
      %v1057 = vadd.f32 %v1053, %v1055
      %v1058 = vpack.c.bf16 %v1057, %v1056
      %v1059 = vld [vmem:[%s4] sm:$0xf]
      %v1060 = vld [vmem:[%s4 + $0x4] sm:$0xf]
      %v1061 = vld [vmem:[%s4 + $0x8] sm:$0xf]
      %v1062 = vld [vmem:[%s4 + $0xc] sm:$0xf]
      %v1063 = vld [vmem:[%s4 + $0x10] sm:$0xf]
      %v1064 = vld [vmem:[%s4 + $0x14] sm:$0xf]
      %v1065 = vld [vmem:[%s4 + $0x18] sm:$0xf]
      %v1066 = vld [vmem:[%s4 + $0x1c] sm:$0xf]
      %v1067 = vld [vmem:[%s7] sm:$0x1]
      %v1069 = vperm.slane %v1067, 0
      %v1079 = vunpack.c.l.b16 %v1059
      %v1080 = vunpack.c.l.b16 %v1060
      %v1081 = vunpack.c.l.b16 %v1061
      %v1082 = vunpack.c.l.b16 %v1062
      %v1083 = vunpack.c.l.b16 %v1063
      %v1084 = vunpack.c.l.b16 %v1064
      %v1085 = vunpack.c.l.b16 %v1065
      %v1086 = vunpack.c.l.b16 %v1066
      %v1087 = vpack.c.b16 %v1080, %v1079
      %v1088 = vpack.c.b16 %v1082, %v1081
      %v1089 = vpack.c.b16 %v1084, %v1083
      %v1090 = vpack.c.b16 %v1086, %v1085
      %vm1095 = vcmask 523264
      %v1097 = vsel %vm1095, %v1058, 0
      %1099 = vmatpush.bf16.msra.mxu0 0
      %1100 = vmatpush.bf16.msra.mxu0 0
      %1101 = vmatpush.bf16.msra.mxu0 0
      %1102 = vmatpush.bf16.msra.mxu0 0
      %1103 = vmatpush.bf16.msra.mxu0 %v1090
      %1104 = vmatpush.bf16.msra.mxu0 %v1089
      %1105 = vmatpush.bf16.msra.mxu0 %v1088
      %1106 = vmatpush.bf16.msra.mxu0 %v1087
      %1107 = vmatmul.bf16.gmra.mxu0 %v1097
      %v1108 = vpop.f32.mrf.mxu0
      %v1109 = vadd.f32 %v1069, %v1108
      %v1110 = vpop.f32.mrf.mxu0
      %v1111 = vadd.f32 %v1069, %v1110
      %1112 = vdwg.mxu0
      %v1113 = vld [vmem:[#allocation2] sm:$0xf]
      %v1114 = vld [vmem:[#allocation2 + $0x4] sm:$0xf]
      %v1115 = vpack.c.bf16 %v1111, %v1109
      %v1118 = vunpack.c.l.b16 %v1113
      %v1119 = vunpack.c.l.b16 %v1114
      %v1120 = vpack.c.b16 %v1119, %v1118
      %vm1121 = vcmask 130048
      %v1123 = vsel %vm1121, %v1115, 0
      %v1126 = vsel %vm1121, %v1120, 0
      %1128 = vmatpush.bf16.xpose.msra.mxu0 0
      %1129 = vmatpush.bf16.xpose.msra.mxu0 0
      %1130 = vmatpush.bf16.xpose.msra.mxu0 0
      %1131 = vmatpush.bf16.xpose.msra.mxu0 0
      %1132 = vmatpush.bf16.xpose.msra.mxu0 0
      %1133 = vmatpush.bf16.xpose.msra.mxu0 0
      %1134 = vmatpush.bf16.xpose.msra.mxu0 0
      %1135 = vmatpush.bf16.xpose.msra.mxu0 %v1126
      %1136 = vmatmul.bf16.gmra.mxu0 %v1123
      %v1137 = vpop.f32.mrf.mxu0
      %v1138 = vadd.f32 0.0, %v1137
      %v1139 = vpop.f32.mrf.mxu0
      %v1140 = vadd.f32 0.0, %v1139
      %1141 = vdwg.mxu0
      %v1142 = vmul.f32 %v1138, 0.25
      %v1143 = vmul.f32 %v1140, 0.25
      %v1144 = vsel %vm1121, %v1142, -inf
      %1145 = vmax.xlane.f32.xlu0 %v1144
      %v1146 = vpop.xlane.xlu0 %1145
      %v1147 = vsel %vm1121, %v1143, -inf
      %1148 = vmax.xlane.f32.xlu0 %v1147
      %v1149 = vpop.xlane.xlu0 %1148
      %v1150 = vsub.f32 %v1142, %v1146
      %v1151 = vsub.f32 %v1143, %v1149
      %v1152 = vmul.f32 %v1150, 1.442695
      %v1153 = vpow.pop %v1152
      %v1154 = vmul.f32 %v1151, 1.442695
      %v1155 = vpow.pop %v1154
      %v1156 = vsel %vm1121, %v1153, 0.0
      %1157 = vadd.xlane.f32.xlu0 %v1156
      %v1158 = vpop.xlane.xlu0 %1157
      %v1159 = vsel %vm1121, %v1155, 0.0
      %1160 = vadd.xlane.f32.xlu0 %v1159
      %v1161 = vpop.xlane.xlu0 %1160
      %v1162 = vrcp.pop %v1158
      %v1163 = vmul.f32 %v1158, %v1162
      %v1164 = vsub.f32 1.0, %v1163
      %v1165 = vmul.f32 %v1162, %v1164
      %v1166 = vadd.f32 %v1162, %v1165
      %vm1167 = vweird.f32 %v1158
      %vm1168 = vweird.f32 %v1162
      %vm1169 = vmor %vm1167, %vm1168
      %v1170 = vsel %vm1169, %v1162, %v1166
      %v1171 = vand.u32 2147483647, %v1158
      %vm1172 = vcmp.eq.f32.partialorder %v1171, 8.507059e+37
      %v1173 = vand.u32 %v1158, 2147483648
      %v1174 = vor.u32 1.1754944e-38, %v1173
      %v1175 = vsel %vm1172, %v1174, %v1170
      %v1176 = vmul.f32 %v1153, %v1175
      %v1177 = vrcp.pop %v1161
      %v1178 = vmul.f32 %v1161, %v1177
      %v1179 = vsub.f32 1.0, %v1178
      %v1180 = vmul.f32 %v1177, %v1179
      %v1181 = vadd.f32 %v1177, %v1180
      %vm1182 = vweird.f32 %v1161
      %vm1183 = vweird.f32 %v1177
      %vm1184 = vmor %vm1182, %vm1183
      %v1185 = vsel %vm1184, %v1177, %v1181
      %v1186 = vand.u32 2147483647, %v1161
      %vm1187 = vcmp.eq.f32.partialorder %v1186, 8.507059e+37
      %v1188 = vand.u32 %v1161, 2147483648
      %v1189 = vor.u32 1.1754944e-38, %v1188
      %v1190 = vsel %vm1187, %v1189, %v1185
      %v1191 = vmul.f32 %v1155, %v1190
      %v1192 = vpack.c.bf16 %v1191, %v1176
      %v1193 = vld [vmem:[#allocation3] sm:$0xf]
      %v1194 = vld [vmem:[#allocation3 + $0x4] sm:$0xf]
      %v1197 = vunpack.c.l.b16 %v1193
      %v1198 = vunpack.c.l.b16 %v1194
      %v1199 = vpack.c.b16 %v1198, %v1197
      %v1202 = vsel %vm1121, %v1192, 0
      %1204 = vmatpush.bf16.msra.mxu0 0
      %1205 = vmatpush.bf16.msra.mxu0 0
      %1206 = vmatpush.bf16.msra.mxu0 0
      %1207 = vmatpush.bf16.msra.mxu0 0
      %1208 = vmatpush.bf16.msra.mxu0 0
      %1209 = vmatpush.bf16.msra.mxu0 0
      %1210 = vmatpush.bf16.msra.mxu0 0
      %1211 = vmatpush.bf16.msra.mxu0 %v1199
      %1212 = vmatmul.bf16.gmra.mxu0 %v1202
      %v1213 = vpop.f32.mrf.mxu0
      %v1214 = vadd.f32 0.0, %v1213
      %v1215 = vpop.f32.mrf.mxu0
      %v1216 = vadd.f32 0.0, %v1215
      %1217 = vdwg.mxu0
      %v1218 = vpack.c.bf16 %v1216, %v1214
      %v1219 = vld [vmem:[%s10] sm:$0xf]
      %v1220 = vld [vmem:[%s10 + $0x4] sm:$0xf]
      %s1221 = scalar_lea.vmem %s4, 32
      %v1222 = vld [vmem:[%s1221] sm:$0xf]
      %v1223 = vld [vmem:[%s1221 + $0x4] sm:$0xf]
      %v1224 = vld [vmem:[%s1221 + $0x8] sm:$0xf]
      %v1225 = vld [vmem:[%s1221 + $0xc] sm:$0xf]
      %v1226 = vld [vmem:[%s1221 + $0x10] sm:$0xf]
      %v1227 = vld [vmem:[%s1221 + $0x14] sm:$0xf]
      %v1228 = vld [vmem:[%s1221 + $0x18] sm:$0xf]
      %v1229 = vld [vmem:[%s1221 + $0x1c] sm:$0xf]
      %s1230 = scalar_lea.vmem %s7, 1
      %v1231 = vld [vmem:[%s1230] sm:$0x1]
      %v1233 = vperm.slane %v1231, 0
      %v1243 = vunpack.c.l.b16 %v1222
      %v1244 = vunpack.c.l.b16 %v1223
      %v1245 = vunpack.c.l.b16 %v1224
      %v1246 = vunpack.c.l.b16 %v1225
      %v1247 = vunpack.c.l.b16 %v1226
      %v1248 = vunpack.c.l.b16 %v1227
      %v1249 = vunpack.c.l.b16 %v1228
      %v1250 = vunpack.c.l.b16 %v1229
      %v1251 = vpack.c.b16 %v1244, %v1243
      %v1252 = vpack.c.b16 %v1246, %v1245
      %v1253 = vpack.c.b16 %v1248, %v1247
      %v1254 = vpack.c.b16 %v1250, %v1249
      %1259 = vmatpush.bf16.msra.mxu0 0
      %1260 = vmatpush.bf16.msra.mxu0 0
      %1261 = vmatpush.bf16.msra.mxu0 0
      %1262 = vmatpush.bf16.msra.mxu0 0
      %1263 = vmatpush.bf16.msra.mxu0 %v1254
      %1264 = vmatpush.bf16.msra.mxu0 %v1253
      %1265 = vmatpush.bf16.msra.mxu0 %v1252
      %1266 = vmatpush.bf16.msra.mxu0 %v1251
      %1267 = vmatmul.bf16.gmra.mxu0 %v1097
      %v1268 = vpop.f32.mrf.mxu0
      %v1269 = vadd.f32 %v1233, %v1268
      %v1270 = vpop.f32.mrf.mxu0
      %v1271 = vadd.f32 %v1233, %v1270
      %1272 = vdwg.mxu0
      %s1273 = scalar_lea.vmem [#allocation2], 8
      %v1274 = vld [vmem:[%s1273] sm:$0xf]
      %v1275 = vld [vmem:[%s1273 + $0x4] sm:$0xf]
      %v1276 = vpack.c.bf16 %v1271, %v1269
      %v1279 = vunpack.c.l.b16 %v1274
      %v1280 = vunpack.c.l.b16 %v1275
      %v1281 = vpack.c.b16 %v1280, %v1279
      %v1283 = vsel %vm1121, %v1276, 0
      %v1286 = vsel %vm1121, %v1281, 0
      %1288 = vmatpush.bf16.xpose.msra.mxu0 0
      %1289 = vmatpush.bf16.xpose.msra.mxu0 0
      %1290 = vmatpush.bf16.xpose.msra.mxu0 0
      %1291 = vmatpush.bf16.xpose.msra.mxu0 0
      %1292 = vmatpush.bf16.xpose.msra.mxu0 0
      %1293 = vmatpush.bf16.xpose.msra.mxu0 0
      %1294 = vmatpush.bf16.xpose.msra.mxu0 0
      %1295 = vmatpush.bf16.xpose.msra.mxu0 %v1286
      %1296 = vmatmul.bf16.gmra.mxu0 %v1283
      %v1297 = vpop.f32.mrf.mxu0
      %v1298 = vadd.f32 0.0, %v1297
      %v1299 = vpop.f32.mrf.mxu0
      %v1300 = vadd.f32 0.0, %v1299
      %1301 = vdwg.mxu0
      %v1302 = vmul.f32 %v1298, 0.25
      %v1303 = vmul.f32 %v1300, 0.25
      %v1304 = vsel %vm1121, %v1302, -inf
      %1305 = vmax.xlane.f32.xlu0 %v1304
      %v1306 = vpop.xlane.xlu0 %1305
      %v1307 = vsel %vm1121, %v1303, -inf
      %1308 = vmax.xlane.f32.xlu0 %v1307
      %v1309 = vpop.xlane.xlu0 %1308
      %v1310 = vsub.f32 %v1302, %v1306
      %v1311 = vsub.f32 %v1303, %v1309
      %v1312 = vmul.f32 %v1310, 1.442695
      %v1313 = vpow.pop %v1312
      %v1314 = vmul.f32 %v1311, 1.442695
      %v1315 = vpow.pop %v1314
      %v1316 = vsel %vm1121, %v1313, 0.0
      %1317 = vadd.xlane.f32.xlu0 %v1316
      %v1318 = vpop.xlane.xlu0 %1317
      %v1319 = vsel %vm1121, %v1315, 0.0
      %1320 = vadd.xlane.f32.xlu0 %v1319
      %v1321 = vpop.xlane.xlu0 %1320
      %v1322 = vrcp.pop %v1318
      %v1323 = vmul.f32 %v1318, %v1322
      %v1324 = vsub.f32 1.0, %v1323
      %v1325 = vmul.f32 %v1322, %v1324
      %v1326 = vadd.f32 %v1322, %v1325
      %vm1327 = vweird.f32 %v1318
      %vm1328 = vweird.f32 %v1322
      %vm1329 = vmor %vm1327, %vm1328
      %v1330 = vsel %vm1329, %v1322, %v1326
      %v1331 = vand.u32 2147483647, %v1318
      %vm1332 = vcmp.eq.f32.partialorder %v1331, 8.507059e+37
      %v1333 = vand.u32 %v1318, 2147483648
      %v1334 = vor.u32 1.1754944e-38, %v1333
      %v1335 = vsel %vm1332, %v1334, %v1330
      %v1336 = vmul.f32 %v1313, %v1335
      %v1337 = vrcp.pop %v1321
      %v1338 = vmul.f32 %v1321, %v1337
      %v1339 = vsub.f32 1.0, %v1338
      %v1340 = vmul.f32 %v1337, %v1339
      %v1341 = vadd.f32 %v1337, %v1340
      %vm1342 = vweird.f32 %v1321
      %vm1343 = vweird.f32 %v1337
      %vm1344 = vmor %vm1342, %vm1343
      %v1345 = vsel %vm1344, %v1337, %v1341
      %v1346 = vand.u32 2147483647, %v1321
      %vm1347 = vcmp.eq.f32.partialorder %v1346, 8.507059e+37
      %v1348 = vand.u32 %v1321, 2147483648
      %v1349 = vor.u32 1.1754944e-38, %v1348
      %v1350 = vsel %vm1347, %v1349, %v1345
      %v1351 = vmul.f32 %v1315, %v1350
      %v1352 = vpack.c.bf16 %v1351, %v1336
      %s1353 = scalar_lea.vmem [#allocation3], 8
      %v1354 = vld [vmem:[%s1353] sm:$0xf]
      %v1355 = vld [vmem:[%s1353 + $0x4] sm:$0xf]
      %v1358 = vunpack.c.l.b16 %v1354
      %v1359 = vunpack.c.l.b16 %v1355
      %v1360 = vpack.c.b16 %v1359, %v1358
      %v1363 = vsel %vm1121, %v1352, 0
      %1365 = vmatpush.bf16.msra.mxu0 0
      %1366 = vmatpush.bf16.msra.mxu0 0
      %1367 = vmatpush.bf16.msra.mxu0 0
      %1368 = vmatpush.bf16.msra.mxu0 0
      %1369 = vmatpush.bf16.msra.mxu0 0
      %1370 = vmatpush.bf16.msra.mxu0 0
      %1371 = vmatpush.bf16.msra.mxu0 0
      %1372 = vmatpush.bf16.msra.mxu0 %v1360
      %1373 = vmatmul.bf16.gmra.mxu0 %v1363
      %v1374 = vpop.f32.mrf.mxu0
      %v1375 = vadd.f32 0.0, %v1374
      %v1376 = vpop.f32.mrf.mxu0
      %v1377 = vadd.f32 0.0, %v1376
      %1378 = vdwg.mxu0
      %v1379 = vpack.c.bf16 %v1377, %v1375
      %v1380 = vld [vmem:[%s10 + $0x8] sm:$0xf]
      %v1381 = vld [vmem:[%s10 + $0xc] sm:$0xf]
      %v1384 = vunpack.c.l.b16 %v1380
      %v1385 = vunpack.c.l.b16 %v1381
      %v1386 = vpack.c.b16 %v1385, %v1384
      %v1389 = vsel %vm1121, %v1379, 0
      %1391 = vmatpush.bf16.msra.mxu0 0
      %1392 = vmatpush.bf16.msra.mxu0 0
      %1393 = vmatpush.bf16.msra.mxu0 0
      %1394 = vmatpush.bf16.msra.mxu0 0
      %1395 = vmatpush.bf16.msra.mxu0 0
      %1396 = vmatpush.bf16.msra.mxu0 0
      %1397 = vmatpush.bf16.msra.mxu0 0
      %1398 = vmatpush.bf16.msra.mxu0 %v1386
      %1399 = vmatmul.bf16.gmra.mxu0 %v1389
      %v1400 = vpop.f32.mrf.mxu0
      %v1401 = vadd.f32 0.0, %v1400
      %v1402 = vpop.f32.mrf.mxu0
      %v1403 = vadd.f32 0.0, %v1402
      %1404 = vdwg.mxu0
      %v1407 = vunpack.c.l.b16 %v1219
      %v1408 = vunpack.c.l.b16 %v1220
      %v1409 = vpack.c.b16 %v1408, %v1407
      %v1412 = vsel %vm1121, %v1218, 0
      %1414 = vmatpush.bf16.msra.mxu0 0
      %1415 = vmatpush.bf16.msra.mxu0 0
      %1416 = vmatpush.bf16.msra.mxu0 0
      %1417 = vmatpush.bf16.msra.mxu0 0
      %1418 = vmatpush.bf16.msra.mxu0 0
      %1419 = vmatpush.bf16.msra.mxu0 0
      %1420 = vmatpush.bf16.msra.mxu0 0
      %1421 = vmatpush.bf16.msra.mxu0 %v1409
      %1422 = vmatmul.bf16.gmra.mxu0 %v1412
      %v1423 = vpop.f32.mrf.mxu0
      %v1424 = vadd.f32 %v1401, %v1423
      %v1425 = vpop.f32.mrf.mxu0
      %v1426 = vadd.f32 %v1403, %v1425
      %1427 = vdwg.mxu0
      %s1428 = scalar_lea.vmem %s4, 64
      %v1429 = vld [vmem:[%s1428] sm:$0xf]
      %v1430 = vld [vmem:[%s1428 + $0x4] sm:$0xf]
      %v1431 = vld [vmem:[%s1428 + $0x8] sm:$0xf]
      %v1432 = vld [vmem:[%s1428 + $0xc] sm:$0xf]
      %v1433 = vld [vmem:[%s1428 + $0x10] sm:$0xf]
      %v1434 = vld [vmem:[%s1428 + $0x14] sm:$0xf]
      %v1435 = vld [vmem:[%s1428 + $0x18] sm:$0xf]
      %v1436 = vld [vmem:[%s1428 + $0x1c] sm:$0xf]
      %s1437 = scalar_lea.vmem %s7, 2
      %v1438 = vld [vmem:[%s1437] sm:$0x1]
      %v1440 = vperm.slane %v1438, 0
      %v1450 = vunpack.c.l.b16 %v1429
      %v1451 = vunpack.c.l.b16 %v1430
      %v1452 = vunpack.c.l.b16 %v1431
      %v1453 = vunpack.c.l.b16 %v1432
      %v1454 = vunpack.c.l.b16 %v1433
      %v1455 = vunpack.c.l.b16 %v1434
      %v1456 = vunpack.c.l.b16 %v1435
      %v1457 = vunpack.c.l.b16 %v1436
      %v1458 = vpack.c.b16 %v1451, %v1450
      %v1459 = vpack.c.b16 %v1453, %v1452
      %v1460 = vpack.c.b16 %v1455, %v1454
      %v1461 = vpack.c.b16 %v1457, %v1456
      %1466 = vmatpush.bf16.msra.mxu0 0
      %1467 = vmatpush.bf16.msra.mxu0 0
      %1468 = vmatpush.bf16.msra.mxu0 0
      %1469 = vmatpush.bf16.msra.mxu0 0
      %1470 = vmatpush.bf16.msra.mxu0 %v1461
      %1471 = vmatpush.bf16.msra.mxu0 %v1460
      %1472 = vmatpush.bf16.msra.mxu0 %v1459
      %1473 = vmatpush.bf16.msra.mxu0 %v1458
      %1474 = vmatmul.bf16.gmra.mxu0 %v1097
      %v1475 = vpop.f32.mrf.mxu0
      %v1476 = vadd.f32 %v1440, %v1475
      %v1477 = vpop.f32.mrf.mxu0
      %v1478 = vadd.f32 %v1440, %v1477
      %1479 = vdwg.mxu0
      %s1480 = scalar_lea.vmem [#allocation2], 16
      %v1481 = vld [vmem:[%s1480] sm:$0xf]
      %v1482 = vld [vmem:[%s1480 + $0x4] sm:$0xf]
      %v1483 = vpack.c.bf16 %v1478, %v1476
      %v1486 = vunpack.c.l.b16 %v1481
      %v1487 = vunpack.c.l.b16 %v1482
      %v1488 = vpack.c.b16 %v1487, %v1486
      %v1490 = vsel %vm1121, %v1483, 0
      %v1493 = vsel %vm1121, %v1488, 0
      %1495 = vmatpush.bf16.xpose.msra.mxu0 0
      %1496 = vmatpush.bf16.xpose.msra.mxu0 0
      %1497 = vmatpush.bf16.xpose.msra.mxu0 0
      %1498 = vmatpush.bf16.xpose.msra.mxu0 0
      %1499 = vmatpush.bf16.xpose.msra.mxu0 0
      %1500 = vmatpush.bf16.xpose.msra.mxu0 0
      %1501 = vmatpush.bf16.xpose.msra.mxu0 0
      %1502 = vmatpush.bf16.xpose.msra.mxu0 %v1493
      %1503 = vmatmul.bf16.gmra.mxu0 %v1490
      %v1504 = vpop.f32.mrf.mxu0
      %v1505 = vadd.f32 0.0, %v1504
      %v1506 = vpop.f32.mrf.mxu0
      %v1507 = vadd.f32 0.0, %v1506
      %1508 = vdwg.mxu0
      %v1509 = vmul.f32 %v1505, 0.25
      %v1510 = vmul.f32 %v1507, 0.25
      %v1511 = vsel %vm1121, %v1509, -inf
      %1512 = vmax.xlane.f32.xlu0 %v1511
      %v1513 = vpop.xlane.xlu0 %1512
      %v1514 = vsel %vm1121, %v1510, -inf
      %1515 = vmax.xlane.f32.xlu0 %v1514
      %v1516 = vpop.xlane.xlu0 %1515
      %v1517 = vsub.f32 %v1509, %v1513
      %v1518 = vsub.f32 %v1510, %v1516
      %v1519 = vmul.f32 %v1517, 1.442695
      %v1520 = vpow.pop %v1519
      %v1521 = vmul.f32 %v1518, 1.442695
      %v1522 = vpow.pop %v1521
      %v1523 = vsel %vm1121, %v1520, 0.0
      %1524 = vadd.xlane.f32.xlu0 %v1523
      %v1525 = vpop.xlane.xlu0 %1524
      %v1526 = vsel %vm1121, %v1522, 0.0
      %1527 = vadd.xlane.f32.xlu0 %v1526
      %v1528 = vpop.xlane.xlu0 %1527
      %v1529 = vrcp.pop %v1525
      %v1530 = vmul.f32 %v1525, %v1529
      %v1531 = vsub.f32 1.0, %v1530
      %v1532 = vmul.f32 %v1529, %v1531
      %v1533 = vadd.f32 %v1529, %v1532
      %vm1534 = vweird.f32 %v1525
      %vm1535 = vweird.f32 %v1529
      %vm1536 = vmor %vm1534, %vm1535
      %v1537 = vsel %vm1536, %v1529, %v1533
      %v1538 = vand.u32 2147483647, %v1525
      %vm1539 = vcmp.eq.f32.partialorder %v1538, 8.507059e+37
      %v1540 = vand.u32 %v1525, 2147483648
      %v1541 = vor.u32 1.1754944e-38, %v1540
      %v1542 = vsel %vm1539, %v1541, %v1537
      %v1543 = vmul.f32 %v1520, %v1542
      %v1544 = vrcp.pop %v1528
      %v1545 = vmul.f32 %v1528, %v1544
      %v1546 = vsub.f32 1.0, %v1545
      %v1547 = vmul.f32 %v1544, %v1546
      %v1548 = vadd.f32 %v1544, %v1547
      %vm1549 = vweird.f32 %v1528
      %vm1550 = vweird.f32 %v1544
      %vm1551 = vmor %vm1549, %vm1550
      %v1552 = vsel %vm1551, %v1544, %v1548
      %v1553 = vand.u32 2147483647, %v1528
      %vm1554 = vcmp.eq.f32.partialorder %v1553, 8.507059e+37
      %v1555 = vand.u32 %v1528, 2147483648
      %v1556 = vor.u32 1.1754944e-38, %v1555
      %v1557 = vsel %vm1554, %v1556, %v1552
      %v1558 = vmul.f32 %v1522, %v1557
      %v1559 = vpack.c.bf16 %v1558, %v1543
      %s1560 = scalar_lea.vmem [#allocation3], 16
      %v1561 = vld [vmem:[%s1560] sm:$0xf]
      %v1562 = vld [vmem:[%s1560 + $0x4] sm:$0xf]
      %v1565 = vunpack.c.l.b16 %v1561
      %v1566 = vunpack.c.l.b16 %v1562
      %v1567 = vpack.c.b16 %v1566, %v1565
      %v1570 = vsel %vm1121, %v1559, 0
      %1572 = vmatpush.bf16.msra.mxu0 0
      %1573 = vmatpush.bf16.msra.mxu0 0
      %1574 = vmatpush.bf16.msra.mxu0 0
      %1575 = vmatpush.bf16.msra.mxu0 0
      %1576 = vmatpush.bf16.msra.mxu0 0
      %1577 = vmatpush.bf16.msra.mxu0 0
      %1578 = vmatpush.bf16.msra.mxu0 0
      %1579 = vmatpush.bf16.msra.mxu0 %v1567
      %1580 = vmatmul.bf16.gmra.mxu0 %v1570
      %v1581 = vpop.f32.mrf.mxu0
      %v1582 = vadd.f32 0.0, %v1581
      %v1583 = vpop.f32.mrf.mxu0
      %v1584 = vadd.f32 0.0, %v1583
      %1585 = vdwg.mxu0
      %v1586 = vpack.c.bf16 %v1584, %v1582
      %v1587 = vld [vmem:[%s10 + $0x10] sm:$0xf]
      %v1588 = vld [vmem:[%s10 + $0x14] sm:$0xf]
      %v1591 = vunpack.c.l.b16 %v1587
      %v1592 = vunpack.c.l.b16 %v1588
      %v1593 = vpack.c.b16 %v1592, %v1591
      %v1596 = vsel %vm1121, %v1586, 0
      %1598 = vmatpush.bf16.msra.mxu0 0
      %1599 = vmatpush.bf16.msra.mxu0 0
      %1600 = vmatpush.bf16.msra.mxu0 0
      %1601 = vmatpush.bf16.msra.mxu0 0
      %1602 = vmatpush.bf16.msra.mxu0 0
      %1603 = vmatpush.bf16.msra.mxu0 0
      %1604 = vmatpush.bf16.msra.mxu0 0
      %1605 = vmatpush.bf16.msra.mxu0 %v1593
      %1606 = vmatmul.bf16.gmra.mxu0 %v1596
      %v1607 = vpop.f32.mrf.mxu0
      %v1608 = vadd.f32 0.0, %v1607
      %v1609 = vpop.f32.mrf.mxu0
      %v1610 = vadd.f32 0.0, %v1609
      %1611 = vdwg.mxu0
      %v1612 = vadd.f32 %v1424, %v1608
      %v1613 = vadd.f32 %v1426, %v1610
      %s1614 = scalar_lea.vmem %s4, 96
      %v1615 = vld [vmem:[%s1614] sm:$0xf]
      %v1616 = vld [vmem:[%s1614 + $0x4] sm:$0xf]
      %v1617 = vld [vmem:[%s1614 + $0x8] sm:$0xf]
      %v1618 = vld [vmem:[%s1614 + $0xc] sm:$0xf]
      %v1619 = vld [vmem:[%s1614 + $0x10] sm:$0xf]
      %v1620 = vld [vmem:[%s1614 + $0x14] sm:$0xf]
      %v1621 = vld [vmem:[%s1614 + $0x18] sm:$0xf]
      %v1622 = vld [vmem:[%s1614 + $0x1c] sm:$0xf]
      %s1623 = scalar_lea.vmem %s7, 3
      %v1624 = vld [vmem:[%s1623] sm:$0x1]
      %v1626 = vperm.slane %v1624, 0
      %v1636 = vunpack.c.l.b16 %v1615
      %v1637 = vunpack.c.l.b16 %v1616
      %v1638 = vunpack.c.l.b16 %v1617
      %v1639 = vunpack.c.l.b16 %v1618
      %v1640 = vunpack.c.l.b16 %v1619
      %v1641 = vunpack.c.l.b16 %v1620
      %v1642 = vunpack.c.l.b16 %v1621
      %v1643 = vunpack.c.l.b16 %v1622
      %v1644 = vpack.c.b16 %v1637, %v1636
      %v1645 = vpack.c.b16 %v1639, %v1638
      %v1646 = vpack.c.b16 %v1641, %v1640
      %v1647 = vpack.c.b16 %v1643, %v1642
      %1652 = vmatpush.bf16.msra.mxu0 0
      %1653 = vmatpush.bf16.msra.mxu0 0
      %1654 = vmatpush.bf16.msra.mxu0 0
      %1655 = vmatpush.bf16.msra.mxu0 0
      %1656 = vmatpush.bf16.msra.mxu0 %v1647
      %1657 = vmatpush.bf16.msra.mxu0 %v1646
      %1658 = vmatpush.bf16.msra.mxu0 %v1645
      %1659 = vmatpush.bf16.msra.mxu0 %v1644
      %1660 = vmatmul.bf16.gmra.mxu0 %v1097
      %v1661 = vpop.f32.mrf.mxu0
      %v1662 = vadd.f32 %v1626, %v1661
      %v1663 = vpop.f32.mrf.mxu0
      %v1664 = vadd.f32 %v1626, %v1663
      %1665 = vdwg.mxu0
      %s1666 = scalar_lea.vmem [#allocation2], 24
      %v1667 = vld [vmem:[%s1666] sm:$0xf]
      %v1668 = vld [vmem:[%s1666 + $0x4] sm:$0xf]
      %v1669 = vpack.c.bf16 %v1664, %v1662
      %v1672 = vunpack.c.l.b16 %v1667
      %v1673 = vunpack.c.l.b16 %v1668
      %v1674 = vpack.c.b16 %v1673, %v1672
      %v1676 = vsel %vm1121, %v1669, 0
      %v1679 = vsel %vm1121, %v1674, 0
      %1681 = vmatpush.bf16.xpose.msra.mxu0 0
      %1682 = vmatpush.bf16.xpose.msra.mxu0 0
      %1683 = vmatpush.bf16.xpose.msra.mxu0 0
      %1684 = vmatpush.bf16.xpose.msra.mxu0 0
      %1685 = vmatpush.bf16.xpose.msra.mxu0 0
      %1686 = vmatpush.bf16.xpose.msra.mxu0 0
      %1687 = vmatpush.bf16.xpose.msra.mxu0 0
      %1688 = vmatpush.bf16.xpose.msra.mxu0 %v1679
      %1689 = vmatmul.bf16.gmra.mxu0 %v1676
      %v1690 = vpop.f32.mrf.mxu0
      %v1691 = vadd.f32 0.0, %v1690
      %v1692 = vpop.f32.mrf.mxu0
      %v1693 = vadd.f32 0.0, %v1692
      %1694 = vdwg.mxu0
      %v1695 = vmul.f32 %v1691, 0.25
      %v1696 = vmul.f32 %v1693, 0.25
      %v1697 = vsel %vm1121, %v1695, -inf
      %1698 = vmax.xlane.f32.xlu0 %v1697
      %v1699 = vpop.xlane.xlu0 %1698
      %v1700 = vsel %vm1121, %v1696, -inf
      %1701 = vmax.xlane.f32.xlu0 %v1700
      %v1702 = vpop.xlane.xlu0 %1701
      %v1703 = vsub.f32 %v1695, %v1699
      %v1704 = vsub.f32 %v1696, %v1702
      %v1705 = vmul.f32 %v1703, 1.442695
      %v1706 = vpow.pop %v1705
      %v1707 = vmul.f32 %v1704, 1.442695
      %v1708 = vpow.pop %v1707
      %v1709 = vsel %vm1121, %v1706, 0.0
      %1710 = vadd.xlane.f32.xlu0 %v1709
      %v1711 = vpop.xlane.xlu0 %1710
      %v1712 = vsel %vm1121, %v1708, 0.0
      %1713 = vadd.xlane.f32.xlu0 %v1712
      %v1714 = vpop.xlane.xlu0 %1713
      %v1715 = vrcp.pop %v1711
      %v1716 = vmul.f32 %v1711, %v1715
      %v1717 = vsub.f32 1.0, %v1716
      %v1718 = vmul.f32 %v1715, %v1717
      %v1719 = vadd.f32 %v1715, %v1718
      %vm1720 = vweird.f32 %v1711
      %vm1721 = vweird.f32 %v1715
      %vm1722 = vmor %vm1720, %vm1721
      %v1723 = vsel %vm1722, %v1715, %v1719
      %v1724 = vand.u32 2147483647, %v1711
      %vm1725 = vcmp.eq.f32.partialorder %v1724, 8.507059e+37
      %v1726 = vand.u32 %v1711, 2147483648
      %v1727 = vor.u32 1.1754944e-38, %v1726
      %v1728 = vsel %vm1725, %v1727, %v1723
      %v1729 = vmul.f32 %v1706, %v1728
      %v1730 = vrcp.pop %v1714
      %v1731 = vmul.f32 %v1714, %v1730
      %v1732 = vsub.f32 1.0, %v1731
      %v1733 = vmul.f32 %v1730, %v1732
      %v1734 = vadd.f32 %v1730, %v1733
      %vm1735 = vweird.f32 %v1714
      %vm1736 = vweird.f32 %v1730
      %vm1737 = vmor %vm1735, %vm1736
      %v1738 = vsel %vm1737, %v1730, %v1734
      %v1739 = vand.u32 2147483647, %v1714
      %vm1740 = vcmp.eq.f32.partialorder %v1739, 8.507059e+37
      %v1741 = vand.u32 %v1714, 2147483648
      %v1742 = vor.u32 1.1754944e-38, %v1741
      %v1743 = vsel %vm1740, %v1742, %v1738
      %v1744 = vmul.f32 %v1708, %v1743
      %v1745 = vpack.c.bf16 %v1744, %v1729
      %s1746 = scalar_lea.vmem [#allocation3], 24
      %v1747 = vld [vmem:[%s1746] sm:$0xf]
      %v1748 = vld [vmem:[%s1746 + $0x4] sm:$0xf]
      %v1751 = vunpack.c.l.b16 %v1747
      %v1752 = vunpack.c.l.b16 %v1748
      %v1753 = vpack.c.b16 %v1752, %v1751
      %v1756 = vsel %vm1121, %v1745, 0
      %1758 = vmatpush.bf16.msra.mxu0 0
      %1759 = vmatpush.bf16.msra.mxu0 0
      %1760 = vmatpush.bf16.msra.mxu0 0
      %1761 = vmatpush.bf16.msra.mxu0 0
      %1762 = vmatpush.bf16.msra.mxu0 0
      %1763 = vmatpush.bf16.msra.mxu0 0
      %1764 = vmatpush.bf16.msra.mxu0 0
      %1765 = vmatpush.bf16.msra.mxu0 %v1753
      %1766 = vmatmul.bf16.gmra.mxu0 %v1756
      %v1767 = vpop.f32.mrf.mxu0
      %v1768 = vadd.f32 0.0, %v1767
      %v1769 = vpop.f32.mrf.mxu0
      %v1770 = vadd.f32 0.0, %v1769
      %1771 = vdwg.mxu0
      %v1772 = vpack.c.bf16 %v1770, %v1768
      %v1773 = vld [vmem:[%s10 + $0x18] sm:$0xf]
      %v1774 = vld [vmem:[%s10 + $0x1c] sm:$0xf]
      %v1777 = vunpack.c.l.b16 %v1773
      %v1778 = vunpack.c.l.b16 %v1774
      %v1779 = vpack.c.b16 %v1778, %v1777
      %v1782 = vsel %vm1121, %v1772, 0
      %1784 = vmatpush.bf16.msra.mxu0 0
      %1785 = vmatpush.bf16.msra.mxu0 0
      %1786 = vmatpush.bf16.msra.mxu0 0
      %1787 = vmatpush.bf16.msra.mxu0 0
      %1788 = vmatpush.bf16.msra.mxu0 0
      %1789 = vmatpush.bf16.msra.mxu0 0
      %1790 = vmatpush.bf16.msra.mxu0 0
      %1791 = vmatpush.bf16.msra.mxu0 %v1779
      %1792 = vmatmul.bf16.gmra.mxu0 %v1782
      %v1793 = vpop.f32.mrf.mxu0
      %v1794 = vadd.f32 0.0, %v1793
      %v1795 = vpop.f32.mrf.mxu0
      %v1796 = vadd.f32 0.0, %v1795
      %1797 = vdwg.mxu0
      %v1798 = vadd.f32 %v1612, %v1794
      %v1799 = vadd.f32 %v1613, %v1796
      %v1800 = vld [vmem:[%s11] sm:$0x1]
      %v1802 = vperm.slane %v1800, 0
      %v1804 = vadd.f32 %v1798, %v1802
      %v1805 = vadd.f32 %v1799, %v1802
      %v1806 = vadd.f32 %v1052, %v1804
      %v1807 = vadd.f32 %v1053, %v1805
      %v1808 = vld [vmem:[%s12] sm:$0x1]
      %v1809 = vld [vmem:[%s13] sm:$0x1]
      %v1810 = vsel %vm1095, %v1806, 0.0
      %1811 = vadd.xlane.f32.xlu0 %v1810
      %v1812 = vpop.xlane.xlu0 %1811
      %v1813 = vsel %vm1095, %v1807, 0.0
      %1814 = vadd.xlane.f32.xlu0 %v1813
      %v1815 = vpop.xlane.xlu0 %1814
      %v1816 = vrcp.pop 64.0
      %v1817 = vmul.f32 64.0, %v1816
      %v1818 = vsub.f32 1.0, %v1817
      %v1819 = vmul.f32 %v1816, %v1818
      %v1820 = vadd.f32 %v1816, %v1819
      %vm1821 = vweird.f32 %v1816
      %v1822 = vsel %vm1821, %v1816, %v1820
      %v1823 = vmul.f32 %v1812, %v1822
      %v1824 = vmul.f32 %v1815, %v1822
      %v1825 = vsub.f32 %v1806, %v1823
      %v1826 = vsub.f32 %v1807, %v1824
      %v1827 = vmul.f32 %v1825, %v1825
      %v1828 = vmul.f32 %v1826, %v1826
      %v1829 = vsel %vm1095, %v1827, 0.0
      %1830 = vadd.xlane.f32.xlu0 %v1829
      %v1831 = vpop.xlane.xlu0 %1830
      %v1832 = vsel %vm1095, %v1828, 0.0
      %1833 = vadd.xlane.f32.xlu0 %v1832
      %v1834 = vpop.xlane.xlu0 %1833
      %v1835 = vmul.f32 %v1831, %v1822
      %v1836 = vmul.f32 %v1834, %v1822
      %v1837 = vadd.f32 %v1835, 1e-05
      %v1838 = vadd.f32 %v1836, 1e-05
      %v1839 = vrsqrt.pop %v1837
      %v1840 = vmul.f32 %v1839, %v1837
      %v1841 = vmul.f32 %v1840, %v1839
      %v1842 = vmul.f32 0.5, %v1841
      %v1843 = vsub.f32 1.5, %v1842
      %v1844 = vmul.f32 %v1839, %v1843
      %vm1845 = vweird.f32 %v1837
      %vm1846 = vweird.f32 %v1839
      %vm1847 = vmor %vm1845, %vm1846
      %v1848 = vsel %vm1847, %v1839, %v1844
      %v1849 = vrsqrt.pop %v1838
      %v1850 = vmul.f32 %v1849, %v1838
      %v1851 = vmul.f32 %v1850, %v1849
      %v1852 = vmul.f32 0.5, %v1851
      %v1853 = vsub.f32 1.5, %v1852
      %v1854 = vmul.f32 %v1849, %v1853
      %vm1855 = vweird.f32 %v1838
      %vm1856 = vweird.f32 %v1849
      %vm1857 = vmor %vm1855, %vm1856
      %v1858 = vsel %vm1857, %v1849, %v1854
      %v1859 = vmul.f32 %v1825, %v1848
      %v1860 = vmul.f32 %v1826, %v1858
      %v1862 = vperm.slane %v1808, 0
      %v1864 = vmul.f32 %v1859, %v1862
      %v1865 = vmul.f32 %v1860, %v1862
      %v1867 = vperm.slane %v1809, 0
      %v1869 = vadd.f32 %v1864, %v1867
      %v1870 = vadd.f32 %v1865, %v1867
      %1871 = vst.msk [vmem:[%s581] sm:$0xff] %vm1095, %v1869
      %1872 = vst.msk [vmem:[%s581 + $0x8] sm:$0xff] %vm1095, %v1870
      %s1873 = smul.u32 2, %s30
      %p1874 = scmp.lt.s32.totalorder %s29, 1
      %s1875 = scalar_select %p1874, %s29, 1
      %p1876 = scmp.lt.s32.totalorder %s1873, 1
      %s1877 = scalar_select %p1876, %s1873, 1
      %s1878 = smul.addr %s1875, 2
      %s1879 = sadd.s32 %s1877, %s1878
      %s1880 = smul.addr %s1879, 8
      %s1881 = scalar_lea.vmem %s14, %s1880
      // Predicated region
      $region81: #{transformer_forward.22} parent=75 // pred_check
        %p1882 = pneg %p375
      $region82: #{transformer_forward.22} parent=75 // pred_check_branch
        %1884 = sbr.rel (%p1882) target = $region84
      $region83: #{transformer_forward.22} parent=75 // pred_region
        %s1885 = smul.u32 2, %s30
      $region84: #{transformer_forward.22} parent=75 // pred_fallthru
        _
    $region76: #{transformer_forward.22} parent=5 // pred_fallthru
      _
    %p1886 = scmp.le.s32.totalorder 2, %s20
    // Predicated region
    $region85: #{transformer_forward.22} parent=5 // pred_check
      %p1887 = pneg %p1886
    $region86: #{transformer_forward.22} parent=5 // pred_check_branch
      %1889 = sbr.rel (%p1887) target = $region88
    $region87: #{transformer_forward.22} parent=5 // pred_region
      %s1890 = ssub.s32 %s20, 2
      // Predicated region
      $region89: #{transformer_forward.22} parent=87 // pred_check
        %p1891 = pneg %p381
      $region90: #{transformer_forward.22} parent=87 // pred_check_branch
        %1893 = sbr.rel (%p1891) target = $region92
      $region91: #{transformer_forward.22} parent=87 // pred_region
        %s1894 = smul.u32 2, %s32
        %p1895 = scmp.lt.s32.totalorder %s31, 1
        %s1896 = scalar_select %p1895, %s31, 1
        %p1897 = scmp.lt.s32.totalorder %s1894, 1
        %s1898 = scalar_select %p1897, %s1894, 1
        %s1899 = smul.addr %s1896, 2
        %s1900 = sadd.s32 %s1898, %s1899
        %s1901 = smul.addr %s1900, 8
        %s1902 = scalar_lea.vmem %s14, %s1901
      $region92: #{transformer_forward.22} parent=87 // pred_fallthru
        _
    $region88: #{transformer_forward.22} parent=5 // pred_fallthru
      _
  $region6: #{transformer_forward.22} parent=0 // loop_footer
    %s24 = sadd.s32 1, %s20
  $region7: #{transformer_forward.22} parent=0 // loop_footer_branch
    %19 = sbr.rel target = $region3
  $region8: #{transformer_forward.22} parent=0 // loop_exit
    _

</llo_original>
